<compile_context>
chip_gen: v6e
topology: v6e:2x2x1
jax: 0.10.0
libtpu: 0.0.40
codegen_flags: <defaults>
</compile_context>

<pallas_src>
import functools

import jax
import jax.numpy as jnp
from jax.experimental import pallas as pl
from jax.experimental.pallas import tpu as pltpu


BLOCK_FIELDS = ("ln1_g", "ln1_b", "in_w", "in_b", "out_w", "out_b",
                "ln2_g", "ln2_b", "fc1_w", "fc1_b", "fc2_w", "fc2_b")


# ----------------------------- in-kernel helpers -----------------------------

def _ln(x, g, b):
    mu = jnp.mean(x, axis=-1, keepdims=True)
    xc = x - mu
    var = jnp.mean(xc * xc, axis=-1, keepdims=True)
    return xc * jax.lax.rsqrt(var + 1e-5) * g + b


def _attn_mask(n_seq, seq_len, n_heads, causal):
    """Additive block-diagonal (+causal) mask, stacked H times along sublanes.

    Built in-kernel from 2-D iotas; the per-sequence membership test is
    unrolled over the (static, small) number of sequences so no vector
    integer division is needed."""
    nl = n_seq * seq_len
    r = jax.lax.broadcasted_iota(jnp.int32, (nl, nl), 0)
    c = jax.lax.broadcasted_iota(jnp.int32, (nl, nl), 1)
    keep = None
    for n in range(n_seq):                               # static unroll
        lo, hi = n * seq_len, (n + 1) * seq_len
        in_blk = jnp.logical_and(jnp.logical_and(r >= lo, r < hi),
                                 jnp.logical_and(c >= lo, c < hi))
        keep = in_blk if keep is None else jnp.logical_or(keep, in_blk)
    if causal:
        # within a block, global c<=r is equivalent to per-sequence causality
        keep = jnp.logical_and(keep, c <= r)
    mask = jnp.where(keep, 0.0, -1e9).astype(jnp.float32)
    return jnp.concatenate([mask] * n_heads, axis=0)     # (H*NL, NL)


def _transformer_blocks(x, blk, n_seq, seq_len, n_layers, n_heads, causal):
    """Residual stream x: (N*L, D).  blk: dict of stacked (n_layers, ...) refs."""
    NL, D = x.shape
    Dh = D // n_heads
    mask_h = _attn_mask(n_seq, seq_len, n_heads, causal)  # hoisted out of loop
    for l in range(n_layers):                             # static unroll
        # ---------------- attention ----------------
        h_in = _ln(x, blk["ln1_g"][l:l + 1, :], blk["ln1_b"][l:l + 1, :])
        qkv = jnp.dot(h_in, blk["in_w"][l],
                      preferred_element_type=jnp.float32) + blk["in_b"][l:l + 1, :]
        # per-head q.k^T (1/sqrt(Dh) pre-folded into Q), stacked along sublanes
        s = jnp.concatenate(
            [jax.lax.dot_general(qkv[:, h * Dh:(h + 1) * Dh],
                                 qkv[:, D + h * Dh:D + (h + 1) * Dh],
                                 (((1,), (1,)), ((), ())),
                                 preferred_element_type=jnp.float32)
             for h in range(n_heads)], axis=0)            # (H*NL, NL)
        # ONE softmax chain per layer (mask-add, max, exp, sum, reciprocal)
        s = s + mask_h
        s = s - jnp.max(s, axis=-1, keepdims=True)
        p = jnp.exp(s)
        p = p * pl.reciprocal(jnp.sum(p, axis=-1, keepdims=True), approx=True)
        # per-head p.v, concat along lanes -> ONE (NL,D)x(D,D) out-projection
        ctx = jnp.concatenate(
            [jnp.dot(p[h * NL:(h + 1) * NL, :],
                     qkv[:, 2 * D + h * Dh:2 * D + (h + 1) * Dh],
                     preferred_element_type=jnp.float32)
             for h in range(n_heads)], axis=-1)            # (NL, D)
        x = x + jnp.dot(ctx, blk["out_w"][l],
                        preferred_element_type=jnp.float32) + blk["out_b"][l:l + 1, :]
        # ---------------- MLP (QuickGELU) ----------------
        h_in = _ln(x, blk["ln2_g"][l:l + 1, :], blk["ln2_b"][l:l + 1, :])
        h1 = jnp.dot(h_in, blk["fc1_w"][l],
                     preferred_element_type=jnp.float32) + blk["fc1_b"][l:l + 1, :]
        h1 = h1 * jax.nn.sigmoid(1.702 * h1)
        x = x + jnp.dot(h1, blk["fc2_w"][l],
                        preferred_element_type=jnp.float32) + blk["fc2_b"][l:l + 1, :]
    return x


# ------------------------------ fused kernel ---------------------------------

def _custom_clip_kernel(*refs, n_img, v_len, v_layers, v_heads,
                        n_cls, t_len, t_layers, t_heads, eot_rows):
    it = iter(refs)
    tok_ref = next(it); embed_w_ref = next(it); pos_v_ref = next(it)
    lnpre_g_ref = next(it); lnpre_b_ref = next(it)
    vblk = {f: next(it) for f in BLOCK_FIELDS}
    lnpost_g_ref = next(it); lnpost_b_ref = next(it); vproj_ref = next(it)
    prompts_ref = next(it); pos_t_ref = next(it)
    tblk = {f: next(it) for f in BLOCK_FIELDS}
    lnf_g_ref = next(it); lnf_b_ref = next(it); tproj_ref = next(it)
    ls_ref = next(it)
    o_ref = next(it)

    # ---------------- vision tower ----------------
    # patch + CLS embedding in one matmul (indicator column selects class_emb)
    x = jnp.dot(tok_ref[...], embed_w_ref[...],
                preferred_element_type=jnp.float32)
    x = x + jnp.concatenate([pos_v_ref[...]] * n_img, axis=0)   # pos, un-tiled input
    x = _ln(x, lnpre_g_ref[...], lnpre_b_ref[...])
    x = _transformer_blocks(x, vblk, n_img, v_len, v_layers, v_heads,
                            causal=False)
    # CLS rows sit at static offsets 0, L, 2L, ... -> static slices, no one-hot
    cls_tok = jnp.concatenate(
        [x[i * v_len:i * v_len + 1, :] for i in range(n_img)], axis=0)
    cls_tok = _ln(cls_tok, lnpost_g_ref[...], lnpost_b_ref[...])
    img = jnp.dot(cls_tok, vproj_ref[...], preferred_element_type=jnp.float32)

    # ---------------- text tower ----------------
    y = prompts_ref[...] + jnp.concatenate([pos_t_ref[...]] * n_cls, axis=0)
    y = _transformer_blocks(y, tblk, n_cls, t_len, t_layers, t_heads,
                            causal=True)
    y = _ln(y, lnf_g_ref[...], lnf_b_ref[...])
    # EOT rows are static (argmax of the constant tokenized_prompts buffer)
    eot_tok = jnp.concatenate([y[r:r + 1, :] for r in eot_rows], axis=0)
    txt = jnp.dot(eot_tok, tproj_ref[...], preferred_element_type=jnp.float32)

    # ---------------- normalize + logits ----------------
    img = img * jax.lax.rsqrt(
        jnp.maximum(jnp.sum(img * img, axis=-1, keepdims=True), 1e-12))
    txt = txt * jax.lax.rsqrt(
        jnp.maximum(jnp.sum(txt * txt, axis=-1, keepdims=True), 1e-12))
    o_ref[...] = ls_ref[0, 0] * jax.lax.dot_general(
        img, txt, (((1,), (1,)), ((), ())),
        preferred_element_type=jnp.float32)


# ------------------------------ JAX-side glue ---------------------------------

def image_to_tokens(image, patch):
    # NCHW patch extraction (stride==kernel conv ≡ matmul over flat patches).
    # An extra indicator column selects the class_embedding row of embed_w so
    # CLS-token insertion is part of the fused embedding matmul.
    N, C, H, W = image.shape
    g = H // patch
    patches = image.reshape(N, C, g, patch, g, patch)
    patches = patches.transpose(0, 2, 4, 1, 3, 5).reshape(
        N, g * g, C * patch * patch)
    patch_rows = jnp.concatenate(
        [patches, jnp.zeros((N, g * g, 1), jnp.float32)], axis=-1)
    cls_row = jnp.zeros((N, 1, C * patch * patch + 1), jnp.float32)
    cls_row = cls_row.at[:, :, -1].set(1.0)
    tokens = jnp.concatenate([cls_row, patch_rows], axis=1)      # (N, L, CPP+1)
    return tokens.reshape(N * (g * g + 1), C * patch * patch + 1)


def prompt_learner_forward(pp):
    # class_token_position == 'end', generic (2-D, non-CSC) context
    n_cls = pp["token_prefix"].shape[0]
    ctx = jnp.broadcast_to(pp["ctx"][None], (n_cls,) + pp["ctx"].shape)
    return jnp.concatenate([pp["token_prefix"], ctx, pp["token_suffix"]],
                           axis=1)                               # (n_cls, L, D)


def custom_clip_forward(params, image, cfg):
    vp, tp, pp = params["visual"], params["text"], params["prompt"]
    tokens = image_to_tokens(image, cfg["patch"])                # glue
    prompts = prompt_learner_forward(pp)                         # glue (concat)
    n_cls, t_len, td = prompts.shape
    g = cfg["image_size"] // cfg["patch"]
    v_len = g * g + 1
    n_img = image.shape[0]
    scale_exp = jnp.exp(params["logit_scale"]).reshape(1, 1)     # scalar, wrapper

    args = [tokens, vp["embed_w"], vp["pos_emb"], vp["ln_pre_g"], vp["ln_pre_b"]]
    args += [vp["blocks"][f] for f in BLOCK_FIELDS]
    args += [vp["ln_post_g"], vp["ln_post_b"], vp["proj"]]
    args += [prompts.reshape(n_cls * t_len, td), tp["pos_emb"]]
    args += [tp["blocks"][f] for f in BLOCK_FIELDS]
    args += [tp["ln_final_g"], tp["ln_final_b"], tp["text_projection"], scale_exp]

    kern = functools.partial(
        _custom_clip_kernel,
        n_img=n_img, v_len=v_len, v_layers=cfg["v_layers"], v_heads=cfg["v_heads"],
        n_cls=n_cls, t_len=t_len, t_layers=cfg["t_layers"], t_heads=cfg["t_heads"],
        eot_rows=cfg["eot_rows"])

    # all tensors pinned to VMEM; the exp(logit_scale) scalar lives in SMEM
    in_specs = ([pl.BlockSpec(memory_space=pltpu.MemorySpace.VMEM)] * (len(args) - 1)
                + [pl.BlockSpec(memory_space=pltpu.MemorySpace.SMEM)])

    return pl.pallas_call(
        kern,
        out_shape=jax.ShapeDtypeStruct((n_img, n_cls), jnp.float32),
        in_specs=in_specs,
        out_specs=pl.BlockSpec(memory_space=pltpu.MemorySpace.VMEM),
        compiler_params=pltpu.CompilerParams(
            vmem_limit_bytes=32 * 1024 * 1024),
    )(*args)


# ----------------------------- parameter init ---------------------------------

def init_block_stack(key, d, n_layers, n_heads):
    s = 0.02
    q_scale = (d // n_heads) ** -0.5
    layers = []
    for k in jax.random.split(key, n_layers):
        kk = jax.random.split(k, 4)
        in_w = (jax.random.normal(kk[0], (d, 3 * d)) * s).astype(jnp.float32)
        in_b = jnp.zeros((3 * d,), jnp.float32)
        # fold the 1/sqrt(Dh) attention scale into the Q columns (weights+bias)
        in_w = in_w.at[:, :d].multiply(q_scale)
        in_b = in_b.at[:d].multiply(q_scale)
        layers.append(dict(
            ln1_g=jnp.ones((d,), jnp.float32),
            ln1_b=jnp.zeros((d,), jnp.float32),
            in_w=in_w, in_b=in_b,
            out_w=(jax.random.normal(kk[1], (d, d)) * s).astype(jnp.float32),
            out_b=jnp.zeros((d,), jnp.float32),
            ln2_g=jnp.ones((d,), jnp.float32),
            ln2_b=jnp.zeros((d,), jnp.float32),
            fc1_w=(jax.random.normal(kk[2], (d, 4 * d)) * s).astype(jnp.float32),
            fc1_b=jnp.zeros((4 * d,), jnp.float32),
            fc2_w=(jax.random.normal(kk[3], (4 * d, d)) * s).astype(jnp.float32),
            fc2_b=jnp.zeros((d,), jnp.float32),
        ))
    # stacked shapes: (n_layers, d[,k]) — no (…,1,d) sublane-padding waste
    return {f: jnp.stack([lyr[f] for lyr in layers], axis=0)
            for f in BLOCK_FIELDS}


def init_params(key, cfg):
    keys = jax.random.split(key, 10)
    s = 0.02
    vw, tw, ed = cfg["v_width"], cfg["t_width"], cfg["embed_dim"]
    p = cfg["patch"]
    g = cfg["image_size"] // p
    n_tok = g * g + 1

    conv_w = (jax.random.normal(keys[0], (3 * p * p, vw)) * s).astype(jnp.float32)
    class_emb = (jax.random.normal(keys[1], (1, vw)) * s).astype(jnp.float32)
    visual = dict(
        embed_w=jnp.concatenate([conv_w, class_emb], axis=0),    # (3*p*p+1, vw)
        pos_emb=(jax.random.normal(keys[2], (n_tok, vw)) * s).astype(jnp.float32),
        ln_pre_g=jnp.ones((1, vw), jnp.float32),
        ln_pre_b=jnp.zeros((1, vw), jnp.float32),
        ln_post_g=jnp.ones((1, vw), jnp.float32),
        ln_post_b=jnp.zeros((1, vw), jnp.float32),
        proj=(jax.random.normal(keys[3], (vw, ed)) * s).astype(jnp.float32),
        blocks=init_block_stack(keys[4], vw, cfg["v_layers"], cfg["v_heads"]),
    )

    text = dict(
        pos_emb=(jax.random.normal(keys[5], (cfg["ctx_len"], tw)) * s).astype(jnp.float32),
        ln_final_g=jnp.ones((1, tw), jnp.float32),
        ln_final_b=jnp.zeros((1, tw), jnp.float32),
        text_projection=(jax.random.normal(keys[6], (tw, ed)) * s).astype(jnp.float32),
        blocks=init_block_stack(keys[7], tw, cfg["t_layers"], cfg["t_heads"]),
    )

    # PromptLearner: synthetic tokenization "SOS X X X X <class> . <EOT>".
    # EOT id = vocab-1 so argmax(dim=-1) finds its position (as in real CLIP).
    # TODO(synk): real BPE tokenizer (_Tokenizer / clip.tokenize) has no Pallas
    # equivalent; token ids are synthesized deterministically instead.
    n_cls, n_ctx = cfg["n_cls"], cfg["n_ctx"]
    vocab = cfg["vocab"]
    tokenized = jnp.array(
        [[1] + [2] * n_ctx + [10 + i, 5, vocab - 1] for i in range(n_cls)],
        dtype=jnp.int32)                                         # (n_cls, L)
    tok_emb = (jax.random.normal(keys[8], (vocab, tw)) * s).astype(jnp.float32)
    embedding = tok_emb[tokenized]                               # (n_cls, L, D)
    prompt = dict(
        ctx=(jax.random.normal(keys[9], (n_ctx, tw)) * s).astype(jnp.float32),
        token_prefix=embedding[:, :1, :],                        # SOS
        token_suffix=embedding[:, 1 + n_ctx:, :],                # class, '.', EOT
        tokenized=tokenized,
    )

    return dict(visual=visual, text=text, prompt=prompt,
                logit_scale=jnp.asarray(jnp.log(1.0 / 0.07), jnp.float32))


# ----------------------------------- main --------------------------------------

if __name__ == "__main__":
    cfg = dict(image_size=16, patch=8, v_width=32, v_layers=2, v_heads=4,
               t_width=32, t_layers=2, t_heads=4, ctx_len=8, vocab=64,
               embed_dim=32, n_cls=3, n_ctx=4)

    key = jax.random.PRNGKey(0)
    k_img, k_param = jax.random.split(key)
    image = jax.random.normal(k_img, (2, 3, 16, 16), jnp.float32)  # NCHW
    params = init_params(k_param, cfg)

    # EOT row indices in the flattened (n_cls*L, D) text stream.  They come
    # from the constant tokenized_prompts buffer (argmax over token ids),
    # exactly as in the reference, so they are compile-time static.
    eot_idx = jnp.argmax(params["prompt"]["tokenized"], axis=-1)
    cfg["eot_rows"] = tuple(int(i) * cfg["ctx_len"] + int(e)
                            for i, e in enumerate(eot_idx.tolist()))

    fwd = jax.jit(functools.partial(custom_clip_forward, cfg=cfg))
    logits = jax.block_until_ready(fwd(params, image))             # (2, n_cls)
    assert logits.shape == (2, cfg["n_cls"])
    assert bool(jnp.all(jnp.isfinite(logits)))
    print("KERNEL_OK")
</pallas_src>

<mosaic_0001>
module attributes {stable_mosaic.version = 11 : i64} {
  func.func @_custom_clip_kernel(%arg0: memref<10x193xf32, #tpu.memory_space<vmem>>, %arg1: memref<193x32xf32, #tpu.memory_space<vmem>>, %arg2: memref<5x32xf32, #tpu.memory_space<vmem>>, %arg3: memref<1x32xf32, #tpu.memory_space<vmem>>, %arg4: memref<1x32xf32, #tpu.memory_space<vmem>>, %arg5: memref<2x32xf32, #tpu.memory_space<vmem>>, %arg6: memref<2x32xf32, #tpu.memory_space<vmem>>, %arg7: memref<2x32x96xf32, #tpu.memory_space<vmem>>, %arg8: memref<2x96xf32, #tpu.memory_space<vmem>>, %arg9: memref<2x32x32xf32, #tpu.memory_space<vmem>>, %arg10: memref<2x32xf32, #tpu.memory_space<vmem>>, %arg11: memref<2x32xf32, #tpu.memory_space<vmem>>, %arg12: memref<2x32xf32, #tpu.memory_space<vmem>>, %arg13: memref<2x32x128xf32, #tpu.memory_space<vmem>>, %arg14: memref<2x128xf32, #tpu.memory_space<vmem>>, %arg15: memref<2x128x32xf32, #tpu.memory_space<vmem>>, %arg16: memref<2x32xf32, #tpu.memory_space<vmem>>, %arg17: memref<1x32xf32, #tpu.memory_space<vmem>>, %arg18: memref<1x32xf32, #tpu.memory_space<vmem>>, %arg19: memref<32x32xf32, #tpu.memory_space<vmem>>, %arg20: memref<24x32xf32, #tpu.memory_space<vmem>>, %arg21: memref<8x32xf32, #tpu.memory_space<vmem>>, %arg22: memref<2x32xf32, #tpu.memory_space<vmem>>, %arg23: memref<2x32xf32, #tpu.memory_space<vmem>>, %arg24: memref<2x32x96xf32, #tpu.memory_space<vmem>>, %arg25: memref<2x96xf32, #tpu.memory_space<vmem>>, %arg26: memref<2x32x32xf32, #tpu.memory_space<vmem>>, %arg27: memref<2x32xf32, #tpu.memory_space<vmem>>, %arg28: memref<2x32xf32, #tpu.memory_space<vmem>>, %arg29: memref<2x32xf32, #tpu.memory_space<vmem>>, %arg30: memref<2x32x128xf32, #tpu.memory_space<vmem>>, %arg31: memref<2x128xf32, #tpu.memory_space<vmem>>, %arg32: memref<2x128x32xf32, #tpu.memory_space<vmem>>, %arg33: memref<2x32xf32, #tpu.memory_space<vmem>>, %arg34: memref<1x32xf32, #tpu.memory_space<vmem>>, %arg35: memref<1x32xf32, #tpu.memory_space<vmem>>, %arg36: memref<32x32xf32, #tpu.memory_space<vmem>>, %arg37: memref<1x1xf32, #tpu.memory_space<smem>>, %arg38: memref<2x3xf32, #tpu.memory_space<vmem>>) attributes {dimension_semantics = [], scalar_prefetch = 0 : i64, scratch_operands = 0 : i64, tpu.core_type = #tpu.core_type<tc>} {
    %c0 = arith.constant 0 : index
    %c0_0 = arith.constant 0 : index
    %0 = vector.load %arg0[%c0, %c0_0] : memref<10x193xf32, #tpu.memory_space<vmem>>, vector<10x193xf32>
    %c0_1 = arith.constant 0 : index
    %c0_2 = arith.constant 0 : index
    %1 = vector.load %arg1[%c0_1, %c0_2] : memref<193x32xf32, #tpu.memory_space<vmem>>, vector<193x32xf32>
    %cst = arith.constant dense<0.000000e+00> : vector<10x32xf32>
    %2 = tpu.matmul %0, %1, %cst {dimension_numbers = #tpu.dot_dimension_numbers<[1], [0], [0], [1], [0, 0, 1, 1], [], []>} : vector<10x193xf32>, vector<193x32xf32>, vector<10x32xf32> -> vector<10x32xf32>
    %c0_3 = arith.constant 0 : index
    %c0_4 = arith.constant 0 : index
    %3 = vector.load %arg2[%c0_3, %c0_4] : memref<5x32xf32, #tpu.memory_space<vmem>>, vector<5x32xf32>
    %4 = tpu.concatenate %3, %3 in 0 : vector<5x32xf32>, vector<5x32xf32> -> vector<10x32xf32>
    %5 = arith.addf %2, %4 : vector<10x32xf32>
    %c0_5 = arith.constant 0 : index
    %c0_6 = arith.constant 0 : index
    %6 = vector.load %arg3[%c0_5, %c0_6] : memref<1x32xf32, #tpu.memory_space<vmem>>, vector<1x32xf32>
    %c0_7 = arith.constant 0 : index
    %c0_8 = arith.constant 0 : index
    %7 = vector.load %arg4[%c0_7, %c0_8] : memref<1x32xf32, #tpu.memory_space<vmem>>, vector<1x32xf32>
    %cst_9 = arith.constant dense<0.000000e+00> : vector<10xf32>
    %8 = vector.multi_reduction <add>, %5, %cst_9 [1] : vector<10x32xf32> to vector<10xf32>
    %9 = vector.shape_cast %8 : vector<10xf32> to vector<10x1xf32>
    %cst_10 = arith.constant 3.200000e+01 : f32
    %10 = vector.broadcast %cst_10 : f32 to vector<10x1xf32>
    %11 = arith.divf %9, %10 : vector<10x1xf32>
    %12 = vector.broadcast %11 : vector<10x1xf32> to vector<10x32xf32>
    %13 = arith.subf %5, %12 : vector<10x32xf32>
    %14 = arith.mulf %13, %13 : vector<10x32xf32>
    %cst_11 = arith.constant dense<0.000000e+00> : vector<10xf32>
    %15 = vector.multi_reduction <add>, %14, %cst_11 [1] : vector<10x32xf32> to vector<10xf32>
    %16 = vector.shape_cast %15 : vector<10xf32> to vector<10x1xf32>
    %cst_12 = arith.constant 3.200000e+01 : f32
    %17 = vector.broadcast %cst_12 : f32 to vector<10x1xf32>
    %18 = arith.divf %16, %17 : vector<10x1xf32>
    %cst_13 = arith.constant 9.99999974E-6 : f32
    %19 = vector.broadcast %cst_13 : f32 to vector<10x1xf32>
    %20 = arith.addf %18, %19 : vector<10x1xf32>
    %21 = math.rsqrt %20 : vector<10x1xf32>
    %22 = vector.broadcast %21 : vector<10x1xf32> to vector<10x32xf32>
    %23 = arith.mulf %13, %22 : vector<10x32xf32>
    %24 = vector.broadcast %6 : vector<1x32xf32> to vector<10x32xf32>
    %25 = arith.mulf %23, %24 : vector<10x32xf32>
    %26 = vector.broadcast %7 : vector<1x32xf32> to vector<10x32xf32>
    %27 = arith.addf %25, %26 : vector<10x32xf32>
    %28 = tpu.iota {dimensions = array<i32: 0>} : vector<10x10xi32>
    %29 = tpu.iota {dimensions = array<i32: 1>} : vector<10x10xi32>
    %c0_i32 = arith.constant 0 : i32
    %30 = vector.broadcast %c0_i32 : i32 to vector<10x10xi32>
    %31 = arith.cmpi sge, %28, %30 : vector<10x10xi32>
    %c5_i32 = arith.constant 5 : i32
    %32 = vector.broadcast %c5_i32 : i32 to vector<10x10xi32>
    %33 = arith.cmpi slt, %28, %32 : vector<10x10xi32>
    %34 = arith.andi %31, %33 : vector<10x10xi1>
    %c0_i32_14 = arith.constant 0 : i32
    %35 = vector.broadcast %c0_i32_14 : i32 to vector<10x10xi32>
    %36 = arith.cmpi sge, %29, %35 : vector<10x10xi32>
    %c5_i32_15 = arith.constant 5 : i32
    %37 = vector.broadcast %c5_i32_15 : i32 to vector<10x10xi32>
    %38 = arith.cmpi slt, %29, %37 : vector<10x10xi32>
    %39 = arith.andi %36, %38 : vector<10x10xi1>
    %40 = arith.andi %34, %39 : vector<10x10xi1>
    %c5_i32_16 = arith.constant 5 : i32
    %41 = vector.broadcast %c5_i32_16 : i32 to vector<10x10xi32>
    %42 = arith.cmpi sge, %28, %41 : vector<10x10xi32>
    %c10_i32 = arith.constant 10 : i32
    %43 = vector.broadcast %c10_i32 : i32 to vector<10x10xi32>
    %44 = arith.cmpi slt, %28, %43 : vector<10x10xi32>
    %45 = arith.andi %42, %44 : vector<10x10xi1>
    %c5_i32_17 = arith.constant 5 : i32
    %46 = vector.broadcast %c5_i32_17 : i32 to vector<10x10xi32>
    %47 = arith.cmpi sge, %29, %46 : vector<10x10xi32>
    %c10_i32_18 = arith.constant 10 : i32
    %48 = vector.broadcast %c10_i32_18 : i32 to vector<10x10xi32>
    %49 = arith.cmpi slt, %29, %48 : vector<10x10xi32>
    %50 = arith.andi %47, %49 : vector<10x10xi1>
    %51 = arith.andi %45, %50 : vector<10x10xi1>
    %52 = arith.ori %40, %51 : vector<10x10xi1>
    %cst_19 = arith.constant 0.000000e+00 : f32
    %cst_20 = arith.constant -1.000000e+09 : f32
    %53 = vector.broadcast %cst_19 : f32 to vector<10x10xf32>
    %54 = vector.broadcast %cst_20 : f32 to vector<10x10xf32>
    %55 = arith.select %52, %53, %54 : vector<10x10xi1>, vector<10x10xf32>
    %56 = tpu.concatenate %55, %55, %55, %55 in 0 : vector<10x10xf32>, vector<10x10xf32>, vector<10x10xf32>, vector<10x10xf32> -> vector<40x10xf32>
    %c0_21 = arith.constant 0 : index
    %c0_22 = arith.constant 0 : index
    %57 = vector.load %arg5[%c0_21, %c0_22] : memref<2x32xf32, #tpu.memory_space<vmem>>, vector<1x32xf32>
    %c0_23 = arith.constant 0 : index
    %c0_24 = arith.constant 0 : index
    %58 = vector.load %arg6[%c0_23, %c0_24] : memref<2x32xf32, #tpu.memory_space<vmem>>, vector<1x32xf32>
    %cst_25 = arith.constant dense<0.000000e+00> : vector<10xf32>
    %59 = vector.multi_reduction <add>, %27, %cst_25 [1] : vector<10x32xf32> to vector<10xf32>
    %60 = vector.shape_cast %59 : vector<10xf32> to vector<10x1xf32>
    %cst_26 = arith.constant 3.200000e+01 : f32
    %61 = vector.broadcast %cst_26 : f32 to vector<10x1xf32>
    %62 = arith.divf %60, %61 : vector<10x1xf32>
    %63 = vector.broadcast %62 : vector<10x1xf32> to vector<10x32xf32>
    %64 = arith.subf %27, %63 : vector<10x32xf32>
    %65 = arith.mulf %64, %64 : vector<10x32xf32>
    %cst_27 = arith.constant dense<0.000000e+00> : vector<10xf32>
    %66 = vector.multi_reduction <add>, %65, %cst_27 [1] : vector<10x32xf32> to vector<10xf32>
    %67 = vector.shape_cast %66 : vector<10xf32> to vector<10x1xf32>
    %cst_28 = arith.constant 3.200000e+01 : f32
    %68 = vector.broadcast %cst_28 : f32 to vector<10x1xf32>
    %69 = arith.divf %67, %68 : vector<10x1xf32>
    %cst_29 = arith.constant 9.99999974E-6 : f32
    %70 = vector.broadcast %cst_29 : f32 to vector<10x1xf32>
    %71 = arith.addf %69, %70 : vector<10x1xf32>
    %72 = math.rsqrt %71 : vector<10x1xf32>
    %73 = vector.broadcast %72 : vector<10x1xf32> to vector<10x32xf32>
    %74 = arith.mulf %64, %73 : vector<10x32xf32>
    %75 = vector.broadcast %57 : vector<1x32xf32> to vector<10x32xf32>
    %76 = arith.mulf %74, %75 : vector<10x32xf32>
    %77 = vector.broadcast %58 : vector<1x32xf32> to vector<10x32xf32>
    %78 = arith.addf %76, %77 : vector<10x32xf32>
    %c0_30 = arith.constant 0 : index
    %c0_31 = arith.constant 0 : index
    %c0_32 = arith.constant 0 : index
    %79 = vector.load %arg7[%c0_30, %c0_31, %c0_32] : memref<2x32x96xf32, #tpu.memory_space<vmem>>, vector<1x32x96xf32>
    %80 = vector.shape_cast %79 : vector<1x32x96xf32> to vector<32x96xf32>
    %cst_33 = arith.constant dense<0.000000e+00> : vector<10x96xf32>
    %81 = tpu.matmul %78, %80, %cst_33 {dimension_numbers = #tpu.dot_dimension_numbers<[1], [0], [0], [1], [0, 0, 1, 1], [], []>} : vector<10x32xf32>, vector<32x96xf32>, vector<10x96xf32> -> vector<10x96xf32>
    %c0_34 = arith.constant 0 : index
    %c0_35 = arith.constant 0 : index
    %82 = vector.load %arg8[%c0_34, %c0_35] : memref<2x96xf32, #tpu.memory_space<vmem>>, vector<1x96xf32>
    %83 = vector.broadcast %82 : vector<1x96xf32> to vector<10x96xf32>
    %84 = arith.addf %81, %83 : vector<10x96xf32>
    %85 = vector.extract_strided_slice %84 {offsets = [0, 0], sizes = [10, 8], strides = [1, 1]} : vector<10x96xf32> to vector<10x8xf32>
    %86 = vector.extract_strided_slice %84 {offsets = [0, 32], sizes = [10, 8], strides = [1, 1]} : vector<10x96xf32> to vector<10x8xf32>
    %cst_36 = arith.constant dense<0.000000e+00> : vector<10x10xf32>
    %87 = tpu.matmul %85, %86, %cst_36 {dimension_numbers = #tpu.dot_dimension_numbers<[1], [1], [0], [0], [0, 0, 1, 0], [], []>} : vector<10x8xf32>, vector<10x8xf32>, vector<10x10xf32> -> vector<10x10xf32>
    %88 = vector.extract_strided_slice %84 {offsets = [0, 8], sizes = [10, 8], strides = [1, 1]} : vector<10x96xf32> to vector<10x8xf32>
    %89 = vector.extract_strided_slice %84 {offsets = [0, 40], sizes = [10, 8], strides = [1, 1]} : vector<10x96xf32> to vector<10x8xf32>
    %cst_37 = arith.constant dense<0.000000e+00> : vector<10x10xf32>
    %90 = tpu.matmul %88, %89, %cst_37 {dimension_numbers = #tpu.dot_dimension_numbers<[1], [1], [0], [0], [0, 0, 1, 0], [], []>} : vector<10x8xf32>, vector<10x8xf32>, vector<10x10xf32> -> vector<10x10xf32>
    %91 = vector.extract_strided_slice %84 {offsets = [0, 16], sizes = [10, 8], strides = [1, 1]} : vector<10x96xf32> to vector<10x8xf32>
    %92 = vector.extract_strided_slice %84 {offsets = [0, 48], sizes = [10, 8], strides = [1, 1]} : vector<10x96xf32> to vector<10x8xf32>
    %cst_38 = arith.constant dense<0.000000e+00> : vector<10x10xf32>
    %93 = tpu.matmul %91, %92, %cst_38 {dimension_numbers = #tpu.dot_dimension_numbers<[1], [1], [0], [0], [0, 0, 1, 0], [], []>} : vector<10x8xf32>, vector<10x8xf32>, vector<10x10xf32> -> vector<10x10xf32>
    %94 = vector.extract_strided_slice %84 {offsets = [0, 24], sizes = [10, 8], strides = [1, 1]} : vector<10x96xf32> to vector<10x8xf32>
    %95 = vector.extract_strided_slice %84 {offsets = [0, 56], sizes = [10, 8], strides = [1, 1]} : vector<10x96xf32> to vector<10x8xf32>
    %cst_39 = arith.constant dense<0.000000e+00> : vector<10x10xf32>
    %96 = tpu.matmul %94, %95, %cst_39 {dimension_numbers = #tpu.dot_dimension_numbers<[1], [1], [0], [0], [0, 0, 1, 0], [], []>} : vector<10x8xf32>, vector<10x8xf32>, vector<10x10xf32> -> vector<10x10xf32>
    %97 = tpu.concatenate %87, %90, %93, %96 in 0 : vector<10x10xf32>, vector<10x10xf32>, vector<10x10xf32>, vector<10x10xf32> -> vector<40x10xf32>
    %98 = arith.addf %97, %56 : vector<40x10xf32>
    %cst_40 = arith.constant dense<0xFF800000> : vector<40xf32>
    %99 = vector.multi_reduction <maximumf>, %98, %cst_40 [1] : vector<40x10xf32> to vector<40xf32>
    %100 = vector.shape_cast %99 : vector<40xf32> to vector<40x1xf32>
    %101 = vector.broadcast %100 : vector<40x1xf32> to vector<40x10xf32>
    %102 = arith.subf %98, %101 : vector<40x10xf32>
    %103 = math.exp %102 : vector<40x10xf32>
    %cst_41 = arith.constant dense<0.000000e+00> : vector<40xf32>
    %104 = vector.multi_reduction <add>, %103, %cst_41 [1] : vector<40x10xf32> to vector<40xf32>
    %105 = vector.shape_cast %104 : vector<40xf32> to vector<40x1xf32>
    %106 = tpu.reciprocal %105 {approx = true} : vector<40x1xf32> -> vector<40x1xf32>
    %107 = vector.broadcast %106 : vector<40x1xf32> to vector<40x10xf32>
    %108 = arith.mulf %103, %107 : vector<40x10xf32>
    %109 = vector.extract_strided_slice %108 {offsets = [0, 0], sizes = [10, 10], strides = [1, 1]} : vector<40x10xf32> to vector<10x10xf32>
    %110 = vector.extract_strided_slice %84 {offsets = [0, 64], sizes = [10, 8], strides = [1, 1]} : vector<10x96xf32> to vector<10x8xf32>
    %cst_42 = arith.constant dense<0.000000e+00> : vector<10x8xf32>
    %111 = tpu.matmul %109, %110, %cst_42 {dimension_numbers = #tpu.dot_dimension_numbers<[1], [0], [0], [1], [0, 0, 1, 1], [], []>} : vector<10x10xf32>, vector<10x8xf32>, vector<10x8xf32> -> vector<10x8xf32>
    %112 = vector.extract_strided_slice %108 {offsets = [10, 0], sizes = [10, 10], strides = [1, 1]} : vector<40x10xf32> to vector<10x10xf32>
    %113 = vector.extract_strided_slice %84 {offsets = [0, 72], sizes = [10, 8], strides = [1, 1]} : vector<10x96xf32> to vector<10x8xf32>
    %cst_43 = arith.constant dense<0.000000e+00> : vector<10x8xf32>
    %114 = tpu.matmul %112, %113, %cst_43 {dimension_numbers = #tpu.dot_dimension_numbers<[1], [0], [0], [1], [0, 0, 1, 1], [], []>} : vector<10x10xf32>, vector<10x8xf32>, vector<10x8xf32> -> vector<10x8xf32>
    %115 = vector.extract_strided_slice %108 {offsets = [20, 0], sizes = [10, 10], strides = [1, 1]} : vector<40x10xf32> to vector<10x10xf32>
    %116 = vector.extract_strided_slice %84 {offsets = [0, 80], sizes = [10, 8], strides = [1, 1]} : vector<10x96xf32> to vector<10x8xf32>
    %cst_44 = arith.constant dense<0.000000e+00> : vector<10x8xf32>
    %117 = tpu.matmul %115, %116, %cst_44 {dimension_numbers = #tpu.dot_dimension_numbers<[1], [0], [0], [1], [0, 0, 1, 1], [], []>} : vector<10x10xf32>, vector<10x8xf32>, vector<10x8xf32> -> vector<10x8xf32>
    %118 = vector.extract_strided_slice %108 {offsets = [30, 0], sizes = [10, 10], strides = [1, 1]} : vector<40x10xf32> to vector<10x10xf32>
    %119 = vector.extract_strided_slice %84 {offsets = [0, 88], sizes = [10, 8], strides = [1, 1]} : vector<10x96xf32> to vector<10x8xf32>
    %cst_45 = arith.constant dense<0.000000e+00> : vector<10x8xf32>
    %120 = tpu.matmul %118, %119, %cst_45 {dimension_numbers = #tpu.dot_dimension_numbers<[1], [0], [0], [1], [0, 0, 1, 1], [], []>} : vector<10x10xf32>, vector<10x8xf32>, vector<10x8xf32> -> vector<10x8xf32>
    %121 = tpu.concatenate %111, %114, %117, %120 in 1 : vector<10x8xf32>, vector<10x8xf32>, vector<10x8xf32>, vector<10x8xf32> -> vector<10x32xf32>
    %c0_46 = arith.constant 0 : index
    %c0_47 = arith.constant 0 : index
    %c0_48 = arith.constant 0 : index
    %122 = vector.load %arg9[%c0_46, %c0_47, %c0_48] : memref<2x32x32xf32, #tpu.memory_space<vmem>>, vector<1x32x32xf32>
    %123 = vector.shape_cast %122 : vector<1x32x32xf32> to vector<32x32xf32>
    %cst_49 = arith.constant dense<0.000000e+00> : vector<10x32xf32>
    %124 = tpu.matmul %121, %123, %cst_49 {dimension_numbers = #tpu.dot_dimension_numbers<[1], [0], [0], [1], [0, 0, 1, 1], [], []>} : vector<10x32xf32>, vector<32x32xf32>, vector<10x32xf32> -> vector<10x32xf32>
    %125 = arith.addf %27, %124 : vector<10x32xf32>
    %c0_50 = arith.constant 0 : index
    %c0_51 = arith.constant 0 : index
    %126 = vector.load %arg10[%c0_50, %c0_51] : memref<2x32xf32, #tpu.memory_space<vmem>>, vector<1x32xf32>
    %127 = vector.broadcast %126 : vector<1x32xf32> to vector<10x32xf32>
    %128 = arith.addf %125, %127 : vector<10x32xf32>
    %c0_52 = arith.constant 0 : index
    %c0_53 = arith.constant 0 : index
    %129 = vector.load %arg11[%c0_52, %c0_53] : memref<2x32xf32, #tpu.memory_space<vmem>>, vector<1x32xf32>
    %c0_54 = arith.constant 0 : index
    %c0_55 = arith.constant 0 : index
    %130 = vector.load %arg12[%c0_54, %c0_55] : memref<2x32xf32, #tpu.memory_space<vmem>>, vector<1x32xf32>
    %cst_56 = arith.constant dense<0.000000e+00> : vector<10xf32>
    %131 = vector.multi_reduction <add>, %128, %cst_56 [1] : vector<10x32xf32> to vector<10xf32>
    %132 = vector.shape_cast %131 : vector<10xf32> to vector<10x1xf32>
    %cst_57 = arith.constant 3.200000e+01 : f32
    %133 = vector.broadcast %cst_57 : f32 to vector<10x1xf32>
    %134 = arith.divf %132, %133 : vector<10x1xf32>
    %135 = vector.broadcast %134 : vector<10x1xf32> to vector<10x32xf32>
    %136 = arith.subf %128, %135 : vector<10x32xf32>
    %137 = arith.mulf %136, %136 : vector<10x32xf32>
    %cst_58 = arith.constant dense<0.000000e+00> : vector<10xf32>
    %138 = vector.multi_reduction <add>, %137, %cst_58 [1] : vector<10x32xf32> to vector<10xf32>
    %139 = vector.shape_cast %138 : vector<10xf32> to vector<10x1xf32>
    %cst_59 = arith.constant 3.200000e+01 : f32
    %140 = vector.broadcast %cst_59 : f32 to vector<10x1xf32>
    %141 = arith.divf %139, %140 : vector<10x1xf32>
    %cst_60 = arith.constant 9.99999974E-6 : f32
    %142 = vector.broadcast %cst_60 : f32 to vector<10x1xf32>
    %143 = arith.addf %141, %142 : vector<10x1xf32>
    %144 = math.rsqrt %143 : vector<10x1xf32>
    %145 = vector.broadcast %144 : vector<10x1xf32> to vector<10x32xf32>
    %146 = arith.mulf %136, %145 : vector<10x32xf32>
    %147 = vector.broadcast %129 : vector<1x32xf32> to vector<10x32xf32>
    %148 = arith.mulf %146, %147 : vector<10x32xf32>
    %149 = vector.broadcast %130 : vector<1x32xf32> to vector<10x32xf32>
    %150 = arith.addf %148, %149 : vector<10x32xf32>
    %c0_61 = arith.constant 0 : index
    %c0_62 = arith.constant 0 : index
    %c0_63 = arith.constant 0 : index
    %151 = vector.load %arg13[%c0_61, %c0_62, %c0_63] : memref<2x32x128xf32, #tpu.memory_space<vmem>>, vector<1x32x128xf32>
    %152 = vector.shape_cast %151 : vector<1x32x128xf32> to vector<32x128xf32>
    %cst_64 = arith.constant dense<0.000000e+00> : vector<10x128xf32>
    %153 = tpu.matmul %150, %152, %cst_64 {dimension_numbers = #tpu.dot_dimension_numbers<[1], [0], [0], [1], [0, 0, 1, 1], [], []>} : vector<10x32xf32>, vector<32x128xf32>, vector<10x128xf32> -> vector<10x128xf32>
    %c0_65 = arith.constant 0 : index
    %c0_66 = arith.constant 0 : index
    %154 = vector.load %arg14[%c0_65, %c0_66] : memref<2x128xf32, #tpu.memory_space<vmem>>, vector<1x128xf32>
    %155 = vector.broadcast %154 : vector<1x128xf32> to vector<10x128xf32>
    %156 = arith.addf %153, %155 : vector<10x128xf32>
    %cst_67 = arith.constant 1.702000e+00 : f32
    %157 = vector.broadcast %cst_67 : f32 to vector<10x128xf32>
    %158 = arith.mulf %157, %156 : vector<10x128xf32>
    %159 = arith.negf %158 : vector<10x128xf32>
    %160 = math.exp %159 : vector<10x128xf32>
    %cst_68 = arith.constant 1.000000e+00 : f32
    %161 = vector.broadcast %cst_68 : f32 to vector<10x128xf32>
    %162 = arith.addf %161, %160 : vector<10x128xf32>
    %163 = arith.divf %161, %162 : vector<10x128xf32>
    %164 = arith.mulf %156, %163 : vector<10x128xf32>
    %c0_69 = arith.constant 0 : index
    %c0_70 = arith.constant 0 : index
    %c0_71 = arith.constant 0 : index
    %165 = vector.load %arg15[%c0_69, %c0_70, %c0_71] : memref<2x128x32xf32, #tpu.memory_space<vmem>>, vector<1x128x32xf32>
    %166 = vector.shape_cast %165 : vector<1x128x32xf32> to vector<128x32xf32>
    %cst_72 = arith.constant dense<0.000000e+00> : vector<10x32xf32>
    %167 = tpu.matmul %164, %166, %cst_72 {dimension_numbers = #tpu.dot_dimension_numbers<[1], [0], [0], [1], [0, 0, 1, 1], [], []>} : vector<10x128xf32>, vector<128x32xf32>, vector<10x32xf32> -> vector<10x32xf32>
    %168 = arith.addf %128, %167 : vector<10x32xf32>
    %c0_73 = arith.constant 0 : index
    %c0_74 = arith.constant 0 : index
    %169 = vector.load %arg16[%c0_73, %c0_74] : memref<2x32xf32, #tpu.memory_space<vmem>>, vector<1x32xf32>
    %170 = vector.broadcast %169 : vector<1x32xf32> to vector<10x32xf32>
    %171 = arith.addf %168, %170 : vector<10x32xf32>
    %c1 = arith.constant 1 : index
    %c0_75 = arith.constant 0 : index
    %172 = vector.load %arg5[%c1, %c0_75] : memref<2x32xf32, #tpu.memory_space<vmem>>, vector<1x32xf32>
    %c1_76 = arith.constant 1 : index
    %c0_77 = arith.constant 0 : index
    %173 = vector.load %arg6[%c1_76, %c0_77] : memref<2x32xf32, #tpu.memory_space<vmem>>, vector<1x32xf32>
    %cst_78 = arith.constant dense<0.000000e+00> : vector<10xf32>
    %174 = vector.multi_reduction <add>, %171, %cst_78 [1] : vector<10x32xf32> to vector<10xf32>
    %175 = vector.shape_cast %174 : vector<10xf32> to vector<10x1xf32>
    %cst_79 = arith.constant 3.200000e+01 : f32
    %176 = vector.broadcast %cst_79 : f32 to vector<10x1xf32>
    %177 = arith.divf %175, %176 : vector<10x1xf32>
    %178 = vector.broadcast %177 : vector<10x1xf32> to vector<10x32xf32>
    %179 = arith.subf %171, %178 : vector<10x32xf32>
    %180 = arith.mulf %179, %179 : vector<10x32xf32>
    %cst_80 = arith.constant dense<0.000000e+00> : vector<10xf32>
    %181 = vector.multi_reduction <add>, %180, %cst_80 [1] : vector<10x32xf32> to vector<10xf32>
    %182 = vector.shape_cast %181 : vector<10xf32> to vector<10x1xf32>
    %cst_81 = arith.constant 3.200000e+01 : f32
    %183 = vector.broadcast %cst_81 : f32 to vector<10x1xf32>
    %184 = arith.divf %182, %183 : vector<10x1xf32>
    %cst_82 = arith.constant 9.99999974E-6 : f32
    %185 = vector.broadcast %cst_82 : f32 to vector<10x1xf32>
    %186 = arith.addf %184, %185 : vector<10x1xf32>
    %187 = math.rsqrt %186 : vector<10x1xf32>
    %188 = vector.broadcast %187 : vector<10x1xf32> to vector<10x32xf32>
    %189 = arith.mulf %179, %188 : vector<10x32xf32>
    %190 = vector.broadcast %172 : vector<1x32xf32> to vector<10x32xf32>
    %191 = arith.mulf %189, %190 : vector<10x32xf32>
    %192 = vector.broadcast %173 : vector<1x32xf32> to vector<10x32xf32>
    %193 = arith.addf %191, %192 : vector<10x32xf32>
    %c1_83 = arith.constant 1 : index
    %c0_84 = arith.constant 0 : index
    %c0_85 = arith.constant 0 : index
    %194 = vector.load %arg7[%c1_83, %c0_84, %c0_85] : memref<2x32x96xf32, #tpu.memory_space<vmem>>, vector<1x32x96xf32>
    %195 = vector.shape_cast %194 : vector<1x32x96xf32> to vector<32x96xf32>
    %cst_86 = arith.constant dense<0.000000e+00> : vector<10x96xf32>
    %196 = tpu.matmul %193, %195, %cst_86 {dimension_numbers = #tpu.dot_dimension_numbers<[1], [0], [0], [1], [0, 0, 1, 1], [], []>} : vector<10x32xf32>, vector<32x96xf32>, vector<10x96xf32> -> vector<10x96xf32>
    %c1_87 = arith.constant 1 : index
    %c0_88 = arith.constant 0 : index
    %197 = vector.load %arg8[%c1_87, %c0_88] : memref<2x96xf32, #tpu.memory_space<vmem>>, vector<1x96xf32>
    %198 = vector.broadcast %197 : vector<1x96xf32> to vector<10x96xf32>
    %199 = arith.addf %196, %198 : vector<10x96xf32>
    %200 = vector.extract_strided_slice %199 {offsets = [0, 0], sizes = [10, 8], strides = [1, 1]} : vector<10x96xf32> to vector<10x8xf32>
    %201 = vector.extract_strided_slice %199 {offsets = [0, 32], sizes = [10, 8], strides = [1, 1]} : vector<10x96xf32> to vector<10x8xf32>
    %cst_89 = arith.constant dense<0.000000e+00> : vector<10x10xf32>
    %202 = tpu.matmul %200, %201, %cst_89 {dimension_numbers = #tpu.dot_dimension_numbers<[1], [1], [0], [0], [0, 0, 1, 0], [], []>} : vector<10x8xf32>, vector<10x8xf32>, vector<10x10xf32> -> vector<10x10xf32>
    %203 = vector.extract_strided_slice %199 {offsets = [0, 8], sizes = [10, 8], strides = [1, 1]} : vector<10x96xf32> to vector<10x8xf32>
    %204 = vector.extract_strided_slice %199 {offsets = [0, 40], sizes = [10, 8], strides = [1, 1]} : vector<10x96xf32> to vector<10x8xf32>
    %cst_90 = arith.constant dense<0.000000e+00> : vector<10x10xf32>
    %205 = tpu.matmul %203, %204, %cst_90 {dimension_numbers = #tpu.dot_dimension_numbers<[1], [1], [0], [0], [0, 0, 1, 0], [], []>} : vector<10x8xf32>, vector<10x8xf32>, vector<10x10xf32> -> vector<10x10xf32>
    %206 = vector.extract_strided_slice %199 {offsets = [0, 16], sizes = [10, 8], strides = [1, 1]} : vector<10x96xf32> to vector<10x8xf32>
    %207 = vector.extract_strided_slice %199 {offsets = [0, 48], sizes = [10, 8], strides = [1, 1]} : vector<10x96xf32> to vector<10x8xf32>
    %cst_91 = arith.constant dense<0.000000e+00> : vector<10x10xf32>
    %208 = tpu.matmul %206, %207, %cst_91 {dimension_numbers = #tpu.dot_dimension_numbers<[1], [1], [0], [0], [0, 0, 1, 0], [], []>} : vector<10x8xf32>, vector<10x8xf32>, vector<10x10xf32> -> vector<10x10xf32>
    %209 = vector.extract_strided_slice %199 {offsets = [0, 24], sizes = [10, 8], strides = [1, 1]} : vector<10x96xf32> to vector<10x8xf32>
    %210 = vector.extract_strided_slice %199 {offsets = [0, 56], sizes = [10, 8], strides = [1, 1]} : vector<10x96xf32> to vector<10x8xf32>
    %cst_92 = arith.constant dense<0.000000e+00> : vector<10x10xf32>
    %211 = tpu.matmul %209, %210, %cst_92 {dimension_numbers = #tpu.dot_dimension_numbers<[1], [1], [0], [0], [0, 0, 1, 0], [], []>} : vector<10x8xf32>, vector<10x8xf32>, vector<10x10xf32> -> vector<10x10xf32>
    %212 = tpu.concatenate %202, %205, %208, %211 in 0 : vector<10x10xf32>, vector<10x10xf32>, vector<10x10xf32>, vector<10x10xf32> -> vector<40x10xf32>
    %213 = arith.addf %212, %56 : vector<40x10xf32>
    %cst_93 = arith.constant dense<0xFF800000> : vector<40xf32>
    %214 = vector.multi_reduction <maximumf>, %213, %cst_93 [1] : vector<40x10xf32> to vector<40xf32>
    %215 = vector.shape_cast %214 : vector<40xf32> to vector<40x1xf32>
    %216 = vector.broadcast %215 : vector<40x1xf32> to vector<40x10xf32>
    %217 = arith.subf %213, %216 : vector<40x10xf32>
    %218 = math.exp %217 : vector<40x10xf32>
    %cst_94 = arith.constant dense<0.000000e+00> : vector<40xf32>
    %219 = vector.multi_reduction <add>, %218, %cst_94 [1] : vector<40x10xf32> to vector<40xf32>
    %220 = vector.shape_cast %219 : vector<40xf32> to vector<40x1xf32>
    %221 = tpu.reciprocal %220 {approx = true} : vector<40x1xf32> -> vector<40x1xf32>
    %222 = vector.broadcast %221 : vector<40x1xf32> to vector<40x10xf32>
    %223 = arith.mulf %218, %222 : vector<40x10xf32>
    %224 = vector.extract_strided_slice %223 {offsets = [0, 0], sizes = [10, 10], strides = [1, 1]} : vector<40x10xf32> to vector<10x10xf32>
    %225 = vector.extract_strided_slice %199 {offsets = [0, 64], sizes = [10, 8], strides = [1, 1]} : vector<10x96xf32> to vector<10x8xf32>
    %cst_95 = arith.constant dense<0.000000e+00> : vector<10x8xf32>
    %226 = tpu.matmul %224, %225, %cst_95 {dimension_numbers = #tpu.dot_dimension_numbers<[1], [0], [0], [1], [0, 0, 1, 1], [], []>} : vector<10x10xf32>, vector<10x8xf32>, vector<10x8xf32> -> vector<10x8xf32>
    %227 = vector.extract_strided_slice %223 {offsets = [10, 0], sizes = [10, 10], strides = [1, 1]} : vector<40x10xf32> to vector<10x10xf32>
    %228 = vector.extract_strided_slice %199 {offsets = [0, 72], sizes = [10, 8], strides = [1, 1]} : vector<10x96xf32> to vector<10x8xf32>
    %cst_96 = arith.constant dense<0.000000e+00> : vector<10x8xf32>
    %229 = tpu.matmul %227, %228, %cst_96 {dimension_numbers = #tpu.dot_dimension_numbers<[1], [0], [0], [1], [0, 0, 1, 1], [], []>} : vector<10x10xf32>, vector<10x8xf32>, vector<10x8xf32> -> vector<10x8xf32>
    %230 = vector.extract_strided_slice %223 {offsets = [20, 0], sizes = [10, 10], strides = [1, 1]} : vector<40x10xf32> to vector<10x10xf32>
    %231 = vector.extract_strided_slice %199 {offsets = [0, 80], sizes = [10, 8], strides = [1, 1]} : vector<10x96xf32> to vector<10x8xf32>
    %cst_97 = arith.constant dense<0.000000e+00> : vector<10x8xf32>
    %232 = tpu.matmul %230, %231, %cst_97 {dimension_numbers = #tpu.dot_dimension_numbers<[1], [0], [0], [1], [0, 0, 1, 1], [], []>} : vector<10x10xf32>, vector<10x8xf32>, vector<10x8xf32> -> vector<10x8xf32>
    %233 = vector.extract_strided_slice %223 {offsets = [30, 0], sizes = [10, 10], strides = [1, 1]} : vector<40x10xf32> to vector<10x10xf32>
    %234 = vector.extract_strided_slice %199 {offsets = [0, 88], sizes = [10, 8], strides = [1, 1]} : vector<10x96xf32> to vector<10x8xf32>
    %cst_98 = arith.constant dense<0.000000e+00> : vector<10x8xf32>
    %235 = tpu.matmul %233, %234, %cst_98 {dimension_numbers = #tpu.dot_dimension_numbers<[1], [0], [0], [1], [0, 0, 1, 1], [], []>} : vector<10x10xf32>, vector<10x8xf32>, vector<10x8xf32> -> vector<10x8xf32>
    %236 = tpu.concatenate %226, %229, %232, %235 in 1 : vector<10x8xf32>, vector<10x8xf32>, vector<10x8xf32>, vector<10x8xf32> -> vector<10x32xf32>
    %c1_99 = arith.constant 1 : index
    %c0_100 = arith.constant 0 : index
    %c0_101 = arith.constant 0 : index
    %237 = vector.load %arg9[%c1_99, %c0_100, %c0_101] : memref<2x32x32xf32, #tpu.memory_space<vmem>>, vector<1x32x32xf32>
    %238 = vector.shape_cast %237 : vector<1x32x32xf32> to vector<32x32xf32>
    %cst_102 = arith.constant dense<0.000000e+00> : vector<10x32xf32>
    %239 = tpu.matmul %236, %238, %cst_102 {dimension_numbers = #tpu.dot_dimension_numbers<[1], [0], [0], [1], [0, 0, 1, 1], [], []>} : vector<10x32xf32>, vector<32x32xf32>, vector<10x32xf32> -> vector<10x32xf32>
    %240 = arith.addf %171, %239 : vector<10x32xf32>
    %c1_103 = arith.constant 1 : index
    %c0_104 = arith.constant 0 : index
    %241 = vector.load %arg10[%c1_103, %c0_104] : memref<2x32xf32, #tpu.memory_space<vmem>>, vector<1x32xf32>
    %242 = vector.broadcast %241 : vector<1x32xf32> to vector<10x32xf32>
    %243 = arith.addf %240, %242 : vector<10x32xf32>
    %c1_105 = arith.constant 1 : index
    %c0_106 = arith.constant 0 : index
    %244 = vector.load %arg11[%c1_105, %c0_106] : memref<2x32xf32, #tpu.memory_space<vmem>>, vector<1x32xf32>
    %c1_107 = arith.constant 1 : index
    %c0_108 = arith.constant 0 : index
    %245 = vector.load %arg12[%c1_107, %c0_108] : memref<2x32xf32, #tpu.memory_space<vmem>>, vector<1x32xf32>
    %cst_109 = arith.constant dense<0.000000e+00> : vector<10xf32>
    %246 = vector.multi_reduction <add>, %243, %cst_109 [1] : vector<10x32xf32> to vector<10xf32>
    %247 = vector.shape_cast %246 : vector<10xf32> to vector<10x1xf32>
    %cst_110 = arith.constant 3.200000e+01 : f32
    %248 = vector.broadcast %cst_110 : f32 to vector<10x1xf32>
    %249 = arith.divf %247, %248 : vector<10x1xf32>
    %250 = vector.broadcast %249 : vector<10x1xf32> to vector<10x32xf32>
    %251 = arith.subf %243, %250 : vector<10x32xf32>
    %252 = arith.mulf %251, %251 : vector<10x32xf32>
    %cst_111 = arith.constant dense<0.000000e+00> : vector<10xf32>
    %253 = vector.multi_reduction <add>, %252, %cst_111 [1] : vector<10x32xf32> to vector<10xf32>
    %254 = vector.shape_cast %253 : vector<10xf32> to vector<10x1xf32>
    %cst_112 = arith.constant 3.200000e+01 : f32
    %255 = vector.broadcast %cst_112 : f32 to vector<10x1xf32>
    %256 = arith.divf %254, %255 : vector<10x1xf32>
    %cst_113 = arith.constant 9.99999974E-6 : f32
    %257 = vector.broadcast %cst_113 : f32 to vector<10x1xf32>
    %258 = arith.addf %256, %257 : vector<10x1xf32>
    %259 = math.rsqrt %258 : vector<10x1xf32>
    %260 = vector.broadcast %259 : vector<10x1xf32> to vector<10x32xf32>
    %261 = arith.mulf %251, %260 : vector<10x32xf32>
    %262 = vector.broadcast %244 : vector<1x32xf32> to vector<10x32xf32>
    %263 = arith.mulf %261, %262 : vector<10x32xf32>
    %264 = vector.broadcast %245 : vector<1x32xf32> to vector<10x32xf32>
    %265 = arith.addf %263, %264 : vector<10x32xf32>
    %c1_114 = arith.constant 1 : index
    %c0_115 = arith.constant 0 : index
    %c0_116 = arith.constant 0 : index
    %266 = vector.load %arg13[%c1_114, %c0_115, %c0_116] : memref<2x32x128xf32, #tpu.memory_space<vmem>>, vector<1x32x128xf32>
    %267 = vector.shape_cast %266 : vector<1x32x128xf32> to vector<32x128xf32>
    %cst_117 = arith.constant dense<0.000000e+00> : vector<10x128xf32>
    %268 = tpu.matmul %265, %267, %cst_117 {dimension_numbers = #tpu.dot_dimension_numbers<[1], [0], [0], [1], [0, 0, 1, 1], [], []>} : vector<10x32xf32>, vector<32x128xf32>, vector<10x128xf32> -> vector<10x128xf32>
    %c1_118 = arith.constant 1 : index
    %c0_119 = arith.constant 0 : index
    %269 = vector.load %arg14[%c1_118, %c0_119] : memref<2x128xf32, #tpu.memory_space<vmem>>, vector<1x128xf32>
    %270 = vector.broadcast %269 : vector<1x128xf32> to vector<10x128xf32>
    %271 = arith.addf %268, %270 : vector<10x128xf32>
    %cst_120 = arith.constant 1.702000e+00 : f32
    %272 = vector.broadcast %cst_120 : f32 to vector<10x128xf32>
    %273 = arith.mulf %272, %271 : vector<10x128xf32>
    %274 = arith.negf %273 : vector<10x128xf32>
    %275 = math.exp %274 : vector<10x128xf32>
    %cst_121 = arith.constant 1.000000e+00 : f32
    %276 = vector.broadcast %cst_121 : f32 to vector<10x128xf32>
    %277 = arith.addf %276, %275 : vector<10x128xf32>
    %278 = arith.divf %276, %277 : vector<10x128xf32>
    %279 = arith.mulf %271, %278 : vector<10x128xf32>
    %c1_122 = arith.constant 1 : index
    %c0_123 = arith.constant 0 : index
    %c0_124 = arith.constant 0 : index
    %280 = vector.load %arg15[%c1_122, %c0_123, %c0_124] : memref<2x128x32xf32, #tpu.memory_space<vmem>>, vector<1x128x32xf32>
    %281 = vector.shape_cast %280 : vector<1x128x32xf32> to vector<128x32xf32>
    %cst_125 = arith.constant dense<0.000000e+00> : vector<10x32xf32>
    %282 = tpu.matmul %279, %281, %cst_125 {dimension_numbers = #tpu.dot_dimension_numbers<[1], [0], [0], [1], [0, 0, 1, 1], [], []>} : vector<10x128xf32>, vector<128x32xf32>, vector<10x32xf32> -> vector<10x32xf32>
    %283 = arith.addf %243, %282 : vector<10x32xf32>
    %c1_126 = arith.constant 1 : index
    %c0_127 = arith.constant 0 : index
    %284 = vector.load %arg16[%c1_126, %c0_127] : memref<2x32xf32, #tpu.memory_space<vmem>>, vector<1x32xf32>
    %285 = vector.broadcast %284 : vector<1x32xf32> to vector<10x32xf32>
    %286 = arith.addf %283, %285 : vector<10x32xf32>
    %287 = vector.extract_strided_slice %286 {offsets = [0, 0], sizes = [1, 32], strides = [1, 1]} : vector<10x32xf32> to vector<1x32xf32>
    %288 = vector.extract_strided_slice %286 {offsets = [5, 0], sizes = [1, 32], strides = [1, 1]} : vector<10x32xf32> to vector<1x32xf32>
    %289 = tpu.concatenate %287, %288 in 0 : vector<1x32xf32>, vector<1x32xf32> -> vector<2x32xf32>
    %c0_128 = arith.constant 0 : index
    %c0_129 = arith.constant 0 : index
    %290 = vector.load %arg17[%c0_128, %c0_129] : memref<1x32xf32, #tpu.memory_space<vmem>>, vector<1x32xf32>
    %c0_130 = arith.constant 0 : index
    %c0_131 = arith.constant 0 : index
    %291 = vector.load %arg18[%c0_130, %c0_131] : memref<1x32xf32, #tpu.memory_space<vmem>>, vector<1x32xf32>
    %cst_132 = arith.constant dense<0.000000e+00> : vector<2xf32>
    %292 = vector.multi_reduction <add>, %289, %cst_132 [1] : vector<2x32xf32> to vector<2xf32>
    %293 = vector.shape_cast %292 : vector<2xf32> to vector<2x1xf32>
    %cst_133 = arith.constant 3.200000e+01 : f32
    %294 = vector.broadcast %cst_133 : f32 to vector<2x1xf32>
    %295 = arith.divf %293, %294 : vector<2x1xf32>
    %296 = vector.broadcast %295 : vector<2x1xf32> to vector<2x32xf32>
    %297 = arith.subf %289, %296 : vector<2x32xf32>
    %298 = arith.mulf %297, %297 : vector<2x32xf32>
    %cst_134 = arith.constant dense<0.000000e+00> : vector<2xf32>
    %299 = vector.multi_reduction <add>, %298, %cst_134 [1] : vector<2x32xf32> to vector<2xf32>
    %300 = vector.shape_cast %299 : vector<2xf32> to vector<2x1xf32>
    %cst_135 = arith.constant 3.200000e+01 : f32
    %301 = vector.broadcast %cst_135 : f32 to vector<2x1xf32>
    %302 = arith.divf %300, %301 : vector<2x1xf32>
    %cst_136 = arith.constant 9.99999974E-6 : f32
    %303 = vector.broadcast %cst_136 : f32 to vector<2x1xf32>
    %304 = arith.addf %302, %303 : vector<2x1xf32>
    %305 = math.rsqrt %304 : vector<2x1xf32>
    %306 = vector.broadcast %305 : vector<2x1xf32> to vector<2x32xf32>
    %307 = arith.mulf %297, %306 : vector<2x32xf32>
    %308 = vector.broadcast %290 : vector<1x32xf32> to vector<2x32xf32>
    %309 = arith.mulf %307, %308 : vector<2x32xf32>
    %310 = vector.broadcast %291 : vector<1x32xf32> to vector<2x32xf32>
    %311 = arith.addf %309, %310 : vector<2x32xf32>
    %c0_137 = arith.constant 0 : index
    %c0_138 = arith.constant 0 : index
    %312 = vector.load %arg19[%c0_137, %c0_138] : memref<32x32xf32, #tpu.memory_space<vmem>>, vector<32x32xf32>
    %cst_139 = arith.constant dense<0.000000e+00> : vector<2x32xf32>
    %313 = tpu.matmul %311, %312, %cst_139 {dimension_numbers = #tpu.dot_dimension_numbers<[1], [0], [0], [1], [0, 0, 1, 1], [], []>} : vector<2x32xf32>, vector<32x32xf32>, vector<2x32xf32> -> vector<2x32xf32>
    %c0_140 = arith.constant 0 : index
    %c0_141 = arith.constant 0 : index
    %314 = vector.load %arg20[%c0_140, %c0_141] : memref<24x32xf32, #tpu.memory_space<vmem>>, vector<24x32xf32>
    %c0_142 = arith.constant 0 : index
    %c0_143 = arith.constant 0 : index
    %315 = vector.load %arg21[%c0_142, %c0_143] : memref<8x32xf32, #tpu.memory_space<vmem>>, vector<8x32xf32>
    %316 = tpu.concatenate %315, %315, %315 in 0 : vector<8x32xf32>, vector<8x32xf32>, vector<8x32xf32> -> vector<24x32xf32>
    %317 = arith.addf %314, %316 : vector<24x32xf32>
    %318 = tpu.iota {dimensions = array<i32: 0>} : vector<24x24xi32>
    %319 = tpu.iota {dimensions = array<i32: 1>} : vector<24x24xi32>
    %c0_i32_144 = arith.constant 0 : i32
    %320 = vector.broadcast %c0_i32_144 : i32 to vector<24x24xi32>
    %321 = arith.cmpi sge, %318, %320 : vector<24x24xi32>
    %c8_i32 = arith.constant 8 : i32
    %322 = vector.broadcast %c8_i32 : i32 to vector<24x24xi32>
    %323 = arith.cmpi slt, %318, %322 : vector<24x24xi32>
    %324 = arith.andi %321, %323 : vector<24x24xi1>
    %c0_i32_145 = arith.constant 0 : i32
    %325 = vector.broadcast %c0_i32_145 : i32 to vector<24x24xi32>
    %326 = arith.cmpi sge, %319, %325 : vector<24x24xi32>
    %c8_i32_146 = arith.constant 8 : i32
    %327 = vector.broadcast %c8_i32_146 : i32 to vector<24x24xi32>
    %328 = arith.cmpi slt, %319, %327 : vector<24x24xi32>
    %329 = arith.andi %326, %328 : vector<24x24xi1>
    %330 = arith.andi %324, %329 : vector<24x24xi1>
    %c8_i32_147 = arith.constant 8 : i32
    %331 = vector.broadcast %c8_i32_147 : i32 to vector<24x24xi32>
    %332 = arith.cmpi sge, %318, %331 : vector<24x24xi32>
    %c16_i32 = arith.constant 16 : i32
    %333 = vector.broadcast %c16_i32 : i32 to vector<24x24xi32>
    %334 = arith.cmpi slt, %318, %333 : vector<24x24xi32>
    %335 = arith.andi %332, %334 : vector<24x24xi1>
    %c8_i32_148 = arith.constant 8 : i32
    %336 = vector.broadcast %c8_i32_148 : i32 to vector<24x24xi32>
    %337 = arith.cmpi sge, %319, %336 : vector<24x24xi32>
    %c16_i32_149 = arith.constant 16 : i32
    %338 = vector.broadcast %c16_i32_149 : i32 to vector<24x24xi32>
    %339 = arith.cmpi slt, %319, %338 : vector<24x24xi32>
    %340 = arith.andi %337, %339 : vector<24x24xi1>
    %341 = arith.andi %335, %340 : vector<24x24xi1>
    %342 = arith.ori %330, %341 : vector<24x24xi1>
    %c16_i32_150 = arith.constant 16 : i32
    %343 = vector.broadcast %c16_i32_150 : i32 to vector<24x24xi32>
    %344 = arith.cmpi sge, %318, %343 : vector<24x24xi32>
    %c24_i32 = arith.constant 24 : i32
    %345 = vector.broadcast %c24_i32 : i32 to vector<24x24xi32>
    %346 = arith.cmpi slt, %318, %345 : vector<24x24xi32>
    %347 = arith.andi %344, %346 : vector<24x24xi1>
    %c16_i32_151 = arith.constant 16 : i32
    %348 = vector.broadcast %c16_i32_151 : i32 to vector<24x24xi32>
    %349 = arith.cmpi sge, %319, %348 : vector<24x24xi32>
    %c24_i32_152 = arith.constant 24 : i32
    %350 = vector.broadcast %c24_i32_152 : i32 to vector<24x24xi32>
    %351 = arith.cmpi slt, %319, %350 : vector<24x24xi32>
    %352 = arith.andi %349, %351 : vector<24x24xi1>
    %353 = arith.andi %347, %352 : vector<24x24xi1>
    %354 = arith.ori %342, %353 : vector<24x24xi1>
    %355 = arith.cmpi sle, %319, %318 : vector<24x24xi32>
    %356 = arith.andi %354, %355 : vector<24x24xi1>
    %cst_153 = arith.constant 0.000000e+00 : f32
    %cst_154 = arith.constant -1.000000e+09 : f32
    %357 = vector.broadcast %cst_153 : f32 to vector<24x24xf32>
    %358 = vector.broadcast %cst_154 : f32 to vector<24x24xf32>
    %359 = arith.select %356, %357, %358 : vector<24x24xi1>, vector<24x24xf32>
    %360 = tpu.concatenate %359, %359, %359, %359 in 0 : vector<24x24xf32>, vector<24x24xf32>, vector<24x24xf32>, vector<24x24xf32> -> vector<96x24xf32>
    %c0_155 = arith.constant 0 : index
    %c0_156 = arith.constant 0 : index
    %361 = vector.load %arg22[%c0_155, %c0_156] : memref<2x32xf32, #tpu.memory_space<vmem>>, vector<1x32xf32>
    %c0_157 = arith.constant 0 : index
    %c0_158 = arith.constant 0 : index
    %362 = vector.load %arg23[%c0_157, %c0_158] : memref<2x32xf32, #tpu.memory_space<vmem>>, vector<1x32xf32>
    %cst_159 = arith.constant dense<0.000000e+00> : vector<24xf32>
    %363 = vector.multi_reduction <add>, %317, %cst_159 [1] : vector<24x32xf32> to vector<24xf32>
    %364 = vector.shape_cast %363 : vector<24xf32> to vector<24x1xf32>
    %cst_160 = arith.constant 3.200000e+01 : f32
    %365 = vector.broadcast %cst_160 : f32 to vector<24x1xf32>
    %366 = arith.divf %364, %365 : vector<24x1xf32>
    %367 = vector.broadcast %366 : vector<24x1xf32> to vector<24x32xf32>
    %368 = arith.subf %317, %367 : vector<24x32xf32>
    %369 = arith.mulf %368, %368 : vector<24x32xf32>
    %cst_161 = arith.constant dense<0.000000e+00> : vector<24xf32>
    %370 = vector.multi_reduction <add>, %369, %cst_161 [1] : vector<24x32xf32> to vector<24xf32>
    %371 = vector.shape_cast %370 : vector<24xf32> to vector<24x1xf32>
    %cst_162 = arith.constant 3.200000e+01 : f32
    %372 = vector.broadcast %cst_162 : f32 to vector<24x1xf32>
    %373 = arith.divf %371, %372 : vector<24x1xf32>
    %cst_163 = arith.constant 9.99999974E-6 : f32
    %374 = vector.broadcast %cst_163 : f32 to vector<24x1xf32>
    %375 = arith.addf %373, %374 : vector<24x1xf32>
    %376 = math.rsqrt %375 : vector<24x1xf32>
    %377 = vector.broadcast %376 : vector<24x1xf32> to vector<24x32xf32>
    %378 = arith.mulf %368, %377 : vector<24x32xf32>
    %379 = vector.broadcast %361 : vector<1x32xf32> to vector<24x32xf32>
    %380 = arith.mulf %378, %379 : vector<24x32xf32>
    %381 = vector.broadcast %362 : vector<1x32xf32> to vector<24x32xf32>
    %382 = arith.addf %380, %381 : vector<24x32xf32>
    %c0_164 = arith.constant 0 : index
    %c0_165 = arith.constant 0 : index
    %c0_166 = arith.constant 0 : index
    %383 = vector.load %arg24[%c0_164, %c0_165, %c0_166] : memref<2x32x96xf32, #tpu.memory_space<vmem>>, vector<1x32x96xf32>
    %384 = vector.shape_cast %383 : vector<1x32x96xf32> to vector<32x96xf32>
    %cst_167 = arith.constant dense<0.000000e+00> : vector<24x96xf32>
    %385 = tpu.matmul %382, %384, %cst_167 {dimension_numbers = #tpu.dot_dimension_numbers<[1], [0], [0], [1], [0, 0, 1, 1], [], []>} : vector<24x32xf32>, vector<32x96xf32>, vector<24x96xf32> -> vector<24x96xf32>
    %c0_168 = arith.constant 0 : index
    %c0_169 = arith.constant 0 : index
    %386 = vector.load %arg25[%c0_168, %c0_169] : memref<2x96xf32, #tpu.memory_space<vmem>>, vector<1x96xf32>
    %387 = vector.broadcast %386 : vector<1x96xf32> to vector<24x96xf32>
    %388 = arith.addf %385, %387 : vector<24x96xf32>
    %389 = vector.extract_strided_slice %388 {offsets = [0, 0], sizes = [24, 8], strides = [1, 1]} : vector<24x96xf32> to vector<24x8xf32>
    %390 = vector.extract_strided_slice %388 {offsets = [0, 32], sizes = [24, 8], strides = [1, 1]} : vector<24x96xf32> to vector<24x8xf32>
    %cst_170 = arith.constant dense<0.000000e+00> : vector<24x24xf32>
    %391 = tpu.matmul %389, %390, %cst_170 {dimension_numbers = #tpu.dot_dimension_numbers<[1], [1], [0], [0], [0, 0, 1, 0], [], []>} : vector<24x8xf32>, vector<24x8xf32>, vector<24x24xf32> -> vector<24x24xf32>
    %392 = vector.extract_strided_slice %388 {offsets = [0, 8], sizes = [24, 8], strides = [1, 1]} : vector<24x96xf32> to vector<24x8xf32>
    %393 = vector.extract_strided_slice %388 {offsets = [0, 40], sizes = [24, 8], strides = [1, 1]} : vector<24x96xf32> to vector<24x8xf32>
    %cst_171 = arith.constant dense<0.000000e+00> : vector<24x24xf32>
    %394 = tpu.matmul %392, %393, %cst_171 {dimension_numbers = #tpu.dot_dimension_numbers<[1], [1], [0], [0], [0, 0, 1, 0], [], []>} : vector<24x8xf32>, vector<24x8xf32>, vector<24x24xf32> -> vector<24x24xf32>
    %395 = vector.extract_strided_slice %388 {offsets = [0, 16], sizes = [24, 8], strides = [1, 1]} : vector<24x96xf32> to vector<24x8xf32>
    %396 = vector.extract_strided_slice %388 {offsets = [0, 48], sizes = [24, 8], strides = [1, 1]} : vector<24x96xf32> to vector<24x8xf32>
    %cst_172 = arith.constant dense<0.000000e+00> : vector<24x24xf32>
    %397 = tpu.matmul %395, %396, %cst_172 {dimension_numbers = #tpu.dot_dimension_numbers<[1], [1], [0], [0], [0, 0, 1, 0], [], []>} : vector<24x8xf32>, vector<24x8xf32>, vector<24x24xf32> -> vector<24x24xf32>
    %398 = vector.extract_strided_slice %388 {offsets = [0, 24], sizes = [24, 8], strides = [1, 1]} : vector<24x96xf32> to vector<24x8xf32>
    %399 = vector.extract_strided_slice %388 {offsets = [0, 56], sizes = [24, 8], strides = [1, 1]} : vector<24x96xf32> to vector<24x8xf32>
    %cst_173 = arith.constant dense<0.000000e+00> : vector<24x24xf32>
    %400 = tpu.matmul %398, %399, %cst_173 {dimension_numbers = #tpu.dot_dimension_numbers<[1], [1], [0], [0], [0, 0, 1, 0], [], []>} : vector<24x8xf32>, vector<24x8xf32>, vector<24x24xf32> -> vector<24x24xf32>
    %401 = tpu.concatenate %391, %394, %397, %400 in 0 : vector<24x24xf32>, vector<24x24xf32>, vector<24x24xf32>, vector<24x24xf32> -> vector<96x24xf32>
    %402 = arith.addf %401, %360 : vector<96x24xf32>
    %cst_174 = arith.constant dense<0xFF800000> : vector<96xf32>
    %403 = vector.multi_reduction <maximumf>, %402, %cst_174 [1] : vector<96x24xf32> to vector<96xf32>
    %404 = vector.shape_cast %403 : vector<96xf32> to vector<96x1xf32>
    %405 = vector.broadcast %404 : vector<96x1xf32> to vector<96x24xf32>
    %406 = arith.subf %402, %405 : vector<96x24xf32>
    %407 = math.exp %406 : vector<96x24xf32>
    %cst_175 = arith.constant dense<0.000000e+00> : vector<96xf32>
    %408 = vector.multi_reduction <add>, %407, %cst_175 [1] : vector<96x24xf32> to vector<96xf32>
    %409 = vector.shape_cast %408 : vector<96xf32> to vector<96x1xf32>
    %410 = tpu.reciprocal %409 {approx = true} : vector<96x1xf32> -> vector<96x1xf32>
    %411 = vector.broadcast %410 : vector<96x1xf32> to vector<96x24xf32>
    %412 = arith.mulf %407, %411 : vector<96x24xf32>
    %413 = vector.extract_strided_slice %412 {offsets = [0, 0], sizes = [24, 24], strides = [1, 1]} : vector<96x24xf32> to vector<24x24xf32>
    %414 = vector.extract_strided_slice %388 {offsets = [0, 64], sizes = [24, 8], strides = [1, 1]} : vector<24x96xf32> to vector<24x8xf32>
    %cst_176 = arith.constant dense<0.000000e+00> : vector<24x8xf32>
    %415 = tpu.matmul %413, %414, %cst_176 {dimension_numbers = #tpu.dot_dimension_numbers<[1], [0], [0], [1], [0, 0, 1, 1], [], []>} : vector<24x24xf32>, vector<24x8xf32>, vector<24x8xf32> -> vector<24x8xf32>
    %416 = vector.extract_strided_slice %412 {offsets = [24, 0], sizes = [24, 24], strides = [1, 1]} : vector<96x24xf32> to vector<24x24xf32>
    %417 = vector.extract_strided_slice %388 {offsets = [0, 72], sizes = [24, 8], strides = [1, 1]} : vector<24x96xf32> to vector<24x8xf32>
    %cst_177 = arith.constant dense<0.000000e+00> : vector<24x8xf32>
    %418 = tpu.matmul %416, %417, %cst_177 {dimension_numbers = #tpu.dot_dimension_numbers<[1], [0], [0], [1], [0, 0, 1, 1], [], []>} : vector<24x24xf32>, vector<24x8xf32>, vector<24x8xf32> -> vector<24x8xf32>
    %419 = vector.extract_strided_slice %412 {offsets = [48, 0], sizes = [24, 24], strides = [1, 1]} : vector<96x24xf32> to vector<24x24xf32>
    %420 = vector.extract_strided_slice %388 {offsets = [0, 80], sizes = [24, 8], strides = [1, 1]} : vector<24x96xf32> to vector<24x8xf32>
    %cst_178 = arith.constant dense<0.000000e+00> : vector<24x8xf32>
    %421 = tpu.matmul %419, %420, %cst_178 {dimension_numbers = #tpu.dot_dimension_numbers<[1], [0], [0], [1], [0, 0, 1, 1], [], []>} : vector<24x24xf32>, vector<24x8xf32>, vector<24x8xf32> -> vector<24x8xf32>
    %422 = vector.extract_strided_slice %412 {offsets = [72, 0], sizes = [24, 24], strides = [1, 1]} : vector<96x24xf32> to vector<24x24xf32>
    %423 = vector.extract_strided_slice %388 {offsets = [0, 88], sizes = [24, 8], strides = [1, 1]} : vector<24x96xf32> to vector<24x8xf32>
    %cst_179 = arith.constant dense<0.000000e+00> : vector<24x8xf32>
    %424 = tpu.matmul %422, %423, %cst_179 {dimension_numbers = #tpu.dot_dimension_numbers<[1], [0], [0], [1], [0, 0, 1, 1], [], []>} : vector<24x24xf32>, vector<24x8xf32>, vector<24x8xf32> -> vector<24x8xf32>
    %425 = tpu.concatenate %415, %418, %421, %424 in 1 : vector<24x8xf32>, vector<24x8xf32>, vector<24x8xf32>, vector<24x8xf32> -> vector<24x32xf32>
    %c0_180 = arith.constant 0 : index
    %c0_181 = arith.constant 0 : index
    %c0_182 = arith.constant 0 : index
    %426 = vector.load %arg26[%c0_180, %c0_181, %c0_182] : memref<2x32x32xf32, #tpu.memory_space<vmem>>, vector<1x32x32xf32>
    %427 = vector.shape_cast %426 : vector<1x32x32xf32> to vector<32x32xf32>
    %cst_183 = arith.constant dense<0.000000e+00> : vector<24x32xf32>
    %428 = tpu.matmul %425, %427, %cst_183 {dimension_numbers = #tpu.dot_dimension_numbers<[1], [0], [0], [1], [0, 0, 1, 1], [], []>} : vector<24x32xf32>, vector<32x32xf32>, vector<24x32xf32> -> vector<24x32xf32>
    %429 = arith.addf %317, %428 : vector<24x32xf32>
    %c0_184 = arith.constant 0 : index
    %c0_185 = arith.constant 0 : index
    %430 = vector.load %arg27[%c0_184, %c0_185] : memref<2x32xf32, #tpu.memory_space<vmem>>, vector<1x32xf32>
    %431 = vector.broadcast %430 : vector<1x32xf32> to vector<24x32xf32>
    %432 = arith.addf %429, %431 : vector<24x32xf32>
    %c0_186 = arith.constant 0 : index
    %c0_187 = arith.constant 0 : index
    %433 = vector.load %arg28[%c0_186, %c0_187] : memref<2x32xf32, #tpu.memory_space<vmem>>, vector<1x32xf32>
    %c0_188 = arith.constant 0 : index
    %c0_189 = arith.constant 0 : index
    %434 = vector.load %arg29[%c0_188, %c0_189] : memref<2x32xf32, #tpu.memory_space<vmem>>, vector<1x32xf32>
    %cst_190 = arith.constant dense<0.000000e+00> : vector<24xf32>
    %435 = vector.multi_reduction <add>, %432, %cst_190 [1] : vector<24x32xf32> to vector<24xf32>
    %436 = vector.shape_cast %435 : vector<24xf32> to vector<24x1xf32>
    %cst_191 = arith.constant 3.200000e+01 : f32
    %437 = vector.broadcast %cst_191 : f32 to vector<24x1xf32>
    %438 = arith.divf %436, %437 : vector<24x1xf32>
    %439 = vector.broadcast %438 : vector<24x1xf32> to vector<24x32xf32>
    %440 = arith.subf %432, %439 : vector<24x32xf32>
    %441 = arith.mulf %440, %440 : vector<24x32xf32>
    %cst_192 = arith.constant dense<0.000000e+00> : vector<24xf32>
    %442 = vector.multi_reduction <add>, %441, %cst_192 [1] : vector<24x32xf32> to vector<24xf32>
    %443 = vector.shape_cast %442 : vector<24xf32> to vector<24x1xf32>
    %cst_193 = arith.constant 3.200000e+01 : f32
    %444 = vector.broadcast %cst_193 : f32 to vector<24x1xf32>
    %445 = arith.divf %443, %444 : vector<24x1xf32>
    %cst_194 = arith.constant 9.99999974E-6 : f32
    %446 = vector.broadcast %cst_194 : f32 to vector<24x1xf32>
    %447 = arith.addf %445, %446 : vector<24x1xf32>
    %448 = math.rsqrt %447 : vector<24x1xf32>
    %449 = vector.broadcast %448 : vector<24x1xf32> to vector<24x32xf32>
    %450 = arith.mulf %440, %449 : vector<24x32xf32>
    %451 = vector.broadcast %433 : vector<1x32xf32> to vector<24x32xf32>
    %452 = arith.mulf %450, %451 : vector<24x32xf32>
    %453 = vector.broadcast %434 : vector<1x32xf32> to vector<24x32xf32>
    %454 = arith.addf %452, %453 : vector<24x32xf32>
    %c0_195 = arith.constant 0 : index
    %c0_196 = arith.constant 0 : index
    %c0_197 = arith.constant 0 : index
    %455 = vector.load %arg30[%c0_195, %c0_196, %c0_197] : memref<2x32x128xf32, #tpu.memory_space<vmem>>, vector<1x32x128xf32>
    %456 = vector.shape_cast %455 : vector<1x32x128xf32> to vector<32x128xf32>
    %cst_198 = arith.constant dense<0.000000e+00> : vector<24x128xf32>
    %457 = tpu.matmul %454, %456, %cst_198 {dimension_numbers = #tpu.dot_dimension_numbers<[1], [0], [0], [1], [0, 0, 1, 1], [], []>} : vector<24x32xf32>, vector<32x128xf32>, vector<24x128xf32> -> vector<24x128xf32>
    %c0_199 = arith.constant 0 : index
    %c0_200 = arith.constant 0 : index
    %458 = vector.load %arg31[%c0_199, %c0_200] : memref<2x128xf32, #tpu.memory_space<vmem>>, vector<1x128xf32>
    %459 = vector.broadcast %458 : vector<1x128xf32> to vector<24x128xf32>
    %460 = arith.addf %457, %459 : vector<24x128xf32>
    %cst_201 = arith.constant 1.702000e+00 : f32
    %461 = vector.broadcast %cst_201 : f32 to vector<24x128xf32>
    %462 = arith.mulf %461, %460 : vector<24x128xf32>
    %463 = arith.negf %462 : vector<24x128xf32>
    %464 = math.exp %463 : vector<24x128xf32>
    %cst_202 = arith.constant 1.000000e+00 : f32
    %465 = vector.broadcast %cst_202 : f32 to vector<24x128xf32>
    %466 = arith.addf %465, %464 : vector<24x128xf32>
    %467 = arith.divf %465, %466 : vector<24x128xf32>
    %468 = arith.mulf %460, %467 : vector<24x128xf32>
    %c0_203 = arith.constant 0 : index
    %c0_204 = arith.constant 0 : index
    %c0_205 = arith.constant 0 : index
    %469 = vector.load %arg32[%c0_203, %c0_204, %c0_205] : memref<2x128x32xf32, #tpu.memory_space<vmem>>, vector<1x128x32xf32>
    %470 = vector.shape_cast %469 : vector<1x128x32xf32> to vector<128x32xf32>
    %cst_206 = arith.constant dense<0.000000e+00> : vector<24x32xf32>
    %471 = tpu.matmul %468, %470, %cst_206 {dimension_numbers = #tpu.dot_dimension_numbers<[1], [0], [0], [1], [0, 0, 1, 1], [], []>} : vector<24x128xf32>, vector<128x32xf32>, vector<24x32xf32> -> vector<24x32xf32>
    %472 = arith.addf %432, %471 : vector<24x32xf32>
    %c0_207 = arith.constant 0 : index
    %c0_208 = arith.constant 0 : index
    %473 = vector.load %arg33[%c0_207, %c0_208] : memref<2x32xf32, #tpu.memory_space<vmem>>, vector<1x32xf32>
    %474 = vector.broadcast %473 : vector<1x32xf32> to vector<24x32xf32>
    %475 = arith.addf %472, %474 : vector<24x32xf32>
    %c1_209 = arith.constant 1 : index
    %c0_210 = arith.constant 0 : index
    %476 = vector.load %arg22[%c1_209, %c0_210] : memref<2x32xf32, #tpu.memory_space<vmem>>, vector<1x32xf32>
    %c1_211 = arith.constant 1 : index
    %c0_212 = arith.constant 0 : index
    %477 = vector.load %arg23[%c1_211, %c0_212] : memref<2x32xf32, #tpu.memory_space<vmem>>, vector<1x32xf32>
    %cst_213 = arith.constant dense<0.000000e+00> : vector<24xf32>
    %478 = vector.multi_reduction <add>, %475, %cst_213 [1] : vector<24x32xf32> to vector<24xf32>
    %479 = vector.shape_cast %478 : vector<24xf32> to vector<24x1xf32>
    %cst_214 = arith.constant 3.200000e+01 : f32
    %480 = vector.broadcast %cst_214 : f32 to vector<24x1xf32>
    %481 = arith.divf %479, %480 : vector<24x1xf32>
    %482 = vector.broadcast %481 : vector<24x1xf32> to vector<24x32xf32>
    %483 = arith.subf %475, %482 : vector<24x32xf32>
    %484 = arith.mulf %483, %483 : vector<24x32xf32>
    %cst_215 = arith.constant dense<0.000000e+00> : vector<24xf32>
    %485 = vector.multi_reduction <add>, %484, %cst_215 [1] : vector<24x32xf32> to vector<24xf32>
    %486 = vector.shape_cast %485 : vector<24xf32> to vector<24x1xf32>
    %cst_216 = arith.constant 3.200000e+01 : f32
    %487 = vector.broadcast %cst_216 : f32 to vector<24x1xf32>
    %488 = arith.divf %486, %487 : vector<24x1xf32>
    %cst_217 = arith.constant 9.99999974E-6 : f32
    %489 = vector.broadcast %cst_217 : f32 to vector<24x1xf32>
    %490 = arith.addf %488, %489 : vector<24x1xf32>
    %491 = math.rsqrt %490 : vector<24x1xf32>
    %492 = vector.broadcast %491 : vector<24x1xf32> to vector<24x32xf32>
    %493 = arith.mulf %483, %492 : vector<24x32xf32>
    %494 = vector.broadcast %476 : vector<1x32xf32> to vector<24x32xf32>
    %495 = arith.mulf %493, %494 : vector<24x32xf32>
    %496 = vector.broadcast %477 : vector<1x32xf32> to vector<24x32xf32>
    %497 = arith.addf %495, %496 : vector<24x32xf32>
    %c1_218 = arith.constant 1 : index
    %c0_219 = arith.constant 0 : index
    %c0_220 = arith.constant 0 : index
    %498 = vector.load %arg24[%c1_218, %c0_219, %c0_220] : memref<2x32x96xf32, #tpu.memory_space<vmem>>, vector<1x32x96xf32>
    %499 = vector.shape_cast %498 : vector<1x32x96xf32> to vector<32x96xf32>
    %cst_221 = arith.constant dense<0.000000e+00> : vector<24x96xf32>
    %500 = tpu.matmul %497, %499, %cst_221 {dimension_numbers = #tpu.dot_dimension_numbers<[1], [0], [0], [1], [0, 0, 1, 1], [], []>} : vector<24x32xf32>, vector<32x96xf32>, vector<24x96xf32> -> vector<24x96xf32>
    %c1_222 = arith.constant 1 : index
    %c0_223 = arith.constant 0 : index
    %501 = vector.load %arg25[%c1_222, %c0_223] : memref<2x96xf32, #tpu.memory_space<vmem>>, vector<1x96xf32>
    %502 = vector.broadcast %501 : vector<1x96xf32> to vector<24x96xf32>
    %503 = arith.addf %500, %502 : vector<24x96xf32>
    %504 = vector.extract_strided_slice %503 {offsets = [0, 0], sizes = [24, 8], strides = [1, 1]} : vector<24x96xf32> to vector<24x8xf32>
    %505 = vector.extract_strided_slice %503 {offsets = [0, 32], sizes = [24, 8], strides = [1, 1]} : vector<24x96xf32> to vector<24x8xf32>
    %cst_224 = arith.constant dense<0.000000e+00> : vector<24x24xf32>
    %506 = tpu.matmul %504, %505, %cst_224 {dimension_numbers = #tpu.dot_dimension_numbers<[1], [1], [0], [0], [0, 0, 1, 0], [], []>} : vector<24x8xf32>, vector<24x8xf32>, vector<24x24xf32> -> vector<24x24xf32>
    %507 = vector.extract_strided_slice %503 {offsets = [0, 8], sizes = [24, 8], strides = [1, 1]} : vector<24x96xf32> to vector<24x8xf32>
    %508 = vector.extract_strided_slice %503 {offsets = [0, 40], sizes = [24, 8], strides = [1, 1]} : vector<24x96xf32> to vector<24x8xf32>
    %cst_225 = arith.constant dense<0.000000e+00> : vector<24x24xf32>
    %509 = tpu.matmul %507, %508, %cst_225 {dimension_numbers = #tpu.dot_dimension_numbers<[1], [1], [0], [0], [0, 0, 1, 0], [], []>} : vector<24x8xf32>, vector<24x8xf32>, vector<24x24xf32> -> vector<24x24xf32>
    %510 = vector.extract_strided_slice %503 {offsets = [0, 16], sizes = [24, 8], strides = [1, 1]} : vector<24x96xf32> to vector<24x8xf32>
    %511 = vector.extract_strided_slice %503 {offsets = [0, 48], sizes = [24, 8], strides = [1, 1]} : vector<24x96xf32> to vector<24x8xf32>
    %cst_226 = arith.constant dense<0.000000e+00> : vector<24x24xf32>
    %512 = tpu.matmul %510, %511, %cst_226 {dimension_numbers = #tpu.dot_dimension_numbers<[1], [1], [0], [0], [0, 0, 1, 0], [], []>} : vector<24x8xf32>, vector<24x8xf32>, vector<24x24xf32> -> vector<24x24xf32>
    %513 = vector.extract_strided_slice %503 {offsets = [0, 24], sizes = [24, 8], strides = [1, 1]} : vector<24x96xf32> to vector<24x8xf32>
    %514 = vector.extract_strided_slice %503 {offsets = [0, 56], sizes = [24, 8], strides = [1, 1]} : vector<24x96xf32> to vector<24x8xf32>
    %cst_227 = arith.constant dense<0.000000e+00> : vector<24x24xf32>
    %515 = tpu.matmul %513, %514, %cst_227 {dimension_numbers = #tpu.dot_dimension_numbers<[1], [1], [0], [0], [0, 0, 1, 0], [], []>} : vector<24x8xf32>, vector<24x8xf32>, vector<24x24xf32> -> vector<24x24xf32>
    %516 = tpu.concatenate %506, %509, %512, %515 in 0 : vector<24x24xf32>, vector<24x24xf32>, vector<24x24xf32>, vector<24x24xf32> -> vector<96x24xf32>
    %517 = arith.addf %516, %360 : vector<96x24xf32>
    %cst_228 = arith.constant dense<0xFF800000> : vector<96xf32>
    %518 = vector.multi_reduction <maximumf>, %517, %cst_228 [1] : vector<96x24xf32> to vector<96xf32>
    %519 = vector.shape_cast %518 : vector<96xf32> to vector<96x1xf32>
    %520 = vector.broadcast %519 : vector<96x1xf32> to vector<96x24xf32>
    %521 = arith.subf %517, %520 : vector<96x24xf32>
    %522 = math.exp %521 : vector<96x24xf32>
    %cst_229 = arith.constant dense<0.000000e+00> : vector<96xf32>
    %523 = vector.multi_reduction <add>, %522, %cst_229 [1] : vector<96x24xf32> to vector<96xf32>
    %524 = vector.shape_cast %523 : vector<96xf32> to vector<96x1xf32>
    %525 = tpu.reciprocal %524 {approx = true} : vector<96x1xf32> -> vector<96x1xf32>
    %526 = vector.broadcast %525 : vector<96x1xf32> to vector<96x24xf32>
    %527 = arith.mulf %522, %526 : vector<96x24xf32>
    %528 = vector.extract_strided_slice %527 {offsets = [0, 0], sizes = [24, 24], strides = [1, 1]} : vector<96x24xf32> to vector<24x24xf32>
    %529 = vector.extract_strided_slice %503 {offsets = [0, 64], sizes = [24, 8], strides = [1, 1]} : vector<24x96xf32> to vector<24x8xf32>
    %cst_230 = arith.constant dense<0.000000e+00> : vector<24x8xf32>
    %530 = tpu.matmul %528, %529, %cst_230 {dimension_numbers = #tpu.dot_dimension_numbers<[1], [0], [0], [1], [0, 0, 1, 1], [], []>} : vector<24x24xf32>, vector<24x8xf32>, vector<24x8xf32> -> vector<24x8xf32>
    %531 = vector.extract_strided_slice %527 {offsets = [24, 0], sizes = [24, 24], strides = [1, 1]} : vector<96x24xf32> to vector<24x24xf32>
    %532 = vector.extract_strided_slice %503 {offsets = [0, 72], sizes = [24, 8], strides = [1, 1]} : vector<24x96xf32> to vector<24x8xf32>
    %cst_231 = arith.constant dense<0.000000e+00> : vector<24x8xf32>
    %533 = tpu.matmul %531, %532, %cst_231 {dimension_numbers = #tpu.dot_dimension_numbers<[1], [0], [0], [1], [0, 0, 1, 1], [], []>} : vector<24x24xf32>, vector<24x8xf32>, vector<24x8xf32> -> vector<24x8xf32>
    %534 = vector.extract_strided_slice %527 {offsets = [48, 0], sizes = [24, 24], strides = [1, 1]} : vector<96x24xf32> to vector<24x24xf32>
    %535 = vector.extract_strided_slice %503 {offsets = [0, 80], sizes = [24, 8], strides = [1, 1]} : vector<24x96xf32> to vector<24x8xf32>
    %cst_232 = arith.constant dense<0.000000e+00> : vector<24x8xf32>
    %536 = tpu.matmul %534, %535, %cst_232 {dimension_numbers = #tpu.dot_dimension_numbers<[1], [0], [0], [1], [0, 0, 1, 1], [], []>} : vector<24x24xf32>, vector<24x8xf32>, vector<24x8xf32> -> vector<24x8xf32>
    %537 = vector.extract_strided_slice %527 {offsets = [72, 0], sizes = [24, 24], strides = [1, 1]} : vector<96x24xf32> to vector<24x24xf32>
    %538 = vector.extract_strided_slice %503 {offsets = [0, 88], sizes = [24, 8], strides = [1, 1]} : vector<24x96xf32> to vector<24x8xf32>
    %cst_233 = arith.constant dense<0.000000e+00> : vector<24x8xf32>
    %539 = tpu.matmul %537, %538, %cst_233 {dimension_numbers = #tpu.dot_dimension_numbers<[1], [0], [0], [1], [0, 0, 1, 1], [], []>} : vector<24x24xf32>, vector<24x8xf32>, vector<24x8xf32> -> vector<24x8xf32>
    %540 = tpu.concatenate %530, %533, %536, %539 in 1 : vector<24x8xf32>, vector<24x8xf32>, vector<24x8xf32>, vector<24x8xf32> -> vector<24x32xf32>
    %c1_234 = arith.constant 1 : index
    %c0_235 = arith.constant 0 : index
    %c0_236 = arith.constant 0 : index
    %541 = vector.load %arg26[%c1_234, %c0_235, %c0_236] : memref<2x32x32xf32, #tpu.memory_space<vmem>>, vector<1x32x32xf32>
    %542 = vector.shape_cast %541 : vector<1x32x32xf32> to vector<32x32xf32>
    %cst_237 = arith.constant dense<0.000000e+00> : vector<24x32xf32>
    %543 = tpu.matmul %540, %542, %cst_237 {dimension_numbers = #tpu.dot_dimension_numbers<[1], [0], [0], [1], [0, 0, 1, 1], [], []>} : vector<24x32xf32>, vector<32x32xf32>, vector<24x32xf32> -> vector<24x32xf32>
    %544 = arith.addf %475, %543 : vector<24x32xf32>
    %c1_238 = arith.constant 1 : index
    %c0_239 = arith.constant 0 : index
    %545 = vector.load %arg27[%c1_238, %c0_239] : memref<2x32xf32, #tpu.memory_space<vmem>>, vector<1x32xf32>
    %546 = vector.broadcast %545 : vector<1x32xf32> to vector<24x32xf32>
    %547 = arith.addf %544, %546 : vector<24x32xf32>
    %c1_240 = arith.constant 1 : index
    %c0_241 = arith.constant 0 : index
    %548 = vector.load %arg28[%c1_240, %c0_241] : memref<2x32xf32, #tpu.memory_space<vmem>>, vector<1x32xf32>
    %c1_242 = arith.constant 1 : index
    %c0_243 = arith.constant 0 : index
    %549 = vector.load %arg29[%c1_242, %c0_243] : memref<2x32xf32, #tpu.memory_space<vmem>>, vector<1x32xf32>
    %cst_244 = arith.constant dense<0.000000e+00> : vector<24xf32>
    %550 = vector.multi_reduction <add>, %547, %cst_244 [1] : vector<24x32xf32> to vector<24xf32>
    %551 = vector.shape_cast %550 : vector<24xf32> to vector<24x1xf32>
    %cst_245 = arith.constant 3.200000e+01 : f32
    %552 = vector.broadcast %cst_245 : f32 to vector<24x1xf32>
    %553 = arith.divf %551, %552 : vector<24x1xf32>
    %554 = vector.broadcast %553 : vector<24x1xf32> to vector<24x32xf32>
    %555 = arith.subf %547, %554 : vector<24x32xf32>
    %556 = arith.mulf %555, %555 : vector<24x32xf32>
    %cst_246 = arith.constant dense<0.000000e+00> : vector<24xf32>
    %557 = vector.multi_reduction <add>, %556, %cst_246 [1] : vector<24x32xf32> to vector<24xf32>
    %558 = vector.shape_cast %557 : vector<24xf32> to vector<24x1xf32>
    %cst_247 = arith.constant 3.200000e+01 : f32
    %559 = vector.broadcast %cst_247 : f32 to vector<24x1xf32>
    %560 = arith.divf %558, %559 : vector<24x1xf32>
    %cst_248 = arith.constant 9.99999974E-6 : f32
    %561 = vector.broadcast %cst_248 : f32 to vector<24x1xf32>
    %562 = arith.addf %560, %561 : vector<24x1xf32>
    %563 = math.rsqrt %562 : vector<24x1xf32>
    %564 = vector.broadcast %563 : vector<24x1xf32> to vector<24x32xf32>
    %565 = arith.mulf %555, %564 : vector<24x32xf32>
    %566 = vector.broadcast %548 : vector<1x32xf32> to vector<24x32xf32>
    %567 = arith.mulf %565, %566 : vector<24x32xf32>
    %568 = vector.broadcast %549 : vector<1x32xf32> to vector<24x32xf32>
    %569 = arith.addf %567, %568 : vector<24x32xf32>
    %c1_249 = arith.constant 1 : index
    %c0_250 = arith.constant 0 : index
    %c0_251 = arith.constant 0 : index
    %570 = vector.load %arg30[%c1_249, %c0_250, %c0_251] : memref<2x32x128xf32, #tpu.memory_space<vmem>>, vector<1x32x128xf32>
    %571 = vector.shape_cast %570 : vector<1x32x128xf32> to vector<32x128xf32>
    %cst_252 = arith.constant dense<0.000000e+00> : vector<24x128xf32>
    %572 = tpu.matmul %569, %571, %cst_252 {dimension_numbers = #tpu.dot_dimension_numbers<[1], [0], [0], [1], [0, 0, 1, 1], [], []>} : vector<24x32xf32>, vector<32x128xf32>, vector<24x128xf32> -> vector<24x128xf32>
    %c1_253 = arith.constant 1 : index
    %c0_254 = arith.constant 0 : index
    %573 = vector.load %arg31[%c1_253, %c0_254] : memref<2x128xf32, #tpu.memory_space<vmem>>, vector<1x128xf32>
    %574 = vector.broadcast %573 : vector<1x128xf32> to vector<24x128xf32>
    %575 = arith.addf %572, %574 : vector<24x128xf32>
    %cst_255 = arith.constant 1.702000e+00 : f32
    %576 = vector.broadcast %cst_255 : f32 to vector<24x128xf32>
    %577 = arith.mulf %576, %575 : vector<24x128xf32>
    %578 = arith.negf %577 : vector<24x128xf32>
    %579 = math.exp %578 : vector<24x128xf32>
    %cst_256 = arith.constant 1.000000e+00 : f32
    %580 = vector.broadcast %cst_256 : f32 to vector<24x128xf32>
    %581 = arith.addf %580, %579 : vector<24x128xf32>
    %582 = arith.divf %580, %581 : vector<24x128xf32>
    %583 = arith.mulf %575, %582 : vector<24x128xf32>
    %c1_257 = arith.constant 1 : index
    %c0_258 = arith.constant 0 : index
    %c0_259 = arith.constant 0 : index
    %584 = vector.load %arg32[%c1_257, %c0_258, %c0_259] : memref<2x128x32xf32, #tpu.memory_space<vmem>>, vector<1x128x32xf32>
    %585 = vector.shape_cast %584 : vector<1x128x32xf32> to vector<128x32xf32>
    %cst_260 = arith.constant dense<0.000000e+00> : vector<24x32xf32>
    %586 = tpu.matmul %583, %585, %cst_260 {dimension_numbers = #tpu.dot_dimension_numbers<[1], [0], [0], [1], [0, 0, 1, 1], [], []>} : vector<24x128xf32>, vector<128x32xf32>, vector<24x32xf32> -> vector<24x32xf32>
    %587 = arith.addf %547, %586 : vector<24x32xf32>
    %c1_261 = arith.constant 1 : index
    %c0_262 = arith.constant 0 : index
    %588 = vector.load %arg33[%c1_261, %c0_262] : memref<2x32xf32, #tpu.memory_space<vmem>>, vector<1x32xf32>
    %589 = vector.broadcast %588 : vector<1x32xf32> to vector<24x32xf32>
    %590 = arith.addf %587, %589 : vector<24x32xf32>
    %c0_263 = arith.constant 0 : index
    %c0_264 = arith.constant 0 : index
    %591 = vector.load %arg34[%c0_263, %c0_264] : memref<1x32xf32, #tpu.memory_space<vmem>>, vector<1x32xf32>
    %c0_265 = arith.constant 0 : index
    %c0_266 = arith.constant 0 : index
    %592 = vector.load %arg35[%c0_265, %c0_266] : memref<1x32xf32, #tpu.memory_space<vmem>>, vector<1x32xf32>
    %cst_267 = arith.constant dense<0.000000e+00> : vector<24xf32>
    %593 = vector.multi_reduction <add>, %590, %cst_267 [1] : vector<24x32xf32> to vector<24xf32>
    %594 = vector.shape_cast %593 : vector<24xf32> to vector<24x1xf32>
    %cst_268 = arith.constant 3.200000e+01 : f32
    %595 = vector.broadcast %cst_268 : f32 to vector<24x1xf32>
    %596 = arith.divf %594, %595 : vector<24x1xf32>
    %597 = vector.broadcast %596 : vector<24x1xf32> to vector<24x32xf32>
    %598 = arith.subf %590, %597 : vector<24x32xf32>
    %599 = arith.mulf %598, %598 : vector<24x32xf32>
    %cst_269 = arith.constant dense<0.000000e+00> : vector<24xf32>
    %600 = vector.multi_reduction <add>, %599, %cst_269 [1] : vector<24x32xf32> to vector<24xf32>
    %601 = vector.shape_cast %600 : vector<24xf32> to vector<24x1xf32>
    %cst_270 = arith.constant 3.200000e+01 : f32
    %602 = vector.broadcast %cst_270 : f32 to vector<24x1xf32>
    %603 = arith.divf %601, %602 : vector<24x1xf32>
    %cst_271 = arith.constant 9.99999974E-6 : f32
    %604 = vector.broadcast %cst_271 : f32 to vector<24x1xf32>
    %605 = arith.addf %603, %604 : vector<24x1xf32>
    %606 = math.rsqrt %605 : vector<24x1xf32>
    %607 = vector.broadcast %606 : vector<24x1xf32> to vector<24x32xf32>
    %608 = arith.mulf %598, %607 : vector<24x32xf32>
    %609 = vector.broadcast %591 : vector<1x32xf32> to vector<24x32xf32>
    %610 = arith.mulf %608, %609 : vector<24x32xf32>
    %611 = vector.broadcast %592 : vector<1x32xf32> to vector<24x32xf32>
    %612 = arith.addf %610, %611 : vector<24x32xf32>
    %613 = vector.extract_strided_slice %612 {offsets = [7, 0], sizes = [1, 32], strides = [1, 1]} : vector<24x32xf32> to vector<1x32xf32>
    %614 = vector.extract_strided_slice %612 {offsets = [15, 0], sizes = [1, 32], strides = [1, 1]} : vector<24x32xf32> to vector<1x32xf32>
    %615 = vector.extract_strided_slice %612 {offsets = [23, 0], sizes = [1, 32], strides = [1, 1]} : vector<24x32xf32> to vector<1x32xf32>
    %616 = tpu.concatenate %613, %614, %615 in 0 : vector<1x32xf32>, vector<1x32xf32>, vector<1x32xf32> -> vector<3x32xf32>
    %c0_272 = arith.constant 0 : index
    %c0_273 = arith.constant 0 : index
    %617 = vector.load %arg36[%c0_272, %c0_273] : memref<32x32xf32, #tpu.memory_space<vmem>>, vector<32x32xf32>
    %cst_274 = arith.constant dense<0.000000e+00> : vector<3x32xf32>
    %618 = tpu.matmul %616, %617, %cst_274 {dimension_numbers = #tpu.dot_dimension_numbers<[1], [0], [0], [1], [0, 0, 1, 1], [], []>} : vector<3x32xf32>, vector<32x32xf32>, vector<3x32xf32> -> vector<3x32xf32>
    %619 = arith.mulf %313, %313 : vector<2x32xf32>
    %cst_275 = arith.constant dense<0.000000e+00> : vector<2xf32>
    %620 = vector.multi_reduction <add>, %619, %cst_275 [1] : vector<2x32xf32> to vector<2xf32>
    %621 = vector.shape_cast %620 : vector<2xf32> to vector<2x1xf32>
    %cst_276 = arith.constant 9.99999996E-13 : f32
    %622 = vector.broadcast %cst_276 : f32 to vector<2x1xf32>
    %623 = arith.maximumf %621, %622 : vector<2x1xf32>
    %624 = math.rsqrt %623 : vector<2x1xf32>
    %625 = vector.broadcast %624 : vector<2x1xf32> to vector<2x32xf32>
    %626 = arith.mulf %313, %625 : vector<2x32xf32>
    %627 = arith.mulf %618, %618 : vector<3x32xf32>
    %cst_277 = arith.constant dense<0.000000e+00> : vector<3xf32>
    %628 = vector.multi_reduction <add>, %627, %cst_277 [1] : vector<3x32xf32> to vector<3xf32>
    %629 = vector.shape_cast %628 : vector<3xf32> to vector<3x1xf32>
    %cst_278 = arith.constant 9.99999996E-13 : f32
    %630 = vector.broadcast %cst_278 : f32 to vector<3x1xf32>
    %631 = arith.maximumf %629, %630 : vector<3x1xf32>
    %632 = math.rsqrt %631 : vector<3x1xf32>
    %633 = vector.broadcast %632 : vector<3x1xf32> to vector<3x32xf32>
    %634 = arith.mulf %618, %633 : vector<3x32xf32>
    %c0_279 = arith.constant 0 : index
    %c0_280 = arith.constant 0 : index
    %635 = memref.load %arg37[%c0_279, %c0_280] : memref<1x1xf32, #tpu.memory_space<smem>>
    %cst_281 = arith.constant dense<0.000000e+00> : vector<2x3xf32>
    %636 = tpu.matmul %626, %634, %cst_281 {dimension_numbers = #tpu.dot_dimension_numbers<[1], [1], [0], [0], [0, 0, 1, 0], [], []>} : vector<2x32xf32>, vector<3x32xf32>, vector<2x3xf32> -> vector<2x3xf32>
    %637 = vector.broadcast %635 : f32 to vector<2x3xf32>
    %638 = arith.mulf %637, %636 : vector<2x3xf32>
    %c0_282 = arith.constant 0 : index
    %c0_283 = arith.constant 0 : index
    %639 = vector.load %arg38[%c0_282, %c0_283] : memref<2x3xf32, #tpu.memory_space<vmem>>, vector<2x3xf32>
    tpu.vector_store %arg38[%c0_282, %c0_283], %638 {strides = array<i32>} : memref<2x3xf32, #tpu.memory_space<vmem>>, vector<2x3xf32>,
    return
  }
}

</mosaic_0001>

<llo_original>
// kernel: custom_clip_forward.1
$region0: #{custom_clip_forward.1}
  #allocation0 [shape = 'u32[]', space=smem, size = 0x4, offset = 0x4, fixed_abs, tag = 'smem constant byte address 0x4 - core index']
  #allocation1 [shape = 'u32[144,128]{1,0:T(1,128)}', space=vmem, size = 0x12000, scoped, tag = 'internal scratch']
  #allocation2 [shape = 'f32[1,1]{1,0:T(1,128)S(6)}', space=smem, size = 0x200, scoped, tag = 'scoped memory for custom_clip_forward.1']
  %s0 = inlined_call_operand.smem [shape: u32[39], index: -1, kind: input, shape index: {}]
  %s1 = sld [smem:[%s0]]
  %s2 = scalar_lea.smem %s0, 1
  %s3 = sld [smem:[%s2]]
  %s4 = scalar_lea.smem %s0, 2
  %s5 = sld [smem:[%s4]]
  %s6 = scalar_lea.smem %s0, 3
  %s7 = sld [smem:[%s6]]
  %s8 = scalar_lea.smem %s0, 4
  %s9 = sld [smem:[%s8]]
  %s10 = scalar_lea.smem %s0, 5
  %s11 = sld [smem:[%s10]]
  %s12 = scalar_lea.smem %s0, 6
  %s13 = sld [smem:[%s12]]
  %s14 = scalar_lea.smem %s0, 7
  %s15 = sld [smem:[%s14]]
  %s16 = scalar_lea.smem %s0, 8
  %s17 = sld [smem:[%s16]]
  %s18 = scalar_lea.smem %s0, 9
  %s19 = sld [smem:[%s18]]
  %s20 = scalar_lea.smem %s0, 10
  %s21 = sld [smem:[%s20]]
  %s22 = scalar_lea.smem %s0, 11
  %s23 = sld [smem:[%s22]]
  %s24 = scalar_lea.smem %s0, 12
  %s25 = sld [smem:[%s24]]
  %s26 = scalar_lea.smem %s0, 13
  %s27 = sld [smem:[%s26]]
  %s28 = scalar_lea.smem %s0, 14
  %s29 = sld [smem:[%s28]]
  %s30 = scalar_lea.smem %s0, 15
  %s31 = sld [smem:[%s30]]
  %s32 = scalar_lea.smem %s0, 16
  %s33 = sld [smem:[%s32]]
  %s34 = scalar_lea.smem %s0, 17
  %s35 = sld [smem:[%s34]]
  %s36 = scalar_lea.smem %s0, 18
  %s37 = sld [smem:[%s36]]
  %s38 = scalar_lea.smem %s0, 19
  %s39 = sld [smem:[%s38]]
  %s40 = scalar_lea.smem %s0, 20
  %s41 = sld [smem:[%s40]]
  %s42 = scalar_lea.smem %s0, 21
  %s43 = sld [smem:[%s42]]
  %s44 = scalar_lea.smem %s0, 22
  %s45 = sld [smem:[%s44]]
  %s46 = scalar_lea.smem %s0, 23
  %s47 = sld [smem:[%s46]]
  %s48 = scalar_lea.smem %s0, 24
  %s49 = sld [smem:[%s48]]
  %s50 = scalar_lea.smem %s0, 25
  %s51 = sld [smem:[%s50]]
  %s52 = scalar_lea.smem %s0, 26
  %s53 = sld [smem:[%s52]]
  %s54 = scalar_lea.smem %s0, 27
  %s55 = sld [smem:[%s54]]
  %s56 = scalar_lea.smem %s0, 28
  %s57 = sld [smem:[%s56]]
  %s58 = scalar_lea.smem %s0, 29
  %s59 = sld [smem:[%s58]]
  %s60 = scalar_lea.smem %s0, 30
  %s61 = sld [smem:[%s60]]
  %s62 = scalar_lea.smem %s0, 31
  %s63 = sld [smem:[%s62]]
  %s64 = scalar_lea.smem %s0, 32
  %s65 = sld [smem:[%s64]]
  %s66 = scalar_lea.smem %s0, 33
  %s67 = sld [smem:[%s66]]
  %s68 = scalar_lea.smem %s0, 34
  %s69 = sld [smem:[%s68]]
  %s70 = scalar_lea.smem %s0, 35
  %s71 = sld [smem:[%s70]]
  %s72 = scalar_lea.smem %s0, 36
  %s73 = sld [smem:[%s72]]
  %s74 = scalar_lea.smem %s0, 37
  %s75 = sld [smem:[%s74]]
  %s76 = scalar_lea.smem %s0, 38
  %s77 = sld [smem:[%s76]]
  %s78 = sld [smem:[#allocation0]]
  $region162: #{custom_clip_forward.1} parent=0
    _
  %s80 = ssub.s32 1, %s78
  %s81 = scalar_select 0, %s80, %s78
  %82 = sst [smem:[#allocation2]] %s75
  $region1: #{custom_clip_forward.1} parent=0
    #allocation3 [shape = 'u8[1024]{0}', space=vmem, size = 0x400, scoped, tag = 'output window, operand 0, single buffered']
    #allocation4 [shape = 's32[1]{0}', space=sflag, size = 0x4, scoped, tag = 'scoped memory for custom_clip_forward.1']
    %83 = vsyncpa [#allocation4], 0
    // Predicated region
    $region2: #{custom_clip_forward.1} parent=1 // pred_check
      _
    $region3: #{custom_clip_forward.1} parent=1 // pred_check_branch
      %85 = sbr.rel (0) target = $region5
    $region4: #{custom_clip_forward.1} parent=1 // pred_region
      _
    $region5: #{custom_clip_forward.1} parent=1 // pred_fallthru
      _
    // Predicated region
    $region6: #{custom_clip_forward.1} parent=1 // pred_check
      _
    $region7: #{custom_clip_forward.1} parent=1 // pred_check_branch
      %87 = sbr.rel (0) target = $region9
    $region8: #{custom_clip_forward.1} parent=1 // pred_region
      _
    $region9: #{custom_clip_forward.1} parent=1 // pred_fallthru
      _
    // Predicated region
    $region10: #{custom_clip_forward.1} parent=1 // pred_check
      _
    $region11: #{custom_clip_forward.1} parent=1 // pred_check_branch
      %89 = sbr.rel (0) target = $region13
    $region12: #{custom_clip_forward.1} parent=1 // pred_region
      _
    $region13: #{custom_clip_forward.1} parent=1 // pred_fallthru
      _
    // Predicated region
    $region14: #{custom_clip_forward.1} parent=1 // pred_check
      _
    $region15: #{custom_clip_forward.1} parent=1 // pred_check_branch
      %91 = sbr.rel (0) target = $region17
    $region16: #{custom_clip_forward.1} parent=1 // pred_region
      _
    $region17: #{custom_clip_forward.1} parent=1 // pred_fallthru
      _
    // Predicated region
    $region18: #{custom_clip_forward.1} parent=1 // pred_check
      _
    $region19: #{custom_clip_forward.1} parent=1 // pred_check_branch
      %93 = sbr.rel (0) target = $region21
    $region20: #{custom_clip_forward.1} parent=1 // pred_region
      _
    $region21: #{custom_clip_forward.1} parent=1 // pred_fallthru
      _
    // Predicated region
    $region22: #{custom_clip_forward.1} parent=1 // pred_check
      _
    $region23: #{custom_clip_forward.1} parent=1 // pred_check_branch
      %95 = sbr.rel (0) target = $region25
    $region24: #{custom_clip_forward.1} parent=1 // pred_region
      _
    $region25: #{custom_clip_forward.1} parent=1 // pred_fallthru
      _
    // Predicated region
    $region26: #{custom_clip_forward.1} parent=1 // pred_check
      _
    $region27: #{custom_clip_forward.1} parent=1 // pred_check_branch
      %97 = sbr.rel (0) target = $region29
    $region28: #{custom_clip_forward.1} parent=1 // pred_region
      _
    $region29: #{custom_clip_forward.1} parent=1 // pred_fallthru
      _
    // Predicated region
    $region30: #{custom_clip_forward.1} parent=1 // pred_check
      _
    $region31: #{custom_clip_forward.1} parent=1 // pred_check_branch
      %99 = sbr.rel (0) target = $region33
    $region32: #{custom_clip_forward.1} parent=1 // pred_region
      _
    $region33: #{custom_clip_forward.1} parent=1 // pred_fallthru
      _
    // Predicated region
    $region34: #{custom_clip_forward.1} parent=1 // pred_check
      _
    $region35: #{custom_clip_forward.1} parent=1 // pred_check_branch
      %101 = sbr.rel (0) target = $region37
    $region36: #{custom_clip_forward.1} parent=1 // pred_region
      _
    $region37: #{custom_clip_forward.1} parent=1 // pred_fallthru
      _
    // Predicated region
    $region38: #{custom_clip_forward.1} parent=1 // pred_check
      _
    $region39: #{custom_clip_forward.1} parent=1 // pred_check_branch
      %103 = sbr.rel (0) target = $region41
    $region40: #{custom_clip_forward.1} parent=1 // pred_region
      _
    $region41: #{custom_clip_forward.1} parent=1 // pred_fallthru
      _
    // Predicated region
    $region42: #{custom_clip_forward.1} parent=1 // pred_check
      _
    $region43: #{custom_clip_forward.1} parent=1 // pred_check_branch
      %105 = sbr.rel (0) target = $region45
    $region44: #{custom_clip_forward.1} parent=1 // pred_region
      _
    $region45: #{custom_clip_forward.1} parent=1 // pred_fallthru
      _
    // Predicated region
    $region46: #{custom_clip_forward.1} parent=1 // pred_check
      _
    $region47: #{custom_clip_forward.1} parent=1 // pred_check_branch
      %107 = sbr.rel (0) target = $region49
    $region48: #{custom_clip_forward.1} parent=1 // pred_region
      _
    $region49: #{custom_clip_forward.1} parent=1 // pred_fallthru
      _
    // Predicated region
    $region50: #{custom_clip_forward.1} parent=1 // pred_check
      _
    $region51: #{custom_clip_forward.1} parent=1 // pred_check_branch
      %109 = sbr.rel (0) target = $region53
    $region52: #{custom_clip_forward.1} parent=1 // pred_region
      _
    $region53: #{custom_clip_forward.1} parent=1 // pred_fallthru
      _
    // Predicated region
    $region54: #{custom_clip_forward.1} parent=1 // pred_check
      _
    $region55: #{custom_clip_forward.1} parent=1 // pred_check_branch
      %111 = sbr.rel (0) target = $region57
    $region56: #{custom_clip_forward.1} parent=1 // pred_region
      _
    $region57: #{custom_clip_forward.1} parent=1 // pred_fallthru
      _
    // Predicated region
    $region58: #{custom_clip_forward.1} parent=1 // pred_check
      _
    $region59: #{custom_clip_forward.1} parent=1 // pred_check_branch
      %113 = sbr.rel (0) target = $region61
    $region60: #{custom_clip_forward.1} parent=1 // pred_region
      _
    $region61: #{custom_clip_forward.1} parent=1 // pred_fallthru
      _
    // Predicated region
    $region62: #{custom_clip_forward.1} parent=1 // pred_check
      _
    $region63: #{custom_clip_forward.1} parent=1 // pred_check_branch
      %115 = sbr.rel (0) target = $region65
    $region64: #{custom_clip_forward.1} parent=1 // pred_region
      _
    $region65: #{custom_clip_forward.1} parent=1 // pred_fallthru
      _
    // Predicated region
    $region66: #{custom_clip_forward.1} parent=1 // pred_check
      _
    $region67: #{custom_clip_forward.1} parent=1 // pred_check_branch
      %117 = sbr.rel (0) target = $region69
    $region68: #{custom_clip_forward.1} parent=1 // pred_region
      _
    $region69: #{custom_clip_forward.1} parent=1 // pred_fallthru
      _
    // Predicated region
    $region70: #{custom_clip_forward.1} parent=1 // pred_check
      _
    $region71: #{custom_clip_forward.1} parent=1 // pred_check_branch
      %119 = sbr.rel (0) target = $region73
    $region72: #{custom_clip_forward.1} parent=1 // pred_region
      _
    $region73: #{custom_clip_forward.1} parent=1 // pred_fallthru
      _
    // Predicated region
    $region74: #{custom_clip_forward.1} parent=1 // pred_check
      _
    $region75: #{custom_clip_forward.1} parent=1 // pred_check_branch
      %121 = sbr.rel (0) target = $region77
    $region76: #{custom_clip_forward.1} parent=1 // pred_region
      _
    $region77: #{custom_clip_forward.1} parent=1 // pred_fallthru
      _
    // Predicated region
    $region78: #{custom_clip_forward.1} parent=1 // pred_check
      _
    $region79: #{custom_clip_forward.1} parent=1 // pred_check_branch
      %123 = sbr.rel (0) target = $region81
    $region80: #{custom_clip_forward.1} parent=1 // pred_region
      _
    $region81: #{custom_clip_forward.1} parent=1 // pred_fallthru
      _
    // Predicated region
    $region82: #{custom_clip_forward.1} parent=1 // pred_check
      _
    $region83: #{custom_clip_forward.1} parent=1 // pred_check_branch
      %125 = sbr.rel (0) target = $region85
    $region84: #{custom_clip_forward.1} parent=1 // pred_region
      _
    $region85: #{custom_clip_forward.1} parent=1 // pred_fallthru
      _
    // Predicated region
    $region86: #{custom_clip_forward.1} parent=1 // pred_check
      _
    $region87: #{custom_clip_forward.1} parent=1 // pred_check_branch
      %127 = sbr.rel (0) target = $region89
    $region88: #{custom_clip_forward.1} parent=1 // pred_region
      _
    $region89: #{custom_clip_forward.1} parent=1 // pred_fallthru
      _
    // Predicated region
    $region90: #{custom_clip_forward.1} parent=1 // pred_check
      _
    $region91: #{custom_clip_forward.1} parent=1 // pred_check_branch
      %129 = sbr.rel (0) target = $region93
    $region92: #{custom_clip_forward.1} parent=1 // pred_region
      _
    $region93: #{custom_clip_forward.1} parent=1 // pred_fallthru
      _
    // Predicated region
    $region94: #{custom_clip_forward.1} parent=1 // pred_check
      _
    $region95: #{custom_clip_forward.1} parent=1 // pred_check_branch
      %131 = sbr.rel (0) target = $region97
    $region96: #{custom_clip_forward.1} parent=1 // pred_region
      _
    $region97: #{custom_clip_forward.1} parent=1 // pred_fallthru
      _
    // Predicated region
    $region98: #{custom_clip_forward.1} parent=1 // pred_check
      _
    $region99: #{custom_clip_forward.1} parent=1 // pred_check_branch
      %133 = sbr.rel (0) target = $region101
    $region100: #{custom_clip_forward.1} parent=1 // pred_region
      _
    $region101: #{custom_clip_forward.1} parent=1 // pred_fallthru
      _
    // Predicated region
    $region102: #{custom_clip_forward.1} parent=1 // pred_check
      _
    $region103: #{custom_clip_forward.1} parent=1 // pred_check_branch
      %135 = sbr.rel (0) target = $region105
    $region104: #{custom_clip_forward.1} parent=1 // pred_region
      _
    $region105: #{custom_clip_forward.1} parent=1 // pred_fallthru
      _
    // Predicated region
    $region106: #{custom_clip_forward.1} parent=1 // pred_check
      _
    $region107: #{custom_clip_forward.1} parent=1 // pred_check_branch
      %137 = sbr.rel (0) target = $region109
    $region108: #{custom_clip_forward.1} parent=1 // pred_region
      _
    $region109: #{custom_clip_forward.1} parent=1 // pred_fallthru
      _
    // Predicated region
    $region110: #{custom_clip_forward.1} parent=1 // pred_check
      _
    $region111: #{custom_clip_forward.1} parent=1 // pred_check_branch
      %139 = sbr.rel (0) target = $region113
    $region112: #{custom_clip_forward.1} parent=1 // pred_region
      _
    $region113: #{custom_clip_forward.1} parent=1 // pred_fallthru
      _
    // Predicated region
    $region114: #{custom_clip_forward.1} parent=1 // pred_check
      _
    $region115: #{custom_clip_forward.1} parent=1 // pred_check_branch
      %141 = sbr.rel (0) target = $region117
    $region116: #{custom_clip_forward.1} parent=1 // pred_region
      _
    $region117: #{custom_clip_forward.1} parent=1 // pred_fallthru
      _
    // Predicated region
    $region118: #{custom_clip_forward.1} parent=1 // pred_check
      _
    $region119: #{custom_clip_forward.1} parent=1 // pred_check_branch
      %143 = sbr.rel (0) target = $region121
    $region120: #{custom_clip_forward.1} parent=1 // pred_region
      _
    $region121: #{custom_clip_forward.1} parent=1 // pred_fallthru
      _
    // Predicated region
    $region122: #{custom_clip_forward.1} parent=1 // pred_check
      _
    $region123: #{custom_clip_forward.1} parent=1 // pred_check_branch
      %145 = sbr.rel (0) target = $region125
    $region124: #{custom_clip_forward.1} parent=1 // pred_region
      _
    $region125: #{custom_clip_forward.1} parent=1 // pred_fallthru
      _
    // Predicated region
    $region126: #{custom_clip_forward.1} parent=1 // pred_check
      _
    $region127: #{custom_clip_forward.1} parent=1 // pred_check_branch
      %147 = sbr.rel (0) target = $region129
    $region128: #{custom_clip_forward.1} parent=1 // pred_region
      _
    $region129: #{custom_clip_forward.1} parent=1 // pred_fallthru
      _
    // Predicated region
    $region130: #{custom_clip_forward.1} parent=1 // pred_check
      _
    $region131: #{custom_clip_forward.1} parent=1 // pred_check_branch
      %149 = sbr.rel (0) target = $region133
    $region132: #{custom_clip_forward.1} parent=1 // pred_region
      _
    $region133: #{custom_clip_forward.1} parent=1 // pred_fallthru
      _
    // Predicated region
    $region134: #{custom_clip_forward.1} parent=1 // pred_check
      _
    $region135: #{custom_clip_forward.1} parent=1 // pred_check_branch
      %151 = sbr.rel (0) target = $region137
    $region136: #{custom_clip_forward.1} parent=1 // pred_region
      _
    $region137: #{custom_clip_forward.1} parent=1 // pred_fallthru
      _
    // Predicated region
    $region138: #{custom_clip_forward.1} parent=1 // pred_check
      _
    $region139: #{custom_clip_forward.1} parent=1 // pred_check_branch
      %153 = sbr.rel (0) target = $region141
    $region140: #{custom_clip_forward.1} parent=1 // pred_region
      _
    $region141: #{custom_clip_forward.1} parent=1 // pred_fallthru
      _
    // Predicated region
    $region142: #{custom_clip_forward.1} parent=1 // pred_check
      _
    $region143: #{custom_clip_forward.1} parent=1 // pred_check_branch
      %155 = sbr.rel (0) target = $region145
    $region144: #{custom_clip_forward.1} parent=1 // pred_region
      _
    $region145: #{custom_clip_forward.1} parent=1 // pred_fallthru
      _
    // Predicated region
    $region146: #{custom_clip_forward.1} parent=1 // pred_check
      _
    $region147: #{custom_clip_forward.1} parent=1 // pred_check_branch
      %157 = sbr.rel (0) target = $region149
    $region148: #{custom_clip_forward.1} parent=1 // pred_region
      _
    $region149: #{custom_clip_forward.1} parent=1 // pred_fallthru
      _
    // Predicated region
    $region150: #{custom_clip_forward.1} parent=1 // pred_check
      _
    $region151: #{custom_clip_forward.1} parent=1 // pred_check_branch
      %159 = sbr.rel (0) target = $region153
    $region152: #{custom_clip_forward.1} parent=1 // pred_region
      _
    $region153: #{custom_clip_forward.1} parent=1 // pred_fallthru
      _
    %v160 = vld [vmem:[%s1] sm:$0xff]
    %v161 = vld [vmem:[%s1 + $0x8] sm:$0xff]
    %v162 = vld [vmem:[%s1 + $0x10] sm:$0x3]
    %v163 = vld [vmem:[%s1 + $0x18] sm:$0x3]
    %v164 = vld [vmem:[%s3] sm:$0xff]
    %v165 = vld [vmem:[%s3 + $0x8] sm:$0xff]
    %v166 = vld [vmem:[%s3 + $0x10] sm:$0xff]
    %v167 = vld [vmem:[%s3 + $0x18] sm:$0xff]
    %v168 = vld [vmem:[%s3 + $0x20] sm:$0xff]
    %v169 = vld [vmem:[%s3 + $0x28] sm:$0xff]
    %v170 = vld [vmem:[%s3 + $0x30] sm:$0xff]
    %v171 = vld [vmem:[%s3 + $0x38] sm:$0xff]
    %v172 = vld [vmem:[%s3 + $0x40] sm:$0xff]
    %v173 = vld [vmem:[%s3 + $0x48] sm:$0xff]
    %v174 = vld [vmem:[%s3 + $0x50] sm:$0xff]
    %v175 = vld [vmem:[%s3 + $0x58] sm:$0xff]
    %v176 = vld [vmem:[%s3 + $0x60] sm:$0xff]
    %v177 = vld [vmem:[%s3 + $0x68] sm:$0xff]
    %v178 = vld [vmem:[%s3 + $0x70] sm:$0xff]
    %v179 = vld [vmem:[%s3 + $0x78] sm:$0xff]
    %v180 = vld [vmem:[%s3 + $0x80] sm:$0xff]
    %v181 = vld [vmem:[%s3 + $0x88] sm:$0xff]
    %v182 = vld [vmem:[%s3 + $0x90] sm:$0xff]
    %v183 = vld [vmem:[%s3 + $0x98] sm:$0xff]
    %v184 = vld [vmem:[%s3 + $0xa0] sm:$0xff]
    %v185 = vld [vmem:[%s3 + $0xa8] sm:$0xff]
    %v186 = vld [vmem:[%s3 + $0xb0] sm:$0xff]
    %v187 = vld [vmem:[%s3 + $0xb8] sm:$0xff]
    %v188 = vld [vmem:[%s3 + $0xc0] sm:$0x1]
    %v189 = vld [vmem:[%s5] sm:$0x1f]
    %v191 = vrot.slane %v189, 3
    %vm193 = vcmask 1044480
    %v194 = vsel %vm193, %v189, %v191
    %vm195 = vcmask 531456
    %v197 = vsel %vm195, %v161, 0
    %v200 = vsel %vm195, %v163, 0
    %vm202 = vcmask 1040384
    %v204 = vsel %vm202, %v188, 0
    %206 = vmatprep.subr.mxu0 0.0
    %207 = vmatpush1.msra.mxu0 %v179
    %208 = vmatprep.subr.mxu0 0.0
    %209 = vmatpush1.msra.mxu0 %v178
    %210 = vmatprep.subr.mxu0 0.0
    %211 = vmatpush1.msra.mxu0 %v177
    %212 = vmatprep.subr.mxu0 0.0
    %213 = vmatpush1.msra.mxu0 %v176
    %214 = vmatprep.subr.mxu0 0.0
    %215 = vmatpush1.msra.mxu0 %v175
    %216 = vmatprep.subr.mxu0 0.0
    %217 = vmatpush1.msra.mxu0 %v174
    %218 = vmatprep.subr.mxu0 0.0
    %219 = vmatpush1.msra.mxu0 %v173
    %220 = vmatprep.subr.mxu0 0.0
    %221 = vmatpush1.msra.mxu0 %v172
    %222 = vmatprep.subr.mxu0 0.0
    %223 = vmatpush1.msra.mxu0 %v171
    %224 = vmatprep.subr.mxu0 0.0
    %225 = vmatpush1.msra.mxu0 %v170
    %226 = vmatprep.subr.mxu0 0.0
    %227 = vmatpush1.msra.mxu0 %v169
    %228 = vmatprep.subr.mxu0 0.0
    %229 = vmatpush1.msra.mxu0 %v168
    %230 = vmatprep.subr.mxu0 0.0
    %231 = vmatpush1.msra.mxu0 %v167
    %232 = vmatprep.subr.mxu0 0.0
    %233 = vmatpush1.msra.mxu0 %v166
    %234 = vmatprep.subr.mxu0 0.0
    %235 = vmatpush1.msra.mxu0 %v165
    %236 = vmatprep.subr.mxu0 0.0
    %237 = vmatpush1.msra.mxu0 %v164
    %238 = vmatprep.subr.mxu0 0.0
    %239 = vmatpush2.msra.mxu0 0.0
    %240 = vmatprep.subr.mxu0 0.0
    %241 = vmatpush2.msra.mxu0 0.0
    %242 = vmatprep.subr.mxu0 0.0
    %243 = vmatpush2.msra.mxu0 0.0
    %244 = vmatprep.subr.mxu0 0.0
    %245 = vmatpush2.msra.mxu0 0.0
    %246 = vmatprep.subr.mxu0 0.0
    %247 = vmatpush2.msra.mxu0 0.0
    %248 = vmatprep.subr.mxu0 0.0
    %249 = vmatpush2.msra.mxu0 0.0
    %250 = vmatprep.subr.mxu0 0.0
    %251 = vmatpush2.msra.mxu0 0.0
    %252 = vmatprep.subr.mxu0 0.0
    %253 = vmatpush2.msra.mxu0 %v204
    %254 = vmatprep.subr.mxu0 0.0
    %255 = vmatpush2.msra.mxu0 %v187
    %256 = vmatprep.subr.mxu0 0.0
    %257 = vmatpush2.msra.mxu0 %v186
    %258 = vmatprep.subr.mxu0 0.0
    %259 = vmatpush2.msra.mxu0 %v185
    %260 = vmatprep.subr.mxu0 0.0
    %261 = vmatpush2.msra.mxu0 %v184
    %262 = vmatprep.subr.mxu0 0.0
    %263 = vmatpush2.msra.mxu0 %v183
    %264 = vmatprep.subr.mxu0 0.0
    %265 = vmatpush2.msra.mxu0 %v182
    %266 = vmatprep.subr.mxu0 0.0
    %267 = vmatpush2.msra.mxu0 %v181
    %268 = vmatprep.subr.mxu0 0.0
    %269 = vmatpush2.msra.mxu0 %v180
    %270 = vmatprep.mubr.f32.mxu0 %v197
    %271 = vmatmul.mubr.f32.gmra.mxu0 %v160
    %v272 = vpop.f32.mrf.mxu0
    %v273 = vadd.f32 %v194, %v272
    %v274 = vpop.f32.mrf.mxu0
    %275 = vmatprep.mubr.f32.mxu0 %v200
    %276 = vmatmul.mubr.f32.gmra.mxu0 %v162
    %v277 = vpop.f32.mrf.mxu0
    %v278 = vadd.f32 %v191, %v277
    %v279 = vpop.f32.mrf.mxu0
    %280 = vdwg.mxu0
    %v281 = vld [vmem:[%s7] sm:$0x1]
    %v282 = vld [vmem:[%s9] sm:$0x1]
    %vm283 = vcmask 261120
    %v284 = vsel %vm283, %v273, 0.0
    %285 = vadd.xlane.f32.xlu0 %v284
    %v286 = vpop.xlane.xlu0 %285
    %vm287 = vcmask 254976
    %v288 = vsel %vm287, %v278, 0.0
    %289 = vadd.xlane.f32.xlu0 %v288
    %v290 = vpop.xlane.xlu0 %289
    %v291 = vrcp.pop 32.0
    %v292 = vmul.f32 %v286, %v291
    %v293 = vmul.f32 %v290, %v291
    %v294 = vsub.f32 %v273, %v292
    %v295 = vsub.f32 %v278, %v293
    %v296 = vmul.f32 %v294, %v294
    %v297 = vmul.f32 %v295, %v295
    %v298 = vsel %vm283, %v296, 0.0
    %299 = vadd.xlane.f32.xlu0 %v298
    %v300 = vpop.xlane.xlu0 %299
    %v301 = vsel %vm287, %v297, 0.0
    %302 = vadd.xlane.f32.xlu0 %v301
    %v303 = vpop.xlane.xlu0 %302
    %v304 = vmul.f32 %v300, %v291
    %v305 = vmul.f32 %v303, %v291
    %v306 = vadd.f32 %v304, 1e-05
    %v307 = vadd.f32 %v305, 1e-05
    %v308 = vrsqrt.pop %v306
    %v309 = vrsqrt.pop %v307
    %v310 = vmul.f32 %v294, %v308
    %v311 = vmul.f32 %v295, %v309
    %v313 = vlaneseq
    %v314 = vshrl.u32 %v313, 7
    %v315 = vsub.s32 0, %v314
    %v316 = vrot.slane %v281, %v315
    %v318 = vmul.f32 %v310, %v316
    %v319 = vmul.f32 %v311, %v316
    %v321 = vlaneseq
    %v322 = vshrl.u32 %v321, 7
    %v323 = vsub.s32 0, %v322
    %v324 = vrot.slane %v282, %v323
    %v326 = vadd.f32 %v318, %v324
    %v327 = vadd.f32 %v319, %v324
    %v328 = vlaneseq
    %v329 = vshrl.u32 %v328, 7
    %v330 = vadd.s32 %v329, 8
    %v331 = vlaneseq
    %v332 = vand.u32 %v331, 127
    %vm333 = vcmp.ge.s32.totalorder %v329, 0
    %vm334 = vcmp.ge.s32.totalorder %v330, 0
    %vm335 = vcmp.lt.s32.totalorder %v329, 5
    %vm336 = vcmp.lt.s32.totalorder %v330, 5
    %vm337 = vmand %vm333, %vm335
    %vm338 = vmand %vm334, %vm336
    %vm339 = vcmp.ge.s32.totalorder %v332, 0
    %vm340 = vcmp.lt.s32.totalorder %v332, 5
    %vm341 = vmand %vm339, %vm340
    %vm342 = vmand %vm337, %vm341
    %vm343 = vmand %vm338, %vm341
    %vm344 = vcmp.ge.s32.totalorder %v329, 5
    %vm345 = vcmp.ge.s32.totalorder %v330, 5
    %vm346 = vcmp.lt.s32.totalorder %v329, 10
    %vm347 = vcmp.lt.s32.totalorder %v330, 10
    %vm348 = vmand %vm344, %vm346
    %vm349 = vmand %vm345, %vm347
    %vm350 = vcmp.ge.s32.totalorder %v332, 5
    %vm351 = vcmp.lt.s32.totalorder %v332, 10
    %vm352 = vmand %vm350, %vm351
    %vm353 = vmand %vm348, %vm352
    %vm354 = vmand %vm349, %vm352
    %vm355 = vmor %vm342, %vm353
    %vm356 = vmor %vm343, %vm354
    %v357 = vsel %vm355, 0.0, -1e+09
    %v358 = vsel %vm356, 0.0, -1e+09
    %vm361 = vcmask 1041408
    %v362 = vrot.slane %v357, 6
    %v363 = vrot.slane %v358, 6
    %v364 = vsel %vm361, %v362, %v363
    %vm367 = vcmask 1043456
    %v368 = vrot.slane %v357, 4
    %v369 = vrot.slane %v358, 4
    %v370 = vsel %vm367, %v368, %v369
    %vm373 = vcmask 1045504
    %v374 = vrot.slane %v357, 2
    %v375 = vrot.slane %v358, 2
    %v376 = vsel %vm373, %v374, %v375
    %v379 = vsel %vm361, %v358, %v362
    %v380 = vsel %vm367, %v364, %v368
    %v381 = vsel %vm373, %v370, %v374
    %v382 = vld [vmem:[%s11] sm:$0x1]
    %v383 = vld [vmem:[%s13] sm:$0x1]
    %v384 = vsel %vm283, %v326, 0.0
    %385 = vadd.xlane.f32.xlu0 %v384
    %v386 = vpop.xlane.xlu0 %385
    %v387 = vsel %vm287, %v327, 0.0
    %388 = vadd.xlane.f32.xlu0 %v387
    %v389 = vpop.xlane.xlu0 %388
    %v390 = vmul.f32 %v386, %v291
    %v391 = vmul.f32 %v389, %v291
    %v392 = vsub.f32 %v326, %v390
    %v393 = vsub.f32 %v327, %v391
    %v394 = vmul.f32 %v392, %v392
    %v395 = vmul.f32 %v393, %v393
    %v396 = vsel %vm283, %v394, 0.0
    %397 = vadd.xlane.f32.xlu0 %v396
    %v398 = vpop.xlane.xlu0 %397
    %v399 = vsel %vm287, %v395, 0.0
    %400 = vadd.xlane.f32.xlu0 %v399
    %v401 = vpop.xlane.xlu0 %400
    %v402 = vmul.f32 %v398, %v291
    %v403 = vmul.f32 %v401, %v291
    %v404 = vadd.f32 %v402, 1e-05
    %v405 = vadd.f32 %v403, 1e-05
    %v406 = vrsqrt.pop %v404
    %v407 = vrsqrt.pop %v405
    %v408 = vmul.f32 %v392, %v406
    %v409 = vmul.f32 %v393, %v407
    %v410 = vlaneseq
    %v411 = vshrl.u32 %v410, 7
    %v412 = vsub.s32 0, %v411
    %v413 = vrot.slane %v382, %v412
    %v414 = vmul.f32 %v408, %v413
    %v415 = vmul.f32 %v409, %v413
    %v416 = vlaneseq
    %v417 = vshrl.u32 %v416, 7
    %v418 = vsub.s32 0, %v417
    %v419 = vrot.slane %v383, %v418
    %v420 = vadd.f32 %v414, %v419
    %v421 = vadd.f32 %v415, %v419
    %v422 = vld [vmem:[%s15] sm:$0xff]
    %v423 = vld [vmem:[%s15 + $0x8] sm:$0xff]
    %v424 = vld [vmem:[%s15 + $0x10] sm:$0xff]
    %v425 = vld [vmem:[%s15 + $0x18] sm:$0xff]
    %v426 = vld [vmem:[%s17] sm:$0x1]
    %v427 = vlaneseq
    %v428 = vshrl.u32 %v427, 7
    %v429 = vsub.s32 0, %v428
    %v430 = vrot.slane %v426, %v429
    %v432 = vsel %vm283, %v420, 0
    %v435 = vsel %vm283, %v421, 0
    %437 = vmatprep.subr.mxu0 0.0
    %438 = vmatpush1.msra.mxu0 0.0
    %439 = vmatprep.subr.mxu0 0.0
    %440 = vmatpush1.msra.mxu0 0.0
    %441 = vmatprep.subr.mxu0 0.0
    %442 = vmatpush1.msra.mxu0 0.0
    %443 = vmatprep.subr.mxu0 0.0
    %444 = vmatpush1.msra.mxu0 0.0
    %445 = vmatprep.subr.mxu0 0.0
    %446 = vmatpush1.msra.mxu0 0.0
    %447 = vmatprep.subr.mxu0 0.0
    %448 = vmatpush1.msra.mxu0 0.0
    %449 = vmatprep.subr.mxu0 0.0
    %450 = vmatpush1.msra.mxu0 0.0
    %451 = vmatprep.subr.mxu0 0.0
    %452 = vmatpush1.msra.mxu0 0.0
    %453 = vmatprep.subr.mxu0 0.0
    %454 = vmatpush1.msra.mxu0 0.0
    %455 = vmatprep.subr.mxu0 0.0
    %456 = vmatpush1.msra.mxu0 0.0
    %457 = vmatprep.subr.mxu0 0.0
    %458 = vmatpush1.msra.mxu0 0.0
    %459 = vmatprep.subr.mxu0 0.0
    %460 = vmatpush1.msra.mxu0 0.0
    %461 = vmatprep.subr.mxu0 0.0
    %462 = vmatpush1.msra.mxu0 %v425
    %463 = vmatprep.subr.mxu0 0.0
    %464 = vmatpush1.msra.mxu0 %v424
    %465 = vmatprep.subr.mxu0 0.0
    %466 = vmatpush1.msra.mxu0 %v423
    %467 = vmatprep.subr.mxu0 0.0
    %468 = vmatpush1.msra.mxu0 %v422
    %469 = vmatprep.subr.mxu0 0.0
    %470 = vmatpush2.msra.mxu0 0.0
    %471 = vmatprep.subr.mxu0 0.0
    %472 = vmatpush2.msra.mxu0 0.0
    %473 = vmatprep.subr.mxu0 0.0
    %474 = vmatpush2.msra.mxu0 0.0
    %475 = vmatprep.subr.mxu0 0.0
    %476 = vmatpush2.msra.mxu0 0.0
    %477 = vmatprep.subr.mxu0 0.0
    %478 = vmatpush2.msra.mxu0 0.0
    %479 = vmatprep.subr.mxu0 0.0
    %480 = vmatpush2.msra.mxu0 0.0
    %481 = vmatprep.subr.mxu0 0.0
    %482 = vmatpush2.msra.mxu0 0.0
    %483 = vmatprep.subr.mxu0 0.0
    %484 = vmatpush2.msra.mxu0 0.0
    %485 = vmatprep.subr.mxu0 0.0
    %486 = vmatpush2.msra.mxu0 0.0
    %487 = vmatprep.subr.mxu0 0.0
    %488 = vmatpush2.msra.mxu0 0.0
    %489 = vmatprep.subr.mxu0 0.0
    %490 = vmatpush2.msra.mxu0 0.0
    %491 = vmatprep.subr.mxu0 0.0
    %492 = vmatpush2.msra.mxu0 0.0
    %493 = vmatprep.subr.mxu0 0.0
    %494 = vmatpush2.msra.mxu0 0.0
    %495 = vmatprep.subr.mxu0 0.0
    %496 = vmatpush2.msra.mxu0 0.0
    %497 = vmatprep.subr.mxu0 0.0
    %498 = vmatpush2.msra.mxu0 0.0
    %499 = vmatprep.subr.mxu0 0.0
    %500 = vmatpush2.msra.mxu0 0.0
    %501 = vmatprep.mubr.f32.mxu0 0.0
    %502 = vmatmul.mubr.f32.gmra.mxu0 %v432
    %v503 = vpop.f32.mrf.mxu0
    %v504 = vadd.f32 %v430, %v503
    %v505 = vpop.f32.mrf.mxu0
    %506 = vmatprep.mubr.f32.mxu0 0.0
    %507 = vmatmul.mubr.f32.gmra.mxu0 %v435
    %v508 = vpop.f32.mrf.mxu0
    %v509 = vadd.f32 %v430, %v508
    %v510 = vpop.f32.mrf.mxu0
    %511 = vdwg.mxu0
    %514 = vrot.lane.b32.xlu0 %v504, 96
    %v515 = vpop.permute.xlu0 %514
    %516 = vrot.lane.b32.xlu0 %v509, 96
    %v517 = vpop.permute.xlu0 %516
    %vm518 = vcmask 64512
    %v519 = vsel %vm518, %v504, 0
    %v521 = vsel %vm518, %v509, 0
    %v523 = vsel %vm518, %v515, 0
    %v525 = vsel %vm518, %v517, 0
    %527 = vmatprep.subr.mxu0 0.0
    %528 = vmatpush1.xpose.msra.mxu0 0.0
    %529 = vmatprep.subr.mxu0 0.0
    %530 = vmatpush1.xpose.msra.mxu0 0.0
    %531 = vmatprep.subr.mxu0 0.0
    %532 = vmatpush1.xpose.msra.mxu0 0.0
    %533 = vmatprep.subr.mxu0 0.0
    %534 = vmatpush1.xpose.msra.mxu0 0.0
    %535 = vmatprep.subr.mxu0 0.0
    %536 = vmatpush1.xpose.msra.mxu0 0.0
    %537 = vmatprep.subr.mxu0 0.0
    %538 = vmatpush1.xpose.msra.mxu0 0.0
    %539 = vmatprep.subr.mxu0 0.0
    %540 = vmatpush1.xpose.msra.mxu0 0.0
    %541 = vmatprep.subr.mxu0 0.0
    %542 = vmatpush1.xpose.msra.mxu0 0.0
    %543 = vmatprep.subr.mxu0 0.0
    %544 = vmatpush1.xpose.msra.mxu0 0.0
    %545 = vmatprep.subr.mxu0 0.0
    %546 = vmatpush1.xpose.msra.mxu0 0.0
    %547 = vmatprep.subr.mxu0 0.0
    %548 = vmatpush1.xpose.msra.mxu0 0.0
    %549 = vmatprep.subr.mxu0 0.0
    %550 = vmatpush1.xpose.msra.mxu0 0.0
    %551 = vmatprep.subr.mxu0 0.0
    %552 = vmatpush1.xpose.msra.mxu0 0.0
    %553 = vmatprep.subr.mxu0 0.0
    %554 = vmatpush1.xpose.msra.mxu0 0.0
    %555 = vmatprep.subr.mxu0 0.0
    %556 = vmatpush1.xpose.msra.mxu0 %v525
    %557 = vmatprep.subr.mxu0 0.0
    %558 = vmatpush1.xpose.msra.mxu0 %v523
    %559 = vmatprep.subr.mxu0 0.0
    %560 = vmatpush2.xpose.msra.mxu0 0.0
    %561 = vmatprep.subr.mxu0 0.0
    %562 = vmatpush2.xpose.msra.mxu0 0.0
    %563 = vmatprep.subr.mxu0 0.0
    %564 = vmatpush2.xpose.msra.mxu0 0.0
    %565 = vmatprep.subr.mxu0 0.0
    %566 = vmatpush2.xpose.msra.mxu0 0.0
    %567 = vmatprep.subr.mxu0 0.0
    %568 = vmatpush2.xpose.msra.mxu0 0.0
    %569 = vmatprep.subr.mxu0 0.0
    %570 = vmatpush2.xpose.msra.mxu0 0.0
    %571 = vmatprep.subr.mxu0 0.0
    %572 = vmatpush2.xpose.msra.mxu0 0.0
    %573 = vmatprep.subr.mxu0 0.0
    %574 = vmatpush2.xpose.msra.mxu0 0.0
    %575 = vmatprep.subr.mxu0 0.0
    %576 = vmatpush2.xpose.msra.mxu0 0.0
    %577 = vmatprep.subr.mxu0 0.0
    %578 = vmatpush2.xpose.msra.mxu0 0.0
    %579 = vmatprep.subr.mxu0 0.0
    %580 = vmatpush2.xpose.msra.mxu0 0.0
    %581 = vmatprep.subr.mxu0 0.0
    %582 = vmatpush2.xpose.msra.mxu0 0.0
    %583 = vmatprep.subr.mxu0 0.0
    %584 = vmatpush2.xpose.msra.mxu0 0.0
    %585 = vmatprep.subr.mxu0 0.0
    %586 = vmatpush2.xpose.msra.mxu0 0.0
    %587 = vmatprep.subr.mxu0 0.0
    %588 = vmatpush2.xpose.msra.mxu0 0.0
    %589 = vmatprep.subr.mxu0 0.0
    %590 = vmatpush2.xpose.msra.mxu0 0.0
    %591 = vmatprep.mubr.f32.mxu0 0.0
    %592 = vmatmul.mubr.f32.gmra.mxu0 %v519
    %v593 = vpop.f32.mrf.mxu0
    %v594 = vadd.f32 0.0, %v593
    %v595 = vpop.f32.mrf.mxu0
    %596 = vmatprep.mubr.f32.mxu0 0.0
    %597 = vmatmul.mubr.f32.gmra.mxu0 %v521
    %v598 = vpop.f32.mrf.mxu0
    %v599 = vadd.f32 0.0, %v598
    %v600 = vpop.f32.mrf.mxu0
    %601 = vdwg.mxu0
    %602 = vrot.lane.b32.xlu0 %v504, 120
    %v603 = vpop.permute.xlu0 %602
    %604 = vrot.lane.b32.xlu0 %v509, 120
    %v605 = vpop.permute.xlu0 %604
    %606 = vrot.lane.b32.xlu0 %v504, 88
    %v607 = vpop.permute.xlu0 %606
    %608 = vrot.lane.b32.xlu0 %v509, 88
    %v609 = vpop.permute.xlu0 %608
    %v610 = vsel %vm518, %v603, 0
    %v612 = vsel %vm518, %v605, 0
    %v614 = vsel %vm518, %v607, 0
    %v616 = vsel %vm518, %v609, 0
    %618 = vmatprep.subr.mxu0 0.0
    %619 = vmatpush1.xpose.msra.mxu0 0.0
    %620 = vmatprep.subr.mxu0 0.0
    %621 = vmatpush1.xpose.msra.mxu0 0.0
    %622 = vmatprep.subr.mxu0 0.0
    %623 = vmatpush1.xpose.msra.mxu0 0.0
    %624 = vmatprep.subr.mxu0 0.0
    %625 = vmatpush1.xpose.msra.mxu0 0.0
    %626 = vmatprep.subr.mxu0 0.0
    %627 = vmatpush1.xpose.msra.mxu0 0.0
    %628 = vmatprep.subr.mxu0 0.0
    %629 = vmatpush1.xpose.msra.mxu0 0.0
    %630 = vmatprep.subr.mxu0 0.0
    %631 = vmatpush1.xpose.msra.mxu0 0.0
    %632 = vmatprep.subr.mxu0 0.0
    %633 = vmatpush1.xpose.msra.mxu0 0.0
    %634 = vmatprep.subr.mxu0 0.0
    %635 = vmatpush1.xpose.msra.mxu0 0.0
    %636 = vmatprep.subr.mxu0 0.0
    %637 = vmatpush1.xpose.msra.mxu0 0.0
    %638 = vmatprep.subr.mxu0 0.0
    %639 = vmatpush1.xpose.msra.mxu0 0.0
    %640 = vmatprep.subr.mxu0 0.0
    %641 = vmatpush1.xpose.msra.mxu0 0.0
    %642 = vmatprep.subr.mxu0 0.0
    %643 = vmatpush1.xpose.msra.mxu0 0.0
    %644 = vmatprep.subr.mxu0 0.0
    %645 = vmatpush1.xpose.msra.mxu0 0.0
    %646 = vmatprep.subr.mxu0 0.0
    %647 = vmatpush1.xpose.msra.mxu0 %v616
    %648 = vmatprep.subr.mxu0 0.0
    %649 = vmatpush1.xpose.msra.mxu0 %v614
    %650 = vmatprep.subr.mxu0 0.0
    %651 = vmatpush2.xpose.msra.mxu0 0.0
    %652 = vmatprep.subr.mxu0 0.0
    %653 = vmatpush2.xpose.msra.mxu0 0.0
    %654 = vmatprep.subr.mxu0 0.0
    %655 = vmatpush2.xpose.msra.mxu0 0.0
    %656 = vmatprep.subr.mxu0 0.0
    %657 = vmatpush2.xpose.msra.mxu0 0.0
    %658 = vmatprep.subr.mxu0 0.0
    %659 = vmatpush2.xpose.msra.mxu0 0.0
    %660 = vmatprep.subr.mxu0 0.0
    %661 = vmatpush2.xpose.msra.mxu0 0.0
    %662 = vmatprep.subr.mxu0 0.0
    %663 = vmatpush2.xpose.msra.mxu0 0.0
    %664 = vmatprep.subr.mxu0 0.0
    %665 = vmatpush2.xpose.msra.mxu0 0.0
    %666 = vmatprep.subr.mxu0 0.0
    %667 = vmatpush2.xpose.msra.mxu0 0.0
    %668 = vmatprep.subr.mxu0 0.0
    %669 = vmatpush2.xpose.msra.mxu0 0.0
    %670 = vmatprep.subr.mxu0 0.0
    %671 = vmatpush2.xpose.msra.mxu0 0.0
    %672 = vmatprep.subr.mxu0 0.0
    %673 = vmatpush2.xpose.msra.mxu0 0.0
    %674 = vmatprep.subr.mxu0 0.0
    %675 = vmatpush2.xpose.msra.mxu0 0.0
    %676 = vmatprep.subr.mxu0 0.0
    %677 = vmatpush2.xpose.msra.mxu0 0.0
    %678 = vmatprep.subr.mxu0 0.0
    %679 = vmatpush2.xpose.msra.mxu0 0.0
    %680 = vmatprep.subr.mxu0 0.0
    %681 = vmatpush2.xpose.msra.mxu0 0.0
    %682 = vmatprep.mubr.f32.mxu0 0.0
    %683 = vmatmul.mubr.f32.gmra.mxu0 %v610
    %v684 = vpop.f32.mrf.mxu0
    %v685 = vadd.f32 0.0, %v684
    %v686 = vpop.f32.mrf.mxu0
    %687 = vmatprep.mubr.f32.mxu0 0.0
    %688 = vmatmul.mubr.f32.gmra.mxu0 %v612
    %v689 = vpop.f32.mrf.mxu0
    %v690 = vadd.f32 0.0, %v689
    %v691 = vpop.f32.mrf.mxu0
    %692 = vdwg.mxu0
    %693 = vrot.lane.b32.xlu0 %v504, 112
    %v694 = vpop.permute.xlu0 %693
    %695 = vrot.lane.b32.xlu0 %v509, 112
    %v696 = vpop.permute.xlu0 %695
    %697 = vrot.lane.b32.xlu0 %v504, 80
    %v698 = vpop.permute.xlu0 %697
    %699 = vrot.lane.b32.xlu0 %v509, 80
    %v700 = vpop.permute.xlu0 %699
    %v701 = vsel %vm518, %v694, 0
    %v703 = vsel %vm518, %v696, 0
    %v705 = vsel %vm518, %v698, 0
    %v707 = vsel %vm518, %v700, 0
    %709 = vmatprep.subr.mxu0 0.0
    %710 = vmatpush1.xpose.msra.mxu0 0.0
    %711 = vmatprep.subr.mxu0 0.0
    %712 = vmatpush1.xpose.msra.mxu0 0.0
    %713 = vmatprep.subr.mxu0 0.0
    %714 = vmatpush1.xpose.msra.mxu0 0.0
    %715 = vmatprep.subr.mxu0 0.0
    %716 = vmatpush1.xpose.msra.mxu0 0.0
    %717 = vmatprep.subr.mxu0 0.0
    %718 = vmatpush1.xpose.msra.mxu0 0.0
    %719 = vmatprep.subr.mxu0 0.0
    %720 = vmatpush1.xpose.msra.mxu0 0.0
    %721 = vmatprep.subr.mxu0 0.0
    %722 = vmatpush1.xpose.msra.mxu0 0.0
    %723 = vmatprep.subr.mxu0 0.0
    %724 = vmatpush1.xpose.msra.mxu0 0.0
    %725 = vmatprep.subr.mxu0 0.0
    %726 = vmatpush1.xpose.msra.mxu0 0.0
    %727 = vmatprep.subr.mxu0 0.0
    %728 = vmatpush1.xpose.msra.mxu0 0.0
    %729 = vmatprep.subr.mxu0 0.0
    %730 = vmatpush1.xpose.msra.mxu0 0.0
    %731 = vmatprep.subr.mxu0 0.0
    %732 = vmatpush1.xpose.msra.mxu0 0.0
    %733 = vmatprep.subr.mxu0 0.0
    %734 = vmatpush1.xpose.msra.mxu0 0.0
    %735 = vmatprep.subr.mxu0 0.0
    %736 = vmatpush1.xpose.msra.mxu0 0.0
    %737 = vmatprep.subr.mxu0 0.0
    %738 = vmatpush1.xpose.msra.mxu0 %v707
    %739 = vmatprep.subr.mxu0 0.0
    %740 = vmatpush1.xpose.msra.mxu0 %v705
    %741 = vmatprep.subr.mxu0 0.0
    %742 = vmatpush2.xpose.msra.mxu0 0.0
    %743 = vmatprep.subr.mxu0 0.0
    %744 = vmatpush2.xpose.msra.mxu0 0.0
    %745 = vmatprep.subr.mxu0 0.0
    %746 = vmatpush2.xpose.msra.mxu0 0.0
    %747 = vmatprep.subr.mxu0 0.0
    %748 = vmatpush2.xpose.msra.mxu0 0.0
    %749 = vmatprep.subr.mxu0 0.0
    %750 = vmatpush2.xpose.msra.mxu0 0.0
    %751 = vmatprep.subr.mxu0 0.0
    %752 = vmatpush2.xpose.msra.mxu0 0.0
    %753 = vmatprep.subr.mxu0 0.0
    %754 = vmatpush2.xpose.msra.mxu0 0.0
    %755 = vmatprep.subr.mxu0 0.0
    %756 = vmatpush2.xpose.msra.mxu0 0.0
    %757 = vmatprep.subr.mxu0 0.0
    %758 = vmatpush2.xpose.msra.mxu0 0.0
    %759 = vmatprep.subr.mxu0 0.0
    %760 = vmatpush2.xpose.msra.mxu0 0.0
    %761 = vmatprep.subr.mxu0 0.0
    %762 = vmatpush2.xpose.msra.mxu0 0.0
    %763 = vmatprep.subr.mxu0 0.0
    %764 = vmatpush2.xpose.msra.mxu0 0.0
    %765 = vmatprep.subr.mxu0 0.0
    %766 = vmatpush2.xpose.msra.mxu0 0.0
    %767 = vmatprep.subr.mxu0 0.0
    %768 = vmatpush2.xpose.msra.mxu0 0.0
    %769 = vmatprep.subr.mxu0 0.0
    %770 = vmatpush2.xpose.msra.mxu0 0.0
    %771 = vmatprep.subr.mxu0 0.0
    %772 = vmatpush2.xpose.msra.mxu0 0.0
    %773 = vmatprep.mubr.f32.mxu0 0.0
    %774 = vmatmul.mubr.f32.gmra.mxu0 %v701
    %v775 = vpop.f32.mrf.mxu0
    %v776 = vadd.f32 0.0, %v775
    %v777 = vpop.f32.mrf.mxu0
    %778 = vmatprep.mubr.f32.mxu0 0.0
    %779 = vmatmul.mubr.f32.gmra.mxu0 %v703
    %v780 = vpop.f32.mrf.mxu0
    %v781 = vadd.f32 0.0, %v780
    %v782 = vpop.f32.mrf.mxu0
    %783 = vdwg.mxu0
    %784 = vrot.lane.b32.xlu0 %v504, 104
    %v785 = vpop.permute.xlu0 %784
    %786 = vrot.lane.b32.xlu0 %v509, 104
    %v787 = vpop.permute.xlu0 %786
    %788 = vrot.lane.b32.xlu0 %v504, 72
    %v789 = vpop.permute.xlu0 %788
    %790 = vrot.lane.b32.xlu0 %v509, 72
    %v791 = vpop.permute.xlu0 %790
    %v792 = vsel %vm518, %v785, 0
    %v794 = vsel %vm518, %v787, 0
    %v796 = vsel %vm518, %v789, 0
    %v798 = vsel %vm518, %v791, 0
    %800 = vmatprep.subr.mxu0 0.0
    %801 = vmatpush1.xpose.msra.mxu0 0.0
    %802 = vmatprep.subr.mxu0 0.0
    %803 = vmatpush1.xpose.msra.mxu0 0.0
    %804 = vmatprep.subr.mxu0 0.0
    %805 = vmatpush1.xpose.msra.mxu0 0.0
    %806 = vmatprep.subr.mxu0 0.0
    %807 = vmatpush1.xpose.msra.mxu0 0.0
    %808 = vmatprep.subr.mxu0 0.0
    %809 = vmatpush1.xpose.msra.mxu0 0.0
    %810 = vmatprep.subr.mxu0 0.0
    %811 = vmatpush1.xpose.msra.mxu0 0.0
    %812 = vmatprep.subr.mxu0 0.0
    %813 = vmatpush1.xpose.msra.mxu0 0.0
    %814 = vmatprep.subr.mxu0 0.0
    %815 = vmatpush1.xpose.msra.mxu0 0.0
    %816 = vmatprep.subr.mxu0 0.0
    %817 = vmatpush1.xpose.msra.mxu0 0.0
    %818 = vmatprep.subr.mxu0 0.0
    %819 = vmatpush1.xpose.msra.mxu0 0.0
    %820 = vmatprep.subr.mxu0 0.0
    %821 = vmatpush1.xpose.msra.mxu0 0.0
    %822 = vmatprep.subr.mxu0 0.0
    %823 = vmatpush1.xpose.msra.mxu0 0.0
    %824 = vmatprep.subr.mxu0 0.0
    %825 = vmatpush1.xpose.msra.mxu0 0.0
    %826 = vmatprep.subr.mxu0 0.0
    %827 = vmatpush1.xpose.msra.mxu0 0.0
    %828 = vmatprep.subr.mxu0 0.0
    %829 = vmatpush1.xpose.msra.mxu0 %v798
    %830 = vmatprep.subr.mxu0 0.0
    %831 = vmatpush1.xpose.msra.mxu0 %v796
    %832 = vmatprep.subr.mxu0 0.0
    %833 = vmatpush2.xpose.msra.mxu0 0.0
    %834 = vmatprep.subr.mxu0 0.0
    %835 = vmatpush2.xpose.msra.mxu0 0.0
    %836 = vmatprep.subr.mxu0 0.0
    %837 = vmatpush2.xpose.msra.mxu0 0.0
    %838 = vmatprep.subr.mxu0 0.0
    %839 = vmatpush2.xpose.msra.mxu0 0.0
    %840 = vmatprep.subr.mxu0 0.0
    %841 = vmatpush2.xpose.msra.mxu0 0.0
    %842 = vmatprep.subr.mxu0 0.0
    %843 = vmatpush2.xpose.msra.mxu0 0.0
    %844 = vmatprep.subr.mxu0 0.0
    %845 = vmatpush2.xpose.msra.mxu0 0.0
    %846 = vmatprep.subr.mxu0 0.0
    %847 = vmatpush2.xpose.msra.mxu0 0.0
    %848 = vmatprep.subr.mxu0 0.0
    %849 = vmatpush2.xpose.msra.mxu0 0.0
    %850 = vmatprep.subr.mxu0 0.0
    %851 = vmatpush2.xpose.msra.mxu0 0.0
    %852 = vmatprep.subr.mxu0 0.0
    %853 = vmatpush2.xpose.msra.mxu0 0.0
    %854 = vmatprep.subr.mxu0 0.0
    %855 = vmatpush2.xpose.msra.mxu0 0.0
    %856 = vmatprep.subr.mxu0 0.0
    %857 = vmatpush2.xpose.msra.mxu0 0.0
    %858 = vmatprep.subr.mxu0 0.0
    %859 = vmatpush2.xpose.msra.mxu0 0.0
    %860 = vmatprep.subr.mxu0 0.0
    %861 = vmatpush2.xpose.msra.mxu0 0.0
    %862 = vmatprep.subr.mxu0 0.0
    %863 = vmatpush2.xpose.msra.mxu0 0.0
    %864 = vmatprep.mubr.f32.mxu0 0.0
    %865 = vmatmul.mubr.f32.gmra.mxu0 %v792
    %v866 = vpop.f32.mrf.mxu0
    %v867 = vadd.f32 0.0, %v866
    %v868 = vpop.f32.mrf.mxu0
    %869 = vmatprep.mubr.f32.mxu0 0.0
    %870 = vmatmul.mubr.f32.gmra.mxu0 %v794
    %v871 = vpop.f32.mrf.mxu0
    %v872 = vadd.f32 0.0, %v871
    %v873 = vpop.f32.mrf.mxu0
    %874 = vdwg.mxu0
    %v877 = vrot.slane %v685, 6
    %v878 = vrot.slane %v690, 6
    %v879 = vsel %vm361, %v877, %v878
    %v884 = vrot.slane %v776, 4
    %v885 = vrot.slane %v781, 4
    %v886 = vsel %vm367, %v884, %v885
    %v891 = vrot.slane %v867, 2
    %v892 = vrot.slane %v872, 2
    %v893 = vsel %vm373, %v891, %v892
    %v896 = vsel %vm361, %v599, %v877
    %v897 = vsel %vm367, %v879, %v884
    %v898 = vsel %vm373, %v886, %v891
    %v899 = vadd.f32 %v594, %v357
    %v900 = vadd.f32 %v896, %v379
    %v901 = vadd.f32 %v897, %v380
    %v902 = vadd.f32 %v898, %v381
    %v903 = vadd.f32 %v893, %v376
    %vm904 = vcmask 80896
    %v905 = vsel %vm904, %v899, -inf
    %906 = vmax.xlane.f32.xlu0 %v905
    %v907 = vpop.xlane.xlu0 %906
    %v908 = vsel %vm904, %v900, -inf
    %909 = vmax.xlane.f32.xlu0 %v908
    %v910 = vpop.xlane.xlu0 %909
    %v911 = vsel %vm904, %v901, -inf
    %912 = vmax.xlane.f32.xlu0 %v911
    %v913 = vpop.xlane.xlu0 %912
    %v914 = vsel %vm904, %v902, -inf
    %915 = vmax.xlane.f32.xlu0 %v914
    %v916 = vpop.xlane.xlu0 %915
    %v917 = vsel %vm904, %v903, -inf
    %918 = vmax.xlane.f32.xlu0 %v917
    %v919 = vpop.xlane.xlu0 %918
    %v920 = vsub.f32 %v899, %v907
    %v921 = vsub.f32 %v900, %v910
    %v922 = vsub.f32 %v901, %v913
    %v923 = vsub.f32 %v902, %v916
    %v924 = vsub.f32 %v903, %v919
    %v925 = vmul.f32 %v920, 1.442695
    %v926 = vpow.pop %v925
    %v927 = vmul.f32 %v921, 1.442695
    %v928 = vpow.pop %v927
    %v929 = vmul.f32 %v922, 1.442695
    %v930 = vpow.pop %v929
    %v931 = vmul.f32 %v923, 1.442695
    %v932 = vpow.pop %v931
    %v933 = vmul.f32 %v924, 1.442695
    %v934 = vpow.pop %v933
    %v935 = vsel %vm904, %v926, 0.0
    %936 = vadd.xlane.f32.xlu0 %v935
    %v937 = vpop.xlane.xlu0 %936
    %v938 = vsel %vm904, %v928, 0.0
    %939 = vadd.xlane.f32.xlu0 %v938
    %v940 = vpop.xlane.xlu0 %939
    %v941 = vsel %vm904, %v930, 0.0
    %942 = vadd.xlane.f32.xlu0 %v941
    %v943 = vpop.xlane.xlu0 %942
    %v944 = vsel %vm904, %v932, 0.0
    %945 = vadd.xlane.f32.xlu0 %v944
    %v946 = vpop.xlane.xlu0 %945
    %v947 = vsel %vm904, %v934, 0.0
    %948 = vadd.xlane.f32.xlu0 %v947
    %v949 = vpop.xlane.xlu0 %948
    %v950 = vrcp.pop %v937
    %v951 = vrcp.pop %v940
    %v952 = vrcp.pop %v943
    %v953 = vrcp.pop %v946
    %v954 = vrcp.pop %v949
    %v955 = vmul.f32 %v926, %v950
    %v956 = vmul.f32 %v928, %v951
    %v957 = vmul.f32 %v930, %v952
    %v958 = vmul.f32 %v932, %v953
    %v959 = vmul.f32 %v934, %v954
    %960 = vrot.lane.b32.xlu0 %v504, 64
    %v961 = vpop.permute.xlu0 %960
    %962 = vrot.lane.b32.xlu0 %v509, 64
    %v963 = vpop.permute.xlu0 %962
    %v966 = vsel %vm904, %v955, 0
    %v969 = vsel %vm904, %v956, 0
    %v971 = vsel %vm361, %v963, 0
    %973 = vmatprep.subr.mxu0 0.0
    %974 = vmatpush1.msra.mxu0 0.0
    %975 = vmatprep.subr.mxu0 0.0
    %976 = vmatpush1.msra.mxu0 0.0
    %977 = vmatprep.subr.mxu0 0.0
    %978 = vmatpush1.msra.mxu0 0.0
    %979 = vmatprep.subr.mxu0 0.0
    %980 = vmatpush1.msra.mxu0 0.0
    %981 = vmatprep.subr.mxu0 0.0
    %982 = vmatpush1.msra.mxu0 0.0
    %983 = vmatprep.subr.mxu0 0.0
    %984 = vmatpush1.msra.mxu0 0.0
    %985 = vmatprep.subr.mxu0 0.0
    %986 = vmatpush1.msra.mxu0 0.0
    %987 = vmatprep.subr.mxu0 0.0
    %988 = vmatpush1.msra.mxu0 0.0
    %989 = vmatprep.subr.mxu0 0.0
    %990 = vmatpush1.msra.mxu0 0.0
    %991 = vmatprep.subr.mxu0 0.0
    %992 = vmatpush1.msra.mxu0 0.0
    %993 = vmatprep.subr.mxu0 0.0
    %994 = vmatpush1.msra.mxu0 0.0
    %995 = vmatprep.subr.mxu0 0.0
    %996 = vmatpush1.msra.mxu0 0.0
    %997 = vmatprep.subr.mxu0 0.0
    %998 = vmatpush1.msra.mxu0 0.0
    %999 = vmatprep.subr.mxu0 0.0
    %1000 = vmatpush1.msra.mxu0 0.0
    %1001 = vmatprep.subr.mxu0 0.0
    %1002 = vmatpush1.msra.mxu0 %v971
    %1003 = vmatprep.subr.mxu0 0.0
    %1004 = vmatpush1.msra.mxu0 %v961
    %1005 = vmatprep.subr.mxu0 0.0
    %1006 = vmatpush2.msra.mxu0 0.0
    %1007 = vmatprep.subr.mxu0 0.0
    %1008 = vmatpush2.msra.mxu0 0.0
    %1009 = vmatprep.subr.mxu0 0.0
    %1010 = vmatpush2.msra.mxu0 0.0
    %1011 = vmatprep.subr.mxu0 0.0
    %1012 = vmatpush2.msra.mxu0 0.0
    %1013 = vmatprep.subr.mxu0 0.0
    %1014 = vmatpush2.msra.mxu0 0.0
    %1015 = vmatprep.subr.mxu0 0.0
    %1016 = vmatpush2.msra.mxu0 0.0
    %1017 = vmatprep.subr.mxu0 0.0
    %1018 = vmatpush2.msra.mxu0 0.0
    %1019 = vmatprep.subr.mxu0 0.0
    %1020 = vmatpush2.msra.mxu0 0.0
    %1021 = vmatprep.subr.mxu0 0.0
    %1022 = vmatpush2.msra.mxu0 0.0
    %1023 = vmatprep.subr.mxu0 0.0
    %1024 = vmatpush2.msra.mxu0 0.0
    %1025 = vmatprep.subr.mxu0 0.0
    %1026 = vmatpush2.msra.mxu0 0.0
    %1027 = vmatprep.subr.mxu0 0.0
    %1028 = vmatpush2.msra.mxu0 0.0
    %1029 = vmatprep.subr.mxu0 0.0
    %1030 = vmatpush2.msra.mxu0 0.0
    %1031 = vmatprep.subr.mxu0 0.0
    %1032 = vmatpush2.msra.mxu0 0.0
    %1033 = vmatprep.subr.mxu0 0.0
    %1034 = vmatpush2.msra.mxu0 0.0
    %1035 = vmatprep.subr.mxu0 0.0
    %1036 = vmatpush2.msra.mxu0 0.0
    %1037 = vmatprep.mubr.f32.mxu0 0.0
    %1038 = vmatmul.mubr.f32.gmra.mxu0 %v966
    %v1039 = vpop.f32.mrf.mxu0
    %v1040 = vadd.f32 0.0, %v1039
    %v1041 = vpop.f32.mrf.mxu0
    %1042 = vmatprep.mubr.f32.mxu0 0.0
    %1043 = vmatmul.mubr.f32.gmra.mxu0 %v969
    %v1044 = vpop.f32.mrf.mxu0
    %v1045 = vadd.f32 0.0, %v1044
    %v1046 = vpop.f32.mrf.mxu0
    %1047 = vdwg.mxu0
    %v1049 = vrot.slane %v956, 2
    %v1050 = vrot.slane %v957, 2
    %v1051 = vsel %vm373, %v1049, %v1050
    %1052 = vrot.lane.b32.xlu0 %v504, 56
    %v1053 = vpop.permute.xlu0 %1052
    %1054 = vrot.lane.b32.xlu0 %v509, 56
    %v1055 = vpop.permute.xlu0 %1054
    %v1057 = vsel %vm904, %v1051, 0
    %v1059 = vsel %vm904, %v1050, 0
    %v1061 = vsel %vm361, %v1055, 0
    %1063 = vmatprep.subr.mxu0 0.0
    %1064 = vmatpush1.msra.mxu0 0.0
    %1065 = vmatprep.subr.mxu0 0.0
    %1066 = vmatpush1.msra.mxu0 0.0
    %1067 = vmatprep.subr.mxu0 0.0
    %1068 = vmatpush1.msra.mxu0 0.0
    %1069 = vmatprep.subr.mxu0 0.0
    %1070 = vmatpush1.msra.mxu0 0.0
    %1071 = vmatprep.subr.mxu0 0.0
    %1072 = vmatpush1.msra.mxu0 0.0
    %1073 = vmatprep.subr.mxu0 0.0
    %1074 = vmatpush1.msra.mxu0 0.0
    %1075 = vmatprep.subr.mxu0 0.0
    %1076 = vmatpush1.msra.mxu0 0.0
    %1077 = vmatprep.subr.mxu0 0.0
    %1078 = vmatpush1.msra.mxu0 0.0
    %1079 = vmatprep.subr.mxu0 0.0
    %1080 = vmatpush1.msra.mxu0 0.0
    %1081 = vmatprep.subr.mxu0 0.0
    %1082 = vmatpush1.msra.mxu0 0.0
    %1083 = vmatprep.subr.mxu0 0.0
    %1084 = vmatpush1.msra.mxu0 0.0
    %1085 = vmatprep.subr.mxu0 0.0
    %1086 = vmatpush1.msra.mxu0 0.0
    %1087 = vmatprep.subr.mxu0 0.0
    %1088 = vmatpush1.msra.mxu0 0.0
    %1089 = vmatprep.subr.mxu0 0.0
    %1090 = vmatpush1.msra.mxu0 0.0
    %1091 = vmatprep.subr.mxu0 0.0
    %1092 = vmatpush1.msra.mxu0 %v1061
    %1093 = vmatprep.subr.mxu0 0.0
    %1094 = vmatpush1.msra.mxu0 %v1053
    %1095 = vmatprep.subr.mxu0 0.0
    %1096 = vmatpush2.msra.mxu0 0.0
    %1097 = vmatprep.subr.mxu0 0.0
    %1098 = vmatpush2.msra.mxu0 0.0
    %1099 = vmatprep.subr.mxu0 0.0
    %1100 = vmatpush2.msra.mxu0 0.0
    %1101 = vmatprep.subr.mxu0 0.0
    %1102 = vmatpush2.msra.mxu0 0.0
    %1103 = vmatprep.subr.mxu0 0.0
    %1104 = vmatpush2.msra.mxu0 0.0
    %1105 = vmatprep.subr.mxu0 0.0
    %1106 = vmatpush2.msra.mxu0 0.0
    %1107 = vmatprep.subr.mxu0 0.0
    %1108 = vmatpush2.msra.mxu0 0.0
    %1109 = vmatprep.subr.mxu0 0.0
    %1110 = vmatpush2.msra.mxu0 0.0
    %1111 = vmatprep.subr.mxu0 0.0
    %1112 = vmatpush2.msra.mxu0 0.0
    %1113 = vmatprep.subr.mxu0 0.0
    %1114 = vmatpush2.msra.mxu0 0.0
    %1115 = vmatprep.subr.mxu0 0.0
    %1116 = vmatpush2.msra.mxu0 0.0
    %1117 = vmatprep.subr.mxu0 0.0
    %1118 = vmatpush2.msra.mxu0 0.0
    %1119 = vmatprep.subr.mxu0 0.0
    %1120 = vmatpush2.msra.mxu0 0.0
    %1121 = vmatprep.subr.mxu0 0.0
    %1122 = vmatpush2.msra.mxu0 0.0
    %1123 = vmatprep.subr.mxu0 0.0
    %1124 = vmatpush2.msra.mxu0 0.0
    %1125 = vmatprep.subr.mxu0 0.0
    %1126 = vmatpush2.msra.mxu0 0.0
    %1127 = vmatprep.mubr.f32.mxu0 0.0
    %1128 = vmatmul.mubr.f32.gmra.mxu0 %v1057
    %v1129 = vpop.f32.mrf.mxu0
    %v1130 = vadd.f32 0.0, %v1129
    %v1131 = vpop.f32.mrf.mxu0
    %1132 = vmatprep.mubr.f32.mxu0 0.0
    %1133 = vmatmul.mubr.f32.gmra.mxu0 %v1059
    %v1134 = vpop.f32.mrf.mxu0
    %v1135 = vadd.f32 0.0, %v1134
    %v1136 = vpop.f32.mrf.mxu0
    %1137 = vdwg.mxu0
    %v1139 = vrot.slane %v957, 4
    %v1140 = vrot.slane %v958, 4
    %v1141 = vsel %vm367, %v1139, %v1140
    %1142 = vrot.lane.b32.xlu0 %v504, 48
    %v1143 = vpop.permute.xlu0 %1142
    %1144 = vrot.lane.b32.xlu0 %v509, 48
    %v1145 = vpop.permute.xlu0 %1144
    %v1147 = vsel %vm904, %v1141, 0
    %v1149 = vsel %vm904, %v1140, 0
    %v1151 = vsel %vm361, %v1145, 0
    %1153 = vmatprep.subr.mxu0 0.0
    %1154 = vmatpush1.msra.mxu0 0.0
    %1155 = vmatprep.subr.mxu0 0.0
    %1156 = vmatpush1.msra.mxu0 0.0
    %1157 = vmatprep.subr.mxu0 0.0
    %1158 = vmatpush1.msra.mxu0 0.0
    %1159 = vmatprep.subr.mxu0 0.0
    %1160 = vmatpush1.msra.mxu0 0.0
    %1161 = vmatprep.subr.mxu0 0.0
    %1162 = vmatpush1.msra.mxu0 0.0
    %1163 = vmatprep.subr.mxu0 0.0
    %1164 = vmatpush1.msra.mxu0 0.0
    %1165 = vmatprep.subr.mxu0 0.0
    %1166 = vmatpush1.msra.mxu0 0.0
    %1167 = vmatprep.subr.mxu0 0.0
    %1168 = vmatpush1.msra.mxu0 0.0
    %1169 = vmatprep.subr.mxu0 0.0
    %1170 = vmatpush1.msra.mxu0 0.0
    %1171 = vmatprep.subr.mxu0 0.0
    %1172 = vmatpush1.msra.mxu0 0.0
    %1173 = vmatprep.subr.mxu0 0.0
    %1174 = vmatpush1.msra.mxu0 0.0
    %1175 = vmatprep.subr.mxu0 0.0
    %1176 = vmatpush1.msra.mxu0 0.0
    %1177 = vmatprep.subr.mxu0 0.0
    %1178 = vmatpush1.msra.mxu0 0.0
    %1179 = vmatprep.subr.mxu0 0.0
    %1180 = vmatpush1.msra.mxu0 0.0
    %1181 = vmatprep.subr.mxu0 0.0
    %1182 = vmatpush1.msra.mxu0 %v1151
    %1183 = vmatprep.subr.mxu0 0.0
    %1184 = vmatpush1.msra.mxu0 %v1143
    %1185 = vmatprep.subr.mxu0 0.0
    %1186 = vmatpush2.msra.mxu0 0.0
    %1187 = vmatprep.subr.mxu0 0.0
    %1188 = vmatpush2.msra.mxu0 0.0
    %1189 = vmatprep.subr.mxu0 0.0
    %1190 = vmatpush2.msra.mxu0 0.0
    %1191 = vmatprep.subr.mxu0 0.0
    %1192 = vmatpush2.msra.mxu0 0.0
    %1193 = vmatprep.subr.mxu0 0.0
    %1194 = vmatpush2.msra.mxu0 0.0
    %1195 = vmatprep.subr.mxu0 0.0
    %1196 = vmatpush2.msra.mxu0 0.0
    %1197 = vmatprep.subr.mxu0 0.0
    %1198 = vmatpush2.msra.mxu0 0.0
    %1199 = vmatprep.subr.mxu0 0.0
    %1200 = vmatpush2.msra.mxu0 0.0
    %1201 = vmatprep.subr.mxu0 0.0
    %1202 = vmatpush2.msra.mxu0 0.0
    %1203 = vmatprep.subr.mxu0 0.0
    %1204 = vmatpush2.msra.mxu0 0.0
    %1205 = vmatprep.subr.mxu0 0.0
    %1206 = vmatpush2.msra.mxu0 0.0
    %1207 = vmatprep.subr.mxu0 0.0
    %1208 = vmatpush2.msra.mxu0 0.0
    %1209 = vmatprep.subr.mxu0 0.0
    %1210 = vmatpush2.msra.mxu0 0.0
    %1211 = vmatprep.subr.mxu0 0.0
    %1212 = vmatpush2.msra.mxu0 0.0
    %1213 = vmatprep.subr.mxu0 0.0
    %1214 = vmatpush2.msra.mxu0 0.0
    %1215 = vmatprep.subr.mxu0 0.0
    %1216 = vmatpush2.msra.mxu0 0.0
    %1217 = vmatprep.mubr.f32.mxu0 0.0
    %1218 = vmatmul.mubr.f32.gmra.mxu0 %v1147
    %v1219 = vpop.f32.mrf.mxu0
    %v1220 = vadd.f32 0.0, %v1219
    %v1221 = vpop.f32.mrf.mxu0
    %1222 = vmatprep.mubr.f32.mxu0 0.0
    %1223 = vmatmul.mubr.f32.gmra.mxu0 %v1149
    %v1224 = vpop.f32.mrf.mxu0
    %v1225 = vadd.f32 0.0, %v1224
    %v1226 = vpop.f32.mrf.mxu0
    %1227 = vdwg.mxu0
    %v1229 = vrot.slane %v958, 6
    %v1230 = vrot.slane %v959, 6
    %v1231 = vsel %vm361, %v1229, %v1230
    %1232 = vrot.lane.b32.xlu0 %v504, 40
    %v1233 = vpop.permute.xlu0 %1232
    %1234 = vrot.lane.b32.xlu0 %v509, 40
    %v1235 = vpop.permute.xlu0 %1234
    %v1237 = vsel %vm904, %v1231, 0
    %v1239 = vsel %vm904, %v1230, 0
    %v1241 = vsel %vm361, %v1235, 0
    %1243 = vmatprep.subr.mxu0 0.0
    %1244 = vmatpush1.msra.mxu0 0.0
    %1245 = vmatprep.subr.mxu0 0.0
    %1246 = vmatpush1.msra.mxu0 0.0
    %1247 = vmatprep.subr.mxu0 0.0
    %1248 = vmatpush1.msra.mxu0 0.0
    %1249 = vmatprep.subr.mxu0 0.0
    %1250 = vmatpush1.msra.mxu0 0.0
    %1251 = vmatprep.subr.mxu0 0.0
    %1252 = vmatpush1.msra.mxu0 0.0
    %1253 = vmatprep.subr.mxu0 0.0
    %1254 = vmatpush1.msra.mxu0 0.0
    %1255 = vmatprep.subr.mxu0 0.0
    %1256 = vmatpush1.msra.mxu0 0.0
    %1257 = vmatprep.subr.mxu0 0.0
    %1258 = vmatpush1.msra.mxu0 0.0
    %1259 = vmatprep.subr.mxu0 0.0
    %1260 = vmatpush1.msra.mxu0 0.0
    %1261 = vmatprep.subr.mxu0 0.0
    %1262 = vmatpush1.msra.mxu0 0.0
    %1263 = vmatprep.subr.mxu0 0.0
    %1264 = vmatpush1.msra.mxu0 0.0
    %1265 = vmatprep.subr.mxu0 0.0
    %1266 = vmatpush1.msra.mxu0 0.0
    %1267 = vmatprep.subr.mxu0 0.0
    %1268 = vmatpush1.msra.mxu0 0.0
    %1269 = vmatprep.subr.mxu0 0.0
    %1270 = vmatpush1.msra.mxu0 0.0
    %1271 = vmatprep.subr.mxu0 0.0
    %1272 = vmatpush1.msra.mxu0 %v1241
    %1273 = vmatprep.subr.mxu0 0.0
    %1274 = vmatpush1.msra.mxu0 %v1233
    %1275 = vmatprep.subr.mxu0 0.0
    %1276 = vmatpush2.msra.mxu0 0.0
    %1277 = vmatprep.subr.mxu0 0.0
    %1278 = vmatpush2.msra.mxu0 0.0
    %1279 = vmatprep.subr.mxu0 0.0
    %1280 = vmatpush2.msra.mxu0 0.0
    %1281 = vmatprep.subr.mxu0 0.0
    %1282 = vmatpush2.msra.mxu0 0.0
    %1283 = vmatprep.subr.mxu0 0.0
    %1284 = vmatpush2.msra.mxu0 0.0
    %1285 = vmatprep.subr.mxu0 0.0
    %1286 = vmatpush2.msra.mxu0 0.0
    %1287 = vmatprep.subr.mxu0 0.0
    %1288 = vmatpush2.msra.mxu0 0.0
    %1289 = vmatprep.subr.mxu0 0.0
    %1290 = vmatpush2.msra.mxu0 0.0
    %1291 = vmatprep.subr.mxu0 0.0
    %1292 = vmatpush2.msra.mxu0 0.0
    %1293 = vmatprep.subr.mxu0 0.0
    %1294 = vmatpush2.msra.mxu0 0.0
    %1295 = vmatprep.subr.mxu0 0.0
    %1296 = vmatpush2.msra.mxu0 0.0
    %1297 = vmatprep.subr.mxu0 0.0
    %1298 = vmatpush2.msra.mxu0 0.0
    %1299 = vmatprep.subr.mxu0 0.0
    %1300 = vmatpush2.msra.mxu0 0.0
    %1301 = vmatprep.subr.mxu0 0.0
    %1302 = vmatpush2.msra.mxu0 0.0
    %1303 = vmatprep.subr.mxu0 0.0
    %1304 = vmatpush2.msra.mxu0 0.0
    %1305 = vmatprep.subr.mxu0 0.0
    %1306 = vmatpush2.msra.mxu0 0.0
    %1307 = vmatprep.mubr.f32.mxu0 0.0
    %1308 = vmatmul.mubr.f32.gmra.mxu0 %v1237
    %v1309 = vpop.f32.mrf.mxu0
    %v1310 = vadd.f32 0.0, %v1309
    %v1311 = vpop.f32.mrf.mxu0
    %1312 = vmatprep.mubr.f32.mxu0 0.0
    %1313 = vmatmul.mubr.f32.gmra.mxu0 %v1239
    %v1314 = vpop.f32.mrf.mxu0
    %v1315 = vadd.f32 0.0, %v1314
    %v1316 = vpop.f32.mrf.mxu0
    %1317 = vdwg.mxu0
    %1320 = vrot.lane.b32.xlu0 %v1130, 8
    %v1321 = vpop.permute.xlu0 %1320
    %1322 = vrot.lane.b32.xlu0 %v1135, 8
    %v1323 = vpop.permute.xlu0 %1322
    %1328 = vrot.lane.b32.xlu0 %v1220, 16
    %v1329 = vpop.permute.xlu0 %1328
    %1330 = vrot.lane.b32.xlu0 %v1225, 16
    %v1331 = vpop.permute.xlu0 %1330
    %1336 = vrot.lane.b32.xlu0 %v1310, 24
    %v1337 = vpop.permute.xlu0 %1336
    %1338 = vrot.lane.b32.xlu0 %v1315, 24
    %v1339 = vpop.permute.xlu0 %1338
    %v1342 = vsel %vm518, %v1040, %v1321
    %v1343 = vsel %vm518, %v1045, %v1323
    %vm1344 = vcmask 130048
    %v1345 = vsel %vm1344, %v1342, %v1329
    %v1346 = vsel %vm1344, %v1343, %v1331
    %vm1347 = vcmask 195584
    %v1348 = vsel %vm1347, %v1345, %v1337
    %v1349 = vsel %vm1347, %v1346, %v1339
    %v1350 = vld [vmem:[%s19] sm:$0xff]
    %v1351 = vld [vmem:[%s19 + $0x8] sm:$0xff]
    %v1352 = vld [vmem:[%s19 + $0x10] sm:$0xff]
    %v1353 = vld [vmem:[%s19 + $0x18] sm:$0xff]
    %v1355 = vsel %vm283, %v1348, 0
    %v1358 = vsel %vm283, %v1349, 0
    %1360 = vmatprep.subr.mxu0 0.0
    %1361 = vmatpush1.msra.mxu0 0.0
    %1362 = vmatprep.subr.mxu0 0.0
    %1363 = vmatpush1.msra.mxu0 0.0
    %1364 = vmatprep.subr.mxu0 0.0
    %1365 = vmatpush1.msra.mxu0 0.0
    %1366 = vmatprep.subr.mxu0 0.0
    %1367 = vmatpush1.msra.mxu0 0.0
    %1368 = vmatprep.subr.mxu0 0.0
    %1369 = vmatpush1.msra.mxu0 0.0
    %1370 = vmatprep.subr.mxu0 0.0
    %1371 = vmatpush1.msra.mxu0 0.0
    %1372 = vmatprep.subr.mxu0 0.0
    %1373 = vmatpush1.msra.mxu0 0.0
    %1374 = vmatprep.subr.mxu0 0.0
    %1375 = vmatpush1.msra.mxu0 0.0
    %1376 = vmatprep.subr.mxu0 0.0
    %1377 = vmatpush1.msra.mxu0 0.0
    %1378 = vmatprep.subr.mxu0 0.0
    %1379 = vmatpush1.msra.mxu0 0.0
    %1380 = vmatprep.subr.mxu0 0.0
    %1381 = vmatpush1.msra.mxu0 0.0
    %1382 = vmatprep.subr.mxu0 0.0
    %1383 = vmatpush1.msra.mxu0 0.0
    %1384 = vmatprep.subr.mxu0 0.0
    %1385 = vmatpush1.msra.mxu0 %v1353
    %1386 = vmatprep.subr.mxu0 0.0
    %1387 = vmatpush1.msra.mxu0 %v1352
    %1388 = vmatprep.subr.mxu0 0.0
    %1389 = vmatpush1.msra.mxu0 %v1351
    %1390 = vmatprep.subr.mxu0 0.0
    %1391 = vmatpush1.msra.mxu0 %v1350
    %1392 = vmatprep.subr.mxu0 0.0
    %1393 = vmatpush2.msra.mxu0 0.0
    %1394 = vmatprep.subr.mxu0 0.0
    %1395 = vmatpush2.msra.mxu0 0.0
    %1396 = vmatprep.subr.mxu0 0.0
    %1397 = vmatpush2.msra.mxu0 0.0
    %1398 = vmatprep.subr.mxu0 0.0
    %1399 = vmatpush2.msra.mxu0 0.0
    %1400 = vmatprep.subr.mxu0 0.0
    %1401 = vmatpush2.msra.mxu0 0.0
    %1402 = vmatprep.subr.mxu0 0.0
    %1403 = vmatpush2.msra.mxu0 0.0
    %1404 = vmatprep.subr.mxu0 0.0
    %1405 = vmatpush2.msra.mxu0 0.0
    %1406 = vmatprep.subr.mxu0 0.0
    %1407 = vmatpush2.msra.mxu0 0.0
    %1408 = vmatprep.subr.mxu0 0.0
    %1409 = vmatpush2.msra.mxu0 0.0
    %1410 = vmatprep.subr.mxu0 0.0
    %1411 = vmatpush2.msra.mxu0 0.0
    %1412 = vmatprep.subr.mxu0 0.0
    %1413 = vmatpush2.msra.mxu0 0.0
    %1414 = vmatprep.subr.mxu0 0.0
    %1415 = vmatpush2.msra.mxu0 0.0
    %1416 = vmatprep.subr.mxu0 0.0
    %1417 = vmatpush2.msra.mxu0 0.0
    %1418 = vmatprep.subr.mxu0 0.0
    %1419 = vmatpush2.msra.mxu0 0.0
    %1420 = vmatprep.subr.mxu0 0.0
    %1421 = vmatpush2.msra.mxu0 0.0
    %1422 = vmatprep.subr.mxu0 0.0
    %1423 = vmatpush2.msra.mxu0 0.0
    %1424 = vmatprep.mubr.f32.mxu0 0.0
    %1425 = vmatmul.mubr.f32.gmra.mxu0 %v1355
    %v1426 = vpop.f32.mrf.mxu0
    %v1427 = vadd.f32 0.0, %v1426
    %v1428 = vpop.f32.mrf.mxu0
    %1429 = vmatprep.mubr.f32.mxu0 0.0
    %1430 = vmatmul.mubr.f32.gmra.mxu0 %v1358
    %v1431 = vpop.f32.mrf.mxu0
    %v1432 = vadd.f32 0.0, %v1431
    %v1433 = vpop.f32.mrf.mxu0
    %1434 = vdwg.mxu0
    %v1435 = vadd.f32 %v326, %v1427
    %v1436 = vadd.f32 %v327, %v1432
    %v1437 = vld [vmem:[%s21] sm:$0x1]
    %v1438 = vlaneseq
    %v1439 = vshrl.u32 %v1438, 7
    %v1440 = vsub.s32 0, %v1439
    %v1441 = vrot.slane %v1437, %v1440
    %v1442 = vadd.f32 %v1435, %v1441
    %v1443 = vadd.f32 %v1436, %v1441
    %v1444 = vld [vmem:[%s23] sm:$0x1]
    %v1445 = vld [vmem:[%s25] sm:$0x1]
    %v1446 = vsel %vm283, %v1442, 0.0
    %1447 = vadd.xlane.f32.xlu0 %v1446
    %v1448 = vpop.xlane.xlu0 %1447
    %v1449 = vsel %vm287, %v1443, 0.0
    %1450 = vadd.xlane.f32.xlu0 %v1449
    %v1451 = vpop.xlane.xlu0 %1450
    %v1452 = vmul.f32 %v1448, %v291
    %v1453 = vmul.f32 %v1451, %v291
    %v1454 = vsub.f32 %v1442, %v1452
    %v1455 = vsub.f32 %v1443, %v1453
    %v1456 = vmul.f32 %v1454, %v1454
    %v1457 = vmul.f32 %v1455, %v1455
    %v1458 = vsel %vm283, %v1456, 0.0
    %1459 = vadd.xlane.f32.xlu0 %v1458
    %v1460 = vpop.xlane.xlu0 %1459
    %v1461 = vsel %vm287, %v1457, 0.0
    %1462 = vadd.xlane.f32.xlu0 %v1461
    %v1463 = vpop.xlane.xlu0 %1462
    %v1464 = vmul.f32 %v1460, %v291
    %v1465 = vmul.f32 %v1463, %v291
    %v1466 = vadd.f32 %v1464, 1e-05
    %v1467 = vadd.f32 %v1465, 1e-05
    %v1468 = vrsqrt.pop %v1466
    %v1469 = vrsqrt.pop %v1467
    %v1470 = vmul.f32 %v1454, %v1468
    %v1471 = vmul.f32 %v1455, %v1469
    %v1472 = vlaneseq
    %v1473 = vshrl.u32 %v1472, 7
    %v1474 = vsub.s32 0, %v1473
    %v1475 = vrot.slane %v1444, %v1474
    %v1476 = vmul.f32 %v1470, %v1475
    %v1477 = vmul.f32 %v1471, %v1475
    %v1478 = vlaneseq
    %v1479 = vshrl.u32 %v1478, 7
    %v1480 = vsub.s32 0, %v1479
    %v1481 = vrot.slane %v1445, %v1480
    %v1482 = vadd.f32 %v1476, %v1481
    %v1483 = vadd.f32 %v1477, %v1481
    %v1484 = vld [vmem:[%s27] sm:$0xff]
    %v1485 = vld [vmem:[%s27 + $0x8] sm:$0xff]
    %v1486 = vld [vmem:[%s27 + $0x10] sm:$0xff]
    %v1487 = vld [vmem:[%s27 + $0x18] sm:$0xff]
    %v1488 = vld [vmem:[%s29] sm:$0x1]
    %v1489 = vlaneseq
    %v1490 = vshrl.u32 %v1489, 7
    %v1491 = vsub.s32 0, %v1490
    %v1492 = vrot.slane %v1488, %v1491
    %v1494 = vsel %vm283, %v1482, 0
    %v1497 = vsel %vm283, %v1483, 0
    %1499 = vmatprep.subr.mxu0 0.0
    %1500 = vmatpush1.msra.mxu0 0.0
    %1501 = vmatprep.subr.mxu0 0.0
    %1502 = vmatpush1.msra.mxu0 0.0
    %1503 = vmatprep.subr.mxu0 0.0
    %1504 = vmatpush1.msra.mxu0 0.0
    %1505 = vmatprep.subr.mxu0 0.0
    %1506 = vmatpush1.msra.mxu0 0.0
    %1507 = vmatprep.subr.mxu0 0.0
    %1508 = vmatpush1.msra.mxu0 0.0
    %1509 = vmatprep.subr.mxu0 0.0
    %1510 = vmatpush1.msra.mxu0 0.0
    %1511 = vmatprep.subr.mxu0 0.0
    %1512 = vmatpush1.msra.mxu0 0.0
    %1513 = vmatprep.subr.mxu0 0.0
    %1514 = vmatpush1.msra.mxu0 0.0
    %1515 = vmatprep.subr.mxu0 0.0
    %1516 = vmatpush1.msra.mxu0 0.0
    %1517 = vmatprep.subr.mxu0 0.0
    %1518 = vmatpush1.msra.mxu0 0.0
    %1519 = vmatprep.subr.mxu0 0.0
    %1520 = vmatpush1.msra.mxu0 0.0
    %1521 = vmatprep.subr.mxu0 0.0
    %1522 = vmatpush1.msra.mxu0 0.0
    %1523 = vmatprep.subr.mxu0 0.0
    %1524 = vmatpush1.msra.mxu0 %v1487
    %1525 = vmatprep.subr.mxu0 0.0
    %1526 = vmatpush1.msra.mxu0 %v1486
    %1527 = vmatprep.subr.mxu0 0.0
    %1528 = vmatpush1.msra.mxu0 %v1485
    %1529 = vmatprep.subr.mxu0 0.0
    %1530 = vmatpush1.msra.mxu0 %v1484
    %1531 = vmatprep.subr.mxu0 0.0
    %1532 = vmatpush2.msra.mxu0 0.0
    %1533 = vmatprep.subr.mxu0 0.0
    %1534 = vmatpush2.msra.mxu0 0.0
    %1535 = vmatprep.subr.mxu0 0.0
    %1536 = vmatpush2.msra.mxu0 0.0
    %1537 = vmatprep.subr.mxu0 0.0
    %1538 = vmatpush2.msra.mxu0 0.0
    %1539 = vmatprep.subr.mxu0 0.0
    %1540 = vmatpush2.msra.mxu0 0.0
    %1541 = vmatprep.subr.mxu0 0.0
    %1542 = vmatpush2.msra.mxu0 0.0
    %1543 = vmatprep.subr.mxu0 0.0
    %1544 = vmatpush2.msra.mxu0 0.0
    %1545 = vmatprep.subr.mxu0 0.0
    %1546 = vmatpush2.msra.mxu0 0.0
    %1547 = vmatprep.subr.mxu0 0.0
    %1548 = vmatpush2.msra.mxu0 0.0
    %1549 = vmatprep.subr.mxu0 0.0
    %1550 = vmatpush2.msra.mxu0 0.0
    %1551 = vmatprep.subr.mxu0 0.0
    %1552 = vmatpush2.msra.mxu0 0.0
    %1553 = vmatprep.subr.mxu0 0.0
    %1554 = vmatpush2.msra.mxu0 0.0
    %1555 = vmatprep.subr.mxu0 0.0
    %1556 = vmatpush2.msra.mxu0 0.0
    %1557 = vmatprep.subr.mxu0 0.0
    %1558 = vmatpush2.msra.mxu0 0.0
    %1559 = vmatprep.subr.mxu0 0.0
    %1560 = vmatpush2.msra.mxu0 0.0
    %1561 = vmatprep.subr.mxu0 0.0
    %1562 = vmatpush2.msra.mxu0 0.0
    %1563 = vmatprep.mubr.f32.mxu0 0.0
    %1564 = vmatmul.mubr.f32.gmra.mxu0 %v1494
    %v1565 = vpop.f32.mrf.mxu0
    %v1566 = vadd.f32 %v1492, %v1565
    %v1567 = vpop.f32.mrf.mxu0
    %1568 = vmatprep.mubr.f32.mxu0 0.0
    %1569 = vmatmul.mubr.f32.gmra.mxu0 %v1497
    %v1570 = vpop.f32.mrf.mxu0
    %v1571 = vadd.f32 %v1492, %v1570
    %v1572 = vpop.f32.mrf.mxu0
    %1573 = vdwg.mxu0
    %v1574 = vmul.f32 %v1566, 1.702
    %v1575 = vmul.f32 %v1571, 1.702
    %v1576 = vxor.u32 %v1574, 2147483648
    %v1577 = vxor.u32 %v1575, 2147483648
    %v1578 = vmul.f32 %v1576, 1.442695
    %v1579 = vpow.pop %v1578
    %v1580 = vmul.f32 %v1577, 1.442695
    %v1581 = vpow.pop %v1580
    %v1582 = vadd.f32 %v1579, 1.0
    %v1583 = vadd.f32 %v1581, 1.0
    %v1584 = vrcp.pop %v1582
    %v1585 = vmul.f32 1.0, %v1584
    %v1586 = vrcp.pop %v1583
    %v1587 = vmul.f32 1.0, %v1586
    %v1588 = vmul.f32 %v1566, %v1585
    %v1589 = vmul.f32 %v1571, %v1587
    %v1590 = vld [vmem:[%s31] sm:$0xff]
    %v1591 = vld [vmem:[%s31 + $0x8] sm:$0xff]
    %v1592 = vld [vmem:[%s31 + $0x10] sm:$0xff]
    %v1593 = vld [vmem:[%s31 + $0x18] sm:$0xff]
    %v1594 = vld [vmem:[%s31 + $0x20] sm:$0xff]
    %v1595 = vld [vmem:[%s31 + $0x28] sm:$0xff]
    %v1596 = vld [vmem:[%s31 + $0x30] sm:$0xff]
    %v1597 = vld [vmem:[%s31 + $0x38] sm:$0xff]
    %v1598 = vld [vmem:[%s31 + $0x40] sm:$0xff]
    %v1599 = vld [vmem:[%s31 + $0x48] sm:$0xff]
    %v1600 = vld [vmem:[%s31 + $0x50] sm:$0xff]
    %v1601 = vld [vmem:[%s31 + $0x58] sm:$0xff]
    %v1602 = vld [vmem:[%s31 + $0x60] sm:$0xff]
    %v1603 = vld [vmem:[%s31 + $0x68] sm:$0xff]
    %v1604 = vld [vmem:[%s31 + $0x70] sm:$0xff]
    %v1605 = vld [vmem:[%s31 + $0x78] sm:$0xff]
    %1606 = vmatprep.subr.mxu0 0.0
    %1607 = vmatpush1.msra.mxu0 %v1605
    %1608 = vmatprep.subr.mxu0 0.0
    %1609 = vmatpush1.msra.mxu0 %v1604
    %1610 = vmatprep.subr.mxu0 0.0
    %1611 = vmatpush1.msra.mxu0 %v1603
    %1612 = vmatprep.subr.mxu0 0.0
    %1613 = vmatpush1.msra.mxu0 %v1602
    %1614 = vmatprep.subr.mxu0 0.0
    %1615 = vmatpush1.msra.mxu0 %v1601
    %1616 = vmatprep.subr.mxu0 0.0
    %1617 = vmatpush1.msra.mxu0 %v1600
    %1618 = vmatprep.subr.mxu0 0.0
    %1619 = vmatpush1.msra.mxu0 %v1599
    %1620 = vmatprep.subr.mxu0 0.0
    %1621 = vmatpush1.msra.mxu0 %v1598
    %1622 = vmatprep.subr.mxu0 0.0
    %1623 = vmatpush1.msra.mxu0 %v1597
    %1624 = vmatprep.subr.mxu0 0.0
    %1625 = vmatpush1.msra.mxu0 %v1596
    %1626 = vmatprep.subr.mxu0 0.0
    %1627 = vmatpush1.msra.mxu0 %v1595
    %1628 = vmatprep.subr.mxu0 0.0
    %1629 = vmatpush1.msra.mxu0 %v1594
    %1630 = vmatprep.subr.mxu0 0.0
    %1631 = vmatpush1.msra.mxu0 %v1593
    %1632 = vmatprep.subr.mxu0 0.0
    %1633 = vmatpush1.msra.mxu0 %v1592
    %1634 = vmatprep.subr.mxu0 0.0
    %1635 = vmatpush1.msra.mxu0 %v1591
    %1636 = vmatprep.subr.mxu0 0.0
    %1637 = vmatpush1.msra.mxu0 %v1590
    %1638 = vmatprep.subr.mxu0 0.0
    %1639 = vmatpush2.msra.mxu0 0.0
    %1640 = vmatprep.subr.mxu0 0.0
    %1641 = vmatpush2.msra.mxu0 0.0
    %1642 = vmatprep.subr.mxu0 0.0
    %1643 = vmatpush2.msra.mxu0 0.0
    %1644 = vmatprep.subr.mxu0 0.0
    %1645 = vmatpush2.msra.mxu0 0.0
    %1646 = vmatprep.subr.mxu0 0.0
    %1647 = vmatpush2.msra.mxu0 0.0
    %1648 = vmatprep.subr.mxu0 0.0
    %1649 = vmatpush2.msra.mxu0 0.0
    %1650 = vmatprep.subr.mxu0 0.0
    %1651 = vmatpush2.msra.mxu0 0.0
    %1652 = vmatprep.subr.mxu0 0.0
    %1653 = vmatpush2.msra.mxu0 0.0
    %1654 = vmatprep.subr.mxu0 0.0
    %1655 = vmatpush2.msra.mxu0 0.0
    %1656 = vmatprep.subr.mxu0 0.0
    %1657 = vmatpush2.msra.mxu0 0.0
    %1658 = vmatprep.subr.mxu0 0.0
    %1659 = vmatpush2.msra.mxu0 0.0
    %1660 = vmatprep.subr.mxu0 0.0
    %1661 = vmatpush2.msra.mxu0 0.0
    %1662 = vmatprep.subr.mxu0 0.0
    %1663 = vmatpush2.msra.mxu0 0.0
    %1664 = vmatprep.subr.mxu0 0.0
    %1665 = vmatpush2.msra.mxu0 0.0
    %1666 = vmatprep.subr.mxu0 0.0
    %1667 = vmatpush2.msra.mxu0 0.0
    %1668 = vmatprep.subr.mxu0 0.0
    %1669 = vmatpush2.msra.mxu0 0.0
    %1670 = vmatprep.mubr.f32.mxu0 0.0
    %1671 = vmatmul.mubr.f32.gmra.mxu0 %v1588
    %v1672 = vpop.f32.mrf.mxu0
    %v1673 = vadd.f32 0.0, %v1672
    %v1674 = vpop.f32.mrf.mxu0
    %1675 = vmatprep.mubr.f32.mxu0 0.0
    %1676 = vmatmul.mubr.f32.gmra.mxu0 %v1589
    %v1677 = vpop.f32.mrf.mxu0
    %v1678 = vadd.f32 0.0, %v1677
    %v1679 = vpop.f32.mrf.mxu0
    %1680 = vdwg.mxu0
    %v1681 = vadd.f32 %v1442, %v1673
    %v1682 = vadd.f32 %v1443, %v1678
    %v1683 = vld [vmem:[%s33] sm:$0x1]
    %v1684 = vlaneseq
    %v1685 = vshrl.u32 %v1684, 7
    %v1686 = vsub.s32 0, %v1685
    %v1687 = vrot.slane %v1683, %v1686
    %v1688 = vadd.f32 %v1681, %v1687
    %v1689 = vadd.f32 %v1682, %v1687
    %v1690 = vld [vmem:[%s11 + $0x1] sm:$0x1]
    %v1691 = vld [vmem:[%s13 + $0x1] sm:$0x1]
    %v1692 = vsel %vm283, %v1688, 0.0
    %1693 = vadd.xlane.f32.xlu0 %v1692
    %v1694 = vpop.xlane.xlu0 %1693
    %v1695 = vsel %vm287, %v1689, 0.0
    %1696 = vadd.xlane.f32.xlu0 %v1695
    %v1697 = vpop.xlane.xlu0 %1696
    %v1698 = vmul.f32 %v1694, %v291
    %v1699 = vmul.f32 %v1697, %v291
    %v1700 = vsub.f32 %v1688, %v1698
    %v1701 = vsub.f32 %v1689, %v1699
    %v1702 = vmul.f32 %v1700, %v1700
    %v1703 = vmul.f32 %v1701, %v1701
    %v1704 = vsel %vm283, %v1702, 0.0
    %1705 = vadd.xlane.f32.xlu0 %v1704
    %v1706 = vpop.xlane.xlu0 %1705
    %v1707 = vsel %vm287, %v1703, 0.0
    %1708 = vadd.xlane.f32.xlu0 %v1707
    %v1709 = vpop.xlane.xlu0 %1708
    %v1710 = vmul.f32 %v1706, %v291
    %v1711 = vmul.f32 %v1709, %v291
    %v1712 = vadd.f32 %v1710, 1e-05
    %v1713 = vadd.f32 %v1711, 1e-05
    %v1714 = vrsqrt.pop %v1712
    %v1715 = vrsqrt.pop %v1713
    %v1716 = vmul.f32 %v1700, %v1714
    %v1717 = vmul.f32 %v1701, %v1715
    %v1718 = vlaneseq
    %v1719 = vshrl.u32 %v1718, 7
    %v1720 = vsub.s32 0, %v1719
    %v1721 = vrot.slane %v1690, %v1720
    %v1722 = vmul.f32 %v1716, %v1721
    %v1723 = vmul.f32 %v1717, %v1721
    %v1724 = vlaneseq
    %v1725 = vshrl.u32 %v1724, 7
    %v1726 = vsub.s32 0, %v1725
    %v1727 = vrot.slane %v1691, %v1726
    %v1728 = vadd.f32 %v1722, %v1727
    %v1729 = vadd.f32 %v1723, %v1727
    %s1730 = scalar_lea.vmem %s15, 32
    %v1731 = vld [vmem:[%s1730] sm:$0xff]
    %v1732 = vld [vmem:[%s1730 + $0x8] sm:$0xff]
    %v1733 = vld [vmem:[%s1730 + $0x10] sm:$0xff]
    %v1734 = vld [vmem:[%s1730 + $0x18] sm:$0xff]
    %v1735 = vld [vmem:[%s17 + $0x1] sm:$0x1]
    %v1736 = vlaneseq
    %v1737 = vshrl.u32 %v1736, 7
    %v1738 = vsub.s32 0, %v1737
    %v1739 = vrot.slane %v1735, %v1738
    %v1741 = vsel %vm283, %v1728, 0
    %v1744 = vsel %vm283, %v1729, 0
    %1746 = vmatprep.subr.mxu0 0.0
    %1747 = vmatpush1.msra.mxu0 0.0
    %1748 = vmatprep.subr.mxu0 0.0
    %1749 = vmatpush1.msra.mxu0 0.0
    %1750 = vmatprep.subr.mxu0 0.0
    %1751 = vmatpush1.msra.mxu0 0.0
    %1752 = vmatprep.subr.mxu0 0.0
    %1753 = vmatpush1.msra.mxu0 0.0
    %1754 = vmatprep.subr.mxu0 0.0
    %1755 = vmatpush1.msra.mxu0 0.0
    %1756 = vmatprep.subr.mxu0 0.0
    %1757 = vmatpush1.msra.mxu0 0.0
    %1758 = vmatprep.subr.mxu0 0.0
    %1759 = vmatpush1.msra.mxu0 0.0
    %1760 = vmatprep.subr.mxu0 0.0
    %1761 = vmatpush1.msra.mxu0 0.0
    %1762 = vmatprep.subr.mxu0 0.0
    %1763 = vmatpush1.msra.mxu0 0.0
    %1764 = vmatprep.subr.mxu0 0.0
    %1765 = vmatpush1.msra.mxu0 0.0
    %1766 = vmatprep.subr.mxu0 0.0
    %1767 = vmatpush1.msra.mxu0 0.0
    %1768 = vmatprep.subr.mxu0 0.0
    %1769 = vmatpush1.msra.mxu0 0.0
    %1770 = vmatprep.subr.mxu0 0.0
    %1771 = vmatpush1.msra.mxu0 %v1734
    %1772 = vmatprep.subr.mxu0 0.0
    %1773 = vmatpush1.msra.mxu0 %v1733
    %1774 = vmatprep.subr.mxu0 0.0
    %1775 = vmatpush1.msra.mxu0 %v1732
    %1776 = vmatprep.subr.mxu0 0.0
    %1777 = vmatpush1.msra.mxu0 %v1731
    %1778 = vmatprep.subr.mxu0 0.0
    %1779 = vmatpush2.msra.mxu0 0.0
    %1780 = vmatprep.subr.mxu0 0.0
    %1781 = vmatpush2.msra.mxu0 0.0
    %1782 = vmatprep.subr.mxu0 0.0
    %1783 = vmatpush2.msra.mxu0 0.0
    %1784 = vmatprep.subr.mxu0 0.0
    %1785 = vmatpush2.msra.mxu0 0.0
    %1786 = vmatprep.subr.mxu0 0.0
    %1787 = vmatpush2.msra.mxu0 0.0
    %1788 = vmatprep.subr.mxu0 0.0
    %1789 = vmatpush2.msra.mxu0 0.0
    %1790 = vmatprep.subr.mxu0 0.0
    %1791 = vmatpush2.msra.mxu0 0.0
    %1792 = vmatprep.subr.mxu0 0.0
    %1793 = vmatpush2.msra.mxu0 0.0
    %1794 = vmatprep.subr.mxu0 0.0
    %1795 = vmatpush2.msra.mxu0 0.0
    %1796 = vmatprep.subr.mxu0 0.0
    %1797 = vmatpush2.msra.mxu0 0.0
    %1798 = vmatprep.subr.mxu0 0.0
    %1799 = vmatpush2.msra.mxu0 0.0
    %1800 = vmatprep.subr.mxu0 0.0
    %1801 = vmatpush2.msra.mxu0 0.0
    %1802 = vmatprep.subr.mxu0 0.0
    %1803 = vmatpush2.msra.mxu0 0.0
    %1804 = vmatprep.subr.mxu0 0.0
    %1805 = vmatpush2.msra.mxu0 0.0
    %1806 = vmatprep.subr.mxu0 0.0
    %1807 = vmatpush2.msra.mxu0 0.0
    %1808 = vmatprep.subr.mxu0 0.0
    %1809 = vmatpush2.msra.mxu0 0.0
    %1810 = vmatprep.mubr.f32.mxu0 0.0
    %1811 = vmatmul.mubr.f32.gmra.mxu0 %v1741
    %v1812 = vpop.f32.mrf.mxu0
    %v1813 = vadd.f32 %v1739, %v1812
    %v1814 = vpop.f32.mrf.mxu0
    %1815 = vmatprep.mubr.f32.mxu0 0.0
    %1816 = vmatmul.mubr.f32.gmra.mxu0 %v1744
    %v1817 = vpop.f32.mrf.mxu0
    %v1818 = vadd.f32 %v1739, %v1817
    %v1819 = vpop.f32.mrf.mxu0
    %1820 = vdwg.mxu0
    %1823 = vrot.lane.b32.xlu0 %v1813, 96
    %v1824 = vpop.permute.xlu0 %1823
    %1825 = vrot.lane.b32.xlu0 %v1818, 96
    %v1826 = vpop.permute.xlu0 %1825
    %v1827 = vsel %vm518, %v1813, 0
    %v1829 = vsel %vm518, %v1818, 0
    %v1831 = vsel %vm518, %v1824, 0
    %v1833 = vsel %vm518, %v1826, 0
    %1835 = vmatprep.subr.mxu0 0.0
    %1836 = vmatpush1.xpose.msra.mxu0 0.0
    %1837 = vmatprep.subr.mxu0 0.0
    %1838 = vmatpush1.xpose.msra.mxu0 0.0
    %1839 = vmatprep.subr.mxu0 0.0
    %1840 = vmatpush1.xpose.msra.mxu0 0.0
    %1841 = vmatprep.subr.mxu0 0.0
    %1842 = vmatpush1.xpose.msra.mxu0 0.0
    %1843 = vmatprep.subr.mxu0 0.0
    %1844 = vmatpush1.xpose.msra.mxu0 0.0
    %1845 = vmatprep.subr.mxu0 0.0
    %1846 = vmatpush1.xpose.msra.mxu0 0.0
    %1847 = vmatprep.subr.mxu0 0.0
    %1848 = vmatpush1.xpose.msra.mxu0 0.0
    %1849 = vmatprep.subr.mxu0 0.0
    %1850 = vmatpush1.xpose.msra.mxu0 0.0
    %1851 = vmatprep.subr.mxu0 0.0
    %1852 = vmatpush1.xpose.msra.mxu0 0.0
    %1853 = vmatprep.subr.mxu0 0.0
    %1854 = vmatpush1.xpose.msra.mxu0 0.0
    %1855 = vmatprep.subr.mxu0 0.0
    %1856 = vmatpush1.xpose.msra.mxu0 0.0
    %1857 = vmatprep.subr.mxu0 0.0
    %1858 = vmatpush1.xpose.msra.mxu0 0.0
    %1859 = vmatprep.subr.mxu0 0.0
    %1860 = vmatpush1.xpose.msra.mxu0 0.0
    %1861 = vmatprep.subr.mxu0 0.0
    %1862 = vmatpush1.xpose.msra.mxu0 0.0
    %1863 = vmatprep.subr.mxu0 0.0
    %1864 = vmatpush1.xpose.msra.mxu0 %v1833
    %1865 = vmatprep.subr.mxu0 0.0
    %1866 = vmatpush1.xpose.msra.mxu0 %v1831
    %1867 = vmatprep.subr.mxu0 0.0
    %1868 = vmatpush2.xpose.msra.mxu0 0.0
    %1869 = vmatprep.subr.mxu0 0.0
    %1870 = vmatpush2.xpose.msra.mxu0 0.0
    %1871 = vmatprep.subr.mxu0 0.0
    %1872 = vmatpush2.xpose.msra.mxu0 0.0
    %1873 = vmatprep.subr.mxu0 0.0
    %1874 = vmatpush2.xpose.msra.mxu0 0.0
    %1875 = vmatprep.subr.mxu0 0.0
    %1876 = vmatpush2.xpose.msra.mxu0 0.0
    %1877 = vmatprep.subr.mxu0 0.0
    %1878 = vmatpush2.xpose.msra.mxu0 0.0
    %1879 = vmatprep.subr.mxu0 0.0
    %1880 = vmatpush2.xpose.msra.mxu0 0.0
    %1881 = vmatprep.subr.mxu0 0.0
    %1882 = vmatpush2.xpose.msra.mxu0 0.0
    %1883 = vmatprep.subr.mxu0 0.0
    %1884 = vmatpush2.xpose.msra.mxu0 0.0
    %1885 = vmatprep.subr.mxu0 0.0
    %1886 = vmatpush2.xpose.msra.mxu0 0.0
    %1887 = vmatprep.subr.mxu0 0.0
    %1888 = vmatpush2.xpose.msra.mxu0 0.0
    %1889 = vmatprep.subr.mxu0 0.0
    %1890 = vmatpush2.xpose.msra.mxu0 0.0
    %1891 = vmatprep.subr.mxu0 0.0
    %1892 = vmatpush2.xpose.msra.mxu0 0.0
    %1893 = vmatprep.subr.mxu0 0.0
    %1894 = vmatpush2.xpose.msra.mxu0 0.0
    %1895 = vmatprep.subr.mxu0 0.0
    %1896 = vmatpush2.xpose.msra.mxu0 0.0
    %1897 = vmatprep.subr.mxu0 0.0
    %1898 = vmatpush2.xpose.msra.mxu0 0.0
    %1899 = vmatprep.mubr.f32.mxu0 0.0
    %1900 = vmatmul.mubr.f32.gmra.mxu0 %v1827
    %v1901 = vpop.f32.mrf.mxu0
    %v1902 = vadd.f32 0.0, %v1901
    %v1903 = vpop.f32.mrf.mxu0
    %1904 = vmatprep.mubr.f32.mxu0 0.0
    %1905 = vmatmul.mubr.f32.gmra.mxu0 %v1829
    %v1906 = vpop.f32.mrf.mxu0
    %v1907 = vadd.f32 0.0, %v1906
    %v1908 = vpop.f32.mrf.mxu0
    %1909 = vdwg.mxu0
    %1910 = vrot.lane.b32.xlu0 %v1813, 120
    %v1911 = vpop.permute.xlu0 %1910
    %1912 = vrot.lane.b32.xlu0 %v1818, 120
    %v1913 = vpop.permute.xlu0 %1912
    %1914 = vrot.lane.b32.xlu0 %v1813, 88
    %v1915 = vpop.permute.xlu0 %1914
    %1916 = vrot.lane.b32.xlu0 %v1818, 88
    %v1917 = vpop.permute.xlu0 %1916
    %v1918 = vsel %vm518, %v1911, 0
    %v1920 = vsel %vm518, %v1913, 0
    %v1922 = vsel %vm518, %v1915, 0
    %v1924 = vsel %vm518, %v1917, 0
    %1926 = vmatprep.subr.mxu0 0.0
    %1927 = vmatpush1.xpose.msra.mxu0 0.0
    %1928 = vmatprep.subr.mxu0 0.0
    %1929 = vmatpush1.xpose.msra.mxu0 0.0
    %1930 = vmatprep.subr.mxu0 0.0
    %1931 = vmatpush1.xpose.msra.mxu0 0.0
    %1932 = vmatprep.subr.mxu0 0.0
    %1933 = vmatpush1.xpose.msra.mxu0 0.0
    %1934 = vmatprep.subr.mxu0 0.0
    %1935 = vmatpush1.xpose.msra.mxu0 0.0
    %1936 = vmatprep.subr.mxu0 0.0
    %1937 = vmatpush1.xpose.msra.mxu0 0.0
    %1938 = vmatprep.subr.mxu0 0.0
    %1939 = vmatpush1.xpose.msra.mxu0 0.0
    %1940 = vmatprep.subr.mxu0 0.0
    %1941 = vmatpush1.xpose.msra.mxu0 0.0
    %1942 = vmatprep.subr.mxu0 0.0
    %1943 = vmatpush1.xpose.msra.mxu0 0.0
    %1944 = vmatprep.subr.mxu0 0.0
    %1945 = vmatpush1.xpose.msra.mxu0 0.0
    %1946 = vmatprep.subr.mxu0 0.0
    %1947 = vmatpush1.xpose.msra.mxu0 0.0
    %1948 = vmatprep.subr.mxu0 0.0
    %1949 = vmatpush1.xpose.msra.mxu0 0.0
    %1950 = vmatprep.subr.mxu0 0.0
    %1951 = vmatpush1.xpose.msra.mxu0 0.0
    %1952 = vmatprep.subr.mxu0 0.0
    %1953 = vmatpush1.xpose.msra.mxu0 0.0
    %1954 = vmatprep.subr.mxu0 0.0
    %1955 = vmatpush1.xpose.msra.mxu0 %v1924
    %1956 = vmatprep.subr.mxu0 0.0
    %1957 = vmatpush1.xpose.msra.mxu0 %v1922
    %1958 = vmatprep.subr.mxu0 0.0
    %1959 = vmatpush2.xpose.msra.mxu0 0.0
    %1960 = vmatprep.subr.mxu0 0.0
    %1961 = vmatpush2.xpose.msra.mxu0 0.0
    %1962 = vmatprep.subr.mxu0 0.0
    %1963 = vmatpush2.xpose.msra.mxu0 0.0
    %1964 = vmatprep.subr.mxu0 0.0
    %1965 = vmatpush2.xpose.msra.mxu0 0.0
    %1966 = vmatprep.subr.mxu0 0.0
    %1967 = vmatpush2.xpose.msra.mxu0 0.0
    %1968 = vmatprep.subr.mxu0 0.0
    %1969 = vmatpush2.xpose.msra.mxu0 0.0
    %1970 = vmatprep.subr.mxu0 0.0
    %1971 = vmatpush2.xpose.msra.mxu0 0.0
    %1972 = vmatprep.subr.mxu0 0.0
    %1973 = vmatpush2.xpose.msra.mxu0 0.0
    %1974 = vmatprep.subr.mxu0 0.0
    %1975 = vmatpush2.xpose.msra.mxu0 0.0
    %1976 = vmatprep.subr.mxu0 0.0
    %1977 = vmatpush2.xpose.msra.mxu0 0.0
    %1978 = vmatprep.subr.mxu0 0.0
    %1979 = vmatpush2.xpose.msra.mxu0 0.0
    %1980 = vmatprep.subr.mxu0 0.0
    %1981 = vmatpush2.xpose.msra.mxu0 0.0
    %1982 = vmatprep.subr.mxu0 0.0
    %1983 = vmatpush2.xpose.msra.mxu0 0.0
    %1984 = vmatprep.subr.mxu0 0.0
    %1985 = vmatpush2.xpose.msra.mxu0 0.0
    %1986 = vmatprep.subr.mxu0 0.0
    %1987 = vmatpush2.xpose.msra.mxu0 0.0
    %1988 = vmatprep.subr.mxu0 0.0
    %1989 = vmatpush2.xpose.msra.mxu0 0.0
    %1990 = vmatprep.mubr.f32.mxu0 0.0
    %1991 = vmatmul.mubr.f32.gmra.mxu0 %v1918
    %v1992 = vpop.f32.mrf.mxu0
    %v1993 = vadd.f32 0.0, %v1992
    %v1994 = vpop.f32.mrf.mxu0
    %1995 = vmatprep.mubr.f32.mxu0 0.0
    %1996 = vmatmul.mubr.f32.gmra.mxu0 %v1920
    %v1997 = vpop.f32.mrf.mxu0
    %v1998 = vadd.f32 0.0, %v1997
    %v1999 = vpop.f32.mrf.mxu0
    %2000 = vdwg.mxu0
    %2001 = vrot.lane.b32.xlu0 %v1813, 112
    %v2002 = vpop.permute.xlu0 %2001
    %2003 = vrot.lane.b32.xlu0 %v1818, 112
    %v2004 = vpop.permute.xlu0 %2003
    %2005 = vrot.lane.b32.xlu0 %v1813, 80
    %v2006 = vpop.permute.xlu0 %2005
    %2007 = vrot.lane.b32.xlu0 %v1818, 80
    %v2008 = vpop.permute.xlu0 %2007
    %v2009 = vsel %vm518, %v2002, 0
    %v2011 = vsel %vm518, %v2004, 0
    %v2013 = vsel %vm518, %v2006, 0
    %v2015 = vsel %vm518, %v2008, 0
    %2017 = vmatprep.subr.mxu0 0.0
    %2018 = vmatpush1.xpose.msra.mxu0 0.0
    %2019 = vmatprep.subr.mxu0 0.0
    %2020 = vmatpush1.xpose.msra.mxu0 0.0
    %2021 = vmatprep.subr.mxu0 0.0
    %2022 = vmatpush1.xpose.msra.mxu0 0.0
    %2023 = vmatprep.subr.mxu0 0.0
    %2024 = vmatpush1.xpose.msra.mxu0 0.0
    %2025 = vmatprep.subr.mxu0 0.0
    %2026 = vmatpush1.xpose.msra.mxu0 0.0
    %2027 = vmatprep.subr.mxu0 0.0
    %2028 = vmatpush1.xpose.msra.mxu0 0.0
    %2029 = vmatprep.subr.mxu0 0.0
    %2030 = vmatpush1.xpose.msra.mxu0 0.0
    %2031 = vmatprep.subr.mxu0 0.0
    %2032 = vmatpush1.xpose.msra.mxu0 0.0
    %2033 = vmatprep.subr.mxu0 0.0
    %2034 = vmatpush1.xpose.msra.mxu0 0.0
    %2035 = vmatprep.subr.mxu0 0.0
    %2036 = vmatpush1.xpose.msra.mxu0 0.0
    %2037 = vmatprep.subr.mxu0 0.0
    %2038 = vmatpush1.xpose.msra.mxu0 0.0
    %2039 = vmatprep.subr.mxu0 0.0
    %2040 = vmatpush1.xpose.msra.mxu0 0.0
    %2041 = vmatprep.subr.mxu0 0.0
    %2042 = vmatpush1.xpose.msra.mxu0 0.0
    %2043 = vmatprep.subr.mxu0 0.0
    %2044 = vmatpush1.xpose.msra.mxu0 0.0
    %2045 = vmatprep.subr.mxu0 0.0
    %2046 = vmatpush1.xpose.msra.mxu0 %v2015
    %2047 = vmatprep.subr.mxu0 0.0
    %2048 = vmatpush1.xpose.msra.mxu0 %v2013
    %2049 = vmatprep.subr.mxu0 0.0
    %2050 = vmatpush2.xpose.msra.mxu0 0.0
    %2051 = vmatprep.subr.mxu0 0.0
    %2052 = vmatpush2.xpose.msra.mxu0 0.0
    %2053 = vmatprep.subr.mxu0 0.0
    %2054 = vmatpush2.xpose.msra.mxu0 0.0
    %2055 = vmatprep.subr.mxu0 0.0
    %2056 = vmatpush2.xpose.msra.mxu0 0.0
    %2057 = vmatprep.subr.mxu0 0.0
    %2058 = vmatpush2.xpose.msra.mxu0 0.0
    %2059 = vmatprep.subr.mxu0 0.0
    %2060 = vmatpush2.xpose.msra.mxu0 0.0
    %2061 = vmatprep.subr.mxu0 0.0
    %2062 = vmatpush2.xpose.msra.mxu0 0.0
    %2063 = vmatprep.subr.mxu0 0.0
    %2064 = vmatpush2.xpose.msra.mxu0 0.0
    %2065 = vmatprep.subr.mxu0 0.0
    %2066 = vmatpush2.xpose.msra.mxu0 0.0
    %2067 = vmatprep.subr.mxu0 0.0
    %2068 = vmatpush2.xpose.msra.mxu0 0.0
    %2069 = vmatprep.subr.mxu0 0.0
    %2070 = vmatpush2.xpose.msra.mxu0 0.0
    %2071 = vmatprep.subr.mxu0 0.0
    %2072 = vmatpush2.xpose.msra.mxu0 0.0
    %2073 = vmatprep.subr.mxu0 0.0
    %2074 = vmatpush2.xpose.msra.mxu0 0.0
    %2075 = vmatprep.subr.mxu0 0.0
    %2076 = vmatpush2.xpose.msra.mxu0 0.0
    %2077 = vmatprep.subr.mxu0 0.0
    %2078 = vmatpush2.xpose.msra.mxu0 0.0
    %2079 = vmatprep.subr.mxu0 0.0
    %2080 = vmatpush2.xpose.msra.mxu0 0.0
    %2081 = vmatprep.mubr.f32.mxu0 0.0
    %2082 = vmatmul.mubr.f32.gmra.mxu0 %v2009
    %v2083 = vpop.f32.mrf.mxu0
    %v2084 = vadd.f32 0.0, %v2083
    %v2085 = vpop.f32.mrf.mxu0
    %2086 = vmatprep.mubr.f32.mxu0 0.0
    %2087 = vmatmul.mubr.f32.gmra.mxu0 %v2011
    %v2088 = vpop.f32.mrf.mxu0
    %v2089 = vadd.f32 0.0, %v2088
    %v2090 = vpop.f32.mrf.mxu0
    %2091 = vdwg.mxu0
    %2092 = vrot.lane.b32.xlu0 %v1813, 104
    %v2093 = vpop.permute.xlu0 %2092
    %2094 = vrot.lane.b32.xlu0 %v1818, 104
    %v2095 = vpop.permute.xlu0 %2094
    %2096 = vrot.lane.b32.xlu0 %v1813, 72
    %v2097 = vpop.permute.xlu0 %2096
    %2098 = vrot.lane.b32.xlu0 %v1818, 72
    %v2099 = vpop.permute.xlu0 %2098
    %v2100 = vsel %vm518, %v2093, 0
    %v2102 = vsel %vm518, %v2095, 0
    %v2104 = vsel %vm518, %v2097, 0
    %v2106 = vsel %vm518, %v2099, 0
    %2108 = vmatprep.subr.mxu0 0.0
    %2109 = vmatpush1.xpose.msra.mxu0 0.0
    %2110 = vmatprep.subr.mxu0 0.0
    %2111 = vmatpush1.xpose.msra.mxu0 0.0
    %2112 = vmatprep.subr.mxu0 0.0
    %2113 = vmatpush1.xpose.msra.mxu0 0.0
    %2114 = vmatprep.subr.mxu0 0.0
    %2115 = vmatpush1.xpose.msra.mxu0 0.0
    %2116 = vmatprep.subr.mxu0 0.0
    %2117 = vmatpush1.xpose.msra.mxu0 0.0
    %2118 = vmatprep.subr.mxu0 0.0
    %2119 = vmatpush1.xpose.msra.mxu0 0.0
    %2120 = vmatprep.subr.mxu0 0.0
    %2121 = vmatpush1.xpose.msra.mxu0 0.0
    %2122 = vmatprep.subr.mxu0 0.0
    %2123 = vmatpush1.xpose.msra.mxu0 0.0
    %2124 = vmatprep.subr.mxu0 0.0
    %2125 = vmatpush1.xpose.msra.mxu0 0.0
    %2126 = vmatprep.subr.mxu0 0.0
    %2127 = vmatpush1.xpose.msra.mxu0 0.0
    %2128 = vmatprep.subr.mxu0 0.0
    %2129 = vmatpush1.xpose.msra.mxu0 0.0
    %2130 = vmatprep.subr.mxu0 0.0
    %2131 = vmatpush1.xpose.msra.mxu0 0.0
    %2132 = vmatprep.subr.mxu0 0.0
    %2133 = vmatpush1.xpose.msra.mxu0 0.0
    %2134 = vmatprep.subr.mxu0 0.0
    %2135 = vmatpush1.xpose.msra.mxu0 0.0
    %2136 = vmatprep.subr.mxu0 0.0
    %2137 = vmatpush1.xpose.msra.mxu0 %v2106
    %2138 = vmatprep.subr.mxu0 0.0
    %2139 = vmatpush1.xpose.msra.mxu0 %v2104
    %2140 = vmatprep.subr.mxu0 0.0
    %2141 = vmatpush2.xpose.msra.mxu0 0.0
    %2142 = vmatprep.subr.mxu0 0.0
    %2143 = vmatpush2.xpose.msra.mxu0 0.0
    %2144 = vmatprep.subr.mxu0 0.0
    %2145 = vmatpush2.xpose.msra.mxu0 0.0
    %2146 = vmatprep.subr.mxu0 0.0
    %2147 = vmatpush2.xpose.msra.mxu0 0.0
    %2148 = vmatprep.subr.mxu0 0.0
    %2149 = vmatpush2.xpose.msra.mxu0 0.0
    %2150 = vmatprep.subr.mxu0 0.0
    %2151 = vmatpush2.xpose.msra.mxu0 0.0
    %2152 = vmatprep.subr.mxu0 0.0
    %2153 = vmatpush2.xpose.msra.mxu0 0.0
    %2154 = vmatprep.subr.mxu0 0.0
    %2155 = vmatpush2.xpose.msra.mxu0 0.0
    %2156 = vmatprep.subr.mxu0 0.0
    %2157 = vmatpush2.xpose.msra.mxu0 0.0
    %2158 = vmatprep.subr.mxu0 0.0
    %2159 = vmatpush2.xpose.msra.mxu0 0.0
    %2160 = vmatprep.subr.mxu0 0.0
    %2161 = vmatpush2.xpose.msra.mxu0 0.0
    %2162 = vmatprep.subr.mxu0 0.0
    %2163 = vmatpush2.xpose.msra.mxu0 0.0
    %2164 = vmatprep.subr.mxu0 0.0
    %2165 = vmatpush2.xpose.msra.mxu0 0.0
    %2166 = vmatprep.subr.mxu0 0.0
    %2167 = vmatpush2.xpose.msra.mxu0 0.0
    %2168 = vmatprep.subr.mxu0 0.0
    %2169 = vmatpush2.xpose.msra.mxu0 0.0
    %2170 = vmatprep.subr.mxu0 0.0
    %2171 = vmatpush2.xpose.msra.mxu0 0.0
    %2172 = vmatprep.mubr.f32.mxu0 0.0
    %2173 = vmatmul.mubr.f32.gmra.mxu0 %v2100
    %v2174 = vpop.f32.mrf.mxu0
    %v2175 = vadd.f32 0.0, %v2174
    %v2176 = vpop.f32.mrf.mxu0
    %2177 = vmatprep.mubr.f32.mxu0 0.0
    %2178 = vmatmul.mubr.f32.gmra.mxu0 %v2102
    %v2179 = vpop.f32.mrf.mxu0
    %v2180 = vadd.f32 0.0, %v2179
    %v2181 = vpop.f32.mrf.mxu0
    %2182 = vdwg.mxu0
    %v2185 = vrot.slane %v1993, 6
    %v2186 = vrot.slane %v1998, 6
    %v2187 = vsel %vm361, %v2185, %v2186
    %v2192 = vrot.slane %v2084, 4
    %v2193 = vrot.slane %v2089, 4
    %v2194 = vsel %vm367, %v2192, %v2193
    %v2199 = vrot.slane %v2175, 2
    %v2200 = vrot.slane %v2180, 2
    %v2201 = vsel %vm373, %v2199, %v2200
    %v2204 = vsel %vm361, %v1907, %v2185
    %v2205 = vsel %vm367, %v2187, %v2192
    %v2206 = vsel %vm373, %v2194, %v2199
    %v2207 = vadd.f32 %v1902, %v357
    %v2208 = vadd.f32 %v2204, %v379
    %v2209 = vadd.f32 %v2205, %v380
    %v2210 = vadd.f32 %v2206, %v381
    %v2211 = vadd.f32 %v2201, %v376
    %v2212 = vsel %vm904, %v2207, -inf
    %2213 = vmax.xlane.f32.xlu0 %v2212
    %v2214 = vpop.xlane.xlu0 %2213
    %v2215 = vsel %vm904, %v2208, -inf
    %2216 = vmax.xlane.f32.xlu0 %v2215
    %v2217 = vpop.xlane.xlu0 %2216
    %v2218 = vsel %vm904, %v2209, -inf
    %2219 = vmax.xlane.f32.xlu0 %v2218
    %v2220 = vpop.xlane.xlu0 %2219
    %v2221 = vsel %vm904, %v2210, -inf
    %2222 = vmax.xlane.f32.xlu0 %v2221
    %v2223 = vpop.xlane.xlu0 %2222
    %v2224 = vsel %vm904, %v2211, -inf
    %2225 = vmax.xlane.f32.xlu0 %v2224
    %v2226 = vpop.xlane.xlu0 %2225
    %v2227 = vsub.f32 %v2207, %v2214
    %v2228 = vsub.f32 %v2208, %v2217
    %v2229 = vsub.f32 %v2209, %v2220
    %v2230 = vsub.f32 %v2210, %v2223
    %v2231 = vsub.f32 %v2211, %v2226
    %v2232 = vmul.f32 %v2227, 1.442695
    %v2233 = vpow.pop %v2232
    %v2234 = vmul.f32 %v2228, 1.442695
    %v2235 = vpow.pop %v2234
    %v2236 = vmul.f32 %v2229, 1.442695
    %v2237 = vpow.pop %v2236
    %v2238 = vmul.f32 %v2230, 1.442695
    %v2239 = vpow.pop %v2238
    %v2240 = vmul.f32 %v2231, 1.442695
    %v2241 = vpow.pop %v2240
    %v2242 = vsel %vm904, %v2233, 0.0
    %2243 = vadd.xlane.f32.xlu0 %v2242
    %v2244 = vpop.xlane.xlu0 %2243
    %v2245 = vsel %vm904, %v2235, 0.0
    %2246 = vadd.xlane.f32.xlu0 %v2245
    %v2247 = vpop.xlane.xlu0 %2246
    %v2248 = vsel %vm904, %v2237, 0.0
    %2249 = vadd.xlane.f32.xlu0 %v2248
    %v2250 = vpop.xlane.xlu0 %2249
    %v2251 = vsel %vm904, %v2239, 0.0
    %2252 = vadd.xlane.f32.xlu0 %v2251
    %v2253 = vpop.xlane.xlu0 %2252
    %v2254 = vsel %vm904, %v2241, 0.0
    %2255 = vadd.xlane.f32.xlu0 %v2254
    %v2256 = vpop.xlane.xlu0 %2255
    %v2257 = vrcp.pop %v2244
    %v2258 = vrcp.pop %v2247
    %v2259 = vrcp.pop %v2250
    %v2260 = vrcp.pop %v2253
    %v2261 = vrcp.pop %v2256
    %v2262 = vmul.f32 %v2233, %v2257
    %v2263 = vmul.f32 %v2235, %v2258
    %v2264 = vmul.f32 %v2237, %v2259
    %v2265 = vmul.f32 %v2239, %v2260
    %v2266 = vmul.f32 %v2241, %v2261
    %2267 = vrot.lane.b32.xlu0 %v1813, 64
    %v2268 = vpop.permute.xlu0 %2267
    %2269 = vrot.lane.b32.xlu0 %v1818, 64
    %v2270 = vpop.permute.xlu0 %2269
    %v2273 = vsel %vm904, %v2262, 0
    %v2276 = vsel %vm904, %v2263, 0
    %v2278 = vsel %vm361, %v2270, 0
    %2280 = vmatprep.subr.mxu0 0.0
    %2281 = vmatpush1.msra.mxu0 0.0
    %2282 = vmatprep.subr.mxu0 0.0
    %2283 = vmatpush1.msra.mxu0 0.0
    %2284 = vmatprep.subr.mxu0 0.0
    %2285 = vmatpush1.msra.mxu0 0.0
    %2286 = vmatprep.subr.mxu0 0.0
    %2287 = vmatpush1.msra.mxu0 0.0
    %2288 = vmatprep.subr.mxu0 0.0
    %2289 = vmatpush1.msra.mxu0 0.0
    %2290 = vmatprep.subr.mxu0 0.0
    %2291 = vmatpush1.msra.mxu0 0.0
    %2292 = vmatprep.subr.mxu0 0.0
    %2293 = vmatpush1.msra.mxu0 0.0
    %2294 = vmatprep.subr.mxu0 0.0
    %2295 = vmatpush1.msra.mxu0 0.0
    %2296 = vmatprep.subr.mxu0 0.0
    %2297 = vmatpush1.msra.mxu0 0.0
    %2298 = vmatprep.subr.mxu0 0.0
    %2299 = vmatpush1.msra.mxu0 0.0
    %2300 = vmatprep.subr.mxu0 0.0
    %2301 = vmatpush1.msra.mxu0 0.0
    %2302 = vmatprep.subr.mxu0 0.0
    %2303 = vmatpush1.msra.mxu0 0.0
    %2304 = vmatprep.subr.mxu0 0.0
    %2305 = vmatpush1.msra.mxu0 0.0
    %2306 = vmatprep.subr.mxu0 0.0
    %2307 = vmatpush1.msra.mxu0 0.0
    %2308 = vmatprep.subr.mxu0 0.0
    %2309 = vmatpush1.msra.mxu0 %v2278
    %2310 = vmatprep.subr.mxu0 0.0
    %2311 = vmatpush1.msra.mxu0 %v2268
    %2312 = vmatprep.subr.mxu0 0.0
    %2313 = vmatpush2.msra.mxu0 0.0
    %2314 = vmatprep.subr.mxu0 0.0
    %2315 = vmatpush2.msra.mxu0 0.0
    %2316 = vmatprep.subr.mxu0 0.0
    %2317 = vmatpush2.msra.mxu0 0.0
    %2318 = vmatprep.subr.mxu0 0.0
    %2319 = vmatpush2.msra.mxu0 0.0
    %2320 = vmatprep.subr.mxu0 0.0
    %2321 = vmatpush2.msra.mxu0 0.0
    %2322 = vmatprep.subr.mxu0 0.0
    %2323 = vmatpush2.msra.mxu0 0.0
    %2324 = vmatprep.subr.mxu0 0.0
    %2325 = vmatpush2.msra.mxu0 0.0
    %2326 = vmatprep.subr.mxu0 0.0
    %2327 = vmatpush2.msra.mxu0 0.0
    %2328 = vmatprep.subr.mxu0 0.0
    %2329 = vmatpush2.msra.mxu0 0.0
    %2330 = vmatprep.subr.mxu0 0.0
    %2331 = vmatpush2.msra.mxu0 0.0
    %2332 = vmatprep.subr.mxu0 0.0
    %2333 = vmatpush2.msra.mxu0 0.0
    %2334 = vmatprep.subr.mxu0 0.0
    %2335 = vmatpush2.msra.mxu0 0.0
    %2336 = vmatprep.subr.mxu0 0.0
    %2337 = vmatpush2.msra.mxu0 0.0
    %2338 = vmatprep.subr.mxu0 0.0
    %2339 = vmatpush2.msra.mxu0 0.0
    %2340 = vmatprep.subr.mxu0 0.0
    %2341 = vmatpush2.msra.mxu0 0.0
    %2342 = vmatprep.subr.mxu0 0.0
    %2343 = vmatpush2.msra.mxu0 0.0
    %2344 = vmatprep.mubr.f32.mxu0 0.0
    %2345 = vmatmul.mubr.f32.gmra.mxu0 %v2273
    %v2346 = vpop.f32.mrf.mxu0
    %v2347 = vadd.f32 0.0, %v2346
    %v2348 = vpop.f32.mrf.mxu0
    %2349 = vmatprep.mubr.f32.mxu0 0.0
    %2350 = vmatmul.mubr.f32.gmra.mxu0 %v2276
    %v2351 = vpop.f32.mrf.mxu0
    %v2352 = vadd.f32 0.0, %v2351
    %v2353 = vpop.f32.mrf.mxu0
    %2354 = vdwg.mxu0
    %v2356 = vrot.slane %v2263, 2
    %v2357 = vrot.slane %v2264, 2
    %v2358 = vsel %vm373, %v2356, %v2357
    %2359 = vrot.lane.b32.xlu0 %v1813, 56
    %v2360 = vpop.permute.xlu0 %2359
    %2361 = vrot.lane.b32.xlu0 %v1818, 56
    %v2362 = vpop.permute.xlu0 %2361
    %v2364 = vsel %vm904, %v2358, 0
    %v2366 = vsel %vm904, %v2357, 0
    %v2368 = vsel %vm361, %v2362, 0
    %2370 = vmatprep.subr.mxu0 0.0
    %2371 = vmatpush1.msra.mxu0 0.0
    %2372 = vmatprep.subr.mxu0 0.0
    %2373 = vmatpush1.msra.mxu0 0.0
    %2374 = vmatprep.subr.mxu0 0.0
    %2375 = vmatpush1.msra.mxu0 0.0
    %2376 = vmatprep.subr.mxu0 0.0
    %2377 = vmatpush1.msra.mxu0 0.0
    %2378 = vmatprep.subr.mxu0 0.0
    %2379 = vmatpush1.msra.mxu0 0.0
    %2380 = vmatprep.subr.mxu0 0.0
    %2381 = vmatpush1.msra.mxu0 0.0
    %2382 = vmatprep.subr.mxu0 0.0
    %2383 = vmatpush1.msra.mxu0 0.0
    %2384 = vmatprep.subr.mxu0 0.0
    %2385 = vmatpush1.msra.mxu0 0.0
    %2386 = vmatprep.subr.mxu0 0.0
    %2387 = vmatpush1.msra.mxu0 0.0
    %2388 = vmatprep.subr.mxu0 0.0
    %2389 = vmatpush1.msra.mxu0 0.0
    %2390 = vmatprep.subr.mxu0 0.0
    %2391 = vmatpush1.msra.mxu0 0.0
    %2392 = vmatprep.subr.mxu0 0.0
    %2393 = vmatpush1.msra.mxu0 0.0
    %2394 = vmatprep.subr.mxu0 0.0
    %2395 = vmatpush1.msra.mxu0 0.0
    %2396 = vmatprep.subr.mxu0 0.0
    %2397 = vmatpush1.msra.mxu0 0.0
    %2398 = vmatprep.subr.mxu0 0.0
    %2399 = vmatpush1.msra.mxu0 %v2368
    %2400 = vmatprep.subr.mxu0 0.0
    %2401 = vmatpush1.msra.mxu0 %v2360
    %2402 = vmatprep.subr.mxu0 0.0
    %2403 = vmatpush2.msra.mxu0 0.0
    %2404 = vmatprep.subr.mxu0 0.0
    %2405 = vmatpush2.msra.mxu0 0.0
    %2406 = vmatprep.subr.mxu0 0.0
    %2407 = vmatpush2.msra.mxu0 0.0
    %2408 = vmatprep.subr.mxu0 0.0
    %2409 = vmatpush2.msra.mxu0 0.0
    %2410 = vmatprep.subr.mxu0 0.0
    %2411 = vmatpush2.msra.mxu0 0.0
    %2412 = vmatprep.subr.mxu0 0.0
    %2413 = vmatpush2.msra.mxu0 0.0
    %2414 = vmatprep.subr.mxu0 0.0
    %2415 = vmatpush2.msra.mxu0 0.0
    %2416 = vmatprep.subr.mxu0 0.0
    %2417 = vmatpush2.msra.mxu0 0.0
    %2418 = vmatprep.subr.mxu0 0.0
    %2419 = vmatpush2.msra.mxu0 0.0
    %2420 = vmatprep.subr.mxu0 0.0
    %2421 = vmatpush2.msra.mxu0 0.0
    %2422 = vmatprep.subr.mxu0 0.0
    %2423 = vmatpush2.msra.mxu0 0.0
    %2424 = vmatprep.subr.mxu0 0.0
    %2425 = vmatpush2.msra.mxu0 0.0
    %2426 = vmatprep.subr.mxu0 0.0
    %2427 = vmatpush2.msra.mxu0 0.0
    %2428 = vmatprep.subr.mxu0 0.0
    %2429 = vmatpush2.msra.mxu0 0.0
    %2430 = vmatprep.subr.mxu0 0.0
    %2431 = vmatpush2.msra.mxu0 0.0
    %2432 = vmatprep.subr.mxu0 0.0
    %2433 = vmatpush2.msra.mxu0 0.0
    %2434 = vmatprep.mubr.f32.mxu0 0.0
    %2435 = vmatmul.mubr.f32.gmra.mxu0 %v2364
    %v2436 = vpop.f32.mrf.mxu0
    %v2437 = vadd.f32 0.0, %v2436
    %v2438 = vpop.f32.mrf.mxu0
    %2439 = vmatprep.mubr.f32.mxu0 0.0
    %2440 = vmatmul.mubr.f32.gmra.mxu0 %v2366
    %v2441 = vpop.f32.mrf.mxu0
    %v2442 = vadd.f32 0.0, %v2441
    %v2443 = vpop.f32.mrf.mxu0
    %2444 = vdwg.mxu0
    %v2446 = vrot.slane %v2264, 4
    %v2447 = vrot.slane %v2265, 4
    %v2448 = vsel %vm367, %v2446, %v2447
    %2449 = vrot.lane.b32.xlu0 %v1813, 48
    %v2450 = vpop.permute.xlu0 %2449
    %2451 = vrot.lane.b32.xlu0 %v1818, 48
    %v2452 = vpop.permute.xlu0 %2451
    %v2454 = vsel %vm904, %v2448, 0
    %v2456 = vsel %vm904, %v2447, 0
    %v2458 = vsel %vm361, %v2452, 0
    %2460 = vmatprep.subr.mxu0 0.0
    %2461 = vmatpush1.msra.mxu0 0.0
    %2462 = vmatprep.subr.mxu0 0.0
    %2463 = vmatpush1.msra.mxu0 0.0
    %2464 = vmatprep.subr.mxu0 0.0
    %2465 = vmatpush1.msra.mxu0 0.0
    %2466 = vmatprep.subr.mxu0 0.0
    %2467 = vmatpush1.msra.mxu0 0.0
    %2468 = vmatprep.subr.mxu0 0.0
    %2469 = vmatpush1.msra.mxu0 0.0
    %2470 = vmatprep.subr.mxu0 0.0
    %2471 = vmatpush1.msra.mxu0 0.0
    %2472 = vmatprep.subr.mxu0 0.0
    %2473 = vmatpush1.msra.mxu0 0.0
    %2474 = vmatprep.subr.mxu0 0.0
    %2475 = vmatpush1.msra.mxu0 0.0
    %2476 = vmatprep.subr.mxu0 0.0
    %2477 = vmatpush1.msra.mxu0 0.0
    %2478 = vmatprep.subr.mxu0 0.0
    %2479 = vmatpush1.msra.mxu0 0.0
    %2480 = vmatprep.subr.mxu0 0.0
    %2481 = vmatpush1.msra.mxu0 0.0
    %2482 = vmatprep.subr.mxu0 0.0
    %2483 = vmatpush1.msra.mxu0 0.0
    %2484 = vmatprep.subr.mxu0 0.0
    %2485 = vmatpush1.msra.mxu0 0.0
    %2486 = vmatprep.subr.mxu0 0.0
    %2487 = vmatpush1.msra.mxu0 0.0
    %2488 = vmatprep.subr.mxu0 0.0
    %2489 = vmatpush1.msra.mxu0 %v2458
    %2490 = vmatprep.subr.mxu0 0.0
    %2491 = vmatpush1.msra.mxu0 %v2450
    %2492 = vmatprep.subr.mxu0 0.0
    %2493 = vmatpush2.msra.mxu0 0.0
    %2494 = vmatprep.subr.mxu0 0.0
    %2495 = vmatpush2.msra.mxu0 0.0
    %2496 = vmatprep.subr.mxu0 0.0
    %2497 = vmatpush2.msra.mxu0 0.0
    %2498 = vmatprep.subr.mxu0 0.0
    %2499 = vmatpush2.msra.mxu0 0.0
    %2500 = vmatprep.subr.mxu0 0.0
    %2501 = vmatpush2.msra.mxu0 0.0
    %2502 = vmatprep.subr.mxu0 0.0
    %2503 = vmatpush2.msra.mxu0 0.0
    %2504 = vmatprep.subr.mxu0 0.0
    %2505 = vmatpush2.msra.mxu0 0.0
    %2506 = vmatprep.subr.mxu0 0.0
    %2507 = vmatpush2.msra.mxu0 0.0
    %2508 = vmatprep.subr.mxu0 0.0
    %2509 = vmatpush2.msra.mxu0 0.0
    %2510 = vmatprep.subr.mxu0 0.0
    %2511 = vmatpush2.msra.mxu0 0.0
    %2512 = vmatprep.subr.mxu0 0.0
    %2513 = vmatpush2.msra.mxu0 0.0
    %2514 = vmatprep.subr.mxu0 0.0
    %2515 = vmatpush2.msra.mxu0 0.0
    %2516 = vmatprep.subr.mxu0 0.0
    %2517 = vmatpush2.msra.mxu0 0.0
    %2518 = vmatprep.subr.mxu0 0.0
    %2519 = vmatpush2.msra.mxu0 0.0
    %2520 = vmatprep.subr.mxu0 0.0
    %2521 = vmatpush2.msra.mxu0 0.0
    %2522 = vmatprep.subr.mxu0 0.0
    %2523 = vmatpush2.msra.mxu0 0.0
    %2524 = vmatprep.mubr.f32.mxu0 0.0
    %2525 = vmatmul.mubr.f32.gmra.mxu0 %v2454
    %v2526 = vpop.f32.mrf.mxu0
    %v2527 = vadd.f32 0.0, %v2526
    %v2528 = vpop.f32.mrf.mxu0
    %2529 = vmatprep.mubr.f32.mxu0 0.0
    %2530 = vmatmul.mubr.f32.gmra.mxu0 %v2456
    %v2531 = vpop.f32.mrf.mxu0
    %v2532 = vadd.f32 0.0, %v2531
    %v2533 = vpop.f32.mrf.mxu0
    %2534 = vdwg.mxu0
    %v2536 = vrot.slane %v2265, 6
    %v2537 = vrot.slane %v2266, 6
    %v2538 = vsel %vm361, %v2536, %v2537
    %2539 = vrot.lane.b32.xlu0 %v1813, 40
    %v2540 = vpop.permute.xlu0 %2539
    %2541 = vrot.lane.b32.xlu0 %v1818, 40
    %v2542 = vpop.permute.xlu0 %2541
    %v2544 = vsel %vm904, %v2538, 0
    %v2546 = vsel %vm904, %v2537, 0
    %v2548 = vsel %vm361, %v2542, 0
    %2550 = vmatprep.subr.mxu0 0.0
    %2551 = vmatpush1.msra.mxu0 0.0
    %2552 = vmatprep.subr.mxu0 0.0
    %2553 = vmatpush1.msra.mxu0 0.0
    %2554 = vmatprep.subr.mxu0 0.0
    %2555 = vmatpush1.msra.mxu0 0.0
    %2556 = vmatprep.subr.mxu0 0.0
    %2557 = vmatpush1.msra.mxu0 0.0
    %2558 = vmatprep.subr.mxu0 0.0
    %2559 = vmatpush1.msra.mxu0 0.0
    %2560 = vmatprep.subr.mxu0 0.0
    %2561 = vmatpush1.msra.mxu0 0.0
    %2562 = vmatprep.subr.mxu0 0.0
    %2563 = vmatpush1.msra.mxu0 0.0
    %2564 = vmatprep.subr.mxu0 0.0
    %2565 = vmatpush1.msra.mxu0 0.0
    %2566 = vmatprep.subr.mxu0 0.0
    %2567 = vmatpush1.msra.mxu0 0.0
    %2568 = vmatprep.subr.mxu0 0.0
    %2569 = vmatpush1.msra.mxu0 0.0
    %2570 = vmatprep.subr.mxu0 0.0
    %2571 = vmatpush1.msra.mxu0 0.0
    %2572 = vmatprep.subr.mxu0 0.0
    %2573 = vmatpush1.msra.mxu0 0.0
    %2574 = vmatprep.subr.mxu0 0.0
    %2575 = vmatpush1.msra.mxu0 0.0
    %2576 = vmatprep.subr.mxu0 0.0
    %2577 = vmatpush1.msra.mxu0 0.0
    %2578 = vmatprep.subr.mxu0 0.0
    %2579 = vmatpush1.msra.mxu0 %v2548
    %2580 = vmatprep.subr.mxu0 0.0
    %2581 = vmatpush1.msra.mxu0 %v2540
    %2582 = vmatprep.subr.mxu0 0.0
    %2583 = vmatpush2.msra.mxu0 0.0
    %2584 = vmatprep.subr.mxu0 0.0
    %2585 = vmatpush2.msra.mxu0 0.0
    %2586 = vmatprep.subr.mxu0 0.0
    %2587 = vmatpush2.msra.mxu0 0.0
    %2588 = vmatprep.subr.mxu0 0.0
    %2589 = vmatpush2.msra.mxu0 0.0
    %2590 = vmatprep.subr.mxu0 0.0
    %2591 = vmatpush2.msra.mxu0 0.0
    %2592 = vmatprep.subr.mxu0 0.0
    %2593 = vmatpush2.msra.mxu0 0.0
    %2594 = vmatprep.subr.mxu0 0.0
    %2595 = vmatpush2.msra.mxu0 0.0
    %2596 = vmatprep.subr.mxu0 0.0
    %2597 = vmatpush2.msra.mxu0 0.0
    %2598 = vmatprep.subr.mxu0 0.0
    %2599 = vmatpush2.msra.mxu0 0.0
    %2600 = vmatprep.subr.mxu0 0.0
    %2601 = vmatpush2.msra.mxu0 0.0
    %2602 = vmatprep.subr.mxu0 0.0
    %2603 = vmatpush2.msra.mxu0 0.0
    %2604 = vmatprep.subr.mxu0 0.0
    %2605 = vmatpush2.msra.mxu0 0.0
    %2606 = vmatprep.subr.mxu0 0.0
    %2607 = vmatpush2.msra.mxu0 0.0
    %2608 = vmatprep.subr.mxu0 0.0
    %2609 = vmatpush2.msra.mxu0 0.0
    %2610 = vmatprep.subr.mxu0 0.0
    %2611 = vmatpush2.msra.mxu0 0.0
    %2612 = vmatprep.subr.mxu0 0.0
    %2613 = vmatpush2.msra.mxu0 0.0
    %2614 = vmatprep.mubr.f32.mxu0 0.0
    %2615 = vmatmul.mubr.f32.gmra.mxu0 %v2544
    %v2616 = vpop.f32.mrf.mxu0
    %v2617 = vadd.f32 0.0, %v2616
    %v2618 = vpop.f32.mrf.mxu0
    %2619 = vmatprep.mubr.f32.mxu0 0.0
    %2620 = vmatmul.mubr.f32.gmra.mxu0 %v2546
    %v2621 = vpop.f32.mrf.mxu0
    %v2622 = vadd.f32 0.0, %v2621
    %v2623 = vpop.f32.mrf.mxu0
    %2624 = vdwg.mxu0
    %2627 = vrot.lane.b32.xlu0 %v2437, 8
    %v2628 = vpop.permute.xlu0 %2627
    %2629 = vrot.lane.b32.xlu0 %v2442, 8
    %v2630 = vpop.permute.xlu0 %2629
    %2635 = vrot.lane.b32.xlu0 %v2527, 16
    %v2636 = vpop.permute.xlu0 %2635
    %2637 = vrot.lane.b32.xlu0 %v2532, 16
    %v2638 = vpop.permute.xlu0 %2637
    %2643 = vrot.lane.b32.xlu0 %v2617, 24
    %v2644 = vpop.permute.xlu0 %2643
    %2645 = vrot.lane.b32.xlu0 %v2622, 24
    %v2646 = vpop.permute.xlu0 %2645
    %v2649 = vsel %vm518, %v2347, %v2628
    %v2650 = vsel %vm518, %v2352, %v2630
    %v2651 = vsel %vm1344, %v2649, %v2636
    %v2652 = vsel %vm1344, %v2650, %v2638
    %v2653 = vsel %vm1347, %v2651, %v2644
    %v2654 = vsel %vm1347, %v2652, %v2646
    %s2655 = scalar_lea.vmem %s19, 32
    %v2656 = vld [vmem:[%s2655] sm:$0xff]
    %v2657 = vld [vmem:[%s2655 + $0x8] sm:$0xff]
    %v2658 = vld [vmem:[%s2655 + $0x10] sm:$0xff]
    %v2659 = vld [vmem:[%s2655 + $0x18] sm:$0xff]
    %v2661 = vsel %vm283, %v2653, 0
    %v2664 = vsel %vm283, %v2654, 0
    %2666 = vmatprep.subr.mxu0 0.0
    %2667 = vmatpush1.msra.mxu0 0.0
    %2668 = vmatprep.subr.mxu0 0.0
    %2669 = vmatpush1.msra.mxu0 0.0
    %2670 = vmatprep.subr.mxu0 0.0
    %2671 = vmatpush1.msra.mxu0 0.0
    %2672 = vmatprep.subr.mxu0 0.0
    %2673 = vmatpush1.msra.mxu0 0.0
    %2674 = vmatprep.subr.mxu0 0.0
    %2675 = vmatpush1.msra.mxu0 0.0
    %2676 = vmatprep.subr.mxu0 0.0
    %2677 = vmatpush1.msra.mxu0 0.0
    %2678 = vmatprep.subr.mxu0 0.0
    %2679 = vmatpush1.msra.mxu0 0.0
    %2680 = vmatprep.subr.mxu0 0.0
    %2681 = vmatpush1.msra.mxu0 0.0
    %2682 = vmatprep.subr.mxu0 0.0
    %2683 = vmatpush1.msra.mxu0 0.0
    %2684 = vmatprep.subr.mxu0 0.0
    %2685 = vmatpush1.msra.mxu0 0.0
    %2686 = vmatprep.subr.mxu0 0.0
    %2687 = vmatpush1.msra.mxu0 0.0
    %2688 = vmatprep.subr.mxu0 0.0
    %2689 = vmatpush1.msra.mxu0 0.0
    %2690 = vmatprep.subr.mxu0 0.0
    %2691 = vmatpush1.msra.mxu0 %v2659
    %2692 = vmatprep.subr.mxu0 0.0
    %2693 = vmatpush1.msra.mxu0 %v2658
    %2694 = vmatprep.subr.mxu0 0.0
    %2695 = vmatpush1.msra.mxu0 %v2657
    %2696 = vmatprep.subr.mxu0 0.0
    %2697 = vmatpush1.msra.mxu0 %v2656
    %2698 = vmatprep.subr.mxu0 0.0
    %2699 = vmatpush2.msra.mxu0 0.0
    %2700 = vmatprep.subr.mxu0 0.0
    %2701 = vmatpush2.msra.mxu0 0.0
    %2702 = vmatprep.subr.mxu0 0.0
    %2703 = vmatpush2.msra.mxu0 0.0
    %2704 = vmatprep.subr.mxu0 0.0
    %2705 = vmatpush2.msra.mxu0 0.0
    %2706 = vmatprep.subr.mxu0 0.0
    %2707 = vmatpush2.msra.mxu0 0.0
    %2708 = vmatprep.subr.mxu0 0.0
    %2709 = vmatpush2.msra.mxu0 0.0
    %2710 = vmatprep.subr.mxu0 0.0
    %2711 = vmatpush2.msra.mxu0 0.0
    %2712 = vmatprep.subr.mxu0 0.0
    %2713 = vmatpush2.msra.mxu0 0.0
    %2714 = vmatprep.subr.mxu0 0.0
    %2715 = vmatpush2.msra.mxu0 0.0
    %2716 = vmatprep.subr.mxu0 0.0
    %2717 = vmatpush2.msra.mxu0 0.0
    %2718 = vmatprep.subr.mxu0 0.0
    %2719 = vmatpush2.msra.mxu0 0.0
    %2720 = vmatprep.subr.mxu0 0.0
    %2721 = vmatpush2.msra.mxu0 0.0
    %2722 = vmatprep.subr.mxu0 0.0
    %2723 = vmatpush2.msra.mxu0 0.0
    %2724 = vmatprep.subr.mxu0 0.0
    %2725 = vmatpush2.msra.mxu0 0.0
    %2726 = vmatprep.subr.mxu0 0.0
    %2727 = vmatpush2.msra.mxu0 0.0
    %2728 = vmatprep.subr.mxu0 0.0
    %2729 = vmatpush2.msra.mxu0 0.0
    %2730 = vmatprep.mubr.f32.mxu0 0.0
    %2731 = vmatmul.mubr.f32.gmra.mxu0 %v2661
    %v2732 = vpop.f32.mrf.mxu0
    %v2733 = vadd.f32 0.0, %v2732
    %v2734 = vpop.f32.mrf.mxu0
    %2735 = vmatprep.mubr.f32.mxu0 0.0
    %2736 = vmatmul.mubr.f32.gmra.mxu0 %v2664
    %v2737 = vpop.f32.mrf.mxu0
    %v2738 = vadd.f32 0.0, %v2737
    %v2739 = vpop.f32.mrf.mxu0
    %2740 = vdwg.mxu0
    %v2741 = vadd.f32 %v1688, %v2733
    %v2742 = vadd.f32 %v1689, %v2738
    %v2743 = vld [vmem:[%s21 + $0x1] sm:$0x1]
    %v2744 = vlaneseq
    %v2745 = vshrl.u32 %v2744, 7
    %v2746 = vsub.s32 0, %v2745
    %v2747 = vrot.slane %v2743, %v2746
    %v2748 = vadd.f32 %v2741, %v2747
    %v2749 = vadd.f32 %v2742, %v2747
    %v2750 = vld [vmem:[%s23 + $0x1] sm:$0x1]
    %v2751 = vld [vmem:[%s25 + $0x1] sm:$0x1]
    %v2752 = vsel %vm283, %v2748, 0.0
    %2753 = vadd.xlane.f32.xlu0 %v2752
    %v2754 = vpop.xlane.xlu0 %2753
    %v2755 = vsel %vm287, %v2749, 0.0
    %2756 = vadd.xlane.f32.xlu0 %v2755
    %v2757 = vpop.xlane.xlu0 %2756
    %v2758 = vmul.f32 %v2754, %v291
    %v2759 = vmul.f32 %v2757, %v291
    %v2760 = vsub.f32 %v2748, %v2758
    %v2761 = vsub.f32 %v2749, %v2759
    %v2762 = vmul.f32 %v2760, %v2760
    %v2763 = vmul.f32 %v2761, %v2761
    %v2764 = vsel %vm283, %v2762, 0.0
    %2765 = vadd.xlane.f32.xlu0 %v2764
    %v2766 = vpop.xlane.xlu0 %2765
    %v2767 = vsel %vm287, %v2763, 0.0
    %2768 = vadd.xlane.f32.xlu0 %v2767
    %v2769 = vpop.xlane.xlu0 %2768
    %v2770 = vmul.f32 %v2766, %v291
    %v2771 = vmul.f32 %v2769, %v291
    %v2772 = vadd.f32 %v2770, 1e-05
    %v2773 = vadd.f32 %v2771, 1e-05
    %v2774 = vrsqrt.pop %v2772
    %v2775 = vrsqrt.pop %v2773
    %v2776 = vmul.f32 %v2760, %v2774
    %v2777 = vmul.f32 %v2761, %v2775
    %v2778 = vlaneseq
    %v2779 = vshrl.u32 %v2778, 7
    %v2780 = vsub.s32 0, %v2779
    %v2781 = vrot.slane %v2750, %v2780
    %v2782 = vmul.f32 %v2776, %v2781
    %v2783 = vmul.f32 %v2777, %v2781
    %v2784 = vlaneseq
    %v2785 = vshrl.u32 %v2784, 7
    %v2786 = vsub.s32 0, %v2785
    %v2787 = vrot.slane %v2751, %v2786
    %v2788 = vadd.f32 %v2782, %v2787
    %v2789 = vadd.f32 %v2783, %v2787
    %s2790 = scalar_lea.vmem %s27, 32
    %v2791 = vld [vmem:[%s2790] sm:$0xff]
    %v2792 = vld [vmem:[%s2790 + $0x8] sm:$0xff]
    %v2793 = vld [vmem:[%s2790 + $0x10] sm:$0xff]
    %v2794 = vld [vmem:[%s2790 + $0x18] sm:$0xff]
    %v2795 = vld [vmem:[%s29 + $0x1] sm:$0x1]
    %v2796 = vlaneseq
    %v2797 = vshrl.u32 %v2796, 7
    %v2798 = vsub.s32 0, %v2797
    %v2799 = vrot.slane %v2795, %v2798
    %v2801 = vsel %vm283, %v2788, 0
    %v2804 = vsel %vm283, %v2789, 0
    %2806 = vmatprep.subr.mxu0 0.0
    %2807 = vmatpush1.msra.mxu0 0.0
    %2808 = vmatprep.subr.mxu0 0.0
    %2809 = vmatpush1.msra.mxu0 0.0
    %2810 = vmatprep.subr.mxu0 0.0
    %2811 = vmatpush1.msra.mxu0 0.0
    %2812 = vmatprep.subr.mxu0 0.0
    %2813 = vmatpush1.msra.mxu0 0.0
    %2814 = vmatprep.subr.mxu0 0.0
    %2815 = vmatpush1.msra.mxu0 0.0
    %2816 = vmatprep.subr.mxu0 0.0
    %2817 = vmatpush1.msra.mxu0 0.0
    %2818 = vmatprep.subr.mxu0 0.0
    %2819 = vmatpush1.msra.mxu0 0.0
    %2820 = vmatprep.subr.mxu0 0.0
    %2821 = vmatpush1.msra.mxu0 0.0
    %2822 = vmatprep.subr.mxu0 0.0
    %2823 = vmatpush1.msra.mxu0 0.0
    %2824 = vmatprep.subr.mxu0 0.0
    %2825 = vmatpush1.msra.mxu0 0.0
    %2826 = vmatprep.subr.mxu0 0.0
    %2827 = vmatpush1.msra.mxu0 0.0
    %2828 = vmatprep.subr.mxu0 0.0
    %2829 = vmatpush1.msra.mxu0 0.0
    %2830 = vmatprep.subr.mxu0 0.0
    %2831 = vmatpush1.msra.mxu0 %v2794
    %2832 = vmatprep.subr.mxu0 0.0
    %2833 = vmatpush1.msra.mxu0 %v2793
    %2834 = vmatprep.subr.mxu0 0.0
    %2835 = vmatpush1.msra.mxu0 %v2792
    %2836 = vmatprep.subr.mxu0 0.0
    %2837 = vmatpush1.msra.mxu0 %v2791
    %2838 = vmatprep.subr.mxu0 0.0
    %2839 = vmatpush2.msra.mxu0 0.0
    %2840 = vmatprep.subr.mxu0 0.0
    %2841 = vmatpush2.msra.mxu0 0.0
    %2842 = vmatprep.subr.mxu0 0.0
    %2843 = vmatpush2.msra.mxu0 0.0
    %2844 = vmatprep.subr.mxu0 0.0
    %2845 = vmatpush2.msra.mxu0 0.0
    %2846 = vmatprep.subr.mxu0 0.0
    %2847 = vmatpush2.msra.mxu0 0.0
    %2848 = vmatprep.subr.mxu0 0.0
    %2849 = vmatpush2.msra.mxu0 0.0
    %2850 = vmatprep.subr.mxu0 0.0
    %2851 = vmatpush2.msra.mxu0 0.0
    %2852 = vmatprep.subr.mxu0 0.0
    %2853 = vmatpush2.msra.mxu0 0.0
    %2854 = vmatprep.subr.mxu0 0.0
    %2855 = vmatpush2.msra.mxu0 0.0
    %2856 = vmatprep.subr.mxu0 0.0
    %2857 = vmatpush2.msra.mxu0 0.0
    %2858 = vmatprep.subr.mxu0 0.0
    %2859 = vmatpush2.msra.mxu0 0.0
    %2860 = vmatprep.subr.mxu0 0.0
    %2861 = vmatpush2.msra.mxu0 0.0
    %2862 = vmatprep.subr.mxu0 0.0
    %2863 = vmatpush2.msra.mxu0 0.0
    %2864 = vmatprep.subr.mxu0 0.0
    %2865 = vmatpush2.msra.mxu0 0.0
    %2866 = vmatprep.subr.mxu0 0.0
    %2867 = vmatpush2.msra.mxu0 0.0
    %2868 = vmatprep.subr.mxu0 0.0
    %2869 = vmatpush2.msra.mxu0 0.0
    %2870 = vmatprep.mubr.f32.mxu0 0.0
    %2871 = vmatmul.mubr.f32.gmra.mxu0 %v2801
    %v2872 = vpop.f32.mrf.mxu0
    %v2873 = vadd.f32 %v2799, %v2872
    %v2874 = vpop.f32.mrf.mxu0
    %2875 = vmatprep.mubr.f32.mxu0 0.0
    %2876 = vmatmul.mubr.f32.gmra.mxu0 %v2804
    %v2877 = vpop.f32.mrf.mxu0
    %v2878 = vadd.f32 %v2799, %v2877
    %v2879 = vpop.f32.mrf.mxu0
    %2880 = vdwg.mxu0
    %v2881 = vmul.f32 %v2873, 1.702
    %v2882 = vmul.f32 %v2878, 1.702
    %v2883 = vxor.u32 %v2881, 2147483648
    %v2884 = vxor.u32 %v2882, 2147483648
    %v2885 = vmul.f32 %v2883, 1.442695
    %v2886 = vpow.pop %v2885
    %v2887 = vmul.f32 %v2884, 1.442695
    %v2888 = vpow.pop %v2887
    %v2889 = vadd.f32 %v2886, 1.0
    %v2890 = vadd.f32 %v2888, 1.0
    %v2891 = vrcp.pop %v2889
    %v2892 = vmul.f32 1.0, %v2891
    %v2893 = vrcp.pop %v2890
    %v2894 = vmul.f32 1.0, %v2893
    %v2895 = vmul.f32 %v2873, %v2892
    %v2896 = vmul.f32 %v2878, %v2894
    %s2897 = scalar_lea.vmem %s31, 128
    %v2898 = vld [vmem:[%s2897] sm:$0xff]
    %v2899 = vld [vmem:[%s2897 + $0x8] sm:$0xff]
    %v2900 = vld [vmem:[%s2897 + $0x10] sm:$0xff]
    %v2901 = vld [vmem:[%s2897 + $0x18] sm:$0xff]
    %v2902 = vld [vmem:[%s2897 + $0x20] sm:$0xff]
    %v2903 = vld [vmem:[%s2897 + $0x28] sm:$0xff]
    %v2904 = vld [vmem:[%s2897 + $0x30] sm:$0xff]
    %v2905 = vld [vmem:[%s2897 + $0x38] sm:$0xff]
    %v2906 = vld [vmem:[%s2897 + $0x40] sm:$0xff]
    %v2907 = vld [vmem:[%s2897 + $0x48] sm:$0xff]
    %v2908 = vld [vmem:[%s2897 + $0x50] sm:$0xff]
    %v2909 = vld [vmem:[%s2897 + $0x58] sm:$0xff]
    %v2910 = vld [vmem:[%s2897 + $0x60] sm:$0xff]
    %v2911 = vld [vmem:[%s2897 + $0x68] sm:$0xff]
    %v2912 = vld [vmem:[%s2897 + $0x70] sm:$0xff]
    %v2913 = vld [vmem:[%s2897 + $0x78] sm:$0xff]
    %2914 = vmatprep.subr.mxu0 0.0
    %2915 = vmatpush1.msra.mxu0 %v2913
    %2916 = vmatprep.subr.mxu0 0.0
    %2917 = vmatpush1.msra.mxu0 %v2912
    %2918 = vmatprep.subr.mxu0 0.0
    %2919 = vmatpush1.msra.mxu0 %v2911
    %2920 = vmatprep.subr.mxu0 0.0
    %2921 = vmatpush1.msra.mxu0 %v2910
    %2922 = vmatprep.subr.mxu0 0.0
    %2923 = vmatpush1.msra.mxu0 %v2909
    %2924 = vmatprep.subr.mxu0 0.0
    %2925 = vmatpush1.msra.mxu0 %v2908
    %2926 = vmatprep.subr.mxu0 0.0
    %2927 = vmatpush1.msra.mxu0 %v2907
    %2928 = vmatprep.subr.mxu0 0.0
    %2929 = vmatpush1.msra.mxu0 %v2906
    %2930 = vmatprep.subr.mxu0 0.0
    %2931 = vmatpush1.msra.mxu0 %v2905
    %2932 = vmatprep.subr.mxu0 0.0
    %2933 = vmatpush1.msra.mxu0 %v2904
    %2934 = vmatprep.subr.mxu0 0.0
    %2935 = vmatpush1.msra.mxu0 %v2903
    %2936 = vmatprep.subr.mxu0 0.0
    %2937 = vmatpush1.msra.mxu0 %v2902
    %2938 = vmatprep.subr.mxu0 0.0
    %2939 = vmatpush1.msra.mxu0 %v2901
    %2940 = vmatprep.subr.mxu0 0.0
    %2941 = vmatpush1.msra.mxu0 %v2900
    %2942 = vmatprep.subr.mxu0 0.0
    %2943 = vmatpush1.msra.mxu0 %v2899
    %2944 = vmatprep.subr.mxu0 0.0
    %2945 = vmatpush1.msra.mxu0 %v2898
    %2946 = vmatprep.subr.mxu0 0.0
    %2947 = vmatpush2.msra.mxu0 0.0
    %2948 = vmatprep.subr.mxu0 0.0
    %2949 = vmatpush2.msra.mxu0 0.0
    %2950 = vmatprep.subr.mxu0 0.0
    %2951 = vmatpush2.msra.mxu0 0.0
    %2952 = vmatprep.subr.mxu0 0.0
    %2953 = vmatpush2.msra.mxu0 0.0
    %2954 = vmatprep.subr.mxu0 0.0
    %2955 = vmatpush2.msra.mxu0 0.0
    %2956 = vmatprep.subr.mxu0 0.0
    %2957 = vmatpush2.msra.mxu0 0.0
    %2958 = vmatprep.subr.mxu0 0.0
    %2959 = vmatpush2.msra.mxu0 0.0
    %2960 = vmatprep.subr.mxu0 0.0
    %2961 = vmatpush2.msra.mxu0 0.0
    %2962 = vmatprep.subr.mxu0 0.0
    %2963 = vmatpush2.msra.mxu0 0.0
    %2964 = vmatprep.subr.mxu0 0.0
    %2965 = vmatpush2.msra.mxu0 0.0
    %2966 = vmatprep.subr.mxu0 0.0
    %2967 = vmatpush2.msra.mxu0 0.0
    %2968 = vmatprep.subr.mxu0 0.0
    %2969 = vmatpush2.msra.mxu0 0.0
    %2970 = vmatprep.subr.mxu0 0.0
    %2971 = vmatpush2.msra.mxu0 0.0
    %2972 = vmatprep.subr.mxu0 0.0
    %2973 = vmatpush2.msra.mxu0 0.0
    %2974 = vmatprep.subr.mxu0 0.0
    %2975 = vmatpush2.msra.mxu0 0.0
    %2976 = vmatprep.subr.mxu0 0.0
    %2977 = vmatpush2.msra.mxu0 0.0
    %2978 = vmatprep.mubr.f32.mxu0 0.0
    %2979 = vmatmul.mubr.f32.gmra.mxu0 %v2895
    %v2980 = vpop.f32.mrf.mxu0
    %v2981 = vadd.f32 0.0, %v2980
    %v2982 = vpop.f32.mrf.mxu0
    %2983 = vmatprep.mubr.f32.mxu0 0.0
    %2984 = vmatmul.mubr.f32.gmra.mxu0 %v2896
    %v2985 = vpop.f32.mrf.mxu0
    %v2986 = vpop.f32.mrf.mxu0
    %2987 = vdwg.mxu0
    %v2988 = vadd.f32 %v2748, %v2981
    %v2989 = vld [vmem:[%s33 + $0x1] sm:$0x1]
    %v2990 = vlaneseq
    %v2991 = vshrl.u32 %v2990, 7
    %v2992 = vsub.s32 0, %v2991
    %v2993 = vrot.slane %v2989, %v2992
    %v2994 = vadd.f32 %v2988, %v2993
    %v2996 = vrot.slane %v2994, 4
    %v2998 = vsel %vm202, %v2994, %v2996
    %v2999 = vld [vmem:[%s35] sm:$0x1]
    %v3000 = vld [vmem:[%s37] sm:$0x1]
    %v3001 = vsel %vm287, %v2998, 0.0
    %3002 = vadd.xlane.f32.xlu0 %v3001
    %v3003 = vpop.xlane.xlu0 %3002
    %v3004 = vmul.f32 %v3003, %v291
    %v3005 = vsub.f32 %v2998, %v3004
    %v3006 = vmul.f32 %v3005, %v3005
    %v3007 = vsel %vm287, %v3006, 0.0
    %3008 = vadd.xlane.f32.xlu0 %v3007
    %v3009 = vpop.xlane.xlu0 %3008
    %v3010 = vmul.f32 %v3009, %v291
    %v3011 = vadd.f32 %v3010, 1e-05
    %v3012 = vrsqrt.pop %v3011
    %v3013 = vmul.f32 %v3005, %v3012
    %v3015 = vlaneseq
    %v3016 = vshrl.u32 %v3015, 7
    %v3017 = vsub.s32 0, %v3016
    %v3018 = vrot.slane %v2999, %v3017
    %v3020 = vmul.f32 %v3013, %v3018
    %v3022 = vlaneseq
    %v3023 = vshrl.u32 %v3022, 7
    %v3024 = vsub.s32 0, %v3023
    %v3025 = vrot.slane %v3000, %v3024
    %v3027 = vadd.f32 %v3020, %v3025
    %v3028 = vld [vmem:[%s39] sm:$0xff]
    %v3029 = vld [vmem:[%s39 + $0x8] sm:$0xff]
    %v3030 = vld [vmem:[%s39 + $0x10] sm:$0xff]
    %v3031 = vld [vmem:[%s39 + $0x18] sm:$0xff]
    %v3033 = vsel %vm283, %v3027, 0
    %3035 = vmatprep.subr.mxu0 0.0
    %3036 = vmatpush1.msra.mxu0 0.0
    %3037 = vmatprep.subr.mxu0 0.0
    %3038 = vmatpush1.msra.mxu0 0.0
    %3039 = vmatprep.subr.mxu0 0.0
    %3040 = vmatpush1.msra.mxu0 0.0
    %3041 = vmatprep.subr.mxu0 0.0
    %3042 = vmatpush1.msra.mxu0 0.0
    %3043 = vmatprep.subr.mxu0 0.0
    %3044 = vmatpush1.msra.mxu0 0.0
    %3045 = vmatprep.subr.mxu0 0.0
    %3046 = vmatpush1.msra.mxu0 0.0
    %3047 = vmatprep.subr.mxu0 0.0
    %3048 = vmatpush1.msra.mxu0 0.0
    %3049 = vmatprep.subr.mxu0 0.0
    %3050 = vmatpush1.msra.mxu0 0.0
    %3051 = vmatprep.subr.mxu0 0.0
    %3052 = vmatpush1.msra.mxu0 0.0
    %3053 = vmatprep.subr.mxu0 0.0
    %3054 = vmatpush1.msra.mxu0 0.0
    %3055 = vmatprep.subr.mxu0 0.0
    %3056 = vmatpush1.msra.mxu0 0.0
    %3057 = vmatprep.subr.mxu0 0.0
    %3058 = vmatpush1.msra.mxu0 0.0
    %3059 = vmatprep.subr.mxu0 0.0
    %3060 = vmatpush1.msra.mxu0 %v3031
    %3061 = vmatprep.subr.mxu0 0.0
    %3062 = vmatpush1.msra.mxu0 %v3030
    %3063 = vmatprep.subr.mxu0 0.0
    %3064 = vmatpush1.msra.mxu0 %v3029
    %3065 = vmatprep.subr.mxu0 0.0
    %3066 = vmatpush1.msra.mxu0 %v3028
    %3067 = vmatprep.subr.mxu0 0.0
    %3068 = vmatpush2.msra.mxu0 0.0
    %3069 = vmatprep.subr.mxu0 0.0
    %3070 = vmatpush2.msra.mxu0 0.0
    %3071 = vmatprep.subr.mxu0 0.0
    %3072 = vmatpush2.msra.mxu0 0.0
    %3073 = vmatprep.subr.mxu0 0.0
    %3074 = vmatpush2.msra.mxu0 0.0
    %3075 = vmatprep.subr.mxu0 0.0
    %3076 = vmatpush2.msra.mxu0 0.0
    %3077 = vmatprep.subr.mxu0 0.0
    %3078 = vmatpush2.msra.mxu0 0.0
    %3079 = vmatprep.subr.mxu0 0.0
    %3080 = vmatpush2.msra.mxu0 0.0
    %3081 = vmatprep.subr.mxu0 0.0
    %3082 = vmatpush2.msra.mxu0 0.0
    %3083 = vmatprep.subr.mxu0 0.0
    %3084 = vmatpush2.msra.mxu0 0.0
    %3085 = vmatprep.subr.mxu0 0.0
    %3086 = vmatpush2.msra.mxu0 0.0
    %3087 = vmatprep.subr.mxu0 0.0
    %3088 = vmatpush2.msra.mxu0 0.0
    %3089 = vmatprep.subr.mxu0 0.0
    %3090 = vmatpush2.msra.mxu0 0.0
    %3091 = vmatprep.subr.mxu0 0.0
    %3092 = vmatpush2.msra.mxu0 0.0
    %3093 = vmatprep.subr.mxu0 0.0
    %3094 = vmatpush2.msra.mxu0 0.0
    %3095 = vmatprep.subr.mxu0 0.0
    %3096 = vmatpush2.msra.mxu0 0.0
    %3097 = vmatprep.subr.mxu0 0.0
    %3098 = vmatpush2.msra.mxu0 0.0
    %3099 = vmatprep.mubr.f32.mxu0 0.0
    %3100 = vmatmul.mubr.f32.gmra.mxu0 %v3033
    %v3101 = vpop.f32.mrf.mxu0
    %v3102 = vadd.f32 0.0, %v3101
    %v3103 = vpop.f32.mrf.mxu0
    %3104 = vdwg.mxu0
    %v3105 = vld [vmem:[%s41] sm:$0xff]
    %v3106 = vld [vmem:[%s41 + $0x8] sm:$0xff]
    %v3107 = vld [vmem:[%s41 + $0x10] sm:$0xff]
    %v3108 = vld [vmem:[%s43] sm:$0xff]
    %v3109 = vadd.f32 %v3105, %v3108
    %v3110 = vadd.f32 %v3106, %v3108
    %v3111 = vadd.f32 %v3107, %v3108
    %v3112 = vadd.s32 %v329, 16
    %vm3113 = vcmp.ge.s32.totalorder %v3112, 0
    %vm3114 = vcmp.lt.s32.totalorder %v329, 8
    %vm3115 = vcmp.lt.s32.totalorder %v330, 8
    %vm3116 = vcmp.lt.s32.totalorder %v3112, 8
    %vm3117 = vmand %vm333, %vm3114
    %vm3118 = vmand %vm334, %vm3115
    %vm3119 = vmand %vm3113, %vm3116
    %vm3120 = vcmp.lt.s32.totalorder %v332, 8
    %vm3121 = vmand %vm339, %vm3120
    %vm3122 = vmand %vm3117, %vm3121
    %vm3123 = vmand %vm3118, %vm3121
    %vm3124 = vmand %vm3119, %vm3121
    %vm3125 = vcmp.ge.s32.totalorder %v329, 8
    %vm3126 = vcmp.ge.s32.totalorder %v330, 8
    %vm3127 = vcmp.ge.s32.totalorder %v3112, 8
    %vm3128 = vcmp.lt.s32.totalorder %v329, 16
    %vm3129 = vcmp.lt.s32.totalorder %v330, 16
    %vm3130 = vcmp.lt.s32.totalorder %v3112, 16
    %vm3131 = vmand %vm3125, %vm3128
    %vm3132 = vmand %vm3126, %vm3129
    %vm3133 = vmand %vm3127, %vm3130
    %vm3134 = vcmp.ge.s32.totalorder %v332, 8
    %vm3135 = vcmp.lt.s32.totalorder %v332, 16
    %vm3136 = vmand %vm3134, %vm3135
    %vm3137 = vmand %vm3131, %vm3136
    %vm3138 = vmand %vm3132, %vm3136
    %vm3139 = vmand %vm3133, %vm3136
    %vm3140 = vmor %vm3122, %vm3137
    %vm3141 = vmor %vm3123, %vm3138
    %vm3142 = vmor %vm3124, %vm3139
    %vm3143 = vcmp.ge.s32.totalorder %v329, 16
    %vm3144 = vcmp.ge.s32.totalorder %v330, 16
    %vm3145 = vcmp.ge.s32.totalorder %v3112, 16
    %vm3146 = vcmp.lt.s32.totalorder %v329, 24
    %vm3147 = vcmp.lt.s32.totalorder %v330, 24
    %vm3148 = vcmp.lt.s32.totalorder %v3112, 24
    %vm3149 = vmand %vm3143, %vm3146
    %vm3150 = vmand %vm3144, %vm3147
    %vm3151 = vmand %vm3145, %vm3148
    %vm3152 = vcmp.ge.s32.totalorder %v332, 16
    %vm3153 = vcmp.lt.s32.totalorder %v332, 24
    %vm3154 = vmand %vm3152, %vm3153
    %vm3155 = vmand %vm3149, %vm3154
    %vm3156 = vmand %vm3150, %vm3154
    %vm3157 = vmand %vm3151, %vm3154
    %vm3158 = vmor %vm3140, %vm3155
    %vm3159 = vmor %vm3141, %vm3156
    %vm3160 = vmor %vm3142, %vm3157
    %vm3161 = vcmp.le.s32.totalorder %v332, %v329
    %vm3162 = vcmp.le.s32.totalorder %v332, %v330
    %vm3163 = vcmp.le.s32.totalorder %v332, %v3112
    %vm3164 = vmand %vm3158, %vm3161
    %vm3165 = vmand %vm3159, %vm3162
    %vm3166 = vmand %vm3160, %vm3163
    %v3167 = vsel %vm3164, 0.0, -1e+09
    %v3168 = vsel %vm3165, 0.0, -1e+09
    %v3169 = vsel %vm3166, 0.0, -1e+09
    %v3170 = vld [vmem:[%s45] sm:$0x1]
    %v3171 = vld [vmem:[%s47] sm:$0x1]
    %v3172 = vsel %vm283, %v3109, 0.0
    %3173 = vadd.xlane.f32.xlu0 %v3172
    %v3174 = vpop.xlane.xlu0 %3173
    %v3175 = vsel %vm283, %v3110, 0.0
    %3176 = vadd.xlane.f32.xlu0 %v3175
    %v3177 = vpop.xlane.xlu0 %3176
    %v3178 = vsel %vm283, %v3111, 0.0
    %3179 = vadd.xlane.f32.xlu0 %v3178
    %v3180 = vpop.xlane.xlu0 %3179
    %v3181 = vmul.f32 %v3174, %v291
    %v3182 = vmul.f32 %v3177, %v291
    %v3183 = vmul.f32 %v3180, %v291
    %v3184 = vsub.f32 %v3109, %v3181
    %v3185 = vsub.f32 %v3110, %v3182
    %v3186 = vsub.f32 %v3111, %v3183
    %v3187 = vmul.f32 %v3184, %v3184
    %v3188 = vmul.f32 %v3185, %v3185
    %v3189 = vmul.f32 %v3186, %v3186
    %v3190 = vsel %vm283, %v3187, 0.0
    %3191 = vadd.xlane.f32.xlu0 %v3190
    %v3192 = vpop.xlane.xlu0 %3191
    %v3193 = vsel %vm283, %v3188, 0.0
    %3194 = vadd.xlane.f32.xlu0 %v3193
    %v3195 = vpop.xlane.xlu0 %3194
    %v3196 = vsel %vm283, %v3189, 0.0
    %3197 = vadd.xlane.f32.xlu0 %v3196
    %v3198 = vpop.xlane.xlu0 %3197
    %v3199 = vmul.f32 %v3192, %v291
    %v3200 = vmul.f32 %v3195, %v291
    %v3201 = vmul.f32 %v3198, %v291
    %v3202 = vadd.f32 %v3199, 1e-05
    %v3203 = vadd.f32 %v3200, 1e-05
    %v3204 = vadd.f32 %v3201, 1e-05
    %v3205 = vrsqrt.pop %v3202
    %v3206 = vrsqrt.pop %v3203
    %v3207 = vrsqrt.pop %v3204
    %v3208 = vmul.f32 %v3184, %v3205
    %v3209 = vmul.f32 %v3185, %v3206
    %v3210 = vmul.f32 %v3186, %v3207
    %v3211 = vlaneseq
    %v3212 = vshrl.u32 %v3211, 7
    %v3213 = vsub.s32 0, %v3212
    %v3214 = vrot.slane %v3170, %v3213
    %v3215 = vmul.f32 %v3208, %v3214
    %v3216 = vmul.f32 %v3209, %v3214
    %v3217 = vmul.f32 %v3210, %v3214
    %v3218 = vlaneseq
    %v3219 = vshrl.u32 %v3218, 7
    %v3220 = vsub.s32 0, %v3219
    %v3221 = vrot.slane %v3171, %v3220
    %v3222 = vadd.f32 %v3215, %v3221
    %v3223 = vadd.f32 %v3216, %v3221
    %v3224 = vadd.f32 %v3217, %v3221
    %v3225 = vld [vmem:[%s49] sm:$0xff]
    %v3226 = vld [vmem:[%s49 + $0x8] sm:$0xff]
    %v3227 = vld [vmem:[%s49 + $0x10] sm:$0xff]
    %v3228 = vld [vmem:[%s49 + $0x18] sm:$0xff]
    %v3229 = vld [vmem:[%s51] sm:$0x1]
    %v3230 = vlaneseq
    %v3231 = vshrl.u32 %v3230, 7
    %v3232 = vsub.s32 0, %v3231
    %v3233 = vrot.slane %v3229, %v3232
    %v3235 = vsel %vm283, %v3222, 0
    %v3238 = vsel %vm283, %v3223, 0
    %v3241 = vsel %vm283, %v3224, 0
    %3243 = vmatprep.subr.mxu0 0.0
    %3244 = vmatpush1.msra.mxu0 0.0
    %3245 = vmatprep.subr.mxu0 0.0
    %3246 = vmatpush1.msra.mxu0 0.0
    %3247 = vmatprep.subr.mxu0 0.0
    %3248 = vmatpush1.msra.mxu0 0.0
    %3249 = vmatprep.subr.mxu0 0.0
    %3250 = vmatpush1.msra.mxu0 0.0
    %3251 = vmatprep.subr.mxu0 0.0
    %3252 = vmatpush1.msra.mxu0 0.0
    %3253 = vmatprep.subr.mxu0 0.0
    %3254 = vmatpush1.msra.mxu0 0.0
    %3255 = vmatprep.subr.mxu0 0.0
    %3256 = vmatpush1.msra.mxu0 0.0
    %3257 = vmatprep.subr.mxu0 0.0
    %3258 = vmatpush1.msra.mxu0 0.0
    %3259 = vmatprep.subr.mxu0 0.0
    %3260 = vmatpush1.msra.mxu0 0.0
    %3261 = vmatprep.subr.mxu0 0.0
    %3262 = vmatpush1.msra.mxu0 0.0
    %3263 = vmatprep.subr.mxu0 0.0
    %3264 = vmatpush1.msra.mxu0 0.0
    %3265 = vmatprep.subr.mxu0 0.0
    %3266 = vmatpush1.msra.mxu0 0.0
    %3267 = vmatprep.subr.mxu0 0.0
    %3268 = vmatpush1.msra.mxu0 %v3228
    %3269 = vmatprep.subr.mxu0 0.0
    %3270 = vmatpush1.msra.mxu0 %v3227
    %3271 = vmatprep.subr.mxu0 0.0
    %3272 = vmatpush1.msra.mxu0 %v3226
    %3273 = vmatprep.subr.mxu0 0.0
    %3274 = vmatpush1.msra.mxu0 %v3225
    %3275 = vmatprep.subr.mxu0 0.0
    %3276 = vmatpush2.msra.mxu0 0.0
    %3277 = vmatprep.subr.mxu0 0.0
    %3278 = vmatpush2.msra.mxu0 0.0
    %3279 = vmatprep.subr.mxu0 0.0
    %3280 = vmatpush2.msra.mxu0 0.0
    %3281 = vmatprep.subr.mxu0 0.0
    %3282 = vmatpush2.msra.mxu0 0.0
    %3283 = vmatprep.subr.mxu0 0.0
    %3284 = vmatpush2.msra.mxu0 0.0
    %3285 = vmatprep.subr.mxu0 0.0
    %3286 = vmatpush2.msra.mxu0 0.0
    %3287 = vmatprep.subr.mxu0 0.0
    %3288 = vmatpush2.msra.mxu0 0.0
    %3289 = vmatprep.subr.mxu0 0.0
    %3290 = vmatpush2.msra.mxu0 0.0
    %3291 = vmatprep.subr.mxu0 0.0
    %3292 = vmatpush2.msra.mxu0 0.0
    %3293 = vmatprep.subr.mxu0 0.0
    %3294 = vmatpush2.msra.mxu0 0.0
    %3295 = vmatprep.subr.mxu0 0.0
    %3296 = vmatpush2.msra.mxu0 0.0
    %3297 = vmatprep.subr.mxu0 0.0
    %3298 = vmatpush2.msra.mxu0 0.0
    %3299 = vmatprep.subr.mxu0 0.0
    %3300 = vmatpush2.msra.mxu0 0.0
    %3301 = vmatprep.subr.mxu0 0.0
    %3302 = vmatpush2.msra.mxu0 0.0
    %3303 = vmatprep.subr.mxu0 0.0
    %3304 = vmatpush2.msra.mxu0 0.0
    %3305 = vmatprep.subr.mxu0 0.0
    %3306 = vmatpush2.msra.mxu0 0.0
    %3307 = vmatprep.mubr.f32.mxu0 0.0
    %3308 = vmatmul.mubr.f32.gmra.mxu0 %v3235
    %v3309 = vpop.f32.mrf.mxu0
    %v3310 = vadd.f32 %v3233, %v3309
    %v3311 = vpop.f32.mrf.mxu0
    %3312 = vmatprep.mubr.f32.mxu0 0.0
    %3313 = vmatmul.mubr.f32.gmra.mxu0 %v3238
    %v3314 = vpop.f32.mrf.mxu0
    %v3315 = vadd.f32 %v3233, %v3314
    %v3316 = vpop.f32.mrf.mxu0
    %3317 = vmatprep.mubr.f32.mxu0 0.0
    %3318 = vmatmul.mubr.f32.gmra.mxu0 %v3241
    %v3319 = vpop.f32.mrf.mxu0
    %v3320 = vadd.f32 %v3233, %v3319
    %v3321 = vpop.f32.mrf.mxu0
    %3322 = vdwg.mxu0
    %3326 = vrot.lane.b32.xlu0 %v3310, 96
    %v3327 = vpop.permute.xlu0 %3326
    %3328 = vrot.lane.b32.xlu0 %v3315, 96
    %v3329 = vpop.permute.xlu0 %3328
    %3330 = vrot.lane.b32.xlu0 %v3320, 96
    %v3331 = vpop.permute.xlu0 %3330
    %v3332 = vsel %vm518, %v3310, 0
    %v3334 = vsel %vm518, %v3315, 0
    %v3336 = vsel %vm518, %v3320, 0
    %v3338 = vsel %vm518, %v3327, 0
    %v3340 = vsel %vm518, %v3329, 0
    %v3342 = vsel %vm518, %v3331, 0
    %3344 = vmatprep.subr.mxu0 0.0
    %3345 = vmatpush1.xpose.msra.mxu0 0.0
    %3346 = vmatprep.subr.mxu0 0.0
    %3347 = vmatpush1.xpose.msra.mxu0 0.0
    %3348 = vmatprep.subr.mxu0 0.0
    %3349 = vmatpush1.xpose.msra.mxu0 0.0
    %3350 = vmatprep.subr.mxu0 0.0
    %3351 = vmatpush1.xpose.msra.mxu0 0.0
    %3352 = vmatprep.subr.mxu0 0.0
    %3353 = vmatpush1.xpose.msra.mxu0 0.0
    %3354 = vmatprep.subr.mxu0 0.0
    %3355 = vmatpush1.xpose.msra.mxu0 0.0
    %3356 = vmatprep.subr.mxu0 0.0
    %3357 = vmatpush1.xpose.msra.mxu0 0.0
    %3358 = vmatprep.subr.mxu0 0.0
    %3359 = vmatpush1.xpose.msra.mxu0 0.0
    %3360 = vmatprep.subr.mxu0 0.0
    %3361 = vmatpush1.xpose.msra.mxu0 0.0
    %3362 = vmatprep.subr.mxu0 0.0
    %3363 = vmatpush1.xpose.msra.mxu0 0.0
    %3364 = vmatprep.subr.mxu0 0.0
    %3365 = vmatpush1.xpose.msra.mxu0 0.0
    %3366 = vmatprep.subr.mxu0 0.0
    %3367 = vmatpush1.xpose.msra.mxu0 0.0
    %3368 = vmatprep.subr.mxu0 0.0
    %3369 = vmatpush1.xpose.msra.mxu0 0.0
    %3370 = vmatprep.subr.mxu0 0.0
    %3371 = vmatpush1.xpose.msra.mxu0 %v3342
    %3372 = vmatprep.subr.mxu0 0.0
    %3373 = vmatpush1.xpose.msra.mxu0 %v3340
    %3374 = vmatprep.subr.mxu0 0.0
    %3375 = vmatpush1.xpose.msra.mxu0 %v3338
    %3376 = vmatprep.subr.mxu0 0.0
    %3377 = vmatpush2.xpose.msra.mxu0 0.0
    %3378 = vmatprep.subr.mxu0 0.0
    %3379 = vmatpush2.xpose.msra.mxu0 0.0
    %3380 = vmatprep.subr.mxu0 0.0
    %3381 = vmatpush2.xpose.msra.mxu0 0.0
    %3382 = vmatprep.subr.mxu0 0.0
    %3383 = vmatpush2.xpose.msra.mxu0 0.0
    %3384 = vmatprep.subr.mxu0 0.0
    %3385 = vmatpush2.xpose.msra.mxu0 0.0
    %3386 = vmatprep.subr.mxu0 0.0
    %3387 = vmatpush2.xpose.msra.mxu0 0.0
    %3388 = vmatprep.subr.mxu0 0.0
    %3389 = vmatpush2.xpose.msra.mxu0 0.0
    %3390 = vmatprep.subr.mxu0 0.0
    %3391 = vmatpush2.xpose.msra.mxu0 0.0
    %3392 = vmatprep.subr.mxu0 0.0
    %3393 = vmatpush2.xpose.msra.mxu0 0.0
    %3394 = vmatprep.subr.mxu0 0.0
    %3395 = vmatpush2.xpose.msra.mxu0 0.0
    %3396 = vmatprep.subr.mxu0 0.0
    %3397 = vmatpush2.xpose.msra.mxu0 0.0
    %3398 = vmatprep.subr.mxu0 0.0
    %3399 = vmatpush2.xpose.msra.mxu0 0.0
    %3400 = vmatprep.subr.mxu0 0.0
    %3401 = vmatpush2.xpose.msra.mxu0 0.0
    %3402 = vmatprep.subr.mxu0 0.0
    %3403 = vmatpush2.xpose.msra.mxu0 0.0
    %3404 = vmatprep.subr.mxu0 0.0
    %3405 = vmatpush2.xpose.msra.mxu0 0.0
    %3406 = vmatprep.subr.mxu0 0.0
    %3407 = vmatpush2.xpose.msra.mxu0 0.0
    %3408 = vmatprep.mubr.f32.mxu0 0.0
    %3409 = vmatmul.mubr.f32.gmra.mxu0 %v3332
    %v3410 = vpop.f32.mrf.mxu0
    %v3411 = vadd.f32 0.0, %v3410
    %v3412 = vpop.f32.mrf.mxu0
    %3413 = vmatprep.mubr.f32.mxu0 0.0
    %3414 = vmatmul.mubr.f32.gmra.mxu0 %v3334
    %v3415 = vpop.f32.mrf.mxu0
    %v3416 = vadd.f32 0.0, %v3415
    %v3417 = vpop.f32.mrf.mxu0
    %3418 = vmatprep.mubr.f32.mxu0 0.0
    %3419 = vmatmul.mubr.f32.gmra.mxu0 %v3336
    %v3420 = vpop.f32.mrf.mxu0
    %v3421 = vadd.f32 0.0, %v3420
    %v3422 = vpop.f32.mrf.mxu0
    %3423 = vdwg.mxu0
    %3424 = vrot.lane.b32.xlu0 %v3310, 120
    %v3425 = vpop.permute.xlu0 %3424
    %3426 = vrot.lane.b32.xlu0 %v3315, 120
    %v3427 = vpop.permute.xlu0 %3426
    %3428 = vrot.lane.b32.xlu0 %v3320, 120
    %v3429 = vpop.permute.xlu0 %3428
    %3430 = vrot.lane.b32.xlu0 %v3310, 88
    %v3431 = vpop.permute.xlu0 %3430
    %3432 = vrot.lane.b32.xlu0 %v3315, 88
    %v3433 = vpop.permute.xlu0 %3432
    %3434 = vrot.lane.b32.xlu0 %v3320, 88
    %v3435 = vpop.permute.xlu0 %3434
    %v3436 = vsel %vm518, %v3425, 0
    %v3438 = vsel %vm518, %v3427, 0
    %v3440 = vsel %vm518, %v3429, 0
    %v3442 = vsel %vm518, %v3431, 0
    %v3444 = vsel %vm518, %v3433, 0
    %v3446 = vsel %vm518, %v3435, 0
    %3448 = vmatprep.subr.mxu0 0.0
    %3449 = vmatpush1.xpose.msra.mxu0 0.0
    %3450 = vmatprep.subr.mxu0 0.0
    %3451 = vmatpush1.xpose.msra.mxu0 0.0
    %3452 = vmatprep.subr.mxu0 0.0
    %3453 = vmatpush1.xpose.msra.mxu0 0.0
    %3454 = vmatprep.subr.mxu0 0.0
    %3455 = vmatpush1.xpose.msra.mxu0 0.0
    %3456 = vmatprep.subr.mxu0 0.0
    %3457 = vmatpush1.xpose.msra.mxu0 0.0
    %3458 = vmatprep.subr.mxu0 0.0
    %3459 = vmatpush1.xpose.msra.mxu0 0.0
    %3460 = vmatprep.subr.mxu0 0.0
    %3461 = vmatpush1.xpose.msra.mxu0 0.0
    %3462 = vmatprep.subr.mxu0 0.0
    %3463 = vmatpush1.xpose.msra.mxu0 0.0
    %3464 = vmatprep.subr.mxu0 0.0
    %3465 = vmatpush1.xpose.msra.mxu0 0.0
    %3466 = vmatprep.subr.mxu0 0.0
    %3467 = vmatpush1.xpose.msra.mxu0 0.0
    %3468 = vmatprep.subr.mxu0 0.0
    %3469 = vmatpush1.xpose.msra.mxu0 0.0
    %3470 = vmatprep.subr.mxu0 0.0
    %3471 = vmatpush1.xpose.msra.mxu0 0.0
    %3472 = vmatprep.subr.mxu0 0.0
    %3473 = vmatpush1.xpose.msra.mxu0 0.0
    %3474 = vmatprep.subr.mxu0 0.0
    %3475 = vmatpush1.xpose.msra.mxu0 %v3446
    %3476 = vmatprep.subr.mxu0 0.0
    %3477 = vmatpush1.xpose.msra.mxu0 %v3444
    %3478 = vmatprep.subr.mxu0 0.0
    %3479 = vmatpush1.xpose.msra.mxu0 %v3442
    %3480 = vmatprep.subr.mxu0 0.0
    %3481 = vmatpush2.xpose.msra.mxu0 0.0
    %3482 = vmatprep.subr.mxu0 0.0
    %3483 = vmatpush2.xpose.msra.mxu0 0.0
    %3484 = vmatprep.subr.mxu0 0.0
    %3485 = vmatpush2.xpose.msra.mxu0 0.0
    %3486 = vmatprep.subr.mxu0 0.0
    %3487 = vmatpush2.xpose.msra.mxu0 0.0
    %3488 = vmatprep.subr.mxu0 0.0
    %3489 = vmatpush2.xpose.msra.mxu0 0.0
    %3490 = vmatprep.subr.mxu0 0.0
    %3491 = vmatpush2.xpose.msra.mxu0 0.0
    %3492 = vmatprep.subr.mxu0 0.0
    %3493 = vmatpush2.xpose.msra.mxu0 0.0
    %3494 = vmatprep.subr.mxu0 0.0
    %3495 = vmatpush2.xpose.msra.mxu0 0.0
    %3496 = vmatprep.subr.mxu0 0.0
    %3497 = vmatpush2.xpose.msra.mxu0 0.0
    %3498 = vmatprep.subr.mxu0 0.0
    %3499 = vmatpush2.xpose.msra.mxu0 0.0
    %3500 = vmatprep.subr.mxu0 0.0
    %3501 = vmatpush2.xpose.msra.mxu0 0.0
    %3502 = vmatprep.subr.mxu0 0.0
    %3503 = vmatpush2.xpose.msra.mxu0 0.0
    %3504 = vmatprep.subr.mxu0 0.0
    %3505 = vmatpush2.xpose.msra.mxu0 0.0
    %3506 = vmatprep.subr.mxu0 0.0
    %3507 = vmatpush2.xpose.msra.mxu0 0.0
    %3508 = vmatprep.subr.mxu0 0.0
    %3509 = vmatpush2.xpose.msra.mxu0 0.0
    %3510 = vmatprep.subr.mxu0 0.0
    %3511 = vmatpush2.xpose.msra.mxu0 0.0
    %3512 = vmatprep.mubr.f32.mxu0 0.0
    %3513 = vmatmul.mubr.f32.gmra.mxu0 %v3436
    %v3514 = vpop.f32.mrf.mxu0
    %v3515 = vadd.f32 0.0, %v3514
    %v3516 = vpop.f32.mrf.mxu0
    %3517 = vmatprep.mubr.f32.mxu0 0.0
    %3518 = vmatmul.mubr.f32.gmra.mxu0 %v3438
    %v3519 = vpop.f32.mrf.mxu0
    %v3520 = vadd.f32 0.0, %v3519
    %v3521 = vpop.f32.mrf.mxu0
    %3522 = vmatprep.mubr.f32.mxu0 0.0
    %3523 = vmatmul.mubr.f32.gmra.mxu0 %v3440
    %v3524 = vpop.f32.mrf.mxu0
    %v3525 = vadd.f32 0.0, %v3524
    %v3526 = vpop.f32.mrf.mxu0
    %3527 = vdwg.mxu0
    %3528 = vrot.lane.b32.xlu0 %v3310, 112
    %v3529 = vpop.permute.xlu0 %3528
    %3530 = vrot.lane.b32.xlu0 %v3315, 112
    %v3531 = vpop.permute.xlu0 %3530
    %3532 = vrot.lane.b32.xlu0 %v3320, 112
    %v3533 = vpop.permute.xlu0 %3532
    %3534 = vrot.lane.b32.xlu0 %v3310, 80
    %v3535 = vpop.permute.xlu0 %3534
    %3536 = vrot.lane.b32.xlu0 %v3315, 80
    %v3537 = vpop.permute.xlu0 %3536
    %3538 = vrot.lane.b32.xlu0 %v3320, 80
    %v3539 = vpop.permute.xlu0 %3538
    %v3540 = vsel %vm518, %v3529, 0
    %v3542 = vsel %vm518, %v3531, 0
    %v3544 = vsel %vm518, %v3533, 0
    %v3546 = vsel %vm518, %v3535, 0
    %v3548 = vsel %vm518, %v3537, 0
    %v3550 = vsel %vm518, %v3539, 0
    %3552 = vmatprep.subr.mxu0 0.0
    %3553 = vmatpush1.xpose.msra.mxu0 0.0
    %3554 = vmatprep.subr.mxu0 0.0
    %3555 = vmatpush1.xpose.msra.mxu0 0.0
    %3556 = vmatprep.subr.mxu0 0.0
    %3557 = vmatpush1.xpose.msra.mxu0 0.0
    %3558 = vmatprep.subr.mxu0 0.0
    %3559 = vmatpush1.xpose.msra.mxu0 0.0
    %3560 = vmatprep.subr.mxu0 0.0
    %3561 = vmatpush1.xpose.msra.mxu0 0.0
    %3562 = vmatprep.subr.mxu0 0.0
    %3563 = vmatpush1.xpose.msra.mxu0 0.0
    %3564 = vmatprep.subr.mxu0 0.0
    %3565 = vmatpush1.xpose.msra.mxu0 0.0
    %3566 = vmatprep.subr.mxu0 0.0
    %3567 = vmatpush1.xpose.msra.mxu0 0.0
    %3568 = vmatprep.subr.mxu0 0.0
    %3569 = vmatpush1.xpose.msra.mxu0 0.0
    %3570 = vmatprep.subr.mxu0 0.0
    %3571 = vmatpush1.xpose.msra.mxu0 0.0
    %3572 = vmatprep.subr.mxu0 0.0
    %3573 = vmatpush1.xpose.msra.mxu0 0.0
    %3574 = vmatprep.subr.mxu0 0.0
    %3575 = vmatpush1.xpose.msra.mxu0 0.0
    %3576 = vmatprep.subr.mxu0 0.0
    %3577 = vmatpush1.xpose.msra.mxu0 0.0
    %3578 = vmatprep.subr.mxu0 0.0
    %3579 = vmatpush1.xpose.msra.mxu0 %v3550
    %3580 = vmatprep.subr.mxu0 0.0
    %3581 = vmatpush1.xpose.msra.mxu0 %v3548
    %3582 = vmatprep.subr.mxu0 0.0
    %3583 = vmatpush1.xpose.msra.mxu0 %v3546
    %3584 = vmatprep.subr.mxu0 0.0
    %3585 = vmatpush2.xpose.msra.mxu0 0.0
    %3586 = vmatprep.subr.mxu0 0.0
    %3587 = vmatpush2.xpose.msra.mxu0 0.0
    %3588 = vmatprep.subr.mxu0 0.0
    %3589 = vmatpush2.xpose.msra.mxu0 0.0
    %3590 = vmatprep.subr.mxu0 0.0
    %3591 = vmatpush2.xpose.msra.mxu0 0.0
    %3592 = vmatprep.subr.mxu0 0.0
    %3593 = vmatpush2.xpose.msra.mxu0 0.0
    %3594 = vmatprep.subr.mxu0 0.0
    %3595 = vmatpush2.xpose.msra.mxu0 0.0
    %3596 = vmatprep.subr.mxu0 0.0
    %3597 = vmatpush2.xpose.msra.mxu0 0.0
    %3598 = vmatprep.subr.mxu0 0.0
    %3599 = vmatpush2.xpose.msra.mxu0 0.0
    %3600 = vmatprep.subr.mxu0 0.0
    %3601 = vmatpush2.xpose.msra.mxu0 0.0
    %3602 = vmatprep.subr.mxu0 0.0
    %3603 = vmatpush2.xpose.msra.mxu0 0.0
    %3604 = vmatprep.subr.mxu0 0.0
    %3605 = vmatpush2.xpose.msra.mxu0 0.0
    %3606 = vmatprep.subr.mxu0 0.0
    %3607 = vmatpush2.xpose.msra.mxu0 0.0
    %3608 = vmatprep.subr.mxu0 0.0
    %3609 = vmatpush2.xpose.msra.mxu0 0.0
    %3610 = vmatprep.subr.mxu0 0.0
    %3611 = vmatpush2.xpose.msra.mxu0 0.0
    %3612 = vmatprep.subr.mxu0 0.0
    %3613 = vmatpush2.xpose.msra.mxu0 0.0
    %3614 = vmatprep.subr.mxu0 0.0
    %3615 = vmatpush2.xpose.msra.mxu0 0.0
    %3616 = vmatprep.mubr.f32.mxu0 0.0
    %3617 = vmatmul.mubr.f32.gmra.mxu0 %v3540
    %v3618 = vpop.f32.mrf.mxu0
    %v3619 = vadd.f32 0.0, %v3618
    %v3620 = vpop.f32.mrf.mxu0
    %3621 = vmatprep.mubr.f32.mxu0 0.0
    %3622 = vmatmul.mubr.f32.gmra.mxu0 %v3542
    %v3623 = vpop.f32.mrf.mxu0
    %v3624 = vadd.f32 0.0, %v3623
    %v3625 = vpop.f32.mrf.mxu0
    %3626 = vmatprep.mubr.f32.mxu0 0.0
    %3627 = vmatmul.mubr.f32.gmra.mxu0 %v3544
    %v3628 = vpop.f32.mrf.mxu0
    %v3629 = vadd.f32 0.0, %v3628
    %v3630 = vpop.f32.mrf.mxu0
    %3631 = vdwg.mxu0
    %3632 = vrot.lane.b32.xlu0 %v3310, 104
    %v3633 = vpop.permute.xlu0 %3632
    %3634 = vrot.lane.b32.xlu0 %v3315, 104
    %v3635 = vpop.permute.xlu0 %3634
    %3636 = vrot.lane.b32.xlu0 %v3320, 104
    %v3637 = vpop.permute.xlu0 %3636
    %3638 = vrot.lane.b32.xlu0 %v3310, 72
    %v3639 = vpop.permute.xlu0 %3638
    %3640 = vrot.lane.b32.xlu0 %v3315, 72
    %v3641 = vpop.permute.xlu0 %3640
    %3642 = vrot.lane.b32.xlu0 %v3320, 72
    %v3643 = vpop.permute.xlu0 %3642
    %v3644 = vsel %vm518, %v3633, 0
    %v3646 = vsel %vm518, %v3635, 0
    %v3648 = vsel %vm518, %v3637, 0
    %v3650 = vsel %vm518, %v3639, 0
    %v3652 = vsel %vm518, %v3641, 0
    %v3654 = vsel %vm518, %v3643, 0
    %3656 = vmatprep.subr.mxu0 0.0
    %3657 = vmatpush1.xpose.msra.mxu0 0.0
    %3658 = vmatprep.subr.mxu0 0.0
    %3659 = vmatpush1.xpose.msra.mxu0 0.0
    %3660 = vmatprep.subr.mxu0 0.0
    %3661 = vmatpush1.xpose.msra.mxu0 0.0
    %3662 = vmatprep.subr.mxu0 0.0
    %3663 = vmatpush1.xpose.msra.mxu0 0.0
    %3664 = vmatprep.subr.mxu0 0.0
    %3665 = vmatpush1.xpose.msra.mxu0 0.0
    %3666 = vmatprep.subr.mxu0 0.0
    %3667 = vmatpush1.xpose.msra.mxu0 0.0
    %3668 = vmatprep.subr.mxu0 0.0
    %3669 = vmatpush1.xpose.msra.mxu0 0.0
    %3670 = vmatprep.subr.mxu0 0.0
    %3671 = vmatpush1.xpose.msra.mxu0 0.0
    %3672 = vmatprep.subr.mxu0 0.0
    %3673 = vmatpush1.xpose.msra.mxu0 0.0
    %3674 = vmatprep.subr.mxu0 0.0
    %3675 = vmatpush1.xpose.msra.mxu0 0.0
    %3676 = vmatprep.subr.mxu0 0.0
    %3677 = vmatpush1.xpose.msra.mxu0 0.0
    %3678 = vmatprep.subr.mxu0 0.0
    %3679 = vmatpush1.xpose.msra.mxu0 0.0
    %3680 = vmatprep.subr.mxu0 0.0
    %3681 = vmatpush1.xpose.msra.mxu0 0.0
    %3682 = vmatprep.subr.mxu0 0.0
    %3683 = vmatpush1.xpose.msra.mxu0 %v3654
    %3684 = vmatprep.subr.mxu0 0.0
    %3685 = vmatpush1.xpose.msra.mxu0 %v3652
    %3686 = vmatprep.subr.mxu0 0.0
    %3687 = vmatpush1.xpose.msra.mxu0 %v3650
    %3688 = vmatprep.subr.mxu0 0.0
    %3689 = vmatpush2.xpose.msra.mxu0 0.0
    %3690 = vmatprep.subr.mxu0 0.0
    %3691 = vmatpush2.xpose.msra.mxu0 0.0
    %3692 = vmatprep.subr.mxu0 0.0
    %3693 = vmatpush2.xpose.msra.mxu0 0.0
    %3694 = vmatprep.subr.mxu0 0.0
    %3695 = vmatpush2.xpose.msra.mxu0 0.0
    %3696 = vmatprep.subr.mxu0 0.0
    %3697 = vmatpush2.xpose.msra.mxu0 0.0
    %3698 = vmatprep.subr.mxu0 0.0
    %3699 = vmatpush2.xpose.msra.mxu0 0.0
    %3700 = vmatprep.subr.mxu0 0.0
    %3701 = vmatpush2.xpose.msra.mxu0 0.0
    %3702 = vmatprep.subr.mxu0 0.0
    %3703 = vmatpush2.xpose.msra.mxu0 0.0
    %3704 = vmatprep.subr.mxu0 0.0
    %3705 = vmatpush2.xpose.msra.mxu0 0.0
    %3706 = vmatprep.subr.mxu0 0.0
    %3707 = vmatpush2.xpose.msra.mxu0 0.0
    %3708 = vmatprep.subr.mxu0 0.0
    %3709 = vmatpush2.xpose.msra.mxu0 0.0
    %3710 = vmatprep.subr.mxu0 0.0
    %3711 = vmatpush2.xpose.msra.mxu0 0.0
    %3712 = vmatprep.subr.mxu0 0.0
    %3713 = vmatpush2.xpose.msra.mxu0 0.0
    %3714 = vmatprep.subr.mxu0 0.0
    %3715 = vmatpush2.xpose.msra.mxu0 0.0
    %3716 = vmatprep.subr.mxu0 0.0
    %3717 = vmatpush2.xpose.msra.mxu0 0.0
    %3718 = vmatprep.subr.mxu0 0.0
    %3719 = vmatpush2.xpose.msra.mxu0 0.0
    %3720 = vmatprep.mubr.f32.mxu0 0.0
    %3721 = vmatmul.mubr.f32.gmra.mxu0 %v3644
    %v3722 = vpop.f32.mrf.mxu0
    %v3723 = vadd.f32 0.0, %v3722
    %v3724 = vpop.f32.mrf.mxu0
    %3725 = vmatprep.mubr.f32.mxu0 0.0
    %3726 = vmatmul.mubr.f32.gmra.mxu0 %v3646
    %v3727 = vpop.f32.mrf.mxu0
    %v3728 = vadd.f32 0.0, %v3727
    %v3729 = vpop.f32.mrf.mxu0
    %3730 = vmatprep.mubr.f32.mxu0 0.0
    %3731 = vmatmul.mubr.f32.gmra.mxu0 %v3648
    %v3732 = vpop.f32.mrf.mxu0
    %v3733 = vadd.f32 0.0, %v3732
    %v3734 = vpop.f32.mrf.mxu0
    %3735 = vdwg.mxu0
    %v3736 = vadd.f32 %v3411, %v3167
    %v3737 = vadd.f32 %v3416, %v3168
    %v3738 = vadd.f32 %v3421, %v3169
    %v3739 = vadd.f32 %v3515, %v3167
    %v3740 = vadd.f32 %v3520, %v3168
    %v3741 = vadd.f32 %v3525, %v3169
    %v3742 = vadd.f32 %v3619, %v3167
    %v3743 = vadd.f32 %v3624, %v3168
    %v3744 = vadd.f32 %v3629, %v3169
    %v3745 = vadd.f32 %v3723, %v3167
    %v3746 = vadd.f32 %v3728, %v3168
    %v3747 = vadd.f32 %v3733, %v3169
    %v3748 = vsel %vm1347, %v3736, -inf
    %3749 = vmax.xlane.f32.xlu0 %v3748
    %v3750 = vpop.xlane.xlu0 %3749
    %v3751 = vsel %vm1347, %v3737, -inf
    %3752 = vmax.xlane.f32.xlu0 %v3751
    %v3753 = vpop.xlane.xlu0 %3752
    %v3754 = vsel %vm1347, %v3738, -inf
    %3755 = vmax.xlane.f32.xlu0 %v3754
    %v3756 = vpop.xlane.xlu0 %3755
    %v3757 = vsel %vm1347, %v3739, -inf
    %3758 = vmax.xlane.f32.xlu0 %v3757
    %v3759 = vpop.xlane.xlu0 %3758
    %v3760 = vsel %vm1347, %v3740, -inf
    %3761 = vmax.xlane.f32.xlu0 %v3760
    %v3762 = vpop.xlane.xlu0 %3761
    %v3763 = vsel %vm1347, %v3741, -inf
    %3764 = vmax.xlane.f32.xlu0 %v3763
    %v3765 = vpop.xlane.xlu0 %3764
    %v3766 = vsel %vm1347, %v3742, -inf
    %3767 = vmax.xlane.f32.xlu0 %v3766
    %v3768 = vpop.xlane.xlu0 %3767
    %v3769 = vsel %vm1347, %v3743, -inf
    %3770 = vmax.xlane.f32.xlu0 %v3769
    %v3771 = vpop.xlane.xlu0 %3770
    %v3772 = vsel %vm1347, %v3744, -inf
    %3773 = vmax.xlane.f32.xlu0 %v3772
    %v3774 = vpop.xlane.xlu0 %3773
    %v3775 = vsel %vm1347, %v3745, -inf
    %3776 = vmax.xlane.f32.xlu0 %v3775
    %v3777 = vpop.xlane.xlu0 %3776
    %v3778 = vsel %vm1347, %v3746, -inf
    %3779 = vmax.xlane.f32.xlu0 %v3778
    %v3780 = vpop.xlane.xlu0 %3779
    %v3781 = vsel %vm1347, %v3747, -inf
    %3782 = vmax.xlane.f32.xlu0 %v3781
    %v3783 = vpop.xlane.xlu0 %3782
    %v3784 = vsub.f32 %v3736, %v3750
    %v3785 = vsub.f32 %v3737, %v3753
    %v3786 = vsub.f32 %v3738, %v3756
    %v3787 = vsub.f32 %v3739, %v3759
    %v3788 = vsub.f32 %v3740, %v3762
    %v3789 = vsub.f32 %v3741, %v3765
    %v3790 = vsub.f32 %v3742, %v3768
    %v3791 = vsub.f32 %v3743, %v3771
    %v3792 = vsub.f32 %v3744, %v3774
    %v3793 = vsub.f32 %v3745, %v3777
    %v3794 = vsub.f32 %v3746, %v3780
    %v3795 = vsub.f32 %v3747, %v3783
    %v3796 = vmul.f32 %v3784, 1.442695
    %v3797 = vpow.pop %v3796
    %v3798 = vmul.f32 %v3785, 1.442695
    %v3799 = vpow.pop %v3798
    %v3800 = vmul.f32 %v3786, 1.442695
    %v3801 = vpow.pop %v3800
    %v3802 = vmul.f32 %v3787, 1.442695
    %v3803 = vpow.pop %v3802
    %v3804 = vmul.f32 %v3788, 1.442695
    %v3805 = vpow.pop %v3804
    %v3806 = vmul.f32 %v3789, 1.442695
    %v3807 = vpow.pop %v3806
    %v3808 = vmul.f32 %v3790, 1.442695
    %v3809 = vpow.pop %v3808
    %v3810 = vmul.f32 %v3791, 1.442695
    %v3811 = vpow.pop %v3810
    %v3812 = vmul.f32 %v3792, 1.442695
    %v3813 = vpow.pop %v3812
    %v3814 = vmul.f32 %v3793, 1.442695
    %v3815 = vpow.pop %v3814
    %v3816 = vmul.f32 %v3794, 1.442695
    %v3817 = vpow.pop %v3816
    %v3818 = vmul.f32 %v3795, 1.442695
    %v3819 = vpow.pop %v3818
    %v3820 = vsel %vm1347, %v3797, 0.0
    %3821 = vadd.xlane.f32.xlu0 %v3820
    %v3822 = vpop.xlane.xlu0 %3821
    %v3823 = vsel %vm1347, %v3799, 0.0
    %3824 = vadd.xlane.f32.xlu0 %v3823
    %v3825 = vpop.xlane.xlu0 %3824
    %v3826 = vsel %vm1347, %v3801, 0.0
    %3827 = vadd.xlane.f32.xlu0 %v3826
    %v3828 = vpop.xlane.xlu0 %3827
    %v3829 = vsel %vm1347, %v3803, 0.0
    %3830 = vadd.xlane.f32.xlu0 %v3829
    %v3831 = vpop.xlane.xlu0 %3830
    %v3832 = vsel %vm1347, %v3805, 0.0
    %3833 = vadd.xlane.f32.xlu0 %v3832
    %v3834 = vpop.xlane.xlu0 %3833
    %v3835 = vsel %vm1347, %v3807, 0.0
    %3836 = vadd.xlane.f32.xlu0 %v3835
    %v3837 = vpop.xlane.xlu0 %3836
    %v3838 = vsel %vm1347, %v3809, 0.0
    %3839 = vadd.xlane.f32.xlu0 %v3838
    %v3840 = vpop.xlane.xlu0 %3839
    %v3841 = vsel %vm1347, %v3811, 0.0
    %3842 = vadd.xlane.f32.xlu0 %v3841
    %v3843 = vpop.xlane.xlu0 %3842
    %v3844 = vsel %vm1347, %v3813, 0.0
    %3845 = vadd.xlane.f32.xlu0 %v3844
    %v3846 = vpop.xlane.xlu0 %3845
    %v3847 = vsel %vm1347, %v3815, 0.0
    %3848 = vadd.xlane.f32.xlu0 %v3847
    %v3849 = vpop.xlane.xlu0 %3848
    %v3850 = vsel %vm1347, %v3817, 0.0
    %3851 = vadd.xlane.f32.xlu0 %v3850
    %v3852 = vpop.xlane.xlu0 %3851
    %v3853 = vsel %vm1347, %v3819, 0.0
    %3854 = vadd.xlane.f32.xlu0 %v3853
    %v3855 = vpop.xlane.xlu0 %3854
    %v3856 = vrcp.pop %v3822
    %v3857 = vrcp.pop %v3825
    %v3858 = vrcp.pop %v3828
    %v3859 = vrcp.pop %v3831
    %v3860 = vrcp.pop %v3834
    %v3861 = vrcp.pop %v3837
    %v3862 = vrcp.pop %v3840
    %v3863 = vrcp.pop %v3843
    %v3864 = vrcp.pop %v3846
    %v3865 = vrcp.pop %v3849
    %v3866 = vrcp.pop %v3852
    %v3867 = vrcp.pop %v3855
    %v3868 = vmul.f32 %v3797, %v3856
    %v3869 = vmul.f32 %v3799, %v3857
    %v3870 = vmul.f32 %v3801, %v3858
    %v3871 = vmul.f32 %v3803, %v3859
    %v3872 = vmul.f32 %v3805, %v3860
    %v3873 = vmul.f32 %v3807, %v3861
    %v3874 = vmul.f32 %v3809, %v3862
    %v3875 = vmul.f32 %v3811, %v3863
    %v3876 = vmul.f32 %v3813, %v3864
    %v3877 = vmul.f32 %v3815, %v3865
    %v3878 = vmul.f32 %v3817, %v3866
    %v3879 = vmul.f32 %v3819, %v3867
    %3880 = vrot.lane.b32.xlu0 %v3310, 64
    %v3881 = vpop.permute.xlu0 %3880
    %3882 = vrot.lane.b32.xlu0 %v3315, 64
    %v3883 = vpop.permute.xlu0 %3882
    %3884 = vrot.lane.b32.xlu0 %v3320, 64
    %v3885 = vpop.permute.xlu0 %3884
    %v3890 = vsel %vm1347, %v3868, 0
    %v3893 = vsel %vm1347, %v3869, 0
    %v3896 = vsel %vm1347, %v3870, 0
    %3898 = vmatprep.subr.mxu0 0.0
    %3899 = vmatpush1.msra.mxu0 0.0
    %3900 = vmatprep.subr.mxu0 0.0
    %3901 = vmatpush1.msra.mxu0 0.0
    %3902 = vmatprep.subr.mxu0 0.0
    %3903 = vmatpush1.msra.mxu0 0.0
    %3904 = vmatprep.subr.mxu0 0.0
    %3905 = vmatpush1.msra.mxu0 0.0
    %3906 = vmatprep.subr.mxu0 0.0
    %3907 = vmatpush1.msra.mxu0 0.0
    %3908 = vmatprep.subr.mxu0 0.0
    %3909 = vmatpush1.msra.mxu0 0.0
    %3910 = vmatprep.subr.mxu0 0.0
    %3911 = vmatpush1.msra.mxu0 0.0
    %3912 = vmatprep.subr.mxu0 0.0
    %3913 = vmatpush1.msra.mxu0 0.0
    %3914 = vmatprep.subr.mxu0 0.0
    %3915 = vmatpush1.msra.mxu0 0.0
    %3916 = vmatprep.subr.mxu0 0.0
    %3917 = vmatpush1.msra.mxu0 0.0
    %3918 = vmatprep.subr.mxu0 0.0
    %3919 = vmatpush1.msra.mxu0 0.0
    %3920 = vmatprep.subr.mxu0 0.0
    %3921 = vmatpush1.msra.mxu0 0.0
    %3922 = vmatprep.subr.mxu0 0.0
    %3923 = vmatpush1.msra.mxu0 0.0
    %3924 = vmatprep.subr.mxu0 0.0
    %3925 = vmatpush1.msra.mxu0 %v3885
    %3926 = vmatprep.subr.mxu0 0.0
    %3927 = vmatpush1.msra.mxu0 %v3883
    %3928 = vmatprep.subr.mxu0 0.0
    %3929 = vmatpush1.msra.mxu0 %v3881
    %3930 = vmatprep.subr.mxu0 0.0
    %3931 = vmatpush2.msra.mxu0 0.0
    %3932 = vmatprep.subr.mxu0 0.0
    %3933 = vmatpush2.msra.mxu0 0.0
    %3934 = vmatprep.subr.mxu0 0.0
    %3935 = vmatpush2.msra.mxu0 0.0
    %3936 = vmatprep.subr.mxu0 0.0
    %3937 = vmatpush2.msra.mxu0 0.0
    %3938 = vmatprep.subr.mxu0 0.0
    %3939 = vmatpush2.msra.mxu0 0.0
    %3940 = vmatprep.subr.mxu0 0.0
    %3941 = vmatpush2.msra.mxu0 0.0
    %3942 = vmatprep.subr.mxu0 0.0
    %3943 = vmatpush2.msra.mxu0 0.0
    %3944 = vmatprep.subr.mxu0 0.0
    %3945 = vmatpush2.msra.mxu0 0.0
    %3946 = vmatprep.subr.mxu0 0.0
    %3947 = vmatpush2.msra.mxu0 0.0
    %3948 = vmatprep.subr.mxu0 0.0
    %3949 = vmatpush2.msra.mxu0 0.0
    %3950 = vmatprep.subr.mxu0 0.0
    %3951 = vmatpush2.msra.mxu0 0.0
    %3952 = vmatprep.subr.mxu0 0.0
    %3953 = vmatpush2.msra.mxu0 0.0
    %3954 = vmatprep.subr.mxu0 0.0
    %3955 = vmatpush2.msra.mxu0 0.0
    %3956 = vmatprep.subr.mxu0 0.0
    %3957 = vmatpush2.msra.mxu0 0.0
    %3958 = vmatprep.subr.mxu0 0.0
    %3959 = vmatpush2.msra.mxu0 0.0
    %3960 = vmatprep.subr.mxu0 0.0
    %3961 = vmatpush2.msra.mxu0 0.0
    %3962 = vmatprep.mubr.f32.mxu0 0.0
    %3963 = vmatmul.mubr.f32.gmra.mxu0 %v3890
    %v3964 = vpop.f32.mrf.mxu0
    %v3965 = vadd.f32 0.0, %v3964
    %v3966 = vpop.f32.mrf.mxu0
    %3967 = vmatprep.mubr.f32.mxu0 0.0
    %3968 = vmatmul.mubr.f32.gmra.mxu0 %v3893
    %v3969 = vpop.f32.mrf.mxu0
    %v3970 = vadd.f32 0.0, %v3969
    %v3971 = vpop.f32.mrf.mxu0
    %3972 = vmatprep.mubr.f32.mxu0 0.0
    %3973 = vmatmul.mubr.f32.gmra.mxu0 %v3896
    %v3974 = vpop.f32.mrf.mxu0
    %v3975 = vadd.f32 0.0, %v3974
    %v3976 = vpop.f32.mrf.mxu0
    %3977 = vdwg.mxu0
    %3978 = vrot.lane.b32.xlu0 %v3310, 56
    %v3979 = vpop.permute.xlu0 %3978
    %3980 = vrot.lane.b32.xlu0 %v3315, 56
    %v3981 = vpop.permute.xlu0 %3980
    %3982 = vrot.lane.b32.xlu0 %v3320, 56
    %v3983 = vpop.permute.xlu0 %3982
    %v3988 = vsel %vm1347, %v3871, 0
    %v3991 = vsel %vm1347, %v3872, 0
    %v3994 = vsel %vm1347, %v3873, 0
    %3996 = vmatprep.subr.mxu0 0.0
    %3997 = vmatpush1.msra.mxu0 0.0
    %3998 = vmatprep.subr.mxu0 0.0
    %3999 = vmatpush1.msra.mxu0 0.0
    %4000 = vmatprep.subr.mxu0 0.0
    %4001 = vmatpush1.msra.mxu0 0.0
    %4002 = vmatprep.subr.mxu0 0.0
    %4003 = vmatpush1.msra.mxu0 0.0
    %4004 = vmatprep.subr.mxu0 0.0
    %4005 = vmatpush1.msra.mxu0 0.0
    %4006 = vmatprep.subr.mxu0 0.0
    %4007 = vmatpush1.msra.mxu0 0.0
    %4008 = vmatprep.subr.mxu0 0.0
    %4009 = vmatpush1.msra.mxu0 0.0
    %4010 = vmatprep.subr.mxu0 0.0
    %4011 = vmatpush1.msra.mxu0 0.0
    %4012 = vmatprep.subr.mxu0 0.0
    %4013 = vmatpush1.msra.mxu0 0.0
    %4014 = vmatprep.subr.mxu0 0.0
    %4015 = vmatpush1.msra.mxu0 0.0
    %4016 = vmatprep.subr.mxu0 0.0
    %4017 = vmatpush1.msra.mxu0 0.0
    %4018 = vmatprep.subr.mxu0 0.0
    %4019 = vmatpush1.msra.mxu0 0.0
    %4020 = vmatprep.subr.mxu0 0.0
    %4021 = vmatpush1.msra.mxu0 0.0
    %4022 = vmatprep.subr.mxu0 0.0
    %4023 = vmatpush1.msra.mxu0 %v3983
    %4024 = vmatprep.subr.mxu0 0.0
    %4025 = vmatpush1.msra.mxu0 %v3981
    %4026 = vmatprep.subr.mxu0 0.0
    %4027 = vmatpush1.msra.mxu0 %v3979
    %4028 = vmatprep.subr.mxu0 0.0
    %4029 = vmatpush2.msra.mxu0 0.0
    %4030 = vmatprep.subr.mxu0 0.0
    %4031 = vmatpush2.msra.mxu0 0.0
    %4032 = vmatprep.subr.mxu0 0.0
    %4033 = vmatpush2.msra.mxu0 0.0
    %4034 = vmatprep.subr.mxu0 0.0
    %4035 = vmatpush2.msra.mxu0 0.0
    %4036 = vmatprep.subr.mxu0 0.0
    %4037 = vmatpush2.msra.mxu0 0.0
    %4038 = vmatprep.subr.mxu0 0.0
    %4039 = vmatpush2.msra.mxu0 0.0
    %4040 = vmatprep.subr.mxu0 0.0
    %4041 = vmatpush2.msra.mxu0 0.0
    %4042 = vmatprep.subr.mxu0 0.0
    %4043 = vmatpush2.msra.mxu0 0.0
    %4044 = vmatprep.subr.mxu0 0.0
    %4045 = vmatpush2.msra.mxu0 0.0
    %4046 = vmatprep.subr.mxu0 0.0
    %4047 = vmatpush2.msra.mxu0 0.0
    %4048 = vmatprep.subr.mxu0 0.0
    %4049 = vmatpush2.msra.mxu0 0.0
    %4050 = vmatprep.subr.mxu0 0.0
    %4051 = vmatpush2.msra.mxu0 0.0
    %4052 = vmatprep.subr.mxu0 0.0
    %4053 = vmatpush2.msra.mxu0 0.0
    %4054 = vmatprep.subr.mxu0 0.0
    %4055 = vmatpush2.msra.mxu0 0.0
    %4056 = vmatprep.subr.mxu0 0.0
    %4057 = vmatpush2.msra.mxu0 0.0
    %4058 = vmatprep.subr.mxu0 0.0
    %4059 = vmatpush2.msra.mxu0 0.0
    %4060 = vmatprep.mubr.f32.mxu0 0.0
    %4061 = vmatmul.mubr.f32.gmra.mxu0 %v3988
    %v4062 = vpop.f32.mrf.mxu0
    %v4063 = vadd.f32 0.0, %v4062
    %v4064 = vpop.f32.mrf.mxu0
    %4065 = vmatprep.mubr.f32.mxu0 0.0
    %4066 = vmatmul.mubr.f32.gmra.mxu0 %v3991
    %v4067 = vpop.f32.mrf.mxu0
    %v4068 = vadd.f32 0.0, %v4067
    %v4069 = vpop.f32.mrf.mxu0
    %4070 = vmatprep.mubr.f32.mxu0 0.0
    %4071 = vmatmul.mubr.f32.gmra.mxu0 %v3994
    %v4072 = vpop.f32.mrf.mxu0
    %v4073 = vadd.f32 0.0, %v4072
    %v4074 = vpop.f32.mrf.mxu0
    %4075 = vdwg.mxu0
    %4076 = vrot.lane.b32.xlu0 %v3310, 48
    %v4077 = vpop.permute.xlu0 %4076
    %4078 = vrot.lane.b32.xlu0 %v3315, 48
    %v4079 = vpop.permute.xlu0 %4078
    %4080 = vrot.lane.b32.xlu0 %v3320, 48
    %v4081 = vpop.permute.xlu0 %4080
    %v4086 = vsel %vm1347, %v3874, 0
    %v4089 = vsel %vm1347, %v3875, 0
    %v4092 = vsel %vm1347, %v3876, 0
    %4094 = vmatprep.subr.mxu0 0.0
    %4095 = vmatpush1.msra.mxu0 0.0
    %4096 = vmatprep.subr.mxu0 0.0
    %4097 = vmatpush1.msra.mxu0 0.0
    %4098 = vmatprep.subr.mxu0 0.0
    %4099 = vmatpush1.msra.mxu0 0.0
    %4100 = vmatprep.subr.mxu0 0.0
    %4101 = vmatpush1.msra.mxu0 0.0
    %4102 = vmatprep.subr.mxu0 0.0
    %4103 = vmatpush1.msra.mxu0 0.0
    %4104 = vmatprep.subr.mxu0 0.0
    %4105 = vmatpush1.msra.mxu0 0.0
    %4106 = vmatprep.subr.mxu0 0.0
    %4107 = vmatpush1.msra.mxu0 0.0
    %4108 = vmatprep.subr.mxu0 0.0
    %4109 = vmatpush1.msra.mxu0 0.0
    %4110 = vmatprep.subr.mxu0 0.0
    %4111 = vmatpush1.msra.mxu0 0.0
    %4112 = vmatprep.subr.mxu0 0.0
    %4113 = vmatpush1.msra.mxu0 0.0
    %4114 = vmatprep.subr.mxu0 0.0
    %4115 = vmatpush1.msra.mxu0 0.0
    %4116 = vmatprep.subr.mxu0 0.0
    %4117 = vmatpush1.msra.mxu0 0.0
    %4118 = vmatprep.subr.mxu0 0.0
    %4119 = vmatpush1.msra.mxu0 0.0
    %4120 = vmatprep.subr.mxu0 0.0
    %4121 = vmatpush1.msra.mxu0 %v4081
    %4122 = vmatprep.subr.mxu0 0.0
    %4123 = vmatpush1.msra.mxu0 %v4079
    %4124 = vmatprep.subr.mxu0 0.0
    %4125 = vmatpush1.msra.mxu0 %v4077
    %4126 = vmatprep.subr.mxu0 0.0
    %4127 = vmatpush2.msra.mxu0 0.0
    %4128 = vmatprep.subr.mxu0 0.0
    %4129 = vmatpush2.msra.mxu0 0.0
    %4130 = vmatprep.subr.mxu0 0.0
    %4131 = vmatpush2.msra.mxu0 0.0
    %4132 = vmatprep.subr.mxu0 0.0
    %4133 = vmatpush2.msra.mxu0 0.0
    %4134 = vmatprep.subr.mxu0 0.0
    %4135 = vmatpush2.msra.mxu0 0.0
    %4136 = vmatprep.subr.mxu0 0.0
    %4137 = vmatpush2.msra.mxu0 0.0
    %4138 = vmatprep.subr.mxu0 0.0
    %4139 = vmatpush2.msra.mxu0 0.0
    %4140 = vmatprep.subr.mxu0 0.0
    %4141 = vmatpush2.msra.mxu0 0.0
    %4142 = vmatprep.subr.mxu0 0.0
    %4143 = vmatpush2.msra.mxu0 0.0
    %4144 = vmatprep.subr.mxu0 0.0
    %4145 = vmatpush2.msra.mxu0 0.0
    %4146 = vmatprep.subr.mxu0 0.0
    %4147 = vmatpush2.msra.mxu0 0.0
    %4148 = vmatprep.subr.mxu0 0.0
    %4149 = vmatpush2.msra.mxu0 0.0
    %4150 = vmatprep.subr.mxu0 0.0
    %4151 = vmatpush2.msra.mxu0 0.0
    %4152 = vmatprep.subr.mxu0 0.0
    %4153 = vmatpush2.msra.mxu0 0.0
    %4154 = vmatprep.subr.mxu0 0.0
    %4155 = vmatpush2.msra.mxu0 0.0
    %4156 = vmatprep.subr.mxu0 0.0
    %4157 = vmatpush2.msra.mxu0 0.0
    %4158 = vmatprep.mubr.f32.mxu0 0.0
    %4159 = vmatmul.mubr.f32.gmra.mxu0 %v4086
    %v4160 = vpop.f32.mrf.mxu0
    %v4161 = vadd.f32 0.0, %v4160
    %v4162 = vpop.f32.mrf.mxu0
    %4163 = vmatprep.mubr.f32.mxu0 0.0
    %4164 = vmatmul.mubr.f32.gmra.mxu0 %v4089
    %v4165 = vpop.f32.mrf.mxu0
    %v4166 = vadd.f32 0.0, %v4165
    %v4167 = vpop.f32.mrf.mxu0
    %4168 = vmatprep.mubr.f32.mxu0 0.0
    %4169 = vmatmul.mubr.f32.gmra.mxu0 %v4092
    %v4170 = vpop.f32.mrf.mxu0
    %v4171 = vadd.f32 0.0, %v4170
    %v4172 = vpop.f32.mrf.mxu0
    %4173 = vdwg.mxu0
    %4174 = vrot.lane.b32.xlu0 %v3310, 40
    %v4175 = vpop.permute.xlu0 %4174
    %4176 = vrot.lane.b32.xlu0 %v3315, 40
    %v4177 = vpop.permute.xlu0 %4176
    %4178 = vrot.lane.b32.xlu0 %v3320, 40
    %v4179 = vpop.permute.xlu0 %4178
    %v4184 = vsel %vm1347, %v3877, 0
    %v4187 = vsel %vm1347, %v3878, 0
    %v4190 = vsel %vm1347, %v3879, 0
    %4192 = vmatprep.subr.mxu0 0.0
    %4193 = vmatpush1.msra.mxu0 0.0
    %4194 = vmatprep.subr.mxu0 0.0
    %4195 = vmatpush1.msra.mxu0 0.0
    %4196 = vmatprep.subr.mxu0 0.0
    %4197 = vmatpush1.msra.mxu0 0.0
    %4198 = vmatprep.subr.mxu0 0.0
    %4199 = vmatpush1.msra.mxu0 0.0
    %4200 = vmatprep.subr.mxu0 0.0
    %4201 = vmatpush1.msra.mxu0 0.0
    %4202 = vmatprep.subr.mxu0 0.0
    %4203 = vmatpush1.msra.mxu0 0.0
    %4204 = vmatprep.subr.mxu0 0.0
    %4205 = vmatpush1.msra.mxu0 0.0
    %4206 = vmatprep.subr.mxu0 0.0
    %4207 = vmatpush1.msra.mxu0 0.0
    %4208 = vmatprep.subr.mxu0 0.0
    %4209 = vmatpush1.msra.mxu0 0.0
    %4210 = vmatprep.subr.mxu0 0.0
    %4211 = vmatpush1.msra.mxu0 0.0
    %4212 = vmatprep.subr.mxu0 0.0
    %4213 = vmatpush1.msra.mxu0 0.0
    %4214 = vmatprep.subr.mxu0 0.0
    %4215 = vmatpush1.msra.mxu0 0.0
    %4216 = vmatprep.subr.mxu0 0.0
    %4217 = vmatpush1.msra.mxu0 0.0
    %4218 = vmatprep.subr.mxu0 0.0
    %4219 = vmatpush1.msra.mxu0 %v4179
    %4220 = vmatprep.subr.mxu0 0.0
    %4221 = vmatpush1.msra.mxu0 %v4177
    %4222 = vmatprep.subr.mxu0 0.0
    %4223 = vmatpush1.msra.mxu0 %v4175
    %4224 = vmatprep.subr.mxu0 0.0
    %4225 = vmatpush2.msra.mxu0 0.0
    %4226 = vmatprep.subr.mxu0 0.0
    %4227 = vmatpush2.msra.mxu0 0.0
    %4228 = vmatprep.subr.mxu0 0.0
    %4229 = vmatpush2.msra.mxu0 0.0
    %4230 = vmatprep.subr.mxu0 0.0
    %4231 = vmatpush2.msra.mxu0 0.0
    %4232 = vmatprep.subr.mxu0 0.0
    %4233 = vmatpush2.msra.mxu0 0.0
    %4234 = vmatprep.subr.mxu0 0.0
    %4235 = vmatpush2.msra.mxu0 0.0
    %4236 = vmatprep.subr.mxu0 0.0
    %4237 = vmatpush2.msra.mxu0 0.0
    %4238 = vmatprep.subr.mxu0 0.0
    %4239 = vmatpush2.msra.mxu0 0.0
    %4240 = vmatprep.subr.mxu0 0.0
    %4241 = vmatpush2.msra.mxu0 0.0
    %4242 = vmatprep.subr.mxu0 0.0
    %4243 = vmatpush2.msra.mxu0 0.0
    %4244 = vmatprep.subr.mxu0 0.0
    %4245 = vmatpush2.msra.mxu0 0.0
    %4246 = vmatprep.subr.mxu0 0.0
    %4247 = vmatpush2.msra.mxu0 0.0
    %4248 = vmatprep.subr.mxu0 0.0
    %4249 = vmatpush2.msra.mxu0 0.0
    %4250 = vmatprep.subr.mxu0 0.0
    %4251 = vmatpush2.msra.mxu0 0.0
    %4252 = vmatprep.subr.mxu0 0.0
    %4253 = vmatpush2.msra.mxu0 0.0
    %4254 = vmatprep.subr.mxu0 0.0
    %4255 = vmatpush2.msra.mxu0 0.0
    %4256 = vmatprep.mubr.f32.mxu0 0.0
    %4257 = vmatmul.mubr.f32.gmra.mxu0 %v4184
    %v4258 = vpop.f32.mrf.mxu0
    %v4259 = vadd.f32 0.0, %v4258
    %v4260 = vpop.f32.mrf.mxu0
    %4261 = vmatprep.mubr.f32.mxu0 0.0
    %4262 = vmatmul.mubr.f32.gmra.mxu0 %v4187
    %v4263 = vpop.f32.mrf.mxu0
    %v4264 = vadd.f32 0.0, %v4263
    %v4265 = vpop.f32.mrf.mxu0
    %4266 = vmatprep.mubr.f32.mxu0 0.0
    %4267 = vmatmul.mubr.f32.gmra.mxu0 %v4190
    %v4268 = vpop.f32.mrf.mxu0
    %v4269 = vadd.f32 0.0, %v4268
    %v4270 = vpop.f32.mrf.mxu0
    %4271 = vdwg.mxu0
    %4275 = vrot.lane.b32.xlu0 %v4063, 8
    %v4276 = vpop.permute.xlu0 %4275
    %4277 = vrot.lane.b32.xlu0 %v4068, 8
    %v4278 = vpop.permute.xlu0 %4277
    %4279 = vrot.lane.b32.xlu0 %v4073, 8
    %v4280 = vpop.permute.xlu0 %4279
    %4287 = vrot.lane.b32.xlu0 %v4161, 16
    %v4288 = vpop.permute.xlu0 %4287
    %4289 = vrot.lane.b32.xlu0 %v4166, 16
    %v4290 = vpop.permute.xlu0 %4289
    %4291 = vrot.lane.b32.xlu0 %v4171, 16
    %v4292 = vpop.permute.xlu0 %4291
    %4299 = vrot.lane.b32.xlu0 %v4259, 24
    %v4300 = vpop.permute.xlu0 %4299
    %4301 = vrot.lane.b32.xlu0 %v4264, 24
    %v4302 = vpop.permute.xlu0 %4301
    %4303 = vrot.lane.b32.xlu0 %v4269, 24
    %v4304 = vpop.permute.xlu0 %4303
    %v4308 = vsel %vm518, %v3965, %v4276
    %v4309 = vsel %vm518, %v3970, %v4278
    %v4310 = vsel %vm518, %v3975, %v4280
    %v4311 = vsel %vm1344, %v4308, %v4288
    %v4312 = vsel %vm1344, %v4309, %v4290
    %v4313 = vsel %vm1344, %v4310, %v4292
    %v4314 = vsel %vm1347, %v4311, %v4300
    %v4315 = vsel %vm1347, %v4312, %v4302
    %v4316 = vsel %vm1347, %v4313, %v4304
    %v4317 = vld [vmem:[%s53] sm:$0xff]
    %v4318 = vld [vmem:[%s53 + $0x8] sm:$0xff]
    %v4319 = vld [vmem:[%s53 + $0x10] sm:$0xff]
    %v4320 = vld [vmem:[%s53 + $0x18] sm:$0xff]
    %v4322 = vsel %vm283, %v4314, 0
    %v4325 = vsel %vm283, %v4315, 0
    %v4328 = vsel %vm283, %v4316, 0
    %4330 = vmatprep.subr.mxu0 0.0
    %4331 = vmatpush1.msra.mxu0 0.0
    %4332 = vmatprep.subr.mxu0 0.0
    %4333 = vmatpush1.msra.mxu0 0.0
    %4334 = vmatprep.subr.mxu0 0.0
    %4335 = vmatpush1.msra.mxu0 0.0
    %4336 = vmatprep.subr.mxu0 0.0
    %4337 = vmatpush1.msra.mxu0 0.0
    %4338 = vmatprep.subr.mxu0 0.0
    %4339 = vmatpush1.msra.mxu0 0.0
    %4340 = vmatprep.subr.mxu0 0.0
    %4341 = vmatpush1.msra.mxu0 0.0
    %4342 = vmatprep.subr.mxu0 0.0
    %4343 = vmatpush1.msra.mxu0 0.0
    %4344 = vmatprep.subr.mxu0 0.0
    %4345 = vmatpush1.msra.mxu0 0.0
    %4346 = vmatprep.subr.mxu0 0.0
    %4347 = vmatpush1.msra.mxu0 0.0
    %4348 = vmatprep.subr.mxu0 0.0
    %4349 = vmatpush1.msra.mxu0 0.0
    %4350 = vmatprep.subr.mxu0 0.0
    %4351 = vmatpush1.msra.mxu0 0.0
    %4352 = vmatprep.subr.mxu0 0.0
    %4353 = vmatpush1.msra.mxu0 0.0
    %4354 = vmatprep.subr.mxu0 0.0
    %4355 = vmatpush1.msra.mxu0 %v4320
    %4356 = vmatprep.subr.mxu0 0.0
    %4357 = vmatpush1.msra.mxu0 %v4319
    %4358 = vmatprep.subr.mxu0 0.0
    %4359 = vmatpush1.msra.mxu0 %v4318
    %4360 = vmatprep.subr.mxu0 0.0
    %4361 = vmatpush1.msra.mxu0 %v4317
    %4362 = vmatprep.subr.mxu0 0.0
    %4363 = vmatpush2.msra.mxu0 0.0
    %4364 = vmatprep.subr.mxu0 0.0
    %4365 = vmatpush2.msra.mxu0 0.0
    %4366 = vmatprep.subr.mxu0 0.0
    %4367 = vmatpush2.msra.mxu0 0.0
    %4368 = vmatprep.subr.mxu0 0.0
    %4369 = vmatpush2.msra.mxu0 0.0
    %4370 = vmatprep.subr.mxu0 0.0
    %4371 = vmatpush2.msra.mxu0 0.0
    %4372 = vmatprep.subr.mxu0 0.0
    %4373 = vmatpush2.msra.mxu0 0.0
    %4374 = vmatprep.subr.mxu0 0.0
    %4375 = vmatpush2.msra.mxu0 0.0
    %4376 = vmatprep.subr.mxu0 0.0
    %4377 = vmatpush2.msra.mxu0 0.0
    %4378 = vmatprep.subr.mxu0 0.0
    %4379 = vmatpush2.msra.mxu0 0.0
    %4380 = vmatprep.subr.mxu0 0.0
    %4381 = vmatpush2.msra.mxu0 0.0
    %4382 = vmatprep.subr.mxu0 0.0
    %4383 = vmatpush2.msra.mxu0 0.0
    %4384 = vmatprep.subr.mxu0 0.0
    %4385 = vmatpush2.msra.mxu0 0.0
    %4386 = vmatprep.subr.mxu0 0.0
    %4387 = vmatpush2.msra.mxu0 0.0
    %4388 = vmatprep.subr.mxu0 0.0
    %4389 = vmatpush2.msra.mxu0 0.0
    %4390 = vmatprep.subr.mxu0 0.0
    %4391 = vmatpush2.msra.mxu0 0.0
    %4392 = vmatprep.subr.mxu0 0.0
    %4393 = vmatpush2.msra.mxu0 0.0
    %4394 = vmatprep.mubr.f32.mxu0 0.0
    %4395 = vmatmul.mubr.f32.gmra.mxu0 %v4322
    %v4396 = vpop.f32.mrf.mxu0
    %v4397 = vadd.f32 0.0, %v4396
    %v4398 = vpop.f32.mrf.mxu0
    %4399 = vmatprep.mubr.f32.mxu0 0.0
    %4400 = vmatmul.mubr.f32.gmra.mxu0 %v4325
    %v4401 = vpop.f32.mrf.mxu0
    %v4402 = vadd.f32 0.0, %v4401
    %v4403 = vpop.f32.mrf.mxu0
    %4404 = vmatprep.mubr.f32.mxu0 0.0
    %4405 = vmatmul.mubr.f32.gmra.mxu0 %v4328
    %v4406 = vpop.f32.mrf.mxu0
    %v4407 = vadd.f32 0.0, %v4406
    %v4408 = vpop.f32.mrf.mxu0
    %4409 = vdwg.mxu0
    %v4410 = vadd.f32 %v3109, %v4397
    %v4411 = vadd.f32 %v3110, %v4402
    %v4412 = vadd.f32 %v3111, %v4407
    %v4413 = vld [vmem:[%s55] sm:$0x1]
    %v4414 = vlaneseq
    %v4415 = vshrl.u32 %v4414, 7
    %v4416 = vsub.s32 0, %v4415
    %v4417 = vrot.slane %v4413, %v4416
    %v4418 = vadd.f32 %v4410, %v4417
    %v4419 = vadd.f32 %v4411, %v4417
    %v4420 = vadd.f32 %v4412, %v4417
    %v4421 = vld [vmem:[%s57] sm:$0x1]
    %v4422 = vld [vmem:[%s59] sm:$0x1]
    %v4423 = vsel %vm283, %v4418, 0.0
    %4424 = vadd.xlane.f32.xlu0 %v4423
    %v4425 = vpop.xlane.xlu0 %4424
    %v4426 = vsel %vm283, %v4419, 0.0
    %4427 = vadd.xlane.f32.xlu0 %v4426
    %v4428 = vpop.xlane.xlu0 %4427
    %v4429 = vsel %vm283, %v4420, 0.0
    %4430 = vadd.xlane.f32.xlu0 %v4429
    %v4431 = vpop.xlane.xlu0 %4430
    %v4432 = vmul.f32 %v4425, %v291
    %v4433 = vmul.f32 %v4428, %v291
    %v4434 = vmul.f32 %v4431, %v291
    %v4435 = vsub.f32 %v4418, %v4432
    %v4436 = vsub.f32 %v4419, %v4433
    %v4437 = vsub.f32 %v4420, %v4434
    %v4438 = vmul.f32 %v4435, %v4435
    %v4439 = vmul.f32 %v4436, %v4436
    %v4440 = vmul.f32 %v4437, %v4437
    %v4441 = vsel %vm283, %v4438, 0.0
    %4442 = vadd.xlane.f32.xlu0 %v4441
    %v4443 = vpop.xlane.xlu0 %4442
    %v4444 = vsel %vm283, %v4439, 0.0
    %4445 = vadd.xlane.f32.xlu0 %v4444
    %v4446 = vpop.xlane.xlu0 %4445
    %v4447 = vsel %vm283, %v4440, 0.0
    %4448 = vadd.xlane.f32.xlu0 %v4447
    %v4449 = vpop.xlane.xlu0 %4448
    %v4450 = vmul.f32 %v4443, %v291
    %v4451 = vmul.f32 %v4446, %v291
    %v4452 = vmul.f32 %v4449, %v291
    %v4453 = vadd.f32 %v4450, 1e-05
    %v4454 = vadd.f32 %v4451, 1e-05
    %v4455 = vadd.f32 %v4452, 1e-05
    %v4456 = vrsqrt.pop %v4453
    %v4457 = vrsqrt.pop %v4454
    %v4458 = vrsqrt.pop %v4455
    %v4459 = vmul.f32 %v4435, %v4456
    %v4460 = vmul.f32 %v4436, %v4457
    %v4461 = vmul.f32 %v4437, %v4458
    %v4462 = vlaneseq
    %v4463 = vshrl.u32 %v4462, 7
    %v4464 = vsub.s32 0, %v4463
    %v4465 = vrot.slane %v4421, %v4464
    %v4466 = vmul.f32 %v4459, %v4465
    %v4467 = vmul.f32 %v4460, %v4465
    %v4468 = vmul.f32 %v4461, %v4465
    %v4469 = vlaneseq
    %v4470 = vshrl.u32 %v4469, 7
    %v4471 = vsub.s32 0, %v4470
    %v4472 = vrot.slane %v4422, %v4471
    %v4473 = vadd.f32 %v4466, %v4472
    %v4474 = vadd.f32 %v4467, %v4472
    %v4475 = vadd.f32 %v4468, %v4472
    %v4476 = vld [vmem:[%s61] sm:$0xff]
    %v4477 = vld [vmem:[%s61 + $0x8] sm:$0xff]
    %v4478 = vld [vmem:[%s61 + $0x10] sm:$0xff]
    %v4479 = vld [vmem:[%s61 + $0x18] sm:$0xff]
    %v4480 = vld [vmem:[%s63] sm:$0x1]
    %v4481 = vlaneseq
    %v4482 = vshrl.u32 %v4481, 7
    %v4483 = vsub.s32 0, %v4482
    %v4484 = vrot.slane %v4480, %v4483
    %v4486 = vsel %vm283, %v4473, 0
    %v4489 = vsel %vm283, %v4474, 0
    %v4492 = vsel %vm283, %v4475, 0
    %4494 = vmatprep.subr.mxu0 0.0
    %4495 = vmatpush1.msra.mxu0 0.0
    %4496 = vmatprep.subr.mxu0 0.0
    %4497 = vmatpush1.msra.mxu0 0.0
    %4498 = vmatprep.subr.mxu0 0.0
    %4499 = vmatpush1.msra.mxu0 0.0
    %4500 = vmatprep.subr.mxu0 0.0
    %4501 = vmatpush1.msra.mxu0 0.0
    %4502 = vmatprep.subr.mxu0 0.0
    %4503 = vmatpush1.msra.mxu0 0.0
    %4504 = vmatprep.subr.mxu0 0.0
    %4505 = vmatpush1.msra.mxu0 0.0
    %4506 = vmatprep.subr.mxu0 0.0
    %4507 = vmatpush1.msra.mxu0 0.0
    %4508 = vmatprep.subr.mxu0 0.0
    %4509 = vmatpush1.msra.mxu0 0.0
    %4510 = vmatprep.subr.mxu0 0.0
    %4511 = vmatpush1.msra.mxu0 0.0
    %4512 = vmatprep.subr.mxu0 0.0
    %4513 = vmatpush1.msra.mxu0 0.0
    %4514 = vmatprep.subr.mxu0 0.0
    %4515 = vmatpush1.msra.mxu0 0.0
    %4516 = vmatprep.subr.mxu0 0.0
    %4517 = vmatpush1.msra.mxu0 0.0
    %4518 = vmatprep.subr.mxu0 0.0
    %4519 = vmatpush1.msra.mxu0 %v4479
    %4520 = vmatprep.subr.mxu0 0.0
    %4521 = vmatpush1.msra.mxu0 %v4478
    %4522 = vmatprep.subr.mxu0 0.0
    %4523 = vmatpush1.msra.mxu0 %v4477
    %4524 = vmatprep.subr.mxu0 0.0
    %4525 = vmatpush1.msra.mxu0 %v4476
    %4526 = vmatprep.subr.mxu0 0.0
    %4527 = vmatpush2.msra.mxu0 0.0
    %4528 = vmatprep.subr.mxu0 0.0
    %4529 = vmatpush2.msra.mxu0 0.0
    %4530 = vmatprep.subr.mxu0 0.0
    %4531 = vmatpush2.msra.mxu0 0.0
    %4532 = vmatprep.subr.mxu0 0.0
    %4533 = vmatpush2.msra.mxu0 0.0
    %4534 = vmatprep.subr.mxu0 0.0
    %4535 = vmatpush2.msra.mxu0 0.0
    %4536 = vmatprep.subr.mxu0 0.0
    %4537 = vmatpush2.msra.mxu0 0.0
    %4538 = vmatprep.subr.mxu0 0.0
    %4539 = vmatpush2.msra.mxu0 0.0
    %4540 = vmatprep.subr.mxu0 0.0
    %4541 = vmatpush2.msra.mxu0 0.0
    %4542 = vmatprep.subr.mxu0 0.0
    %4543 = vmatpush2.msra.mxu0 0.0
    %4544 = vmatprep.subr.mxu0 0.0
    %4545 = vmatpush2.msra.mxu0 0.0
    %4546 = vmatprep.subr.mxu0 0.0
    %4547 = vmatpush2.msra.mxu0 0.0
    %4548 = vmatprep.subr.mxu0 0.0
    %4549 = vmatpush2.msra.mxu0 0.0
    %4550 = vmatprep.subr.mxu0 0.0
    %4551 = vmatpush2.msra.mxu0 0.0
    %4552 = vmatprep.subr.mxu0 0.0
    %4553 = vmatpush2.msra.mxu0 0.0
    %4554 = vmatprep.subr.mxu0 0.0
    %4555 = vmatpush2.msra.mxu0 0.0
    %4556 = vmatprep.subr.mxu0 0.0
    %4557 = vmatpush2.msra.mxu0 0.0
    %4558 = vmatprep.mubr.f32.mxu0 0.0
    %4559 = vmatmul.mubr.f32.gmra.mxu0 %v4486
    %v4560 = vpop.f32.mrf.mxu0
    %v4561 = vadd.f32 %v4484, %v4560
    %v4562 = vpop.f32.mrf.mxu0
    %4563 = vmatprep.mubr.f32.mxu0 0.0
    %4564 = vmatmul.mubr.f32.gmra.mxu0 %v4489
    %v4565 = vpop.f32.mrf.mxu0
    %v4566 = vadd.f32 %v4484, %v4565
    %v4567 = vpop.f32.mrf.mxu0
    %4568 = vmatprep.mubr.f32.mxu0 0.0
    %4569 = vmatmul.mubr.f32.gmra.mxu0 %v4492
    %v4570 = vpop.f32.mrf.mxu0
    %v4571 = vadd.f32 %v4484, %v4570
    %v4572 = vpop.f32.mrf.mxu0
    %4573 = vdwg.mxu0
    %v4574 = vmul.f32 %v4561, 1.702
    %v4575 = vmul.f32 %v4566, 1.702
    %v4576 = vmul.f32 %v4571, 1.702
    %v4577 = vxor.u32 %v4574, 2147483648
    %v4578 = vxor.u32 %v4575, 2147483648
    %v4579 = vxor.u32 %v4576, 2147483648
    %v4580 = vmul.f32 %v4577, 1.442695
    %v4581 = vpow.pop %v4580
    %v4582 = vmul.f32 %v4578, 1.442695
    %v4583 = vpow.pop %v4582
    %v4584 = vmul.f32 %v4579, 1.442695
    %v4585 = vpow.pop %v4584
    %v4586 = vadd.f32 %v4581, 1.0
    %v4587 = vadd.f32 %v4583, 1.0
    %v4588 = vadd.f32 %v4585, 1.0
    %v4589 = vrcp.pop %v4586
    %v4590 = vmul.f32 1.0, %v4589
    %v4591 = vrcp.pop %v4587
    %v4592 = vmul.f32 1.0, %v4591
    %v4593 = vrcp.pop %v4588
    %v4594 = vmul.f32 1.0, %v4593
    %v4595 = vmul.f32 %v4561, %v4590
    %v4596 = vmul.f32 %v4566, %v4592
    %v4597 = vmul.f32 %v4571, %v4594
    %v4598 = vld [vmem:[%s65] sm:$0xff]
    %v4599 = vld [vmem:[%s65 + $0x8] sm:$0xff]
    %v4600 = vld [vmem:[%s65 + $0x10] sm:$0xff]
    %v4601 = vld [vmem:[%s65 + $0x18] sm:$0xff]
    %v4602 = vld [vmem:[%s65 + $0x20] sm:$0xff]
    %v4603 = vld [vmem:[%s65 + $0x28] sm:$0xff]
    %v4604 = vld [vmem:[%s65 + $0x30] sm:$0xff]
    %v4605 = vld [vmem:[%s65 + $0x38] sm:$0xff]
    %v4606 = vld [vmem:[%s65 + $0x40] sm:$0xff]
    %v4607 = vld [vmem:[%s65 + $0x48] sm:$0xff]
    %v4608 = vld [vmem:[%s65 + $0x50] sm:$0xff]
    %v4609 = vld [vmem:[%s65 + $0x58] sm:$0xff]
    %v4610 = vld [vmem:[%s65 + $0x60] sm:$0xff]
    %v4611 = vld [vmem:[%s65 + $0x68] sm:$0xff]
    %v4612 = vld [vmem:[%s65 + $0x70] sm:$0xff]
    %v4613 = vld [vmem:[%s65 + $0x78] sm:$0xff]
    %4614 = vmatprep.subr.mxu0 0.0
    %4615 = vmatpush1.msra.mxu0 %v4613
    %4616 = vmatprep.subr.mxu0 0.0
    %4617 = vmatpush1.msra.mxu0 %v4612
    %4618 = vmatprep.subr.mxu0 0.0
    %4619 = vmatpush1.msra.mxu0 %v4611
    %4620 = vmatprep.subr.mxu0 0.0
    %4621 = vmatpush1.msra.mxu0 %v4610
    %4622 = vmatprep.subr.mxu0 0.0
    %4623 = vmatpush1.msra.mxu0 %v4609
    %4624 = vmatprep.subr.mxu0 0.0
    %4625 = vmatpush1.msra.mxu0 %v4608
    %4626 = vmatprep.subr.mxu0 0.0
    %4627 = vmatpush1.msra.mxu0 %v4607
    %4628 = vmatprep.subr.mxu0 0.0
    %4629 = vmatpush1.msra.mxu0 %v4606
    %4630 = vmatprep.subr.mxu0 0.0
    %4631 = vmatpush1.msra.mxu0 %v4605
    %4632 = vmatprep.subr.mxu0 0.0
    %4633 = vmatpush1.msra.mxu0 %v4604
    %4634 = vmatprep.subr.mxu0 0.0
    %4635 = vmatpush1.msra.mxu0 %v4603
    %4636 = vmatprep.subr.mxu0 0.0
    %4637 = vmatpush1.msra.mxu0 %v4602
    %4638 = vmatprep.subr.mxu0 0.0
    %4639 = vmatpush1.msra.mxu0 %v4601
    %4640 = vmatprep.subr.mxu0 0.0
    %4641 = vmatpush1.msra.mxu0 %v4600
    %4642 = vmatprep.subr.mxu0 0.0
    %4643 = vmatpush1.msra.mxu0 %v4599
    %4644 = vmatprep.subr.mxu0 0.0
    %4645 = vmatpush1.msra.mxu0 %v4598
    %4646 = vmatprep.subr.mxu0 0.0
    %4647 = vmatpush2.msra.mxu0 0.0
    %4648 = vmatprep.subr.mxu0 0.0
    %4649 = vmatpush2.msra.mxu0 0.0
    %4650 = vmatprep.subr.mxu0 0.0
    %4651 = vmatpush2.msra.mxu0 0.0
    %4652 = vmatprep.subr.mxu0 0.0
    %4653 = vmatpush2.msra.mxu0 0.0
    %4654 = vmatprep.subr.mxu0 0.0
    %4655 = vmatpush2.msra.mxu0 0.0
    %4656 = vmatprep.subr.mxu0 0.0
    %4657 = vmatpush2.msra.mxu0 0.0
    %4658 = vmatprep.subr.mxu0 0.0
    %4659 = vmatpush2.msra.mxu0 0.0
    %4660 = vmatprep.subr.mxu0 0.0
    %4661 = vmatpush2.msra.mxu0 0.0
    %4662 = vmatprep.subr.mxu0 0.0
    %4663 = vmatpush2.msra.mxu0 0.0
    %4664 = vmatprep.subr.mxu0 0.0
    %4665 = vmatpush2.msra.mxu0 0.0
    %4666 = vmatprep.subr.mxu0 0.0
    %4667 = vmatpush2.msra.mxu0 0.0
    %4668 = vmatprep.subr.mxu0 0.0
    %4669 = vmatpush2.msra.mxu0 0.0
    %4670 = vmatprep.subr.mxu0 0.0
    %4671 = vmatpush2.msra.mxu0 0.0
    %4672 = vmatprep.subr.mxu0 0.0
    %4673 = vmatpush2.msra.mxu0 0.0
    %4674 = vmatprep.subr.mxu0 0.0
    %4675 = vmatpush2.msra.mxu0 0.0
    %4676 = vmatprep.subr.mxu0 0.0
    %4677 = vmatpush2.msra.mxu0 0.0
    %4678 = vmatprep.mubr.f32.mxu0 0.0
    %4679 = vmatmul.mubr.f32.gmra.mxu0 %v4595
    %v4680 = vpop.f32.mrf.mxu0
    %v4681 = vadd.f32 0.0, %v4680
    %v4682 = vpop.f32.mrf.mxu0
    %4683 = vmatprep.mubr.f32.mxu0 0.0
    %4684 = vmatmul.mubr.f32.gmra.mxu0 %v4596
    %v4685 = vpop.f32.mrf.mxu0
    %v4686 = vadd.f32 0.0, %v4685
    %v4687 = vpop.f32.mrf.mxu0
    %4688 = vmatprep.mubr.f32.mxu0 0.0
    %4689 = vmatmul.mubr.f32.gmra.mxu0 %v4597
    %v4690 = vpop.f32.mrf.mxu0
    %v4691 = vadd.f32 0.0, %v4690
    %v4692 = vpop.f32.mrf.mxu0
    %4693 = vdwg.mxu0
    %v4694 = vadd.f32 %v4418, %v4681
    %v4695 = vadd.f32 %v4419, %v4686
    %v4696 = vadd.f32 %v4420, %v4691
    %v4697 = vld [vmem:[%s67] sm:$0x1]
    %v4698 = vlaneseq
    %v4699 = vshrl.u32 %v4698, 7
    %v4700 = vsub.s32 0, %v4699
    %v4701 = vrot.slane %v4697, %v4700
    %v4702 = vadd.f32 %v4694, %v4701
    %v4703 = vadd.f32 %v4695, %v4701
    %v4704 = vadd.f32 %v4696, %v4701
    %v4705 = vld [vmem:[%s45 + $0x1] sm:$0x1]
    %v4706 = vld [vmem:[%s47 + $0x1] sm:$0x1]
    %v4707 = vsel %vm283, %v4702, 0.0
    %4708 = vadd.xlane.f32.xlu0 %v4707
    %v4709 = vpop.xlane.xlu0 %4708
    %v4710 = vsel %vm283, %v4703, 0.0
    %4711 = vadd.xlane.f32.xlu0 %v4710
    %v4712 = vpop.xlane.xlu0 %4711
    %v4713 = vsel %vm283, %v4704, 0.0
    %4714 = vadd.xlane.f32.xlu0 %v4713
    %v4715 = vpop.xlane.xlu0 %4714
    %v4716 = vmul.f32 %v4709, %v291
    %v4717 = vmul.f32 %v4712, %v291
    %v4718 = vmul.f32 %v4715, %v291
    %v4719 = vsub.f32 %v4702, %v4716
    %v4720 = vsub.f32 %v4703, %v4717
    %v4721 = vsub.f32 %v4704, %v4718
    %v4722 = vmul.f32 %v4719, %v4719
    %v4723 = vmul.f32 %v4720, %v4720
    %v4724 = vmul.f32 %v4721, %v4721
    %v4725 = vsel %vm283, %v4722, 0.0
    %4726 = vadd.xlane.f32.xlu0 %v4725
    %v4727 = vpop.xlane.xlu0 %4726
    %v4728 = vsel %vm283, %v4723, 0.0
    %4729 = vadd.xlane.f32.xlu0 %v4728
    %v4730 = vpop.xlane.xlu0 %4729
    %v4731 = vsel %vm283, %v4724, 0.0
    %4732 = vadd.xlane.f32.xlu0 %v4731
    %v4733 = vpop.xlane.xlu0 %4732
    %v4734 = vmul.f32 %v4727, %v291
    %v4735 = vmul.f32 %v4730, %v291
    %v4736 = vmul.f32 %v4733, %v291
    %v4737 = vadd.f32 %v4734, 1e-05
    %v4738 = vadd.f32 %v4735, 1e-05
    %v4739 = vadd.f32 %v4736, 1e-05
    %v4740 = vrsqrt.pop %v4737
    %v4741 = vrsqrt.pop %v4738
    %v4742 = vrsqrt.pop %v4739
    %v4743 = vmul.f32 %v4719, %v4740
    %v4744 = vmul.f32 %v4720, %v4741
    %v4745 = vmul.f32 %v4721, %v4742
    %v4746 = vlaneseq
    %v4747 = vshrl.u32 %v4746, 7
    %v4748 = vsub.s32 0, %v4747
    %v4749 = vrot.slane %v4705, %v4748
    %v4750 = vmul.f32 %v4743, %v4749
    %v4751 = vmul.f32 %v4744, %v4749
    %v4752 = vmul.f32 %v4745, %v4749
    %v4753 = vlaneseq
    %v4754 = vshrl.u32 %v4753, 7
    %v4755 = vsub.s32 0, %v4754
    %v4756 = vrot.slane %v4706, %v4755
    %v4757 = vadd.f32 %v4750, %v4756
    %v4758 = vadd.f32 %v4751, %v4756
    %v4759 = vadd.f32 %v4752, %v4756
    %s4760 = scalar_lea.vmem %s49, 32
    %v4761 = vld [vmem:[%s4760] sm:$0xff]
    %v4762 = vld [vmem:[%s4760 + $0x8] sm:$0xff]
    %v4763 = vld [vmem:[%s4760 + $0x10] sm:$0xff]
    %v4764 = vld [vmem:[%s4760 + $0x18] sm:$0xff]
    %v4765 = vld [vmem:[%s51 + $0x1] sm:$0x1]
    %v4766 = vlaneseq
    %v4767 = vshrl.u32 %v4766, 7
    %v4768 = vsub.s32 0, %v4767
    %v4769 = vrot.slane %v4765, %v4768
    %v4771 = vsel %vm283, %v4757, 0
    %v4774 = vsel %vm283, %v4758, 0
    %v4777 = vsel %vm283, %v4759, 0
    %4779 = vmatprep.subr.mxu0 0.0
    %4780 = vmatpush1.msra.mxu0 0.0
    %4781 = vmatprep.subr.mxu0 0.0
    %4782 = vmatpush1.msra.mxu0 0.0
    %4783 = vmatprep.subr.mxu0 0.0
    %4784 = vmatpush1.msra.mxu0 0.0
    %4785 = vmatprep.subr.mxu0 0.0
    %4786 = vmatpush1.msra.mxu0 0.0
    %4787 = vmatprep.subr.mxu0 0.0
    %4788 = vmatpush1.msra.mxu0 0.0
    %4789 = vmatprep.subr.mxu0 0.0
    %4790 = vmatpush1.msra.mxu0 0.0
    %4791 = vmatprep.subr.mxu0 0.0
    %4792 = vmatpush1.msra.mxu0 0.0
    %4793 = vmatprep.subr.mxu0 0.0
    %4794 = vmatpush1.msra.mxu0 0.0
    %4795 = vmatprep.subr.mxu0 0.0
    %4796 = vmatpush1.msra.mxu0 0.0
    %4797 = vmatprep.subr.mxu0 0.0
    %4798 = vmatpush1.msra.mxu0 0.0
    %4799 = vmatprep.subr.mxu0 0.0
    %4800 = vmatpush1.msra.mxu0 0.0
    %4801 = vmatprep.subr.mxu0 0.0
    %4802 = vmatpush1.msra.mxu0 0.0
    %4803 = vmatprep.subr.mxu0 0.0
    %4804 = vmatpush1.msra.mxu0 %v4764
    %4805 = vmatprep.subr.mxu0 0.0
    %4806 = vmatpush1.msra.mxu0 %v4763
    %4807 = vmatprep.subr.mxu0 0.0
    %4808 = vmatpush1.msra.mxu0 %v4762
    %4809 = vmatprep.subr.mxu0 0.0
    %4810 = vmatpush1.msra.mxu0 %v4761
    %4811 = vmatprep.subr.mxu0 0.0
    %4812 = vmatpush2.msra.mxu0 0.0
    %4813 = vmatprep.subr.mxu0 0.0
    %4814 = vmatpush2.msra.mxu0 0.0
    %4815 = vmatprep.subr.mxu0 0.0
    %4816 = vmatpush2.msra.mxu0 0.0
    %4817 = vmatprep.subr.mxu0 0.0
    %4818 = vmatpush2.msra.mxu0 0.0
    %4819 = vmatprep.subr.mxu0 0.0
    %4820 = vmatpush2.msra.mxu0 0.0
    %4821 = vmatprep.subr.mxu0 0.0
    %4822 = vmatpush2.msra.mxu0 0.0
    %4823 = vmatprep.subr.mxu0 0.0
    %4824 = vmatpush2.msra.mxu0 0.0
    %4825 = vmatprep.subr.mxu0 0.0
    %4826 = vmatpush2.msra.mxu0 0.0
    %4827 = vmatprep.subr.mxu0 0.0
    %4828 = vmatpush2.msra.mxu0 0.0
    %4829 = vmatprep.subr.mxu0 0.0
    %4830 = vmatpush2.msra.mxu0 0.0
    %4831 = vmatprep.subr.mxu0 0.0
    %4832 = vmatpush2.msra.mxu0 0.0
    %4833 = vmatprep.subr.mxu0 0.0
    %4834 = vmatpush2.msra.mxu0 0.0
    %4835 = vmatprep.subr.mxu0 0.0
    %4836 = vmatpush2.msra.mxu0 0.0
    %4837 = vmatprep.subr.mxu0 0.0
    %4838 = vmatpush2.msra.mxu0 0.0
    %4839 = vmatprep.subr.mxu0 0.0
    %4840 = vmatpush2.msra.mxu0 0.0
    %4841 = vmatprep.subr.mxu0 0.0
    %4842 = vmatpush2.msra.mxu0 0.0
    %4843 = vmatprep.mubr.f32.mxu0 0.0
    %4844 = vmatmul.mubr.f32.gmra.mxu0 %v4771
    %v4845 = vpop.f32.mrf.mxu0
    %v4846 = vadd.f32 %v4769, %v4845
    %v4847 = vpop.f32.mrf.mxu0
    %4848 = vmatprep.mubr.f32.mxu0 0.0
    %4849 = vmatmul.mubr.f32.gmra.mxu0 %v4774
    %v4850 = vpop.f32.mrf.mxu0
    %v4851 = vadd.f32 %v4769, %v4850
    %v4852 = vpop.f32.mrf.mxu0
    %4853 = vmatprep.mubr.f32.mxu0 0.0
    %4854 = vmatmul.mubr.f32.gmra.mxu0 %v4777
    %v4855 = vpop.f32.mrf.mxu0
    %v4856 = vadd.f32 %v4769, %v4855
    %v4857 = vpop.f32.mrf.mxu0
    %4858 = vdwg.mxu0
    %4862 = vrot.lane.b32.xlu0 %v4846, 96
    %v4863 = vpop.permute.xlu0 %4862
    %4864 = vrot.lane.b32.xlu0 %v4851, 96
    %v4865 = vpop.permute.xlu0 %4864
    %4866 = vrot.lane.b32.xlu0 %v4856, 96
    %v4867 = vpop.permute.xlu0 %4866
    %v4868 = vsel %vm518, %v4846, 0
    %v4870 = vsel %vm518, %v4851, 0
    %v4872 = vsel %vm518, %v4856, 0
    %v4874 = vsel %vm518, %v4863, 0
    %v4876 = vsel %vm518, %v4865, 0
    %v4878 = vsel %vm518, %v4867, 0
    %4880 = vmatprep.subr.mxu0 0.0
    %4881 = vmatpush1.xpose.msra.mxu0 0.0
    %4882 = vmatprep.subr.mxu0 0.0
    %4883 = vmatpush1.xpose.msra.mxu0 0.0
    %4884 = vmatprep.subr.mxu0 0.0
    %4885 = vmatpush1.xpose.msra.mxu0 0.0
    %4886 = vmatprep.subr.mxu0 0.0
    %4887 = vmatpush1.xpose.msra.mxu0 0.0
    %4888 = vmatprep.subr.mxu0 0.0
    %4889 = vmatpush1.xpose.msra.mxu0 0.0
    %4890 = vmatprep.subr.mxu0 0.0
    %4891 = vmatpush1.xpose.msra.mxu0 0.0
    %4892 = vmatprep.subr.mxu0 0.0
    %4893 = vmatpush1.xpose.msra.mxu0 0.0
    %4894 = vmatprep.subr.mxu0 0.0
    %4895 = vmatpush1.xpose.msra.mxu0 0.0
    %4896 = vmatprep.subr.mxu0 0.0
    %4897 = vmatpush1.xpose.msra.mxu0 0.0
    %4898 = vmatprep.subr.mxu0 0.0
    %4899 = vmatpush1.xpose.msra.mxu0 0.0
    %4900 = vmatprep.subr.mxu0 0.0
    %4901 = vmatpush1.xpose.msra.mxu0 0.0
    %4902 = vmatprep.subr.mxu0 0.0
    %4903 = vmatpush1.xpose.msra.mxu0 0.0
    %4904 = vmatprep.subr.mxu0 0.0
    %4905 = vmatpush1.xpose.msra.mxu0 0.0
    %4906 = vmatprep.subr.mxu0 0.0
    %4907 = vmatpush1.xpose.msra.mxu0 %v4878
    %4908 = vmatprep.subr.mxu0 0.0
    %4909 = vmatpush1.xpose.msra.mxu0 %v4876
    %4910 = vmatprep.subr.mxu0 0.0
    %4911 = vmatpush1.xpose.msra.mxu0 %v4874
    %4912 = vmatprep.subr.mxu0 0.0
    %4913 = vmatpush2.xpose.msra.mxu0 0.0
    %4914 = vmatprep.subr.mxu0 0.0
    %4915 = vmatpush2.xpose.msra.mxu0 0.0
    %4916 = vmatprep.subr.mxu0 0.0
    %4917 = vmatpush2.xpose.msra.mxu0 0.0
    %4918 = vmatprep.subr.mxu0 0.0
    %4919 = vmatpush2.xpose.msra.mxu0 0.0
    %4920 = vmatprep.subr.mxu0 0.0
    %4921 = vmatpush2.xpose.msra.mxu0 0.0
    %4922 = vmatprep.subr.mxu0 0.0
    %4923 = vmatpush2.xpose.msra.mxu0 0.0
    %4924 = vmatprep.subr.mxu0 0.0
    %4925 = vmatpush2.xpose.msra.mxu0 0.0
    %4926 = vmatprep.subr.mxu0 0.0
    %4927 = vmatpush2.xpose.msra.mxu0 0.0
    %4928 = vmatprep.subr.mxu0 0.0
    %4929 = vmatpush2.xpose.msra.mxu0 0.0
    %4930 = vmatprep.subr.mxu0 0.0
    %4931 = vmatpush2.xpose.msra.mxu0 0.0
    %4932 = vmatprep.subr.mxu0 0.0
    %4933 = vmatpush2.xpose.msra.mxu0 0.0
    %4934 = vmatprep.subr.mxu0 0.0
    %4935 = vmatpush2.xpose.msra.mxu0 0.0
    %4936 = vmatprep.subr.mxu0 0.0
    %4937 = vmatpush2.xpose.msra.mxu0 0.0
    %4938 = vmatprep.subr.mxu0 0.0
    %4939 = vmatpush2.xpose.msra.mxu0 0.0
    %4940 = vmatprep.subr.mxu0 0.0
    %4941 = vmatpush2.xpose.msra.mxu0 0.0
    %4942 = vmatprep.subr.mxu0 0.0
    %4943 = vmatpush2.xpose.msra.mxu0 0.0
    %4944 = vmatprep.mubr.f32.mxu0 0.0
    %4945 = vmatmul.mubr.f32.gmra.mxu0 %v4868
    %v4946 = vpop.f32.mrf.mxu0
    %v4947 = vadd.f32 0.0, %v4946
    %v4948 = vpop.f32.mrf.mxu0
    %4949 = vmatprep.mubr.f32.mxu0 0.0
    %4950 = vmatmul.mubr.f32.gmra.mxu0 %v4870
    %v4951 = vpop.f32.mrf.mxu0
    %v4952 = vadd.f32 0.0, %v4951
    %v4953 = vpop.f32.mrf.mxu0
    %4954 = vmatprep.mubr.f32.mxu0 0.0
    %4955 = vmatmul.mubr.f32.gmra.mxu0 %v4872
    %v4956 = vpop.f32.mrf.mxu0
    %v4957 = vadd.f32 0.0, %v4956
    %v4958 = vpop.f32.mrf.mxu0
    %4959 = vdwg.mxu0
    %4960 = vrot.lane.b32.xlu0 %v4846, 120
    %v4961 = vpop.permute.xlu0 %4960
    %4962 = vrot.lane.b32.xlu0 %v4851, 120
    %v4963 = vpop.permute.xlu0 %4962
    %4964 = vrot.lane.b32.xlu0 %v4856, 120
    %v4965 = vpop.permute.xlu0 %4964
    %4966 = vrot.lane.b32.xlu0 %v4846, 88
    %v4967 = vpop.permute.xlu0 %4966
    %4968 = vrot.lane.b32.xlu0 %v4851, 88
    %v4969 = vpop.permute.xlu0 %4968
    %4970 = vrot.lane.b32.xlu0 %v4856, 88
    %v4971 = vpop.permute.xlu0 %4970
    %v4972 = vsel %vm518, %v4961, 0
    %v4974 = vsel %vm518, %v4963, 0
    %v4976 = vsel %vm518, %v4965, 0
    %v4978 = vsel %vm518, %v4967, 0
    %v4980 = vsel %vm518, %v4969, 0
    %v4982 = vsel %vm518, %v4971, 0
    %4984 = vmatprep.subr.mxu0 0.0
    %4985 = vmatpush1.xpose.msra.mxu0 0.0
    %4986 = vmatprep.subr.mxu0 0.0
    %4987 = vmatpush1.xpose.msra.mxu0 0.0
    %4988 = vmatprep.subr.mxu0 0.0
    %4989 = vmatpush1.xpose.msra.mxu0 0.0
    %4990 = vmatprep.subr.mxu0 0.0
    %4991 = vmatpush1.xpose.msra.mxu0 0.0
    %4992 = vmatprep.subr.mxu0 0.0
    %4993 = vmatpush1.xpose.msra.mxu0 0.0
    %4994 = vmatprep.subr.mxu0 0.0
    %4995 = vmatpush1.xpose.msra.mxu0 0.0
    %4996 = vmatprep.subr.mxu0 0.0
    %4997 = vmatpush1.xpose.msra.mxu0 0.0
    %4998 = vmatprep.subr.mxu0 0.0
    %4999 = vmatpush1.xpose.msra.mxu0 0.0
    %5000 = vmatprep.subr.mxu0 0.0
    %5001 = vmatpush1.xpose.msra.mxu0 0.0
    %5002 = vmatprep.subr.mxu0 0.0
    %5003 = vmatpush1.xpose.msra.mxu0 0.0
    %5004 = vmatprep.subr.mxu0 0.0
    %5005 = vmatpush1.xpose.msra.mxu0 0.0
    %5006 = vmatprep.subr.mxu0 0.0
    %5007 = vmatpush1.xpose.msra.mxu0 0.0
    %5008 = vmatprep.subr.mxu0 0.0
    %5009 = vmatpush1.xpose.msra.mxu0 0.0
    %5010 = vmatprep.subr.mxu0 0.0
    %5011 = vmatpush1.xpose.msra.mxu0 %v4982
    %5012 = vmatprep.subr.mxu0 0.0
    %5013 = vmatpush1.xpose.msra.mxu0 %v4980
    %5014 = vmatprep.subr.mxu0 0.0
    %5015 = vmatpush1.xpose.msra.mxu0 %v4978
    %5016 = vmatprep.subr.mxu0 0.0
    %5017 = vmatpush2.xpose.msra.mxu0 0.0
    %5018 = vmatprep.subr.mxu0 0.0
    %5019 = vmatpush2.xpose.msra.mxu0 0.0
    %5020 = vmatprep.subr.mxu0 0.0
    %5021 = vmatpush2.xpose.msra.mxu0 0.0
    %5022 = vmatprep.subr.mxu0 0.0
    %5023 = vmatpush2.xpose.msra.mxu0 0.0
    %5024 = vmatprep.subr.mxu0 0.0
    %5025 = vmatpush2.xpose.msra.mxu0 0.0
    %5026 = vmatprep.subr.mxu0 0.0
    %5027 = vmatpush2.xpose.msra.mxu0 0.0
    %5028 = vmatprep.subr.mxu0 0.0
    %5029 = vmatpush2.xpose.msra.mxu0 0.0
    %5030 = vmatprep.subr.mxu0 0.0
    %5031 = vmatpush2.xpose.msra.mxu0 0.0
    %5032 = vmatprep.subr.mxu0 0.0
    %5033 = vmatpush2.xpose.msra.mxu0 0.0
    %5034 = vmatprep.subr.mxu0 0.0
    %5035 = vmatpush2.xpose.msra.mxu0 0.0
    %5036 = vmatprep.subr.mxu0 0.0
    %5037 = vmatpush2.xpose.msra.mxu0 0.0
    %5038 = vmatprep.subr.mxu0 0.0
    %5039 = vmatpush2.xpose.msra.mxu0 0.0
    %5040 = vmatprep.subr.mxu0 0.0
    %5041 = vmatpush2.xpose.msra.mxu0 0.0
    %5042 = vmatprep.subr.mxu0 0.0
    %5043 = vmatpush2.xpose.msra.mxu0 0.0
    %5044 = vmatprep.subr.mxu0 0.0
    %5045 = vmatpush2.xpose.msra.mxu0 0.0
    %5046 = vmatprep.subr.mxu0 0.0
    %5047 = vmatpush2.xpose.msra.mxu0 0.0
    %5048 = vmatprep.mubr.f32.mxu0 0.0
    %5049 = vmatmul.mubr.f32.gmra.mxu0 %v4972
    %v5050 = vpop.f32.mrf.mxu0
    %v5051 = vadd.f32 0.0, %v5050
    %v5052 = vpop.f32.mrf.mxu0
    %5053 = vmatprep.mubr.f32.mxu0 0.0
    %5054 = vmatmul.mubr.f32.gmra.mxu0 %v4974
    %v5055 = vpop.f32.mrf.mxu0
    %v5056 = vadd.f32 0.0, %v5055
    %v5057 = vpop.f32.mrf.mxu0
    %5058 = vmatprep.mubr.f32.mxu0 0.0
    %5059 = vmatmul.mubr.f32.gmra.mxu0 %v4976
    %v5060 = vpop.f32.mrf.mxu0
    %v5061 = vadd.f32 0.0, %v5060
    %v5062 = vpop.f32.mrf.mxu0
    %5063 = vdwg.mxu0
    %5064 = vrot.lane.b32.xlu0 %v4846, 112
    %v5065 = vpop.permute.xlu0 %5064
    %5066 = vrot.lane.b32.xlu0 %v4851, 112
    %v5067 = vpop.permute.xlu0 %5066
    %5068 = vrot.lane.b32.xlu0 %v4856, 112
    %v5069 = vpop.permute.xlu0 %5068
    %5070 = vrot.lane.b32.xlu0 %v4846, 80
    %v5071 = vpop.permute.xlu0 %5070
    %5072 = vrot.lane.b32.xlu0 %v4851, 80
    %v5073 = vpop.permute.xlu0 %5072
    %5074 = vrot.lane.b32.xlu0 %v4856, 80
    %v5075 = vpop.permute.xlu0 %5074
    %v5076 = vsel %vm518, %v5065, 0
    %v5078 = vsel %vm518, %v5067, 0
    %v5080 = vsel %vm518, %v5069, 0
    %v5082 = vsel %vm518, %v5071, 0
    %v5084 = vsel %vm518, %v5073, 0
    %v5086 = vsel %vm518, %v5075, 0
    %5088 = vmatprep.subr.mxu0 0.0
    %5089 = vmatpush1.xpose.msra.mxu0 0.0
    %5090 = vmatprep.subr.mxu0 0.0
    %5091 = vmatpush1.xpose.msra.mxu0 0.0
    %5092 = vmatprep.subr.mxu0 0.0
    %5093 = vmatpush1.xpose.msra.mxu0 0.0
    %5094 = vmatprep.subr.mxu0 0.0
    %5095 = vmatpush1.xpose.msra.mxu0 0.0
    %5096 = vmatprep.subr.mxu0 0.0
    %5097 = vmatpush1.xpose.msra.mxu0 0.0
    %5098 = vmatprep.subr.mxu0 0.0
    %5099 = vmatpush1.xpose.msra.mxu0 0.0
    %5100 = vmatprep.subr.mxu0 0.0
    %5101 = vmatpush1.xpose.msra.mxu0 0.0
    %5102 = vmatprep.subr.mxu0 0.0
    %5103 = vmatpush1.xpose.msra.mxu0 0.0
    %5104 = vmatprep.subr.mxu0 0.0
    %5105 = vmatpush1.xpose.msra.mxu0 0.0
    %5106 = vmatprep.subr.mxu0 0.0
    %5107 = vmatpush1.xpose.msra.mxu0 0.0
    %5108 = vmatprep.subr.mxu0 0.0
    %5109 = vmatpush1.xpose.msra.mxu0 0.0
    %5110 = vmatprep.subr.mxu0 0.0
    %5111 = vmatpush1.xpose.msra.mxu0 0.0
    %5112 = vmatprep.subr.mxu0 0.0
    %5113 = vmatpush1.xpose.msra.mxu0 0.0
    %5114 = vmatprep.subr.mxu0 0.0
    %5115 = vmatpush1.xpose.msra.mxu0 %v5086
    %5116 = vmatprep.subr.mxu0 0.0
    %5117 = vmatpush1.xpose.msra.mxu0 %v5084
    %5118 = vmatprep.subr.mxu0 0.0
    %5119 = vmatpush1.xpose.msra.mxu0 %v5082
    %5120 = vmatprep.subr.mxu0 0.0
    %5121 = vmatpush2.xpose.msra.mxu0 0.0
    %5122 = vmatprep.subr.mxu0 0.0
    %5123 = vmatpush2.xpose.msra.mxu0 0.0
    %5124 = vmatprep.subr.mxu0 0.0
    %5125 = vmatpush2.xpose.msra.mxu0 0.0
    %5126 = vmatprep.subr.mxu0 0.0
    %5127 = vmatpush2.xpose.msra.mxu0 0.0
    %5128 = vmatprep.subr.mxu0 0.0
    %5129 = vmatpush2.xpose.msra.mxu0 0.0
    %5130 = vmatprep.subr.mxu0 0.0
    %5131 = vmatpush2.xpose.msra.mxu0 0.0
    %5132 = vmatprep.subr.mxu0 0.0
    %5133 = vmatpush2.xpose.msra.mxu0 0.0
    %5134 = vmatprep.subr.mxu0 0.0
    %5135 = vmatpush2.xpose.msra.mxu0 0.0
    %5136 = vmatprep.subr.mxu0 0.0
    %5137 = vmatpush2.xpose.msra.mxu0 0.0
    %5138 = vmatprep.subr.mxu0 0.0
    %5139 = vmatpush2.xpose.msra.mxu0 0.0
    %5140 = vmatprep.subr.mxu0 0.0
    %5141 = vmatpush2.xpose.msra.mxu0 0.0
    %5142 = vmatprep.subr.mxu0 0.0
    %5143 = vmatpush2.xpose.msra.mxu0 0.0
    %5144 = vmatprep.subr.mxu0 0.0
    %5145 = vmatpush2.xpose.msra.mxu0 0.0
    %5146 = vmatprep.subr.mxu0 0.0
    %5147 = vmatpush2.xpose.msra.mxu0 0.0
    %5148 = vmatprep.subr.mxu0 0.0
    %5149 = vmatpush2.xpose.msra.mxu0 0.0
    %5150 = vmatprep.subr.mxu0 0.0
    %5151 = vmatpush2.xpose.msra.mxu0 0.0
    %5152 = vmatprep.mubr.f32.mxu0 0.0
    %5153 = vmatmul.mubr.f32.gmra.mxu0 %v5076
    %v5154 = vpop.f32.mrf.mxu0
    %v5155 = vadd.f32 0.0, %v5154
    %v5156 = vpop.f32.mrf.mxu0
    %5157 = vmatprep.mubr.f32.mxu0 0.0
    %5158 = vmatmul.mubr.f32.gmra.mxu0 %v5078
    %v5159 = vpop.f32.mrf.mxu0
    %v5160 = vadd.f32 0.0, %v5159
    %v5161 = vpop.f32.mrf.mxu0
    %5162 = vmatprep.mubr.f32.mxu0 0.0
    %5163 = vmatmul.mubr.f32.gmra.mxu0 %v5080
    %v5164 = vpop.f32.mrf.mxu0
    %v5165 = vadd.f32 0.0, %v5164
    %v5166 = vpop.f32.mrf.mxu0
    %5167 = vdwg.mxu0
    %5168 = vrot.lane.b32.xlu0 %v4846, 104
    %v5169 = vpop.permute.xlu0 %5168
    %5170 = vrot.lane.b32.xlu0 %v4851, 104
    %v5171 = vpop.permute.xlu0 %5170
    %5172 = vrot.lane.b32.xlu0 %v4856, 104
    %v5173 = vpop.permute.xlu0 %5172
    %5174 = vrot.lane.b32.xlu0 %v4846, 72
    %v5175 = vpop.permute.xlu0 %5174
    %5176 = vrot.lane.b32.xlu0 %v4851, 72
    %v5177 = vpop.permute.xlu0 %5176
    %5178 = vrot.lane.b32.xlu0 %v4856, 72
    %v5179 = vpop.permute.xlu0 %5178
    %v5180 = vsel %vm518, %v5169, 0
    %v5182 = vsel %vm518, %v5171, 0
    %v5184 = vsel %vm518, %v5173, 0
    %v5186 = vsel %vm518, %v5175, 0
    %v5188 = vsel %vm518, %v5177, 0
    %v5190 = vsel %vm518, %v5179, 0
    %5192 = vmatprep.subr.mxu0 0.0
    %5193 = vmatpush1.xpose.msra.mxu0 0.0
    %5194 = vmatprep.subr.mxu0 0.0
    %5195 = vmatpush1.xpose.msra.mxu0 0.0
    %5196 = vmatprep.subr.mxu0 0.0
    %5197 = vmatpush1.xpose.msra.mxu0 0.0
    %5198 = vmatprep.subr.mxu0 0.0
    %5199 = vmatpush1.xpose.msra.mxu0 0.0
    %5200 = vmatprep.subr.mxu0 0.0
    %5201 = vmatpush1.xpose.msra.mxu0 0.0
    %5202 = vmatprep.subr.mxu0 0.0
    %5203 = vmatpush1.xpose.msra.mxu0 0.0
    %5204 = vmatprep.subr.mxu0 0.0
    %5205 = vmatpush1.xpose.msra.mxu0 0.0
    %5206 = vmatprep.subr.mxu0 0.0
    %5207 = vmatpush1.xpose.msra.mxu0 0.0
    %5208 = vmatprep.subr.mxu0 0.0
    %5209 = vmatpush1.xpose.msra.mxu0 0.0
    %5210 = vmatprep.subr.mxu0 0.0
    %5211 = vmatpush1.xpose.msra.mxu0 0.0
    %5212 = vmatprep.subr.mxu0 0.0
    %5213 = vmatpush1.xpose.msra.mxu0 0.0
    %5214 = vmatprep.subr.mxu0 0.0
    %5215 = vmatpush1.xpose.msra.mxu0 0.0
    %5216 = vmatprep.subr.mxu0 0.0
    %5217 = vmatpush1.xpose.msra.mxu0 0.0
    %5218 = vmatprep.subr.mxu0 0.0
    %5219 = vmatpush1.xpose.msra.mxu0 %v5190
    %5220 = vmatprep.subr.mxu0 0.0
    %5221 = vmatpush1.xpose.msra.mxu0 %v5188
    %5222 = vmatprep.subr.mxu0 0.0
    %5223 = vmatpush1.xpose.msra.mxu0 %v5186
    %5224 = vmatprep.subr.mxu0 0.0
    %5225 = vmatpush2.xpose.msra.mxu0 0.0
    %5226 = vmatprep.subr.mxu0 0.0
    %5227 = vmatpush2.xpose.msra.mxu0 0.0
    %5228 = vmatprep.subr.mxu0 0.0
    %5229 = vmatpush2.xpose.msra.mxu0 0.0
    %5230 = vmatprep.subr.mxu0 0.0
    %5231 = vmatpush2.xpose.msra.mxu0 0.0
    %5232 = vmatprep.subr.mxu0 0.0
    %5233 = vmatpush2.xpose.msra.mxu0 0.0
    %5234 = vmatprep.subr.mxu0 0.0
    %5235 = vmatpush2.xpose.msra.mxu0 0.0
    %5236 = vmatprep.subr.mxu0 0.0
    %5237 = vmatpush2.xpose.msra.mxu0 0.0
    %5238 = vmatprep.subr.mxu0 0.0
    %5239 = vmatpush2.xpose.msra.mxu0 0.0
    %5240 = vmatprep.subr.mxu0 0.0
    %5241 = vmatpush2.xpose.msra.mxu0 0.0
    %5242 = vmatprep.subr.mxu0 0.0
    %5243 = vmatpush2.xpose.msra.mxu0 0.0
    %5244 = vmatprep.subr.mxu0 0.0
    %5245 = vmatpush2.xpose.msra.mxu0 0.0
    %5246 = vmatprep.subr.mxu0 0.0
    %5247 = vmatpush2.xpose.msra.mxu0 0.0
    %5248 = vmatprep.subr.mxu0 0.0
    %5249 = vmatpush2.xpose.msra.mxu0 0.0
    %5250 = vmatprep.subr.mxu0 0.0
    %5251 = vmatpush2.xpose.msra.mxu0 0.0
    %5252 = vmatprep.subr.mxu0 0.0
    %5253 = vmatpush2.xpose.msra.mxu0 0.0
    %5254 = vmatprep.subr.mxu0 0.0
    %5255 = vmatpush2.xpose.msra.mxu0 0.0
    %5256 = vmatprep.mubr.f32.mxu0 0.0
    %5257 = vmatmul.mubr.f32.gmra.mxu0 %v5180
    %v5258 = vpop.f32.mrf.mxu0
    %v5259 = vadd.f32 0.0, %v5258
    %v5260 = vpop.f32.mrf.mxu0
    %5261 = vmatprep.mubr.f32.mxu0 0.0
    %5262 = vmatmul.mubr.f32.gmra.mxu0 %v5182
    %v5263 = vpop.f32.mrf.mxu0
    %v5264 = vadd.f32 0.0, %v5263
    %v5265 = vpop.f32.mrf.mxu0
    %5266 = vmatprep.mubr.f32.mxu0 0.0
    %5267 = vmatmul.mubr.f32.gmra.mxu0 %v5184
    %v5268 = vpop.f32.mrf.mxu0
    %v5269 = vadd.f32 0.0, %v5268
    %v5270 = vpop.f32.mrf.mxu0
    %5271 = vdwg.mxu0
    %v5272 = vadd.f32 %v4947, %v3167
    %v5273 = vadd.f32 %v4952, %v3168
    %v5274 = vadd.f32 %v4957, %v3169
    %v5275 = vadd.f32 %v5051, %v3167
    %v5276 = vadd.f32 %v5056, %v3168
    %v5277 = vadd.f32 %v5061, %v3169
    %v5278 = vadd.f32 %v5155, %v3167
    %v5279 = vadd.f32 %v5160, %v3168
    %v5280 = vadd.f32 %v5165, %v3169
    %v5281 = vadd.f32 %v5259, %v3167
    %v5282 = vadd.f32 %v5264, %v3168
    %v5283 = vadd.f32 %v5269, %v3169
    %v5284 = vsel %vm1347, %v5272, -inf
    %5285 = vmax.xlane.f32.xlu0 %v5284
    %v5286 = vpop.xlane.xlu0 %5285
    %v5287 = vsel %vm1347, %v5273, -inf
    %5288 = vmax.xlane.f32.xlu0 %v5287
    %v5289 = vpop.xlane.xlu0 %5288
    %v5290 = vsel %vm1347, %v5274, -inf
    %5291 = vmax.xlane.f32.xlu0 %v5290
    %v5292 = vpop.xlane.xlu0 %5291
    %v5293 = vsel %vm1347, %v5275, -inf
    %5294 = vmax.xlane.f32.xlu0 %v5293
    %v5295 = vpop.xlane.xlu0 %5294
    %v5296 = vsel %vm1347, %v5276, -inf
    %5297 = vmax.xlane.f32.xlu0 %v5296
    %v5298 = vpop.xlane.xlu0 %5297
    %v5299 = vsel %vm1347, %v5277, -inf
    %5300 = vmax.xlane.f32.xlu0 %v5299
    %v5301 = vpop.xlane.xlu0 %5300
    %v5302 = vsel %vm1347, %v5278, -inf
    %5303 = vmax.xlane.f32.xlu0 %v5302
    %v5304 = vpop.xlane.xlu0 %5303
    %v5305 = vsel %vm1347, %v5279, -inf
    %5306 = vmax.xlane.f32.xlu0 %v5305
    %v5307 = vpop.xlane.xlu0 %5306
    %v5308 = vsel %vm1347, %v5280, -inf
    %5309 = vmax.xlane.f32.xlu0 %v5308
    %v5310 = vpop.xlane.xlu0 %5309
    %v5311 = vsel %vm1347, %v5281, -inf
    %5312 = vmax.xlane.f32.xlu0 %v5311
    %v5313 = vpop.xlane.xlu0 %5312
    %v5314 = vsel %vm1347, %v5282, -inf
    %5315 = vmax.xlane.f32.xlu0 %v5314
    %v5316 = vpop.xlane.xlu0 %5315
    %v5317 = vsel %vm1347, %v5283, -inf
    %5318 = vmax.xlane.f32.xlu0 %v5317
    %v5319 = vpop.xlane.xlu0 %5318
    %v5320 = vsub.f32 %v5272, %v5286
    %v5321 = vsub.f32 %v5273, %v5289
    %v5322 = vsub.f32 %v5274, %v5292
    %v5323 = vsub.f32 %v5275, %v5295
    %v5324 = vsub.f32 %v5276, %v5298
    %v5325 = vsub.f32 %v5277, %v5301
    %v5326 = vsub.f32 %v5278, %v5304
    %v5327 = vsub.f32 %v5279, %v5307
    %v5328 = vsub.f32 %v5280, %v5310
    %v5329 = vsub.f32 %v5281, %v5313
    %v5330 = vsub.f32 %v5282, %v5316
    %v5331 = vsub.f32 %v5283, %v5319
    %v5332 = vmul.f32 %v5320, 1.442695
    %v5333 = vpow.pop %v5332
    %v5334 = vmul.f32 %v5321, 1.442695
    %v5335 = vpow.pop %v5334
    %v5336 = vmul.f32 %v5322, 1.442695
    %v5337 = vpow.pop %v5336
    %v5338 = vmul.f32 %v5323, 1.442695
    %v5339 = vpow.pop %v5338
    %v5340 = vmul.f32 %v5324, 1.442695
    %v5341 = vpow.pop %v5340
    %v5342 = vmul.f32 %v5325, 1.442695
    %v5343 = vpow.pop %v5342
    %v5344 = vmul.f32 %v5326, 1.442695
    %v5345 = vpow.pop %v5344
    %v5346 = vmul.f32 %v5327, 1.442695
    %v5347 = vpow.pop %v5346
    %v5348 = vmul.f32 %v5328, 1.442695
    %v5349 = vpow.pop %v5348
    %v5350 = vmul.f32 %v5329, 1.442695
    %v5351 = vpow.pop %v5350
    %v5352 = vmul.f32 %v5330, 1.442695
    %v5353 = vpow.pop %v5352
    %v5354 = vmul.f32 %v5331, 1.442695
    %v5355 = vpow.pop %v5354
    %v5356 = vsel %vm1347, %v5333, 0.0
    %5357 = vadd.xlane.f32.xlu0 %v5356
    %v5358 = vpop.xlane.xlu0 %5357
    %v5359 = vsel %vm1347, %v5335, 0.0
    %5360 = vadd.xlane.f32.xlu0 %v5359
    %v5361 = vpop.xlane.xlu0 %5360
    %v5362 = vsel %vm1347, %v5337, 0.0
    %5363 = vadd.xlane.f32.xlu0 %v5362
    %v5364 = vpop.xlane.xlu0 %5363
    %v5365 = vsel %vm1347, %v5339, 0.0
    %5366 = vadd.xlane.f32.xlu0 %v5365
    %v5367 = vpop.xlane.xlu0 %5366
    %v5368 = vsel %vm1347, %v5341, 0.0
    %5369 = vadd.xlane.f32.xlu0 %v5368
    %v5370 = vpop.xlane.xlu0 %5369
    %v5371 = vsel %vm1347, %v5343, 0.0
    %5372 = vadd.xlane.f32.xlu0 %v5371
    %v5373 = vpop.xlane.xlu0 %5372
    %v5374 = vsel %vm1347, %v5345, 0.0
    %5375 = vadd.xlane.f32.xlu0 %v5374
    %v5376 = vpop.xlane.xlu0 %5375
    %v5377 = vsel %vm1347, %v5347, 0.0
    %5378 = vadd.xlane.f32.xlu0 %v5377
    %v5379 = vpop.xlane.xlu0 %5378
    %v5380 = vsel %vm1347, %v5349, 0.0
    %5381 = vadd.xlane.f32.xlu0 %v5380
    %v5382 = vpop.xlane.xlu0 %5381
    %v5383 = vsel %vm1347, %v5351, 0.0
    %5384 = vadd.xlane.f32.xlu0 %v5383
    %v5385 = vpop.xlane.xlu0 %5384
    %v5386 = vsel %vm1347, %v5353, 0.0
    %5387 = vadd.xlane.f32.xlu0 %v5386
    %v5388 = vpop.xlane.xlu0 %5387
    %v5389 = vsel %vm1347, %v5355, 0.0
    %5390 = vadd.xlane.f32.xlu0 %v5389
    %v5391 = vpop.xlane.xlu0 %5390
    %v5392 = vrcp.pop %v5358
    %v5393 = vrcp.pop %v5361
    %v5394 = vrcp.pop %v5364
    %v5395 = vrcp.pop %v5367
    %v5396 = vrcp.pop %v5370
    %v5397 = vrcp.pop %v5373
    %v5398 = vrcp.pop %v5376
    %v5399 = vrcp.pop %v5379
    %v5400 = vrcp.pop %v5382
    %v5401 = vrcp.pop %v5385
    %v5402 = vrcp.pop %v5388
    %v5403 = vrcp.pop %v5391
    %v5404 = vmul.f32 %v5333, %v5392
    %v5405 = vmul.f32 %v5335, %v5393
    %v5406 = vmul.f32 %v5337, %v5394
    %v5407 = vmul.f32 %v5339, %v5395
    %v5408 = vmul.f32 %v5341, %v5396
    %v5409 = vmul.f32 %v5343, %v5397
    %v5410 = vmul.f32 %v5345, %v5398
    %v5411 = vmul.f32 %v5347, %v5399
    %v5412 = vmul.f32 %v5349, %v5400
    %v5413 = vmul.f32 %v5351, %v5401
    %v5414 = vmul.f32 %v5353, %v5402
    %v5415 = vmul.f32 %v5355, %v5403
    %5416 = vrot.lane.b32.xlu0 %v4846, 64
    %v5417 = vpop.permute.xlu0 %5416
    %5418 = vrot.lane.b32.xlu0 %v4851, 64
    %v5419 = vpop.permute.xlu0 %5418
    %5420 = vrot.lane.b32.xlu0 %v4856, 64
    %v5421 = vpop.permute.xlu0 %5420
    %v5426 = vsel %vm1347, %v5404, 0
    %v5429 = vsel %vm1347, %v5405, 0
    %v5432 = vsel %vm1347, %v5406, 0
    %5434 = vmatprep.subr.mxu0 0.0
    %5435 = vmatpush1.msra.mxu0 0.0
    %5436 = vmatprep.subr.mxu0 0.0
    %5437 = vmatpush1.msra.mxu0 0.0
    %5438 = vmatprep.subr.mxu0 0.0
    %5439 = vmatpush1.msra.mxu0 0.0
    %5440 = vmatprep.subr.mxu0 0.0
    %5441 = vmatpush1.msra.mxu0 0.0
    %5442 = vmatprep.subr.mxu0 0.0
    %5443 = vmatpush1.msra.mxu0 0.0
    %5444 = vmatprep.subr.mxu0 0.0
    %5445 = vmatpush1.msra.mxu0 0.0
    %5446 = vmatprep.subr.mxu0 0.0
    %5447 = vmatpush1.msra.mxu0 0.0
    %5448 = vmatprep.subr.mxu0 0.0
    %5449 = vmatpush1.msra.mxu0 0.0
    %5450 = vmatprep.subr.mxu0 0.0
    %5451 = vmatpush1.msra.mxu0 0.0
    %5452 = vmatprep.subr.mxu0 0.0
    %5453 = vmatpush1.msra.mxu0 0.0
    %5454 = vmatprep.subr.mxu0 0.0
    %5455 = vmatpush1.msra.mxu0 0.0
    %5456 = vmatprep.subr.mxu0 0.0
    %5457 = vmatpush1.msra.mxu0 0.0
    %5458 = vmatprep.subr.mxu0 0.0
    %5459 = vmatpush1.msra.mxu0 0.0
    %5460 = vmatprep.subr.mxu0 0.0
    %5461 = vmatpush1.msra.mxu0 %v5421
    %5462 = vmatprep.subr.mxu0 0.0
    %5463 = vmatpush1.msra.mxu0 %v5419
    %5464 = vmatprep.subr.mxu0 0.0
    %5465 = vmatpush1.msra.mxu0 %v5417
    %5466 = vmatprep.subr.mxu0 0.0
    %5467 = vmatpush2.msra.mxu0 0.0
    %5468 = vmatprep.subr.mxu0 0.0
    %5469 = vmatpush2.msra.mxu0 0.0
    %5470 = vmatprep.subr.mxu0 0.0
    %5471 = vmatpush2.msra.mxu0 0.0
    %5472 = vmatprep.subr.mxu0 0.0
    %5473 = vmatpush2.msra.mxu0 0.0
    %5474 = vmatprep.subr.mxu0 0.0
    %5475 = vmatpush2.msra.mxu0 0.0
    %5476 = vmatprep.subr.mxu0 0.0
    %5477 = vmatpush2.msra.mxu0 0.0
    %5478 = vmatprep.subr.mxu0 0.0
    %5479 = vmatpush2.msra.mxu0 0.0
    %5480 = vmatprep.subr.mxu0 0.0
    %5481 = vmatpush2.msra.mxu0 0.0
    %5482 = vmatprep.subr.mxu0 0.0
    %5483 = vmatpush2.msra.mxu0 0.0
    %5484 = vmatprep.subr.mxu0 0.0
    %5485 = vmatpush2.msra.mxu0 0.0
    %5486 = vmatprep.subr.mxu0 0.0
    %5487 = vmatpush2.msra.mxu0 0.0
    %5488 = vmatprep.subr.mxu0 0.0
    %5489 = vmatpush2.msra.mxu0 0.0
    %5490 = vmatprep.subr.mxu0 0.0
    %5491 = vmatpush2.msra.mxu0 0.0
    %5492 = vmatprep.subr.mxu0 0.0
    %5493 = vmatpush2.msra.mxu0 0.0
    %5494 = vmatprep.subr.mxu0 0.0
    %5495 = vmatpush2.msra.mxu0 0.0
    %5496 = vmatprep.subr.mxu0 0.0
    %5497 = vmatpush2.msra.mxu0 0.0
    %5498 = vmatprep.mubr.f32.mxu0 0.0
    %5499 = vmatmul.mubr.f32.gmra.mxu0 %v5426
    %v5500 = vpop.f32.mrf.mxu0
    %v5501 = vadd.f32 0.0, %v5500
    %v5502 = vpop.f32.mrf.mxu0
    %5503 = vmatprep.mubr.f32.mxu0 0.0
    %5504 = vmatmul.mubr.f32.gmra.mxu0 %v5429
    %v5505 = vpop.f32.mrf.mxu0
    %v5506 = vadd.f32 0.0, %v5505
    %v5507 = vpop.f32.mrf.mxu0
    %5508 = vmatprep.mubr.f32.mxu0 0.0
    %5509 = vmatmul.mubr.f32.gmra.mxu0 %v5432
    %v5510 = vpop.f32.mrf.mxu0
    %v5511 = vadd.f32 0.0, %v5510
    %v5512 = vpop.f32.mrf.mxu0
    %5513 = vdwg.mxu0
    %5514 = vrot.lane.b32.xlu0 %v4846, 56
    %v5515 = vpop.permute.xlu0 %5514
    %5516 = vrot.lane.b32.xlu0 %v4851, 56
    %v5517 = vpop.permute.xlu0 %5516
    %5518 = vrot.lane.b32.xlu0 %v4856, 56
    %v5519 = vpop.permute.xlu0 %5518
    %v5524 = vsel %vm1347, %v5407, 0
    %v5527 = vsel %vm1347, %v5408, 0
    %v5530 = vsel %vm1347, %v5409, 0
    %5532 = vmatprep.subr.mxu0 0.0
    %5533 = vmatpush1.msra.mxu0 0.0
    %5534 = vmatprep.subr.mxu0 0.0
    %5535 = vmatpush1.msra.mxu0 0.0
    %5536 = vmatprep.subr.mxu0 0.0
    %5537 = vmatpush1.msra.mxu0 0.0
    %5538 = vmatprep.subr.mxu0 0.0
    %5539 = vmatpush1.msra.mxu0 0.0
    %5540 = vmatprep.subr.mxu0 0.0
    %5541 = vmatpush1.msra.mxu0 0.0
    %5542 = vmatprep.subr.mxu0 0.0
    %5543 = vmatpush1.msra.mxu0 0.0
    %5544 = vmatprep.subr.mxu0 0.0
    %5545 = vmatpush1.msra.mxu0 0.0
    %5546 = vmatprep.subr.mxu0 0.0
    %5547 = vmatpush1.msra.mxu0 0.0
    %5548 = vmatprep.subr.mxu0 0.0
    %5549 = vmatpush1.msra.mxu0 0.0
    %5550 = vmatprep.subr.mxu0 0.0
    %5551 = vmatpush1.msra.mxu0 0.0
    %5552 = vmatprep.subr.mxu0 0.0
    %5553 = vmatpush1.msra.mxu0 0.0
    %5554 = vmatprep.subr.mxu0 0.0
    %5555 = vmatpush1.msra.mxu0 0.0
    %5556 = vmatprep.subr.mxu0 0.0
    %5557 = vmatpush1.msra.mxu0 0.0
    %5558 = vmatprep.subr.mxu0 0.0
    %5559 = vmatpush1.msra.mxu0 %v5519
    %5560 = vmatprep.subr.mxu0 0.0
    %5561 = vmatpush1.msra.mxu0 %v5517
    %5562 = vmatprep.subr.mxu0 0.0
    %5563 = vmatpush1.msra.mxu0 %v5515
    %5564 = vmatprep.subr.mxu0 0.0
    %5565 = vmatpush2.msra.mxu0 0.0
    %5566 = vmatprep.subr.mxu0 0.0
    %5567 = vmatpush2.msra.mxu0 0.0
    %5568 = vmatprep.subr.mxu0 0.0
    %5569 = vmatpush2.msra.mxu0 0.0
    %5570 = vmatprep.subr.mxu0 0.0
    %5571 = vmatpush2.msra.mxu0 0.0
    %5572 = vmatprep.subr.mxu0 0.0
    %5573 = vmatpush2.msra.mxu0 0.0
    %5574 = vmatprep.subr.mxu0 0.0
    %5575 = vmatpush2.msra.mxu0 0.0
    %5576 = vmatprep.subr.mxu0 0.0
    %5577 = vmatpush2.msra.mxu0 0.0
    %5578 = vmatprep.subr.mxu0 0.0
    %5579 = vmatpush2.msra.mxu0 0.0
    %5580 = vmatprep.subr.mxu0 0.0
    %5581 = vmatpush2.msra.mxu0 0.0
    %5582 = vmatprep.subr.mxu0 0.0
    %5583 = vmatpush2.msra.mxu0 0.0
    %5584 = vmatprep.subr.mxu0 0.0
    %5585 = vmatpush2.msra.mxu0 0.0
    %5586 = vmatprep.subr.mxu0 0.0
    %5587 = vmatpush2.msra.mxu0 0.0
    %5588 = vmatprep.subr.mxu0 0.0
    %5589 = vmatpush2.msra.mxu0 0.0
    %5590 = vmatprep.subr.mxu0 0.0
    %5591 = vmatpush2.msra.mxu0 0.0
    %5592 = vmatprep.subr.mxu0 0.0
    %5593 = vmatpush2.msra.mxu0 0.0
    %5594 = vmatprep.subr.mxu0 0.0
    %5595 = vmatpush2.msra.mxu0 0.0
    %5596 = vmatprep.mubr.f32.mxu0 0.0
    %5597 = vmatmul.mubr.f32.gmra.mxu0 %v5524
    %v5598 = vpop.f32.mrf.mxu0
    %v5599 = vadd.f32 0.0, %v5598
    %v5600 = vpop.f32.mrf.mxu0
    %5601 = vmatprep.mubr.f32.mxu0 0.0
    %5602 = vmatmul.mubr.f32.gmra.mxu0 %v5527
    %v5603 = vpop.f32.mrf.mxu0
    %v5604 = vadd.f32 0.0, %v5603
    %v5605 = vpop.f32.mrf.mxu0
    %5606 = vmatprep.mubr.f32.mxu0 0.0
    %5607 = vmatmul.mubr.f32.gmra.mxu0 %v5530
    %v5608 = vpop.f32.mrf.mxu0
    %v5609 = vadd.f32 0.0, %v5608
    %v5610 = vpop.f32.mrf.mxu0
    %5611 = vdwg.mxu0
    %5612 = vrot.lane.b32.xlu0 %v4846, 48
    %v5613 = vpop.permute.xlu0 %5612
    %5614 = vrot.lane.b32.xlu0 %v4851, 48
    %v5615 = vpop.permute.xlu0 %5614
    %5616 = vrot.lane.b32.xlu0 %v4856, 48
    %v5617 = vpop.permute.xlu0 %5616
    %v5622 = vsel %vm1347, %v5410, 0
    %v5625 = vsel %vm1347, %v5411, 0
    %v5628 = vsel %vm1347, %v5412, 0
    %5630 = vmatprep.subr.mxu0 0.0
    %5631 = vmatpush1.msra.mxu0 0.0
    %5632 = vmatprep.subr.mxu0 0.0
    %5633 = vmatpush1.msra.mxu0 0.0
    %5634 = vmatprep.subr.mxu0 0.0
    %5635 = vmatpush1.msra.mxu0 0.0
    %5636 = vmatprep.subr.mxu0 0.0
    %5637 = vmatpush1.msra.mxu0 0.0
    %5638 = vmatprep.subr.mxu0 0.0
    %5639 = vmatpush1.msra.mxu0 0.0
    %5640 = vmatprep.subr.mxu0 0.0
    %5641 = vmatpush1.msra.mxu0 0.0
    %5642 = vmatprep.subr.mxu0 0.0
    %5643 = vmatpush1.msra.mxu0 0.0
    %5644 = vmatprep.subr.mxu0 0.0
    %5645 = vmatpush1.msra.mxu0 0.0
    %5646 = vmatprep.subr.mxu0 0.0
    %5647 = vmatpush1.msra.mxu0 0.0
    %5648 = vmatprep.subr.mxu0 0.0
    %5649 = vmatpush1.msra.mxu0 0.0
    %5650 = vmatprep.subr.mxu0 0.0
    %5651 = vmatpush1.msra.mxu0 0.0
    %5652 = vmatprep.subr.mxu0 0.0
    %5653 = vmatpush1.msra.mxu0 0.0
    %5654 = vmatprep.subr.mxu0 0.0
    %5655 = vmatpush1.msra.mxu0 0.0
    %5656 = vmatprep.subr.mxu0 0.0
    %5657 = vmatpush1.msra.mxu0 %v5617
    %5658 = vmatprep.subr.mxu0 0.0
    %5659 = vmatpush1.msra.mxu0 %v5615
    %5660 = vmatprep.subr.mxu0 0.0
    %5661 = vmatpush1.msra.mxu0 %v5613
    %5662 = vmatprep.subr.mxu0 0.0
    %5663 = vmatpush2.msra.mxu0 0.0
    %5664 = vmatprep.subr.mxu0 0.0
    %5665 = vmatpush2.msra.mxu0 0.0
    %5666 = vmatprep.subr.mxu0 0.0
    %5667 = vmatpush2.msra.mxu0 0.0
    %5668 = vmatprep.subr.mxu0 0.0
    %5669 = vmatpush2.msra.mxu0 0.0
    %5670 = vmatprep.subr.mxu0 0.0
    %5671 = vmatpush2.msra.mxu0 0.0
    %5672 = vmatprep.subr.mxu0 0.0
    %5673 = vmatpush2.msra.mxu0 0.0
    %5674 = vmatprep.subr.mxu0 0.0
    %5675 = vmatpush2.msra.mxu0 0.0
    %5676 = vmatprep.subr.mxu0 0.0
    %5677 = vmatpush2.msra.mxu0 0.0
    %5678 = vmatprep.subr.mxu0 0.0
    %5679 = vmatpush2.msra.mxu0 0.0
    %5680 = vmatprep.subr.mxu0 0.0
    %5681 = vmatpush2.msra.mxu0 0.0
    %5682 = vmatprep.subr.mxu0 0.0
    %5683 = vmatpush2.msra.mxu0 0.0
    %5684 = vmatprep.subr.mxu0 0.0
    %5685 = vmatpush2.msra.mxu0 0.0
    %5686 = vmatprep.subr.mxu0 0.0
    %5687 = vmatpush2.msra.mxu0 0.0
    %5688 = vmatprep.subr.mxu0 0.0
    %5689 = vmatpush2.msra.mxu0 0.0
    %5690 = vmatprep.subr.mxu0 0.0
    %5691 = vmatpush2.msra.mxu0 0.0
    %5692 = vmatprep.subr.mxu0 0.0
    %5693 = vmatpush2.msra.mxu0 0.0
    %5694 = vmatprep.mubr.f32.mxu0 0.0
    %5695 = vmatmul.mubr.f32.gmra.mxu0 %v5622
    %v5696 = vpop.f32.mrf.mxu0
    %v5697 = vadd.f32 0.0, %v5696
    %v5698 = vpop.f32.mrf.mxu0
    %5699 = vmatprep.mubr.f32.mxu0 0.0
    %5700 = vmatmul.mubr.f32.gmra.mxu0 %v5625
    %v5701 = vpop.f32.mrf.mxu0
    %v5702 = vadd.f32 0.0, %v5701
    %v5703 = vpop.f32.mrf.mxu0
    %5704 = vmatprep.mubr.f32.mxu0 0.0
    %5705 = vmatmul.mubr.f32.gmra.mxu0 %v5628
    %v5706 = vpop.f32.mrf.mxu0
    %v5707 = vadd.f32 0.0, %v5706
    %v5708 = vpop.f32.mrf.mxu0
    %5709 = vdwg.mxu0
    %5710 = vrot.lane.b32.xlu0 %v4846, 40
    %v5711 = vpop.permute.xlu0 %5710
    %5712 = vrot.lane.b32.xlu0 %v4851, 40
    %v5713 = vpop.permute.xlu0 %5712
    %5714 = vrot.lane.b32.xlu0 %v4856, 40
    %v5715 = vpop.permute.xlu0 %5714
    %v5720 = vsel %vm1347, %v5413, 0
    %v5723 = vsel %vm1347, %v5414, 0
    %v5726 = vsel %vm1347, %v5415, 0
    %5728 = vmatprep.subr.mxu0 0.0
    %5729 = vmatpush1.msra.mxu0 0.0
    %5730 = vmatprep.subr.mxu0 0.0
    %5731 = vmatpush1.msra.mxu0 0.0
    %5732 = vmatprep.subr.mxu0 0.0
    %5733 = vmatpush1.msra.mxu0 0.0
    %5734 = vmatprep.subr.mxu0 0.0
    %5735 = vmatpush1.msra.mxu0 0.0
    %5736 = vmatprep.subr.mxu0 0.0
    %5737 = vmatpush1.msra.mxu0 0.0
    %5738 = vmatprep.subr.mxu0 0.0
    %5739 = vmatpush1.msra.mxu0 0.0
    %5740 = vmatprep.subr.mxu0 0.0
    %5741 = vmatpush1.msra.mxu0 0.0
    %5742 = vmatprep.subr.mxu0 0.0
    %5743 = vmatpush1.msra.mxu0 0.0
    %5744 = vmatprep.subr.mxu0 0.0
    %5745 = vmatpush1.msra.mxu0 0.0
    %5746 = vmatprep.subr.mxu0 0.0
    %5747 = vmatpush1.msra.mxu0 0.0
    %5748 = vmatprep.subr.mxu0 0.0
    %5749 = vmatpush1.msra.mxu0 0.0
    %5750 = vmatprep.subr.mxu0 0.0
    %5751 = vmatpush1.msra.mxu0 0.0
    %5752 = vmatprep.subr.mxu0 0.0
    %5753 = vmatpush1.msra.mxu0 0.0
    %5754 = vmatprep.subr.mxu0 0.0
    %5755 = vmatpush1.msra.mxu0 %v5715
    %5756 = vmatprep.subr.mxu0 0.0
    %5757 = vmatpush1.msra.mxu0 %v5713
    %5758 = vmatprep.subr.mxu0 0.0
    %5759 = vmatpush1.msra.mxu0 %v5711
    %5760 = vmatprep.subr.mxu0 0.0
    %5761 = vmatpush2.msra.mxu0 0.0
    %5762 = vmatprep.subr.mxu0 0.0
    %5763 = vmatpush2.msra.mxu0 0.0
    %5764 = vmatprep.subr.mxu0 0.0
    %5765 = vmatpush2.msra.mxu0 0.0
    %5766 = vmatprep.subr.mxu0 0.0
    %5767 = vmatpush2.msra.mxu0 0.0
    %5768 = vmatprep.subr.mxu0 0.0
    %5769 = vmatpush2.msra.mxu0 0.0
    %5770 = vmatprep.subr.mxu0 0.0
    %5771 = vmatpush2.msra.mxu0 0.0
    %5772 = vmatprep.subr.mxu0 0.0
    %5773 = vmatpush2.msra.mxu0 0.0
    %5774 = vmatprep.subr.mxu0 0.0
    %5775 = vmatpush2.msra.mxu0 0.0
    %5776 = vmatprep.subr.mxu0 0.0
    %5777 = vmatpush2.msra.mxu0 0.0
    %5778 = vmatprep.subr.mxu0 0.0
    %5779 = vmatpush2.msra.mxu0 0.0
    %5780 = vmatprep.subr.mxu0 0.0
    %5781 = vmatpush2.msra.mxu0 0.0
    %5782 = vmatprep.subr.mxu0 0.0
    %5783 = vmatpush2.msra.mxu0 0.0
    %5784 = vmatprep.subr.mxu0 0.0
    %5785 = vmatpush2.msra.mxu0 0.0
    %5786 = vmatprep.subr.mxu0 0.0
    %5787 = vmatpush2.msra.mxu0 0.0
    %5788 = vmatprep.subr.mxu0 0.0
    %5789 = vmatpush2.msra.mxu0 0.0
    %5790 = vmatprep.subr.mxu0 0.0
    %5791 = vmatpush2.msra.mxu0 0.0
    %5792 = vmatprep.mubr.f32.mxu0 0.0
    %5793 = vmatmul.mubr.f32.gmra.mxu0 %v5720
    %v5794 = vpop.f32.mrf.mxu0
    %v5795 = vadd.f32 0.0, %v5794
    %v5796 = vpop.f32.mrf.mxu0
    %5797 = vmatprep.mubr.f32.mxu0 0.0
    %5798 = vmatmul.mubr.f32.gmra.mxu0 %v5723
    %v5799 = vpop.f32.mrf.mxu0
    %v5800 = vadd.f32 0.0, %v5799
    %v5801 = vpop.f32.mrf.mxu0
    %5802 = vmatprep.mubr.f32.mxu0 0.0
    %5803 = vmatmul.mubr.f32.gmra.mxu0 %v5726
    %v5804 = vpop.f32.mrf.mxu0
    %v5805 = vadd.f32 0.0, %v5804
    %v5806 = vpop.f32.mrf.mxu0
    %5807 = vdwg.mxu0
    %5811 = vrot.lane.b32.xlu0 %v5599, 8
    %v5812 = vpop.permute.xlu0 %5811
    %5813 = vrot.lane.b32.xlu0 %v5604, 8
    %v5814 = vpop.permute.xlu0 %5813
    %5815 = vrot.lane.b32.xlu0 %v5609, 8
    %v5816 = vpop.permute.xlu0 %5815
    %5823 = vrot.lane.b32.xlu0 %v5697, 16
    %v5824 = vpop.permute.xlu0 %5823
    %5825 = vrot.lane.b32.xlu0 %v5702, 16
    %v5826 = vpop.permute.xlu0 %5825
    %5827 = vrot.lane.b32.xlu0 %v5707, 16
    %v5828 = vpop.permute.xlu0 %5827
    %5835 = vrot.lane.b32.xlu0 %v5795, 24
    %v5836 = vpop.permute.xlu0 %5835
    %5837 = vrot.lane.b32.xlu0 %v5800, 24
    %v5838 = vpop.permute.xlu0 %5837
    %5839 = vrot.lane.b32.xlu0 %v5805, 24
    %v5840 = vpop.permute.xlu0 %5839
    %v5844 = vsel %vm518, %v5501, %v5812
    %v5845 = vsel %vm518, %v5506, %v5814
    %v5846 = vsel %vm518, %v5511, %v5816
    %v5847 = vsel %vm1344, %v5844, %v5824
    %v5848 = vsel %vm1344, %v5845, %v5826
    %v5849 = vsel %vm1344, %v5846, %v5828
    %v5850 = vsel %vm1347, %v5847, %v5836
    %v5851 = vsel %vm1347, %v5848, %v5838
    %v5852 = vsel %vm1347, %v5849, %v5840
    %s5853 = scalar_lea.vmem %s53, 32
    %v5854 = vld [vmem:[%s5853] sm:$0xff]
    %v5855 = vld [vmem:[%s5853 + $0x8] sm:$0xff]
    %v5856 = vld [vmem:[%s5853 + $0x10] sm:$0xff]
    %v5857 = vld [vmem:[%s5853 + $0x18] sm:$0xff]
    %v5859 = vsel %vm283, %v5850, 0
    %v5862 = vsel %vm283, %v5851, 0
    %v5865 = vsel %vm283, %v5852, 0
    %5867 = vmatprep.subr.mxu0 0.0
    %5868 = vmatpush1.msra.mxu0 0.0
    %5869 = vmatprep.subr.mxu0 0.0
    %5870 = vmatpush1.msra.mxu0 0.0
    %5871 = vmatprep.subr.mxu0 0.0
    %5872 = vmatpush1.msra.mxu0 0.0
    %5873 = vmatprep.subr.mxu0 0.0
    %5874 = vmatpush1.msra.mxu0 0.0
    %5875 = vmatprep.subr.mxu0 0.0
    %5876 = vmatpush1.msra.mxu0 0.0
    %5877 = vmatprep.subr.mxu0 0.0
    %5878 = vmatpush1.msra.mxu0 0.0
    %5879 = vmatprep.subr.mxu0 0.0
    %5880 = vmatpush1.msra.mxu0 0.0
    %5881 = vmatprep.subr.mxu0 0.0
    %5882 = vmatpush1.msra.mxu0 0.0
    %5883 = vmatprep.subr.mxu0 0.0
    %5884 = vmatpush1.msra.mxu0 0.0
    %5885 = vmatprep.subr.mxu0 0.0
    %5886 = vmatpush1.msra.mxu0 0.0
    %5887 = vmatprep.subr.mxu0 0.0
    %5888 = vmatpush1.msra.mxu0 0.0
    %5889 = vmatprep.subr.mxu0 0.0
    %5890 = vmatpush1.msra.mxu0 0.0
    %5891 = vmatprep.subr.mxu0 0.0
    %5892 = vmatpush1.msra.mxu0 %v5857
    %5893 = vmatprep.subr.mxu0 0.0
    %5894 = vmatpush1.msra.mxu0 %v5856
    %5895 = vmatprep.subr.mxu0 0.0
    %5896 = vmatpush1.msra.mxu0 %v5855
    %5897 = vmatprep.subr.mxu0 0.0
    %5898 = vmatpush1.msra.mxu0 %v5854
    %5899 = vmatprep.subr.mxu0 0.0
    %5900 = vmatpush2.msra.mxu0 0.0
    %5901 = vmatprep.subr.mxu0 0.0
    %5902 = vmatpush2.msra.mxu0 0.0
    %5903 = vmatprep.subr.mxu0 0.0
    %5904 = vmatpush2.msra.mxu0 0.0
    %5905 = vmatprep.subr.mxu0 0.0
    %5906 = vmatpush2.msra.mxu0 0.0
    %5907 = vmatprep.subr.mxu0 0.0
    %5908 = vmatpush2.msra.mxu0 0.0
    %5909 = vmatprep.subr.mxu0 0.0
    %5910 = vmatpush2.msra.mxu0 0.0
    %5911 = vmatprep.subr.mxu0 0.0
    %5912 = vmatpush2.msra.mxu0 0.0
    %5913 = vmatprep.subr.mxu0 0.0
    %5914 = vmatpush2.msra.mxu0 0.0
    %5915 = vmatprep.subr.mxu0 0.0
    %5916 = vmatpush2.msra.mxu0 0.0
    %5917 = vmatprep.subr.mxu0 0.0
    %5918 = vmatpush2.msra.mxu0 0.0
    %5919 = vmatprep.subr.mxu0 0.0
    %5920 = vmatpush2.msra.mxu0 0.0
    %5921 = vmatprep.subr.mxu0 0.0
    %5922 = vmatpush2.msra.mxu0 0.0
    %5923 = vmatprep.subr.mxu0 0.0
    %5924 = vmatpush2.msra.mxu0 0.0
    %5925 = vmatprep.subr.mxu0 0.0
    %5926 = vmatpush2.msra.mxu0 0.0
    %5927 = vmatprep.subr.mxu0 0.0
    %5928 = vmatpush2.msra.mxu0 0.0
    %5929 = vmatprep.subr.mxu0 0.0
    %5930 = vmatpush2.msra.mxu0 0.0
    %5931 = vmatprep.mubr.f32.mxu0 0.0
    %5932 = vmatmul.mubr.f32.gmra.mxu0 %v5859
    %v5933 = vpop.f32.mrf.mxu0
    %v5934 = vadd.f32 0.0, %v5933
    %v5935 = vpop.f32.mrf.mxu0
    %5936 = vmatprep.mubr.f32.mxu0 0.0
    %5937 = vmatmul.mubr.f32.gmra.mxu0 %v5862
    %v5938 = vpop.f32.mrf.mxu0
    %v5939 = vadd.f32 0.0, %v5938
    %v5940 = vpop.f32.mrf.mxu0
    %5941 = vmatprep.mubr.f32.mxu0 0.0
    %5942 = vmatmul.mubr.f32.gmra.mxu0 %v5865
    %v5943 = vpop.f32.mrf.mxu0
    %v5944 = vadd.f32 0.0, %v5943
    %v5945 = vpop.f32.mrf.mxu0
    %5946 = vdwg.mxu0
    %v5947 = vadd.f32 %v4702, %v5934
    %v5948 = vadd.f32 %v4703, %v5939
    %v5949 = vadd.f32 %v4704, %v5944
    %v5950 = vld [vmem:[%s55 + $0x1] sm:$0x1]
    %v5951 = vlaneseq
    %v5952 = vshrl.u32 %v5951, 7
    %v5953 = vsub.s32 0, %v5952
    %v5954 = vrot.slane %v5950, %v5953
    %v5955 = vadd.f32 %v5947, %v5954
    %v5956 = vadd.f32 %v5948, %v5954
    %v5957 = vadd.f32 %v5949, %v5954
    %v5958 = vld [vmem:[%s57 + $0x1] sm:$0x1]
    %v5959 = vld [vmem:[%s59 + $0x1] sm:$0x1]
    %v5960 = vsel %vm283, %v5955, 0.0
    %5961 = vadd.xlane.f32.xlu0 %v5960
    %v5962 = vpop.xlane.xlu0 %5961
    %v5963 = vsel %vm283, %v5956, 0.0
    %5964 = vadd.xlane.f32.xlu0 %v5963
    %v5965 = vpop.xlane.xlu0 %5964
    %v5966 = vsel %vm283, %v5957, 0.0
    %5967 = vadd.xlane.f32.xlu0 %v5966
    %v5968 = vpop.xlane.xlu0 %5967
    %v5969 = vmul.f32 %v5962, %v291
    %v5970 = vmul.f32 %v5965, %v291
    %v5971 = vmul.f32 %v5968, %v291
    %v5972 = vsub.f32 %v5955, %v5969
    %v5973 = vsub.f32 %v5956, %v5970
    %v5974 = vsub.f32 %v5957, %v5971
    %v5975 = vmul.f32 %v5972, %v5972
    %v5976 = vmul.f32 %v5973, %v5973
    %v5977 = vmul.f32 %v5974, %v5974
    %v5978 = vsel %vm283, %v5975, 0.0
    %5979 = vadd.xlane.f32.xlu0 %v5978
    %v5980 = vpop.xlane.xlu0 %5979
    %v5981 = vsel %vm283, %v5976, 0.0
    %5982 = vadd.xlane.f32.xlu0 %v5981
    %v5983 = vpop.xlane.xlu0 %5982
    %v5984 = vsel %vm283, %v5977, 0.0
    %5985 = vadd.xlane.f32.xlu0 %v5984
    %v5986 = vpop.xlane.xlu0 %5985
    %v5987 = vmul.f32 %v5980, %v291
    %v5988 = vmul.f32 %v5983, %v291
    %v5989 = vmul.f32 %v5986, %v291
    %v5990 = vadd.f32 %v5987, 1e-05
    %v5991 = vadd.f32 %v5988, 1e-05
    %v5992 = vadd.f32 %v5989, 1e-05
    %v5993 = vrsqrt.pop %v5990
    %v5994 = vrsqrt.pop %v5991
    %v5995 = vrsqrt.pop %v5992
    %v5996 = vmul.f32 %v5972, %v5993
    %v5997 = vmul.f32 %v5973, %v5994
    %v5998 = vmul.f32 %v5974, %v5995
    %v5999 = vlaneseq
    %v6000 = vshrl.u32 %v5999, 7
    %v6001 = vsub.s32 0, %v6000
    %v6002 = vrot.slane %v5958, %v6001
    %v6003 = vmul.f32 %v5996, %v6002
    %v6004 = vmul.f32 %v5997, %v6002
    %v6005 = vmul.f32 %v5998, %v6002
    %v6006 = vlaneseq
    %v6007 = vshrl.u32 %v6006, 7
    %v6008 = vsub.s32 0, %v6007
    %v6009 = vrot.slane %v5959, %v6008
    %v6010 = vadd.f32 %v6003, %v6009
    %v6011 = vadd.f32 %v6004, %v6009
    %v6012 = vadd.f32 %v6005, %v6009
    %s6013 = scalar_lea.vmem %s61, 32
    %v6014 = vld [vmem:[%s6013] sm:$0xff]
    %v6015 = vld [vmem:[%s6013 + $0x8] sm:$0xff]
    %v6016 = vld [vmem:[%s6013 + $0x10] sm:$0xff]
    %v6017 = vld [vmem:[%s6013 + $0x18] sm:$0xff]
    %v6018 = vld [vmem:[%s63 + $0x1] sm:$0x1]
    %v6019 = vlaneseq
    %v6020 = vshrl.u32 %v6019, 7
    %v6021 = vsub.s32 0, %v6020
    %v6022 = vrot.slane %v6018, %v6021
    %v6024 = vsel %vm283, %v6010, 0
    %v6027 = vsel %vm283, %v6011, 0
    %v6030 = vsel %vm283, %v6012, 0
    %6032 = vmatprep.subr.mxu0 0.0
    %6033 = vmatpush1.msra.mxu0 0.0
    %6034 = vmatprep.subr.mxu0 0.0
    %6035 = vmatpush1.msra.mxu0 0.0
    %6036 = vmatprep.subr.mxu0 0.0
    %6037 = vmatpush1.msra.mxu0 0.0
    %6038 = vmatprep.subr.mxu0 0.0
    %6039 = vmatpush1.msra.mxu0 0.0
    %6040 = vmatprep.subr.mxu0 0.0
    %6041 = vmatpush1.msra.mxu0 0.0
    %6042 = vmatprep.subr.mxu0 0.0
    %6043 = vmatpush1.msra.mxu0 0.0
    %6044 = vmatprep.subr.mxu0 0.0
    %6045 = vmatpush1.msra.mxu0 0.0
    %6046 = vmatprep.subr.mxu0 0.0
    %6047 = vmatpush1.msra.mxu0 0.0
    %6048 = vmatprep.subr.mxu0 0.0
    %6049 = vmatpush1.msra.mxu0 0.0
    %6050 = vmatprep.subr.mxu0 0.0
    %6051 = vmatpush1.msra.mxu0 0.0
    %6052 = vmatprep.subr.mxu0 0.0
    %6053 = vmatpush1.msra.mxu0 0.0
    %6054 = vmatprep.subr.mxu0 0.0
    %6055 = vmatpush1.msra.mxu0 0.0
    %6056 = vmatprep.subr.mxu0 0.0
    %6057 = vmatpush1.msra.mxu0 %v6017
    %6058 = vmatprep.subr.mxu0 0.0
    %6059 = vmatpush1.msra.mxu0 %v6016
    %6060 = vmatprep.subr.mxu0 0.0
    %6061 = vmatpush1.msra.mxu0 %v6015
    %6062 = vmatprep.subr.mxu0 0.0
    %6063 = vmatpush1.msra.mxu0 %v6014
    %6064 = vmatprep.subr.mxu0 0.0
    %6065 = vmatpush2.msra.mxu0 0.0
    %6066 = vmatprep.subr.mxu0 0.0
    %6067 = vmatpush2.msra.mxu0 0.0
    %6068 = vmatprep.subr.mxu0 0.0
    %6069 = vmatpush2.msra.mxu0 0.0
    %6070 = vmatprep.subr.mxu0 0.0
    %6071 = vmatpush2.msra.mxu0 0.0
    %6072 = vmatprep.subr.mxu0 0.0
    %6073 = vmatpush2.msra.mxu0 0.0
    %6074 = vmatprep.subr.mxu0 0.0
    %6075 = vmatpush2.msra.mxu0 0.0
    %6076 = vmatprep.subr.mxu0 0.0
    %6077 = vmatpush2.msra.mxu0 0.0
    %6078 = vmatprep.subr.mxu0 0.0
    %6079 = vmatpush2.msra.mxu0 0.0
    %6080 = vmatprep.subr.mxu0 0.0
    %6081 = vmatpush2.msra.mxu0 0.0
    %6082 = vmatprep.subr.mxu0 0.0
    %6083 = vmatpush2.msra.mxu0 0.0
    %6084 = vmatprep.subr.mxu0 0.0
    %6085 = vmatpush2.msra.mxu0 0.0
    %6086 = vmatprep.subr.mxu0 0.0
    %6087 = vmatpush2.msra.mxu0 0.0
    %6088 = vmatprep.subr.mxu0 0.0
    %6089 = vmatpush2.msra.mxu0 0.0
    %6090 = vmatprep.subr.mxu0 0.0
    %6091 = vmatpush2.msra.mxu0 0.0
    %6092 = vmatprep.subr.mxu0 0.0
    %6093 = vmatpush2.msra.mxu0 0.0
    %6094 = vmatprep.subr.mxu0 0.0
    %6095 = vmatpush2.msra.mxu0 0.0
    %6096 = vmatprep.mubr.f32.mxu0 0.0
    %6097 = vmatmul.mubr.f32.gmra.mxu0 %v6024
    %v6098 = vpop.f32.mrf.mxu0
    %v6099 = vadd.f32 %v6022, %v6098
    %v6100 = vpop.f32.mrf.mxu0
    %6101 = vmatprep.mubr.f32.mxu0 0.0
    %6102 = vmatmul.mubr.f32.gmra.mxu0 %v6027
    %v6103 = vpop.f32.mrf.mxu0
    %v6104 = vadd.f32 %v6022, %v6103
    %v6105 = vpop.f32.mrf.mxu0
    %6106 = vmatprep.mubr.f32.mxu0 0.0
    %6107 = vmatmul.mubr.f32.gmra.mxu0 %v6030
    %v6108 = vpop.f32.mrf.mxu0
    %v6109 = vadd.f32 %v6022, %v6108
    %v6110 = vpop.f32.mrf.mxu0
    %6111 = vdwg.mxu0
    %v6112 = vmul.f32 %v6099, 1.702
    %v6113 = vmul.f32 %v6104, 1.702
    %v6114 = vmul.f32 %v6109, 1.702
    %v6115 = vxor.u32 %v6112, 2147483648
    %v6116 = vxor.u32 %v6113, 2147483648
    %v6117 = vxor.u32 %v6114, 2147483648
    %v6118 = vmul.f32 %v6115, 1.442695
    %v6119 = vpow.pop %v6118
    %v6120 = vmul.f32 %v6116, 1.442695
    %v6121 = vpow.pop %v6120
    %v6122 = vmul.f32 %v6117, 1.442695
    %v6123 = vpow.pop %v6122
    %v6124 = vadd.f32 %v6119, 1.0
    %v6125 = vadd.f32 %v6121, 1.0
    %v6126 = vadd.f32 %v6123, 1.0
    %v6127 = vrcp.pop %v6124
    %v6128 = vmul.f32 1.0, %v6127
    %v6129 = vrcp.pop %v6125
    %v6130 = vmul.f32 1.0, %v6129
    %v6131 = vrcp.pop %v6126
    %v6132 = vmul.f32 1.0, %v6131
    %v6133 = vmul.f32 %v6099, %v6128
    %v6134 = vmul.f32 %v6104, %v6130
    %v6135 = vmul.f32 %v6109, %v6132
    %s6136 = scalar_lea.vmem %s65, 128
    %v6137 = vld [vmem:[%s6136] sm:$0xff]
    %v6138 = vld [vmem:[%s6136 + $0x8] sm:$0xff]
    %v6139 = vld [vmem:[%s6136 + $0x10] sm:$0xff]
    %v6140 = vld [vmem:[%s6136 + $0x18] sm:$0xff]
    %v6141 = vld [vmem:[%s6136 + $0x20] sm:$0xff]
    %v6142 = vld [vmem:[%s6136 + $0x28] sm:$0xff]
    %v6143 = vld [vmem:[%s6136 + $0x30] sm:$0xff]
    %v6144 = vld [vmem:[%s6136 + $0x38] sm:$0xff]
    %v6145 = vld [vmem:[%s6136 + $0x40] sm:$0xff]
    %v6146 = vld [vmem:[%s6136 + $0x48] sm:$0xff]
    %v6147 = vld [vmem:[%s6136 + $0x50] sm:$0xff]
    %v6148 = vld [vmem:[%s6136 + $0x58] sm:$0xff]
    %v6149 = vld [vmem:[%s6136 + $0x60] sm:$0xff]
    %v6150 = vld [vmem:[%s6136 + $0x68] sm:$0xff]
    %v6151 = vld [vmem:[%s6136 + $0x70] sm:$0xff]
    %v6152 = vld [vmem:[%s6136 + $0x78] sm:$0xff]
    %6153 = vmatprep.subr.mxu0 0.0
    %6154 = vmatpush1.msra.mxu0 %v6152
    %6155 = vmatprep.subr.mxu0 0.0
    %6156 = vmatpush1.msra.mxu0 %v6151
    %6157 = vmatprep.subr.mxu0 0.0
    %6158 = vmatpush1.msra.mxu0 %v6150
    %6159 = vmatprep.subr.mxu0 0.0
    %6160 = vmatpush1.msra.mxu0 %v6149
    %6161 = vmatprep.subr.mxu0 0.0
    %6162 = vmatpush1.msra.mxu0 %v6148
    %6163 = vmatprep.subr.mxu0 0.0
    %6164 = vmatpush1.msra.mxu0 %v6147
    %6165 = vmatprep.subr.mxu0 0.0
    %6166 = vmatpush1.msra.mxu0 %v6146
    %6167 = vmatprep.subr.mxu0 0.0
    %6168 = vmatpush1.msra.mxu0 %v6145
    %6169 = vmatprep.subr.mxu0 0.0
    %6170 = vmatpush1.msra.mxu0 %v6144
    %6171 = vmatprep.subr.mxu0 0.0
    %6172 = vmatpush1.msra.mxu0 %v6143
    %6173 = vmatprep.subr.mxu0 0.0
    %6174 = vmatpush1.msra.mxu0 %v6142
    %6175 = vmatprep.subr.mxu0 0.0
    %6176 = vmatpush1.msra.mxu0 %v6141
    %6177 = vmatprep.subr.mxu0 0.0
    %6178 = vmatpush1.msra.mxu0 %v6140
    %6179 = vmatprep.subr.mxu0 0.0
    %6180 = vmatpush1.msra.mxu0 %v6139
    %6181 = vmatprep.subr.mxu0 0.0
    %6182 = vmatpush1.msra.mxu0 %v6138
    %6183 = vmatprep.subr.mxu0 0.0
    %6184 = vmatpush1.msra.mxu0 %v6137
    %6185 = vmatprep.subr.mxu0 0.0
    %6186 = vmatpush2.msra.mxu0 0.0
    %6187 = vmatprep.subr.mxu0 0.0
    %6188 = vmatpush2.msra.mxu0 0.0
    %6189 = vmatprep.subr.mxu0 0.0
    %6190 = vmatpush2.msra.mxu0 0.0
    %6191 = vmatprep.subr.mxu0 0.0
    %6192 = vmatpush2.msra.mxu0 0.0
    %6193 = vmatprep.subr.mxu0 0.0
    %6194 = vmatpush2.msra.mxu0 0.0
    %6195 = vmatprep.subr.mxu0 0.0
    %6196 = vmatpush2.msra.mxu0 0.0
    %6197 = vmatprep.subr.mxu0 0.0
    %6198 = vmatpush2.msra.mxu0 0.0
    %6199 = vmatprep.subr.mxu0 0.0
    %6200 = vmatpush2.msra.mxu0 0.0
    %6201 = vmatprep.subr.mxu0 0.0
    %6202 = vmatpush2.msra.mxu0 0.0
    %6203 = vmatprep.subr.mxu0 0.0
    %6204 = vmatpush2.msra.mxu0 0.0
    %6205 = vmatprep.subr.mxu0 0.0
    %6206 = vmatpush2.msra.mxu0 0.0
    %6207 = vmatprep.subr.mxu0 0.0
    %6208 = vmatpush2.msra.mxu0 0.0
    %6209 = vmatprep.subr.mxu0 0.0
    %6210 = vmatpush2.msra.mxu0 0.0
    %6211 = vmatprep.subr.mxu0 0.0
    %6212 = vmatpush2.msra.mxu0 0.0
    %6213 = vmatprep.subr.mxu0 0.0
    %6214 = vmatpush2.msra.mxu0 0.0
    %6215 = vmatprep.subr.mxu0 0.0
    %6216 = vmatpush2.msra.mxu0 0.0
    %6217 = vmatprep.mubr.f32.mxu0 0.0
    %6218 = vmatmul.mubr.f32.gmra.mxu0 %v6133
    %v6219 = vpop.f32.mrf.mxu0
    %v6220 = vadd.f32 0.0, %v6219
    %v6221 = vpop.f32.mrf.mxu0
    %6222 = vmatprep.mubr.f32.mxu0 0.0
    %6223 = vmatmul.mubr.f32.gmra.mxu0 %v6134
    %v6224 = vpop.f32.mrf.mxu0
    %v6225 = vadd.f32 0.0, %v6224
    %v6226 = vpop.f32.mrf.mxu0
    %6227 = vmatprep.mubr.f32.mxu0 0.0
    %6228 = vmatmul.mubr.f32.gmra.mxu0 %v6135
    %v6229 = vpop.f32.mrf.mxu0
    %v6230 = vadd.f32 0.0, %v6229
    %v6231 = vpop.f32.mrf.mxu0
    %6232 = vdwg.mxu0
    %v6233 = vadd.f32 %v5955, %v6220
    %v6234 = vadd.f32 %v5956, %v6225
    %v6235 = vadd.f32 %v5957, %v6230
    %v6236 = vld [vmem:[%s67 + $0x1] sm:$0x1]
    %v6237 = vlaneseq
    %v6238 = vshrl.u32 %v6237, 7
    %v6239 = vsub.s32 0, %v6238
    %v6240 = vrot.slane %v6236, %v6239
    %v6241 = vadd.f32 %v6233, %v6240
    %v6242 = vadd.f32 %v6234, %v6240
    %v6243 = vadd.f32 %v6235, %v6240
    %v6244 = vld [vmem:[%s69] sm:$0x1]
    %v6245 = vld [vmem:[%s71] sm:$0x1]
    %v6246 = vsel %vm283, %v6241, 0.0
    %6247 = vadd.xlane.f32.xlu0 %v6246
    %v6248 = vpop.xlane.xlu0 %6247
    %v6249 = vsel %vm283, %v6242, 0.0
    %6250 = vadd.xlane.f32.xlu0 %v6249
    %v6251 = vpop.xlane.xlu0 %6250
    %v6252 = vsel %vm283, %v6243, 0.0
    %6253 = vadd.xlane.f32.xlu0 %v6252
    %v6254 = vpop.xlane.xlu0 %6253
    %v6255 = vmul.f32 %v6248, %v291
    %v6256 = vmul.f32 %v6251, %v291
    %v6257 = vmul.f32 %v6254, %v291
    %v6258 = vsub.f32 %v6241, %v6255
    %v6259 = vsub.f32 %v6242, %v6256
    %v6260 = vsub.f32 %v6243, %v6257
    %v6261 = vmul.f32 %v6258, %v6258
    %v6262 = vmul.f32 %v6259, %v6259
    %v6263 = vmul.f32 %v6260, %v6260
    %v6264 = vsel %vm283, %v6261, 0.0
    %6265 = vadd.xlane.f32.xlu0 %v6264
    %v6266 = vpop.xlane.xlu0 %6265
    %v6267 = vsel %vm283, %v6262, 0.0
    %6268 = vadd.xlane.f32.xlu0 %v6267
    %v6269 = vpop.xlane.xlu0 %6268
    %v6270 = vsel %vm283, %v6263, 0.0
    %6271 = vadd.xlane.f32.xlu0 %v6270
    %v6272 = vpop.xlane.xlu0 %6271
    %v6273 = vmul.f32 %v6266, %v291
    %v6274 = vmul.f32 %v6269, %v291
    %v6275 = vmul.f32 %v6272, %v291
    %v6276 = vadd.f32 %v6273, 1e-05
    %v6277 = vadd.f32 %v6274, 1e-05
    %v6278 = vadd.f32 %v6275, 1e-05
    %v6279 = vrsqrt.pop %v6276
    %v6280 = vrsqrt.pop %v6277
    %v6281 = vrsqrt.pop %v6278
    %v6282 = vmul.f32 %v6258, %v6279
    %v6283 = vmul.f32 %v6259, %v6280
    %v6284 = vmul.f32 %v6260, %v6281
    %v6286 = vlaneseq
    %v6287 = vshrl.u32 %v6286, 7
    %v6288 = vsub.s32 0, %v6287
    %v6289 = vrot.slane %v6244, %v6288
    %v6291 = vmul.f32 %v6282, %v6289
    %v6292 = vmul.f32 %v6283, %v6289
    %v6293 = vmul.f32 %v6284, %v6289
    %v6295 = vlaneseq
    %v6296 = vshrl.u32 %v6295, 7
    %v6297 = vsub.s32 0, %v6296
    %v6298 = vrot.slane %v6245, %v6297
    %v6300 = vadd.f32 %v6291, %v6298
    %v6301 = vadd.f32 %v6292, %v6298
    %v6302 = vadd.f32 %v6293, %v6298
    %v6304 = vrot.slane %v6300, 7
    %v6307 = vrot.slane %v6301, 6
    %v6310 = vrot.slane %v6302, 5
    %v6312 = vsel %vm202, %v6304, %v6307
    %v6313 = vsel %vm361, %v6312, %v6310
    %v6314 = vld [vmem:[%s73] sm:$0xff]
    %v6315 = vld [vmem:[%s73 + $0x8] sm:$0xff]
    %v6316 = vld [vmem:[%s73 + $0x10] sm:$0xff]
    %v6317 = vld [vmem:[%s73 + $0x18] sm:$0xff]
    %v6319 = vsel %vm283, %v6313, 0
    %6321 = vmatprep.subr.mxu0 0.0
    %6322 = vmatpush1.msra.mxu0 0.0
    %6323 = vmatprep.subr.mxu0 0.0
    %6324 = vmatpush1.msra.mxu0 0.0
    %6325 = vmatprep.subr.mxu0 0.0
    %6326 = vmatpush1.msra.mxu0 0.0
    %6327 = vmatprep.subr.mxu0 0.0
    %6328 = vmatpush1.msra.mxu0 0.0
    %6329 = vmatprep.subr.mxu0 0.0
    %6330 = vmatpush1.msra.mxu0 0.0
    %6331 = vmatprep.subr.mxu0 0.0
    %6332 = vmatpush1.msra.mxu0 0.0
    %6333 = vmatprep.subr.mxu0 0.0
    %6334 = vmatpush1.msra.mxu0 0.0
    %6335 = vmatprep.subr.mxu0 0.0
    %6336 = vmatpush1.msra.mxu0 0.0
    %6337 = vmatprep.subr.mxu0 0.0
    %6338 = vmatpush1.msra.mxu0 0.0
    %6339 = vmatprep.subr.mxu0 0.0
    %6340 = vmatpush1.msra.mxu0 0.0
    %6341 = vmatprep.subr.mxu0 0.0
    %6342 = vmatpush1.msra.mxu0 0.0
    %6343 = vmatprep.subr.mxu0 0.0
    %6344 = vmatpush1.msra.mxu0 0.0
    %6345 = vmatprep.subr.mxu0 0.0
    %6346 = vmatpush1.msra.mxu0 %v6317
    %6347 = vmatprep.subr.mxu0 0.0
    %6348 = vmatpush1.msra.mxu0 %v6316
    %6349 = vmatprep.subr.mxu0 0.0
    %6350 = vmatpush1.msra.mxu0 %v6315
    %6351 = vmatprep.subr.mxu0 0.0
    %6352 = vmatpush1.msra.mxu0 %v6314
    %6353 = vmatprep.subr.mxu0 0.0
    %6354 = vmatpush2.msra.mxu0 0.0
    %6355 = vmatprep.subr.mxu0 0.0
    %6356 = vmatpush2.msra.mxu0 0.0
    %6357 = vmatprep.subr.mxu0 0.0
    %6358 = vmatpush2.msra.mxu0 0.0
    %6359 = vmatprep.subr.mxu0 0.0
    %6360 = vmatpush2.msra.mxu0 0.0
    %6361 = vmatprep.subr.mxu0 0.0
    %6362 = vmatpush2.msra.mxu0 0.0
    %6363 = vmatprep.subr.mxu0 0.0
    %6364 = vmatpush2.msra.mxu0 0.0
    %6365 = vmatprep.subr.mxu0 0.0
    %6366 = vmatpush2.msra.mxu0 0.0
    %6367 = vmatprep.subr.mxu0 0.0
    %6368 = vmatpush2.msra.mxu0 0.0
    %6369 = vmatprep.subr.mxu0 0.0
    %6370 = vmatpush2.msra.mxu0 0.0
    %6371 = vmatprep.subr.mxu0 0.0
    %6372 = vmatpush2.msra.mxu0 0.0
    %6373 = vmatprep.subr.mxu0 0.0
    %6374 = vmatpush2.msra.mxu0 0.0
    %6375 = vmatprep.subr.mxu0 0.0
    %6376 = vmatpush2.msra.mxu0 0.0
    %6377 = vmatprep.subr.mxu0 0.0
    %6378 = vmatpush2.msra.mxu0 0.0
    %6379 = vmatprep.subr.mxu0 0.0
    %6380 = vmatpush2.msra.mxu0 0.0
    %6381 = vmatprep.subr.mxu0 0.0
    %6382 = vmatpush2.msra.mxu0 0.0
    %6383 = vmatprep.subr.mxu0 0.0
    %6384 = vmatpush2.msra.mxu0 0.0
    %6385 = vmatprep.mubr.f32.mxu0 0.0
    %6386 = vmatmul.mubr.f32.gmra.mxu0 %v6319
    %v6387 = vpop.f32.mrf.mxu0
    %v6388 = vadd.f32 0.0, %v6387
    %v6389 = vpop.f32.mrf.mxu0
    %6390 = vdwg.mxu0
    %v6391 = vmul.f32 %v3102, %v3102
    %v6392 = vsel %vm287, %v6391, 0.0
    %6393 = vadd.xlane.f32.xlu0 %v6392
    %v6394 = vpop.xlane.xlu0 %6393
    %v6395 = vmax.f32 %v6394, 1e-12
    %v6396 = vrsqrt.pop %v6395
    %v6397 = vmul.f32 %v3102, %v6396
    %v6398 = vmul.f32 %v6388, %v6388
    %vm6399 = vcmask 256000
    %v6400 = vsel %vm6399, %v6398, 0.0
    %6401 = vadd.xlane.f32.xlu0 %v6400
    %v6402 = vpop.xlane.xlu0 %6401
    %v6403 = vmax.f32 %v6402, 1e-12
    %v6404 = vrsqrt.pop %v6403
    %v6405 = vmul.f32 %v6388, %v6404
    %s6406 = sld [smem:[#allocation2]]
    %v6408 = vsel %vm283, %v6397, 0
    %v6411 = vsel %vm283, %v6405, 0
    %6413 = vmatprep.subr.mxu0 0.0
    %6414 = vmatpush1.xpose.msra.mxu0 0.0
    %6415 = vmatprep.subr.mxu0 0.0
    %6416 = vmatpush1.xpose.msra.mxu0 0.0
    %6417 = vmatprep.subr.mxu0 0.0
    %6418 = vmatpush1.xpose.msra.mxu0 0.0
    %6419 = vmatprep.subr.mxu0 0.0
    %6420 = vmatpush1.xpose.msra.mxu0 0.0
    %6421 = vmatprep.subr.mxu0 0.0
    %6422 = vmatpush1.xpose.msra.mxu0 0.0
    %6423 = vmatprep.subr.mxu0 0.0
    %6424 = vmatpush1.xpose.msra.mxu0 0.0
    %6425 = vmatprep.subr.mxu0 0.0
    %6426 = vmatpush1.xpose.msra.mxu0 0.0
    %6427 = vmatprep.subr.mxu0 0.0
    %6428 = vmatpush1.xpose.msra.mxu0 0.0
    %6429 = vmatprep.subr.mxu0 0.0
    %6430 = vmatpush1.xpose.msra.mxu0 0.0
    %6431 = vmatprep.subr.mxu0 0.0
    %6432 = vmatpush1.xpose.msra.mxu0 0.0
    %6433 = vmatprep.subr.mxu0 0.0
    %6434 = vmatpush1.xpose.msra.mxu0 0.0
    %6435 = vmatprep.subr.mxu0 0.0
    %6436 = vmatpush1.xpose.msra.mxu0 0.0
    %6437 = vmatprep.subr.mxu0 0.0
    %6438 = vmatpush1.xpose.msra.mxu0 0.0
    %6439 = vmatprep.subr.mxu0 0.0
    %6440 = vmatpush1.xpose.msra.mxu0 0.0
    %6441 = vmatprep.subr.mxu0 0.0
    %6442 = vmatpush1.xpose.msra.mxu0 0.0
    %6443 = vmatprep.subr.mxu0 0.0
    %6444 = vmatpush1.xpose.msra.mxu0 %v6411
    %6445 = vmatprep.subr.mxu0 0.0
    %6446 = vmatpush2.xpose.msra.mxu0 0.0
    %6447 = vmatprep.subr.mxu0 0.0
    %6448 = vmatpush2.xpose.msra.mxu0 0.0
    %6449 = vmatprep.subr.mxu0 0.0
    %6450 = vmatpush2.xpose.msra.mxu0 0.0
    %6451 = vmatprep.subr.mxu0 0.0
    %6452 = vmatpush2.xpose.msra.mxu0 0.0
    %6453 = vmatprep.subr.mxu0 0.0
    %6454 = vmatpush2.xpose.msra.mxu0 0.0
    %6455 = vmatprep.subr.mxu0 0.0
    %6456 = vmatpush2.xpose.msra.mxu0 0.0
    %6457 = vmatprep.subr.mxu0 0.0
    %6458 = vmatpush2.xpose.msra.mxu0 0.0
    %6459 = vmatprep.subr.mxu0 0.0
    %6460 = vmatpush2.xpose.msra.mxu0 0.0
    %6461 = vmatprep.subr.mxu0 0.0
    %6462 = vmatpush2.xpose.msra.mxu0 0.0
    %6463 = vmatprep.subr.mxu0 0.0
    %6464 = vmatpush2.xpose.msra.mxu0 0.0
    %6465 = vmatprep.subr.mxu0 0.0
    %6466 = vmatpush2.xpose.msra.mxu0 0.0
    %6467 = vmatprep.subr.mxu0 0.0
    %6468 = vmatpush2.xpose.msra.mxu0 0.0
    %6469 = vmatprep.subr.mxu0 0.0
    %6470 = vmatpush2.xpose.msra.mxu0 0.0
    %6471 = vmatprep.subr.mxu0 0.0
    %6472 = vmatpush2.xpose.msra.mxu0 0.0
    %6473 = vmatprep.subr.mxu0 0.0
    %6474 = vmatpush2.xpose.msra.mxu0 0.0
    %6475 = vmatprep.subr.mxu0 0.0
    %6476 = vmatpush2.xpose.msra.mxu0 0.0
    %6477 = vmatprep.mubr.f32.mxu0 0.0
    %6478 = vmatmul.mubr.f32.gmra.mxu0 %v6408
    %v6479 = vpop.f32.mrf.mxu0
    %v6480 = vadd.f32 0.0, %v6479
    %v6481 = vpop.f32.mrf.mxu0
    %6482 = vdwg.mxu0
    %v6483 = vstv %s6406
    %v6484 = vmul.f32 %v6483, %v6480
    %vm6485 = vcmask 17408
    %6486 = vst.msk [vmem:[#allocation3] sm:$0x3] %vm6485, %v6484
    // Predicated region
    $region154: #{custom_clip_forward.1} parent=1 // pred_check
      _
    $region155: #{custom_clip_forward.1} parent=1 // pred_check_branch
      %6488 = sbr.rel (0) target = $region157
    $region156: #{custom_clip_forward.1} parent=1 // pred_region
      %s6490 = ssub.s32 32, 32
      %6491 = vsyncadd [#allocation4], %s6490
      %s6493 = sshll.u32 [#allocation3], 4
      %s6494 = int_to_ptr.vmem [resolvable:$true] %s6493
      %6496 = dma.vmem_to_hbm [thread:$0]  %s6494, 32, %s77, [#allocation4]
    $region157: #{custom_clip_forward.1} parent=1 // pred_fallthru
      _
    // Predicated region
    $region158: #{custom_clip_forward.1} parent=1 // pred_check
      _
    $region159: #{custom_clip_forward.1} parent=1 // pred_check_branch
      %6498 = sbr.rel (0) target = $region161
    $region160: #{custom_clip_forward.1} parent=1 // pred_region
      %6499 = dma.done [#allocation4], 32
    $region161: #{custom_clip_forward.1} parent=1 // pred_fallthru
      _
    %6500 = vsyncpa [#allocation4], 1

</llo_original>
